<compile_context>
chip_gen: v7x
topology: tpu7x:2x2x1
jax: 0.10.0
libtpu: 0.0.40
codegen_flags: <defaults>
</compile_context>

<pallas_src>
import jax
import jax.numpy as jnp
from jax.experimental import pallas as pl
from jax.experimental.pallas import tpu as pltpu


# ----------------------------------------------------------------------------
# Kernel 1: fused per-(batch, head) QKV projection + softmax attention
# ----------------------------------------------------------------------------
def attn_head_kernel(x_ref, wq_ref, wk_ref, wv_ref, w_ref, o_ref):
    # x_ref : (1, C, S)    channel-major input slab for this batch
    # wq_ref: (1, C, d_k)  query weights for this head (query_scale folded in)
    # wk_ref: (1, d_k, C)  key weights for this head
    # wv_ref: (1, C, d_k)  value weights for this head
    # w_ref : (1, 1, S, S) softmax attention weights (module output)
    # o_ref : (1, d_k, S)  per-head attention output, channel-major
    xb = x_ref[0]                                                   # (C, S)
    xbt = xb.T                                                      # (S, C) cheap transpose
    q = jnp.dot(xbt, wq_ref[0], preferred_element_type=jnp.float32)  # (S, d_k)
    k = jnp.dot(wk_ref[0], xb, preferred_element_type=jnp.float32)   # (d_k, S)
    v = jnp.dot(xbt, wv_ref[0], preferred_element_type=jnp.float32)  # (S, d_k)

    logits = jnp.dot(q, k, preferred_element_type=jnp.float32)       # (S, S)
    m = jnp.max(logits, axis=-1, keepdims=True)
    e = jnp.exp(logits - m)
    att = e * (1.0 / jnp.sum(e, axis=-1, keepdims=True))             # exact softmax
    w_ref[0, 0] = att

    out = jnp.dot(att, v, preferred_element_type=jnp.float32)        # (S, d_k)
    o_ref[0] = out.T                                                 # (d_k, S)


# ----------------------------------------------------------------------------
# Kernel 2: output 1x1x1 conv + per-batch BatchNorm partial sums
# ----------------------------------------------------------------------------
def out_proj_kernel(a_ref, wo_ref, y_ref, st_ref):
    # a_ref : (1, HK, S)  merged heads, channel-major
    # wo_ref: (C, HK)     output_conv weight
    # y_ref : (1, C, S)   pre-BN output
    # st_ref: (1, C, 2)   per-batch [sum, sum of squares] over S, per channel
    y = jnp.dot(wo_ref[...], a_ref[0], preferred_element_type=jnp.float32)  # (C, S)
    y_ref[0] = y
    s1 = jnp.sum(y, axis=1, keepdims=True)        # (C, 1)
    s2 = jnp.sum(y * y, axis=1, keepdims=True)    # (C, 1)
    st_ref[0] = jnp.concatenate([s1, s2], axis=1)  # (C, 2)


# ----------------------------------------------------------------------------
# Kernel 3: BatchNorm (precomputed scale/shift, gamma folded) + residual + ReLU
# ----------------------------------------------------------------------------
def bn_res_relu_kernel(y_ref, x_ref, sc_ref, sh_ref, o_ref):
    # y_ref, x_ref, o_ref: (1, C, S);  sc_ref, sh_ref: (C, 1) per-channel affine
    o_ref[0] = jnp.maximum(y_ref[0] * sc_ref[...] + sh_ref[...] + x_ref[0], 0.0)


# ----------------------------------------------------------------------------
# Forward pass (matches Multi_Heads_Self_Attn.forward)
# ----------------------------------------------------------------------------
def forward(x_ncdhw, params):
    B, C, W, H, D = x_ncdhw.shape
    S = W * H * D
    n_heads, _, d_k = params["wq"].shape
    HK = n_heads * d_k

    x_cm = x_ncdhw.reshape(B, C, S).astype(jnp.float32)   # NCDHW flatten == channel-major

    # query_scale = (total_key_depth // num_heads) ** -0.5, folded into the
    # tiny per-head query weights (one-time, weight-sized op).
    q_scale = float(S // n_heads) ** -0.5
    wq_scaled = params["wq"] * q_scale

    # --- fused QKV projection + attention: one grid point per (batch, head) --
    attn_w, attn_cm = pl.pallas_call(
        attn_head_kernel,
        out_shape=(jax.ShapeDtypeStruct((B, n_heads, S, S), jnp.float32),
                   jax.ShapeDtypeStruct((B, HK, S), jnp.float32)),
        grid=(B, n_heads),
        in_specs=[
            pl.BlockSpec((1, C, S), lambda b, h: (b, 0, 0)),
            pl.BlockSpec((1, C, d_k), lambda b, h: (h, 0, 0)),
            pl.BlockSpec((1, d_k, C), lambda b, h: (h, 0, 0)),
            pl.BlockSpec((1, C, d_k), lambda b, h: (h, 0, 0)),
        ],
        out_specs=(pl.BlockSpec((1, 1, S, S), lambda b, h: (b, h, 0, 0)),
                   pl.BlockSpec((1, d_k, S), lambda b, h: (b, h, 0))),
        compiler_params=pltpu.CompilerParams(
            dimension_semantics=("parallel", "parallel")),
    )(x_cm, wq_scaled, params["wk"], params["wv"])

    # --- output projection + per-batch BN partial sums -----------------------
    y_cm, stats = pl.pallas_call(
        out_proj_kernel,
        out_shape=(jax.ShapeDtypeStruct((B, C, S), jnp.float32),
                   jax.ShapeDtypeStruct((B, C, 2), jnp.float32)),
        grid=(B,),
        in_specs=[
            pl.BlockSpec((1, HK, S), lambda b: (b, 0, 0)),
            pl.BlockSpec((C, HK), lambda b: (0, 0)),
        ],
        out_specs=(pl.BlockSpec((1, C, S), lambda b: (b, 0, 0)),
                   pl.BlockSpec((1, C, 2), lambda b: (b, 0, 0))),
        compiler_params=pltpu.CompilerParams(dimension_semantics=("parallel",)),
    )(attn_cm, params["wo"])

    # --- BatchNorm3d, training-mode batch statistics (tiny (B,C,2) reduce) ---
    # TODO(synk): running-mean/var buffer updates (a training side effect) are
    # not modelled; they do not affect this forward output.
    tot = jnp.sum(stats, axis=0)                       # (C, 2)
    n = float(B * S)
    mean = tot[:, 0] / n
    var = tot[:, 1] / n - mean * mean                  # biased variance, as BN uses
    inv = jax.lax.rsqrt(var + 1e-5)
    bn_scale = params["bn_gamma"] * inv
    bn_shift = params["bn_beta"] - mean * bn_scale
    # fold the scalar residual gate `gamma` into the per-channel affine
    scale2 = (params["gamma"] * bn_scale).reshape(C, 1)
    shift2 = (params["gamma"] * bn_shift).reshape(C, 1)

    # --- BN + residual + ReLU epilogue ---------------------------------------
    out_cm = pl.pallas_call(
        bn_res_relu_kernel,
        out_shape=jax.ShapeDtypeStruct((B, C, S), jnp.float32),
        grid=(B,),
        in_specs=[
            pl.BlockSpec((1, C, S), lambda b: (b, 0, 0)),
            pl.BlockSpec((1, C, S), lambda b: (b, 0, 0)),
            pl.BlockSpec((C, 1), lambda b: (0, 0)),
            pl.BlockSpec((C, 1), lambda b: (0, 0)),
        ],
        out_specs=pl.BlockSpec((1, C, S), lambda b: (b, 0, 0)),
        compiler_params=pltpu.CompilerParams(dimension_semantics=("parallel",)),
    )(y_cm, x_cm, scale2, shift2)

    out = out_cm.reshape(B, C, W, H, D)                # already NCDHW: no transpose
    return out, attn_w, params["gamma"]


# ----------------------------------------------------------------------------
# Parameter init (shapes mirror the PyTorch module; weights packed per head)
# ----------------------------------------------------------------------------
def init_params(key, n_featuremap, n_heads=4, d_k=16):
    HK = n_heads * d_k
    ks = jax.random.split(key, 4)
    rnd = lambda k, s: 0.2 * jax.random.normal(k, s, jnp.float32)

    # PyTorch Conv3d(kernel=1, bias=False) weights flattened to matrices.
    # Out-channel j of q/k/v maps to head h = j // d_k, depth d = j % d_k.
    wq = rnd(ks[0], (HK, n_featuremap))
    wk = rnd(ks[1], (HK, n_featuremap))
    wv = rnd(ks[2], (HK, n_featuremap))
    wo = rnd(ks[3], (n_featuremap, HK))

    return dict(
        wq=wq.reshape(n_heads, d_k, n_featuremap).transpose(0, 2, 1),  # (H, C, d_k)
        wk=wk.reshape(n_heads, d_k, n_featuremap),                     # (H, d_k, C)
        wv=wv.reshape(n_heads, d_k, n_featuremap).transpose(0, 2, 1),  # (H, C, d_k)
        wo=wo,                                                         # (C, HK)
        bn_gamma=jnp.ones((n_featuremap,), jnp.float32),
        bn_beta=jnp.zeros((n_featuremap,), jnp.float32),
        # PyTorch inits gamma to zero (output == relu(x)); a nonzero value is
        # used here so the attention path is actually exercised — the forward
        # semantics are identical for any gamma value.
        gamma=jnp.full((1,), 0.5, jnp.float32),
    )


# ----------------------------------------------------------------------------
# Pure-JAX reference (for the numerical check)
# ----------------------------------------------------------------------------
def reference_forward(x_ncdhw, params):
    B, C, W, H, D = x_ncdhw.shape
    S = W * H * D
    n_heads, _, d_k = params["wq"].shape
    hp = jax.lax.Precision.HIGHEST
    x2 = x_ncdhw.reshape(B, C, S).astype(jnp.float32)
    scale = float(S // n_heads) ** -0.5
    q = jnp.einsum("hcd,bcs->bhsd", params["wq"], x2, precision=hp) * scale
    k = jnp.einsum("hdc,bct->bhtd", params["wk"], x2, precision=hp)
    v = jnp.einsum("hcd,bct->bhtd", params["wv"], x2, precision=hp)
    logits = jnp.einsum("bhsd,bhtd->bhst", q, k, precision=hp)
    w = jax.nn.softmax(logits, axis=-1)
    o = jnp.einsum("bhst,bhtd->bhsd", w, v, precision=hp)
    o_cm = jnp.transpose(o, (0, 1, 3, 2)).reshape(B, n_heads * d_k, S)
    y = jnp.einsum("cj,bjs->bcs", params["wo"], o_cm, precision=hp)
    mean = jnp.mean(y, axis=(0, 2), keepdims=True)
    var = jnp.mean((y - mean) ** 2, axis=(0, 2), keepdims=True)
    ybn = (y - mean) * jax.lax.rsqrt(var + 1e-5)
    ybn = ybn * params["bn_gamma"][None, :, None] + params["bn_beta"][None, :, None]
    out = jnp.maximum(params["gamma"][0] * ybn + x2, 0.0)
    return out.reshape(B, C, W, H, D), w


if __name__ == "__main__":
    B, C_FEAT, N_HEADS, D_K = 2, 8, 4, 16     # PyTorch defaults: n_heads=4, d_k=16
    W = H = D = 8                             # S = 512 attention tokens

    key = jax.random.PRNGKey(0)
    k_par, k_x = jax.random.split(key)
    params = init_params(k_par, C_FEAT, N_HEADS, D_K)
    x = jax.random.normal(k_x, (B, C_FEAT, W, H, D), jnp.float32)

    out, attn_w, gamma = jax.jit(forward)(x, params)
    out = jax.block_until_ready(out)

    S = W * H * D
    assert out.shape == (B, C_FEAT, W, H, D)
    assert attn_w.shape == (B, N_HEADS, S, S)
    assert gamma.shape == (1,)
    assert bool(jnp.all(jnp.isfinite(out)))
    assert bool(jnp.all(jnp.isfinite(attn_w)))
    # softmax rows sum to 1
    assert bool(jnp.allclose(jnp.sum(attn_w, axis=-1), 1.0, atol=1e-4))

    # numerical check against the pure-JAX reference
    ref_out, ref_w = reference_forward(x, params)
    assert bool(jnp.allclose(out, ref_out, atol=1e-2, rtol=1e-2))
    assert bool(jnp.allclose(attn_w, ref_w, atol=1e-3, rtol=1e-2))

    print("KERNEL_OK")
</pallas_src>

<mosaic_0001>
module attributes {stable_mosaic.version = 11 : i64} {
  func.func @attn_head_kernel(%arg0: i32, %arg1: i32, %arg2: memref<1x8x512xf32, #tpu.memory_space<vmem>>, %arg3: memref<1x8x16xf32, #tpu.memory_space<vmem>>, %arg4: memref<1x16x8xf32, #tpu.memory_space<vmem>>, %arg5: memref<1x8x16xf32, #tpu.memory_space<vmem>>, %arg6: memref<1x1x512x512xf32, #tpu.memory_space<vmem>>, %arg7: memref<1x16x512xf32, #tpu.memory_space<vmem>>) attributes {dimension_semantics = [#tpu.dimension_semantics<parallel>, #tpu.dimension_semantics<parallel>], iteration_bounds = array<i64: 2, 4>, scalar_prefetch = 0 : i64, scratch_operands = 0 : i64, tpu.core_type = #tpu.core_type<tc>, window_params = [{transform_indices = @transform_0, window_bounds = array<i64: 1, 8, 512>}, {transform_indices = @transform_1, window_bounds = array<i64: 1, 8, 16>}, {transform_indices = @transform_2, window_bounds = array<i64: 1, 16, 8>}, {transform_indices = @transform_3, window_bounds = array<i64: 1, 8, 16>}, {transform_indices = @transform_4, window_bounds = array<i64: 1, 1, 512, 512>}, {transform_indices = @transform_5, window_bounds = array<i64: 1, 16, 512>}]} {
    %c0 = arith.constant 0 : index
    %c0_0 = arith.constant 0 : index
    %c0_1 = arith.constant 0 : index
    %0 = vector.load %arg2[%c0, %c0_0, %c0_1] : memref<1x8x512xf32, #tpu.memory_space<vmem>>, vector<1x8x512xf32>
    %1 = vector.shape_cast %0 : vector<1x8x512xf32> to vector<8x512xf32>
    %2 = tpu.transpose %1, [1, 0] : vector<8x512xf32> -> vector<512x8xf32>
    %c0_2 = arith.constant 0 : index
    %c0_3 = arith.constant 0 : index
    %c0_4 = arith.constant 0 : index
    %3 = vector.load %arg3[%c0_2, %c0_3, %c0_4] : memref<1x8x16xf32, #tpu.memory_space<vmem>>, vector<1x8x16xf32>
    %4 = vector.shape_cast %3 : vector<1x8x16xf32> to vector<8x16xf32>
    %cst = arith.constant dense<0.000000e+00> : vector<512x16xf32>
    %5 = tpu.matmul %2, %4, %cst {dimension_numbers = #tpu.dot_dimension_numbers<[1], [0], [0], [1], [0, 0, 1, 1], [], []>} : vector<512x8xf32>, vector<8x16xf32>, vector<512x16xf32> -> vector<512x16xf32>
    %c0_5 = arith.constant 0 : index
    %c0_6 = arith.constant 0 : index
    %c0_7 = arith.constant 0 : index
    %6 = vector.load %arg4[%c0_5, %c0_6, %c0_7] : memref<1x16x8xf32, #tpu.memory_space<vmem>>, vector<1x16x8xf32>
    %7 = vector.shape_cast %6 : vector<1x16x8xf32> to vector<16x8xf32>
    %cst_8 = arith.constant dense<0.000000e+00> : vector<16x512xf32>
    %8 = tpu.matmul %7, %1, %cst_8 {dimension_numbers = #tpu.dot_dimension_numbers<[1], [0], [0], [1], [0, 0, 1, 1], [], []>} : vector<16x8xf32>, vector<8x512xf32>, vector<16x512xf32> -> vector<16x512xf32>
    %c0_9 = arith.constant 0 : index
    %c0_10 = arith.constant 0 : index
    %c0_11 = arith.constant 0 : index
    %9 = vector.load %arg5[%c0_9, %c0_10, %c0_11] : memref<1x8x16xf32, #tpu.memory_space<vmem>>, vector<1x8x16xf32>
    %10 = vector.shape_cast %9 : vector<1x8x16xf32> to vector<8x16xf32>
    %cst_12 = arith.constant dense<0.000000e+00> : vector<512x16xf32>
    %11 = tpu.matmul %2, %10, %cst_12 {dimension_numbers = #tpu.dot_dimension_numbers<[1], [0], [0], [1], [0, 0, 1, 1], [], []>} : vector<512x8xf32>, vector<8x16xf32>, vector<512x16xf32> -> vector<512x16xf32>
    %cst_13 = arith.constant dense<0.000000e+00> : vector<512x512xf32>
    %12 = tpu.matmul %5, %8, %cst_13 {dimension_numbers = #tpu.dot_dimension_numbers<[1], [0], [0], [1], [0, 0, 1, 1], [], []>} : vector<512x16xf32>, vector<16x512xf32>, vector<512x512xf32> -> vector<512x512xf32>
    %cst_14 = arith.constant dense<0xFF800000> : vector<512xf32>
    %13 = vector.multi_reduction <maximumf>, %12, %cst_14 [1] : vector<512x512xf32> to vector<512xf32>
    %14 = vector.shape_cast %13 : vector<512xf32> to vector<512x1xf32>
    %15 = vector.broadcast %14 : vector<512x1xf32> to vector<512x512xf32>
    %16 = arith.subf %12, %15 : vector<512x512xf32>
    %17 = math.exp %16 : vector<512x512xf32>
    %cst_15 = arith.constant dense<0.000000e+00> : vector<512xf32>
    %18 = vector.multi_reduction <add>, %17, %cst_15 [1] : vector<512x512xf32> to vector<512xf32>
    %19 = vector.shape_cast %18 : vector<512xf32> to vector<512x1xf32>
    %cst_16 = arith.constant 1.000000e+00 : f32
    %20 = vector.broadcast %cst_16 : f32 to vector<512x1xf32>
    %21 = arith.divf %20, %19 : vector<512x1xf32>
    %22 = vector.broadcast %21 : vector<512x1xf32> to vector<512x512xf32>
    %23 = arith.mulf %17, %22 : vector<512x512xf32>
    %c0_17 = arith.constant 0 : index
    %c0_18 = arith.constant 0 : index
    %c0_19 = arith.constant 0 : index
    %c0_20 = arith.constant 0 : index
    %24 = vector.load %arg6[%c0_17, %c0_18, %c0_19, %c0_20] : memref<1x1x512x512xf32, #tpu.memory_space<vmem>>, vector<1x1x512x512xf32>
    %25 = vector.shape_cast %24 : vector<1x1x512x512xf32> to vector<512x512xf32>
    %26 = vector.shape_cast %23 : vector<512x512xf32> to vector<1x1x512x512xf32>
    tpu.vector_store %arg6[%c0_17, %c0_18, %c0_19, %c0_20], %26 {strides = array<i32>} : memref<1x1x512x512xf32, #tpu.memory_space<vmem>>, vector<1x1x512x512xf32>,
    %cst_21 = arith.constant dense<0.000000e+00> : vector<512x16xf32>
    %27 = tpu.matmul %23, %11, %cst_21 {dimension_numbers = #tpu.dot_dimension_numbers<[1], [0], [0], [1], [0, 0, 1, 1], [], []>} : vector<512x512xf32>, vector<512x16xf32>, vector<512x16xf32> -> vector<512x16xf32>
    %28 = tpu.transpose %27, [1, 0] : vector<512x16xf32> -> vector<16x512xf32>
    %c0_22 = arith.constant 0 : index
    %c0_23 = arith.constant 0 : index
    %c0_24 = arith.constant 0 : index
    %29 = vector.load %arg7[%c0_22, %c0_23, %c0_24] : memref<1x16x512xf32, #tpu.memory_space<vmem>>, vector<1x16x512xf32>
    %30 = vector.shape_cast %29 : vector<1x16x512xf32> to vector<16x512xf32>
    %31 = vector.shape_cast %28 : vector<16x512xf32> to vector<1x16x512xf32>
    tpu.vector_store %arg7[%c0_22, %c0_23, %c0_24], %31 {strides = array<i32>} : memref<1x16x512xf32, #tpu.memory_space<vmem>>, vector<1x16x512xf32>,
    return
  }
  func.func @transform_0(%arg0: i32, %arg1: i32) -> (i32, i32, i32) {
    %c0_i32 = arith.constant 0 : i32
    %c0_i32_0 = arith.constant 0 : i32
    %c0_i32_1 = arith.constant 0 : i32
    return %arg0, %c0_i32, %c0_i32_0 : i32, i32, i32
  }
  func.func @transform_1(%arg0: i32, %arg1: i32) -> (i32, i32, i32) {
    %c0_i32 = arith.constant 0 : i32
    %c0_i32_0 = arith.constant 0 : i32
    %c0_i32_1 = arith.constant 0 : i32
    return %arg1, %c0_i32, %c0_i32_0 : i32, i32, i32
  }
  func.func @transform_2(%arg0: i32, %arg1: i32) -> (i32, i32, i32) {
    %c0_i32 = arith.constant 0 : i32
    %c0_i32_0 = arith.constant 0 : i32
    %c0_i32_1 = arith.constant 0 : i32
    return %arg1, %c0_i32, %c0_i32_0 : i32, i32, i32
  }
  func.func @transform_3(%arg0: i32, %arg1: i32) -> (i32, i32, i32) {
    %c0_i32 = arith.constant 0 : i32
    %c0_i32_0 = arith.constant 0 : i32
    %c0_i32_1 = arith.constant 0 : i32
    return %arg1, %c0_i32, %c0_i32_0 : i32, i32, i32
  }
  func.func @transform_4(%arg0: i32, %arg1: i32) -> (i32, i32, i32, i32) {
    %c0_i32 = arith.constant 0 : i32
    %c0_i32_0 = arith.constant 0 : i32
    %c0_i32_1 = arith.constant 0 : i32
    return %arg0, %arg1, %c0_i32, %c0_i32_0 : i32, i32, i32, i32
  }
  func.func @transform_5(%arg0: i32, %arg1: i32) -> (i32, i32, i32) {
    %c0_i32 = arith.constant 0 : i32
    %c0_i32_0 = arith.constant 0 : i32
    return %arg0, %arg1, %c0_i32 : i32, i32, i32
  }
}

module attributes {stable_mosaic.version = 11 : i64} {
  func.func @out_proj_kernel(%arg0: i32, %arg1: memref<1x64x512xf32, #tpu.memory_space<vmem>>, %arg2: memref<8x64xf32, #tpu.memory_space<vmem>>, %arg3: memref<1x8x512xf32, #tpu.memory_space<vmem>>, %arg4: memref<1x8x2xf32, #tpu.memory_space<vmem>>) attributes {dimension_semantics = [#tpu.dimension_semantics<parallel>], iteration_bounds = array<i64: 2>, scalar_prefetch = 0 : i64, scratch_operands = 0 : i64, tpu.core_type = #tpu.core_type<tc>, window_params = [{transform_indices = @transform_0, window_bounds = array<i64: 1, 64, 512>}, {pipeline_mode = #tpu.pipeline_mode<synchronous>, transform_indices = @transform_1, window_bounds = array<i64: 8, 64>}, {transform_indices = @transform_2, window_bounds = array<i64: 1, 8, 512>}, {transform_indices = @transform_3, window_bounds = array<i64: 1, 8, 2>}]} {
    %c0 = arith.constant 0 : index
    %c0_0 = arith.constant 0 : index
    %0 = vector.load %arg2[%c0, %c0_0] : memref<8x64xf32, #tpu.memory_space<vmem>>, vector<8x64xf32>
    %c0_1 = arith.constant 0 : index
    %c0_2 = arith.constant 0 : index
    %c0_3 = arith.constant 0 : index
    %1 = vector.load %arg1[%c0_1, %c0_2, %c0_3] : memref<1x64x512xf32, #tpu.memory_space<vmem>>, vector<1x64x512xf32>
    %2 = vector.shape_cast %1 : vector<1x64x512xf32> to vector<64x512xf32>
    %cst = arith.constant dense<0.000000e+00> : vector<8x512xf32>
    %3 = tpu.matmul %0, %2, %cst {dimension_numbers = #tpu.dot_dimension_numbers<[1], [0], [0], [1], [0, 0, 1, 1], [], []>} : vector<8x64xf32>, vector<64x512xf32>, vector<8x512xf32> -> vector<8x512xf32>
    %c0_4 = arith.constant 0 : index
    %c0_5 = arith.constant 0 : index
    %c0_6 = arith.constant 0 : index
    %4 = vector.load %arg3[%c0_4, %c0_5, %c0_6] : memref<1x8x512xf32, #tpu.memory_space<vmem>>, vector<1x8x512xf32>
    %5 = vector.shape_cast %4 : vector<1x8x512xf32> to vector<8x512xf32>
    %6 = vector.shape_cast %3 : vector<8x512xf32> to vector<1x8x512xf32>
    tpu.vector_store %arg3[%c0_4, %c0_5, %c0_6], %6 {strides = array<i32>} : memref<1x8x512xf32, #tpu.memory_space<vmem>>, vector<1x8x512xf32>,
    %cst_7 = arith.constant dense<0.000000e+00> : vector<8xf32>
    %7 = vector.multi_reduction <add>, %3, %cst_7 [1] : vector<8x512xf32> to vector<8xf32>
    %8 = vector.shape_cast %7 : vector<8xf32> to vector<8x1xf32>
    %9 = arith.mulf %3, %3 : vector<8x512xf32>
    %cst_8 = arith.constant dense<0.000000e+00> : vector<8xf32>
    %10 = vector.multi_reduction <add>, %9, %cst_8 [1] : vector<8x512xf32> to vector<8xf32>
    %11 = vector.shape_cast %10 : vector<8xf32> to vector<8x1xf32>
    %12 = tpu.concatenate %8, %11 in 1 : vector<8x1xf32>, vector<8x1xf32> -> vector<8x2xf32>
    %c0_9 = arith.constant 0 : index
    %c0_10 = arith.constant 0 : index
    %c0_11 = arith.constant 0 : index
    %13 = vector.load %arg4[%c0_9, %c0_10, %c0_11] : memref<1x8x2xf32, #tpu.memory_space<vmem>>, vector<1x8x2xf32>
    %14 = vector.shape_cast %13 : vector<1x8x2xf32> to vector<8x2xf32>
    %15 = vector.shape_cast %12 : vector<8x2xf32> to vector<1x8x2xf32>
    tpu.vector_store %arg4[%c0_9, %c0_10, %c0_11], %15 {strides = array<i32>} : memref<1x8x2xf32, #tpu.memory_space<vmem>>, vector<1x8x2xf32>,
    return
  }
  func.func @transform_0(%arg0: i32) -> (i32, i32, i32) {
    %c0_i32 = arith.constant 0 : i32
    %c0_i32_0 = arith.constant 0 : i32
    %c0_i32_1 = arith.constant 0 : i32
    return %arg0, %c0_i32, %c0_i32_0 : i32, i32, i32
  }
  func.func @transform_1(%arg0: i32) -> (i32, i32) {
    %c0_i32 = arith.constant 0 : i32
    %c0_i32_0 = arith.constant 0 : i32
    %c0_i32_1 = arith.constant 0 : i32
    return %c0_i32, %c0_i32_0 : i32, i32
  }
  func.func @transform_2(%arg0: i32) -> (i32, i32, i32) {
    %c0_i32 = arith.constant 0 : i32
    %c0_i32_0 = arith.constant 0 : i32
    %c0_i32_1 = arith.constant 0 : i32
    return %arg0, %c0_i32, %c0_i32_0 : i32, i32, i32
  }
  func.func @transform_3(%arg0: i32) -> (i32, i32, i32) {
    %c0_i32 = arith.constant 0 : i32
    %c0_i32_0 = arith.constant 0 : i32
    %c0_i32_1 = arith.constant 0 : i32
    return %arg0, %c0_i32, %c0_i32_0 : i32, i32, i32
  }
}

module attributes {stable_mosaic.version = 11 : i64} {
  func.func @bn_res_relu_kernel(%arg0: i32, %arg1: memref<1x8x512xf32, #tpu.memory_space<vmem>>, %arg2: memref<1x8x512xf32, #tpu.memory_space<vmem>>, %arg3: memref<8x1xf32, #tpu.memory_space<vmem>>, %arg4: memref<8x1xf32, #tpu.memory_space<vmem>>, %arg5: memref<1x8x512xf32, #tpu.memory_space<vmem>>) attributes {dimension_semantics = [#tpu.dimension_semantics<parallel>], iteration_bounds = array<i64: 2>, scalar_prefetch = 0 : i64, scratch_operands = 0 : i64, tpu.core_type = #tpu.core_type<tc>, window_params = [{transform_indices = @transform_0, window_bounds = array<i64: 1, 8, 512>}, {transform_indices = @transform_1, window_bounds = array<i64: 1, 8, 512>}, {pipeline_mode = #tpu.pipeline_mode<synchronous>, transform_indices = @transform_2, window_bounds = array<i64: 8, 1>}, {pipeline_mode = #tpu.pipeline_mode<synchronous>, transform_indices = @transform_3, window_bounds = array<i64: 8, 1>}, {transform_indices = @transform_4, window_bounds = array<i64: 1, 8, 512>}]} {
    %c0 = arith.constant 0 : index
    %c0_0 = arith.constant 0 : index
    %c0_1 = arith.constant 0 : index
    %0 = vector.load %arg1[%c0, %c0_0, %c0_1] : memref<1x8x512xf32, #tpu.memory_space<vmem>>, vector<1x8x512xf32>
    %1 = vector.shape_cast %0 : vector<1x8x512xf32> to vector<8x512xf32>
    %c0_2 = arith.constant 0 : index
    %c0_3 = arith.constant 0 : index
    %2 = vector.load %arg3[%c0_2, %c0_3] : memref<8x1xf32, #tpu.memory_space<vmem>>, vector<8x1xf32>
    %3 = vector.broadcast %2 : vector<8x1xf32> to vector<8x512xf32>
    %4 = arith.mulf %1, %3 : vector<8x512xf32>
    %c0_4 = arith.constant 0 : index
    %c0_5 = arith.constant 0 : index
    %5 = vector.load %arg4[%c0_4, %c0_5] : memref<8x1xf32, #tpu.memory_space<vmem>>, vector<8x1xf32>
    %6 = vector.broadcast %5 : vector<8x1xf32> to vector<8x512xf32>
    %7 = arith.addf %4, %6 : vector<8x512xf32>
    %c0_6 = arith.constant 0 : index
    %c0_7 = arith.constant 0 : index
    %c0_8 = arith.constant 0 : index
    %8 = vector.load %arg2[%c0_6, %c0_7, %c0_8] : memref<1x8x512xf32, #tpu.memory_space<vmem>>, vector<1x8x512xf32>
    %9 = vector.shape_cast %8 : vector<1x8x512xf32> to vector<8x512xf32>
    %10 = arith.addf %7, %9 : vector<8x512xf32>
    %cst = arith.constant 0.000000e+00 : f32
    %11 = vector.broadcast %cst : f32 to vector<8x512xf32>
    %12 = arith.maximumf %10, %11 : vector<8x512xf32>
    %c0_9 = arith.constant 0 : index
    %c0_10 = arith.constant 0 : index
    %c0_11 = arith.constant 0 : index
    %13 = vector.load %arg5[%c0_9, %c0_10, %c0_11] : memref<1x8x512xf32, #tpu.memory_space<vmem>>, vector<1x8x512xf32>
    %14 = vector.shape_cast %13 : vector<1x8x512xf32> to vector<8x512xf32>
    %15 = vector.shape_cast %12 : vector<8x512xf32> to vector<1x8x512xf32>
    tpu.vector_store %arg5[%c0_9, %c0_10, %c0_11], %15 {strides = array<i32>} : memref<1x8x512xf32, #tpu.memory_space<vmem>>, vector<1x8x512xf32>,
    return
  }
  func.func @transform_0(%arg0: i32) -> (i32, i32, i32) {
    %c0_i32 = arith.constant 0 : i32
    %c0_i32_0 = arith.constant 0 : i32
    %c0_i32_1 = arith.constant 0 : i32
    return %arg0, %c0_i32, %c0_i32_0 : i32, i32, i32
  }
  func.func @transform_1(%arg0: i32) -> (i32, i32, i32) {
    %c0_i32 = arith.constant 0 : i32
    %c0_i32_0 = arith.constant 0 : i32
    %c0_i32_1 = arith.constant 0 : i32
    return %arg0, %c0_i32, %c0_i32_0 : i32, i32, i32
  }
  func.func @transform_2(%arg0: i32) -> (i32, i32) {
    %c0_i32 = arith.constant 0 : i32
    %c0_i32_0 = arith.constant 0 : i32
    %c0_i32_1 = arith.constant 0 : i32
    return %c0_i32, %c0_i32_0 : i32, i32
  }
  func.func @transform_3(%arg0: i32) -> (i32, i32) {
    %c0_i32 = arith.constant 0 : i32
    %c0_i32_0 = arith.constant 0 : i32
    %c0_i32_1 = arith.constant 0 : i32
    return %c0_i32, %c0_i32_0 : i32, i32
  }
  func.func @transform_4(%arg0: i32) -> (i32, i32, i32) {
    %c0_i32 = arith.constant 0 : i32
    %c0_i32_0 = arith.constant 0 : i32
    %c0_i32_1 = arith.constant 0 : i32
    return %arg0, %c0_i32, %c0_i32_0 : i32, i32, i32
  }
}

</mosaic_0001>

<llo_original>
// kernel: forward.4
$region0: #{forward.4}
  #allocation0 [shape = 'u32[]', space=smem, size = 0x4, offset = 0x4, fixed_abs, tag = 'smem constant byte address 0x4 - core index']
  #allocation1 [shape = 'u32[144,128]{1,0:T(1,128)}', space=vmem, size = 0x12000, scoped, tag = 'internal scratch']
  %s0 = inlined_call_operand.vmem [shape: f32[2,64,512], index: 0, kind: input, shape index: {}]
  %s1 = inlined_call_operand.hbm [shape: f32[8,64], index: 1, kind: input, shape index: {}]
  %s2 = inlined_call_operand.vmem [shape: f32[2,8,512], index: 2, kind: output, shape index: {0}]
  %s3 = inlined_call_operand.vmem [shape: f32[2,8,2], index: 3, kind: output, shape index: {1}]
  %4 = xla_tuple %s2, %s3
  %s5 = sld [smem:[#allocation0]]
  $region53: #{forward.4} parent=0
    _
  %s7 = ssub.s32 1, %s5
  %s8 = scalar_select 0, %s7, %s5
  $region1: #{forward.4} parent=0
    #allocation2 [shape = 'u8[4096]{0}', space=vmem, size = 0x1000, scoped, tag = 'input window, operand 1, single buffered']
    #allocation3 [shape = 's32[2]{0}', space=sflag, size = 0x8, scoped, tag = 'scoped memory for forward.4']
    %9 = vsyncpa [#allocation3], 0
    loop: start=0, step=1, limit=4
    $region2: #{forward.4} parent=1 // loop_pre_header
      _
    $region3: #{forward.4} parent=1 // loop_header
      %s11 = sphi 0, %s15
      %p12 = scmp.ge.s32.totalorder %s11, 4
      %s21 = sphi 0, %s23
      %s24 = sphi 0, %s21
      %s25 = sphi 0, %s24
      %s41 = sphi 0, %s25
      %s45 = sphi 0, %s45
      %s47 = sphi 0, %s45
      %s48 = sphi 0, %s47
      %s62 = sphi 0, %s48
      %s68 = sphi 0, %s70
      %s71 = sphi 0, %s68
      %s72 = sphi 0, %s71
      %s88 = sphi 0, %s72
      %s94 = sphi 0, %s96
      %s97 = sphi 0, %s94
      %s98 = sphi 0, %s97
      %s114 = sphi 0, %s98
    $region4: #{forward.4} parent=1 // loop_header_branch
      %14 = sbr.rel (%p12) target = $region8
    $region5: #{forward.4} parent=1 // loop_body
      %s16 = ssub.s32 %s11, 1
      %s17 = ssub.s32 %s11, 2
      %s18 = sadd.s32 %s11, 1
      %s19 = ssub.s32 %s11, %s18
      %p20 = scmp.eq.s32.totalorder %s19, 0
      %s22 = sadd.s32 %s21, 1
      %s23 = scalar_select %p20, %s21, %s22
      %p26 = pneg %p20
      %p27 = scmp.eq.s32.totalorder %s11, 1
      %p28 = por %p26, %p27
      %p29 = scmp.ne.s32.totalorder %s21, %s24
      %p30 = scmp.eq.s32.totalorder %s11, 0
      %p31 = por %p29, %p30
      %p32 = scmp.ne.s32.totalorder %s21, %s24
      %p33 = scmp.eq.s32.totalorder %s16, 1
      %p34 = por %p32, %p33
      %p35 = scmp.ne.s32.totalorder %s24, %s25
      %p36 = scmp.eq.s32.totalorder %s16, 0
      %p37 = por %p35, %p36
      %p38 = scmp.ne.s32.totalorder %s24, %s25
      %p39 = scmp.eq.s32.totalorder %s17, 1
      %p40 = por %p38, %p39
      %p42 = scmp.ne.s32.totalorder %s25, %s41
      %p43 = scmp.eq.s32.totalorder %s17, 0
      %p44 = por %p42, %p43
      %s46 = sadd.s32 %s45, 1
      %p49 = scmp.eq.s32.totalorder %s11, 1
      %p50 = scmp.ne.s32.totalorder %s45, %s47
      %p51 = scmp.eq.s32.totalorder %s11, 0
      %p52 = por %p50, %p51
      %p53 = scmp.ne.s32.totalorder %s45, %s47
      %p54 = scmp.eq.s32.totalorder %s16, 1
      %p55 = por %p53, %p54
      %p56 = scmp.ne.s32.totalorder %s47, %s48
      %p57 = scmp.eq.s32.totalorder %s16, 0
      %p58 = por %p56, %p57
      %p59 = scmp.ne.s32.totalorder %s47, %s48
      %p60 = scmp.eq.s32.totalorder %s17, 1
      %p61 = por %p59, %p60
      %p63 = scmp.ne.s32.totalorder %s48, %s62
      %p64 = scmp.eq.s32.totalorder %s17, 0
      %p65 = por %p63, %p64
      %s66 = ssub.s32 %s11, %s18
      %p67 = scmp.eq.s32.totalorder %s66, 0
      %s69 = sadd.s32 %s68, 1
      %s70 = scalar_select %p67, %s68, %s69
      %p73 = pneg %p67
      %p74 = scmp.eq.s32.totalorder %s11, 1
      %p75 = por %p73, %p74
      %p76 = scmp.ne.s32.totalorder %s68, %s71
      %p77 = scmp.eq.s32.totalorder %s11, 0
      %p78 = por %p76, %p77
      %p79 = scmp.ne.s32.totalorder %s68, %s71
      %p80 = scmp.eq.s32.totalorder %s16, 1
      %p81 = por %p79, %p80
      %p82 = scmp.ne.s32.totalorder %s71, %s72
      %p83 = scmp.eq.s32.totalorder %s16, 0
      %p84 = por %p82, %p83
      %p85 = scmp.ne.s32.totalorder %s71, %s72
      %p86 = scmp.eq.s32.totalorder %s17, 1
      %p87 = por %p85, %p86
      %p89 = scmp.ne.s32.totalorder %s72, %s88
      %p90 = scmp.eq.s32.totalorder %s17, 0
      %p91 = por %p89, %p90
      %s92 = ssub.s32 %s11, %s18
      %p93 = scmp.eq.s32.totalorder %s92, 0
      %s95 = sadd.s32 %s94, 1
      %s96 = scalar_select %p93, %s94, %s95
      %p99 = pneg %p93
      %p100 = scmp.eq.s32.totalorder %s11, 1
      %p101 = por %p99, %p100
      %p102 = scmp.ne.s32.totalorder %s94, %s97
      %p103 = scmp.eq.s32.totalorder %s11, 0
      %p104 = por %p102, %p103
      %p105 = scmp.ne.s32.totalorder %s94, %s97
      %p106 = scmp.eq.s32.totalorder %s16, 1
      %p107 = por %p105, %p106
      %p108 = scmp.ne.s32.totalorder %s97, %s98
      %p109 = scmp.eq.s32.totalorder %s16, 0
      %p110 = por %p108, %p109
      %p111 = scmp.ne.s32.totalorder %s97, %s98
      %p112 = scmp.eq.s32.totalorder %s17, 1
      %p113 = por %p111, %p112
      %p115 = scmp.ne.s32.totalorder %s98, %s114
      %p116 = scmp.eq.s32.totalorder %s17, 0
      %p117 = por %p115, %p116
      %p118 = scmp.le.s32.totalorder 1, %s11
      %p119 = scmp.lt.s32.totalorder %s11, 3
      %p120 = pnand %p118, %p119
      %p121 = pneg %p120
      // Predicated region
      $region9: #{forward.4} parent=5 // pred_check
        _
      $region10: #{forward.4} parent=5 // pred_check_branch
        %123 = sbr.rel (%p120) target = $region12
      $region11: #{forward.4} parent=5 // pred_region
        %s124 = ssub.s32 %s11, 1
        // Predicated region
        $region13: #{forward.4} parent=11 // pred_check
          %p125 = pneg %p58
        $region14: #{forward.4} parent=11 // pred_check_branch
          %127 = sbr.rel (%p125) target = $region16
        $region15: #{forward.4} parent=11 // pred_region
          %s129 = ssub.s32 128, 128
          %130 = vsyncadd [#allocation3], %s129
          %s132 = sshll.u32 [#allocation2], 4
          %s133 = int_to_ptr.vmem [resolvable:$true] %s132
          %135 = dma.hbm_to_vmem [thread:$0]  %s1, 128, %s133, [#allocation3]
        $region16: #{forward.4} parent=11 // pred_fallthru
          _
      $region12: #{forward.4} parent=5 // pred_fallthru
        _
      %p136 = scmp.lt.s32.totalorder %s11, 2
      // Predicated region
      $region17: #{forward.4} parent=5 // pred_check
        %p137 = pneg %p136
      $region18: #{forward.4} parent=5 // pred_check_branch
        %139 = sbr.rel (%p137) target = $region20
      $region19: #{forward.4} parent=5 // pred_region
        // Predicated region
        $region21: #{forward.4} parent=19 // pred_check
          %p140 = pneg %p31
        $region22: #{forward.4} parent=19 // pred_check_branch
          %142 = sbr.rel (%p140) target = $region24
        $region23: #{forward.4} parent=19 // pred_region
          %p143 = scmp.lt.s32.totalorder %s11, 1
          %s144 = scalar_select %p143, %s11, 1
          %s145 = smul.addr %s144, 32
          %s146 = smul.addr %s145, 8
          %s147 = scalar_lea.vmem %s0, %s146
        $region24: #{forward.4} parent=19 // pred_fallthru
          _
      $region20: #{forward.4} parent=5 // pred_fallthru
        _
      %p148 = scmp.le.s32.totalorder 1, %s11
      %p149 = scmp.lt.s32.totalorder %s11, 3
      %p150 = pnand %p148, %p149
      %p151 = pneg %p150
      // Predicated region
      $region25: #{forward.4} parent=5 // pred_check
        _
      $region26: #{forward.4} parent=5 // pred_check_branch
        %153 = sbr.rel (%p150) target = $region28
      $region27: #{forward.4} parent=5 // pred_region
        %s154 = ssub.s32 %s11, 1
        // Predicated region
        $region29: #{forward.4} parent=27 // pred_check
          %p155 = pneg %p58
        $region30: #{forward.4} parent=27 // pred_check_branch
          %157 = sbr.rel (%p155) target = $region32
        $region31: #{forward.4} parent=27 // pred_region
          %158 = dma.done [#allocation3], 128
        $region32: #{forward.4} parent=27 // pred_fallthru
          _
        %p159 = scmp.lt.s32.totalorder %s16, 1
        %s160 = scalar_select %p159, %s16, 1
        %s161 = smul.addr %s160, 32
        %s162 = smul.addr %s161, 8
        %s163 = scalar_lea.vmem %s0, %s162
        %p164 = pneg %p37
        %p165 = pneg %p34
        %p166 = pneg %p58
        %p167 = pneg %p55
        %p168 = pneg %p84
        %p169 = pneg %p81
        %p170 = scmp.lt.s32.totalorder %s16, 1
        %s171 = scalar_select %p170, %s16, 1
        %s172 = smul.addr %s171, 4
        %s173 = smul.addr %s172, 8
        %s174 = scalar_lea.vmem %s2, %s173
        %p175 = pneg %p110
        %p176 = pneg %p107
        %p177 = scmp.lt.s32.totalorder %s16, 1
        %s178 = scalar_select %p177, %s16, 1
        %s179 = smul.addr %s178, 8
        %s180 = scalar_lea.vmem %s3, %s179
        %p181 = scmp.lt.s32.totalorder %s16, 1
        %s182 = scalar_select %p181, %s16, 1
        %s183 = smul.addr %s182, 32
        %s184 = smul.addr %s183, 8
        %s185 = scalar_lea.vmem %s0, %s184
        %p186 = scmp.lt.s32.totalorder %s16, 1
        %s187 = scalar_select %p186, %s16, 1
        %s188 = smul.addr %s187, 4
        %s189 = smul.addr %s188, 8
        %s190 = scalar_lea.vmem %s2, %s189
        %p191 = scmp.lt.s32.totalorder %s16, 1
        %s192 = scalar_select %p191, %s16, 1
        %s193 = smul.addr %s192, 8
        %s194 = scalar_lea.vmem %s3, %s193
        %v195 = vld [vmem:[#allocation2] sm:$0xff]
        %v196 = vld [vmem:[%s185] sm:$0xff]
        %v197 = vld [vmem:[%s185 + $0x8] sm:$0xff]
        %v198 = vld [vmem:[%s185 + $0x10] sm:$0xff]
        %v199 = vld [vmem:[%s185 + $0x18] sm:$0xff]
        %v200 = vld [vmem:[%s185 + $0x20] sm:$0xff]
        %v201 = vld [vmem:[%s185 + $0x28] sm:$0xff]
        %v202 = vld [vmem:[%s185 + $0x30] sm:$0xff]
        %v203 = vld [vmem:[%s185 + $0x38] sm:$0xff]
        %v204 = vld [vmem:[%s185 + $0x40] sm:$0xff]
        %v205 = vld [vmem:[%s185 + $0x48] sm:$0xff]
        %v206 = vld [vmem:[%s185 + $0x50] sm:$0xff]
        %v207 = vld [vmem:[%s185 + $0x58] sm:$0xff]
        %v208 = vld [vmem:[%s185 + $0x60] sm:$0xff]
        %v209 = vld [vmem:[%s185 + $0x68] sm:$0xff]
        %v210 = vld [vmem:[%s185 + $0x70] sm:$0xff]
        %v211 = vld [vmem:[%s185 + $0x78] sm:$0xff]
        %v212 = vld [vmem:[%s185 + $0x80] sm:$0xff]
        %v213 = vld [vmem:[%s185 + $0x88] sm:$0xff]
        %v214 = vld [vmem:[%s185 + $0x90] sm:$0xff]
        %v215 = vld [vmem:[%s185 + $0x98] sm:$0xff]
        %v216 = vld [vmem:[%s185 + $0xa0] sm:$0xff]
        %v217 = vld [vmem:[%s185 + $0xa8] sm:$0xff]
        %v218 = vld [vmem:[%s185 + $0xb0] sm:$0xff]
        %v219 = vld [vmem:[%s185 + $0xb8] sm:$0xff]
        %v220 = vld [vmem:[%s185 + $0xc0] sm:$0xff]
        %v221 = vld [vmem:[%s185 + $0xc8] sm:$0xff]
        %v222 = vld [vmem:[%s185 + $0xd0] sm:$0xff]
        %v223 = vld [vmem:[%s185 + $0xd8] sm:$0xff]
        %v224 = vld [vmem:[%s185 + $0xe0] sm:$0xff]
        %v225 = vld [vmem:[%s185 + $0xe8] sm:$0xff]
        %v226 = vld [vmem:[%s185 + $0xf0] sm:$0xff]
        %v227 = vld [vmem:[%s185 + $0xf8] sm:$0xff]
        %vm228 = vcmask 523264
        %v230 = vsel %vm228, %v195, 0
        %232 = vmatprep.subr.mxu0 %v197
        %233 = vmatpush1.msra.mxu0 %v196
        %234 = vmatprep.subr.mxu0 %v201
        %235 = vmatpush1.msra.mxu0 %v200
        %236 = vmatprep.subr.mxu0 %v205
        %237 = vmatpush1.msra.mxu0 %v204
        %238 = vmatprep.subr.mxu0 %v209
        %239 = vmatpush1.msra.mxu0 %v208
        %240 = vmatprep.subr.mxu0 %v213
        %241 = vmatpush1.msra.mxu0 %v212
        %242 = vmatprep.subr.mxu0 %v217
        %243 = vmatpush1.msra.mxu0 %v216
        %244 = vmatprep.subr.mxu0 %v221
        %245 = vmatpush1.msra.mxu0 %v220
        %246 = vmatprep.subr.mxu0 %v225
        %247 = vmatpush1.msra.mxu0 %v224
        %248 = vmatprep.subr.mxu0 0.0
        %249 = vmatpush1.msra.mxu0 0.0
        %250 = vmatprep.subr.mxu0 0.0
        %251 = vmatpush1.msra.mxu0 0.0
        %252 = vmatprep.subr.mxu0 0.0
        %253 = vmatpush1.msra.mxu0 0.0
        %254 = vmatprep.subr.mxu0 0.0
        %255 = vmatpush1.msra.mxu0 0.0
        %256 = vmatprep.subr.mxu0 0.0
        %257 = vmatpush1.msra.mxu0 0.0
        %258 = vmatprep.subr.mxu0 0.0
        %259 = vmatpush1.msra.mxu0 0.0
        %260 = vmatprep.subr.mxu0 0.0
        %261 = vmatpush1.msra.mxu0 0.0
        %262 = vmatprep.subr.mxu0 0.0
        %263 = vmatpush1.msra.mxu0 0.0
        %264 = vmatprep.subr.mxu0 0.0
        %265 = vmatpush1.msra.mxu0 0.0
        %266 = vmatprep.subr.mxu0 0.0
        %267 = vmatpush1.msra.mxu0 0.0
        %268 = vmatprep.subr.mxu0 0.0
        %269 = vmatpush1.msra.mxu0 0.0
        %270 = vmatprep.subr.mxu0 0.0
        %271 = vmatpush1.msra.mxu0 0.0
        %272 = vmatprep.subr.mxu0 0.0
        %273 = vmatpush1.msra.mxu0 0.0
        %274 = vmatprep.subr.mxu0 0.0
        %275 = vmatpush1.msra.mxu0 0.0
        %276 = vmatprep.subr.mxu0 0.0
        %277 = vmatpush1.msra.mxu0 0.0
        %278 = vmatprep.subr.mxu0 0.0
        %279 = vmatpush1.msra.mxu0 0.0
        %280 = vmatprep.subr.mxu0 0.0
        %281 = vmatpush1.msra.mxu0 0.0
        %282 = vmatprep.subr.mxu0 0.0
        %283 = vmatpush1.msra.mxu0 0.0
        %284 = vmatprep.subr.mxu0 0.0
        %285 = vmatpush1.msra.mxu0 0.0
        %286 = vmatprep.subr.mxu0 0.0
        %287 = vmatpush1.msra.mxu0 0.0
        %288 = vmatprep.subr.mxu0 0.0
        %289 = vmatpush1.msra.mxu0 0.0
        %290 = vmatprep.subr.mxu0 0.0
        %291 = vmatpush1.msra.mxu0 0.0
        %292 = vmatprep.subr.mxu0 0.0
        %293 = vmatpush1.msra.mxu0 0.0
        %294 = vmatprep.subr.mxu0 0.0
        %295 = vmatpush1.msra.mxu0 0.0
        %296 = vmatprep.mubr.f32.mxu0 0.0
        %297 = vmatmul.mubr.f32.gmra.mrb[0].mxu0 %v230
        %v298 = vpop.f32.mrb[0].mxu0
        %v299 = vadd.f32 0.0, %v298
        %v300 = vpop.f32.mrb[0].mxu0
        %v301 = vadd.f32 0.0, %v300
        %302 = vdwg.mxu0
        %303 = vmatprep.subr.mxu0 %v199
        %304 = vmatpush1.msra.mxu0 %v198
        %305 = vmatprep.subr.mxu0 %v203
        %306 = vmatpush1.msra.mxu0 %v202
        %307 = vmatprep.subr.mxu0 %v207
        %308 = vmatpush1.msra.mxu0 %v206
        %309 = vmatprep.subr.mxu0 %v211
        %310 = vmatpush1.msra.mxu0 %v210
        %311 = vmatprep.subr.mxu0 %v215
        %312 = vmatpush1.msra.mxu0 %v214
        %313 = vmatprep.subr.mxu0 %v219
        %314 = vmatpush1.msra.mxu0 %v218
        %315 = vmatprep.subr.mxu0 %v223
        %316 = vmatpush1.msra.mxu0 %v222
        %317 = vmatprep.subr.mxu0 %v227
        %318 = vmatpush1.msra.mxu0 %v226
        %319 = vmatprep.subr.mxu0 0.0
        %320 = vmatpush1.msra.mxu0 0.0
        %321 = vmatprep.subr.mxu0 0.0
        %322 = vmatpush1.msra.mxu0 0.0
        %323 = vmatprep.subr.mxu0 0.0
        %324 = vmatpush1.msra.mxu0 0.0
        %325 = vmatprep.subr.mxu0 0.0
        %326 = vmatpush1.msra.mxu0 0.0
        %327 = vmatprep.subr.mxu0 0.0
        %328 = vmatpush1.msra.mxu0 0.0
        %329 = vmatprep.subr.mxu0 0.0
        %330 = vmatpush1.msra.mxu0 0.0
        %331 = vmatprep.subr.mxu0 0.0
        %332 = vmatpush1.msra.mxu0 0.0
        %333 = vmatprep.subr.mxu0 0.0
        %334 = vmatpush1.msra.mxu0 0.0
        %335 = vmatprep.subr.mxu0 0.0
        %336 = vmatpush1.msra.mxu0 0.0
        %337 = vmatprep.subr.mxu0 0.0
        %338 = vmatpush1.msra.mxu0 0.0
        %339 = vmatprep.subr.mxu0 0.0
        %340 = vmatpush1.msra.mxu0 0.0
        %341 = vmatprep.subr.mxu0 0.0
        %342 = vmatpush1.msra.mxu0 0.0
        %343 = vmatprep.subr.mxu0 0.0
        %344 = vmatpush1.msra.mxu0 0.0
        %345 = vmatprep.subr.mxu0 0.0
        %346 = vmatpush1.msra.mxu0 0.0
        %347 = vmatprep.subr.mxu0 0.0
        %348 = vmatpush1.msra.mxu0 0.0
        %349 = vmatprep.subr.mxu0 0.0
        %350 = vmatpush1.msra.mxu0 0.0
        %351 = vmatprep.subr.mxu0 0.0
        %352 = vmatpush1.msra.mxu0 0.0
        %353 = vmatprep.subr.mxu0 0.0
        %354 = vmatpush1.msra.mxu0 0.0
        %355 = vmatprep.subr.mxu0 0.0
        %356 = vmatpush1.msra.mxu0 0.0
        %357 = vmatprep.subr.mxu0 0.0
        %358 = vmatpush1.msra.mxu0 0.0
        %359 = vmatprep.subr.mxu0 0.0
        %360 = vmatpush1.msra.mxu0 0.0
        %361 = vmatprep.subr.mxu0 0.0
        %362 = vmatpush1.msra.mxu0 0.0
        %363 = vmatprep.subr.mxu0 0.0
        %364 = vmatpush1.msra.mxu0 0.0
        %365 = vmatprep.subr.mxu0 0.0
        %366 = vmatpush1.msra.mxu0 0.0
        %367 = vmatprep.mubr.f32.mxu0 0.0
        %368 = vmatmul.mubr.f32.gmra.mrb[0].mxu0 %v230
        %v369 = vpop.f32.mrb[0].mxu0
        %v370 = vadd.f32 0.0, %v369
        %v371 = vpop.f32.mrb[0].mxu0
        %v372 = vadd.f32 0.0, %v371
        %373 = vdwg.mxu0
        %374 = vst [vmem:[%s190] sm:$0xff] %v299
        %375 = vst [vmem:[%s190 + $0x8] sm:$0xff] %v301
        %376 = vst [vmem:[%s190 + $0x10] sm:$0xff] %v370
        %377 = vst [vmem:[%s190 + $0x18] sm:$0xff] %v372
        %v378 = vadd.f32 %v299, %v301
        %v379 = vadd.f32 %v378, %v370
        %v380 = vadd.f32 %v379, %v372
        %381 = vadd.xlane.f32.xlu0 %v380
        %v382 = vpop.xlane.xlu0 %381
        %v383 = vmul.f32 %v299, %v299
        %v384 = vmul.f32 %v301, %v301
        %v385 = vmul.f32 %v370, %v370
        %v386 = vmul.f32 %v372, %v372
        %v387 = vadd.f32 %v383, %v384
        %v388 = vadd.f32 %v387, %v385
        %v389 = vadd.f32 %v388, %v386
        %390 = vadd.xlane.f32.xlu0 %v389
        %v391 = vpop.xlane.xlu0 %390
        %vm392 = vcmask 7168
        %v393 = vsel %vm392, %v382, %v391
        %vm394 = vcmask 15360
        %395 = vst.msk [vmem:[%s194] sm:$0xff] %vm394, %v393
        %p396 = scmp.lt.s32.totalorder %s16, 1
        %s397 = scalar_select %p396, %s16, 1
        %s398 = smul.addr %s397, 4
        %s399 = smul.addr %s398, 8
        %s400 = scalar_lea.vmem %s2, %s399
        %p401 = scmp.lt.s32.totalorder %s16, 1
        %s402 = scalar_select %p401, %s16, 1
        %s403 = smul.addr %s402, 8
        %s404 = scalar_lea.vmem %s3, %s403
        // Predicated region
        $region33: #{forward.4} parent=27 // pred_check
          %p405 = pneg %p81
        $region34: #{forward.4} parent=27 // pred_check_branch
          %407 = sbr.rel (%p405) target = $region36
        $region35: #{forward.4} parent=27 // pred_region
          _
        $region36: #{forward.4} parent=27 // pred_fallthru
          _
        // Predicated region
        $region37: #{forward.4} parent=27 // pred_check
          %p408 = pneg %p107
        $region38: #{forward.4} parent=27 // pred_check_branch
          %410 = sbr.rel (%p408) target = $region40
        $region39: #{forward.4} parent=27 // pred_region
          _
        $region40: #{forward.4} parent=27 // pred_fallthru
          _
      $region28: #{forward.4} parent=5 // pred_fallthru
        _
      %p411 = scmp.le.s32.totalorder 2, %s11
      // Predicated region
      $region41: #{forward.4} parent=5 // pred_check
        %p412 = pneg %p411
      $region42: #{forward.4} parent=5 // pred_check_branch
        %414 = sbr.rel (%p412) target = $region44
      $region43: #{forward.4} parent=5 // pred_region
        %s415 = ssub.s32 %s11, 2
        // Predicated region
        $region45: #{forward.4} parent=43 // pred_check
          %p416 = pneg %p87
        $region46: #{forward.4} parent=43 // pred_check_branch
          %418 = sbr.rel (%p416) target = $region48
        $region47: #{forward.4} parent=43 // pred_region
          %p419 = scmp.lt.s32.totalorder %s17, 1
          %s420 = scalar_select %p419, %s17, 1
          %s421 = smul.addr %s420, 4
          %s422 = smul.addr %s421, 8
          %s423 = scalar_lea.vmem %s2, %s422
        $region48: #{forward.4} parent=43 // pred_fallthru
          _
        // Predicated region
        $region49: #{forward.4} parent=43 // pred_check
          %p424 = pneg %p113
        $region50: #{forward.4} parent=43 // pred_check_branch
          %426 = sbr.rel (%p424) target = $region52
        $region51: #{forward.4} parent=43 // pred_region
          %p427 = scmp.lt.s32.totalorder %s17, 1
          %s428 = scalar_select %p427, %s17, 1
          %s429 = smul.addr %s428, 8
          %s430 = scalar_lea.vmem %s3, %s429
        $region52: #{forward.4} parent=43 // pred_fallthru
          _
      $region44: #{forward.4} parent=5 // pred_fallthru
        _
    $region6: #{forward.4} parent=1 // loop_footer
      %s15 = sadd.s32 1, %s11
    $region7: #{forward.4} parent=1 // loop_footer_branch
      %10 = sbr.rel target = $region3
    $region8: #{forward.4} parent=1 // loop_exit
      _
    %431 = vsyncpa [#allocation3], 1
    %s432 = scalar_lea.sflag [#allocation3], 1
    %433 = vsyncpa %s432, 1

// kernel: forward.5
$region0: #{forward.5}
  #allocation0 [shape = 'u32[]', space=smem, size = 0x4, offset = 0x4, fixed_abs, tag = 'smem constant byte address 0x4 - core index']
  #allocation1 [shape = 'u32[144,128]{1,0:T(1,128)}', space=vmem, size = 0x12000, scoped, tag = 'internal scratch']
  %s0 = inlined_call_operand.vmem [shape: f32[2,8,512], index: 0, kind: input, shape index: {}]
  %s1 = inlined_call_operand.vmem [shape: f32[2,8,512], index: 1, kind: input, shape index: {}]
  %s2 = inlined_call_operand.vmem [shape: f32[8,1], index: 2, kind: input, shape index: {}]
  %s3 = inlined_call_operand.vmem [shape: f32[8,1], index: 3, kind: input, shape index: {}]
  %s4 = inlined_call_operand.vmem [shape: f32[2,8,512], index: 4, kind: output, shape index: {}]
  %s5 = sld [smem:[#allocation0]]
  $region49: #{forward.5} parent=0
    _
  %s7 = ssub.s32 1, %s5
  %s8 = scalar_select 0, %s7, %s5
  loop: start=0, step=1, limit=4
  $region2: #{forward.5} parent=0 // loop_pre_header
    _
  $region3: #{forward.5} parent=0 // loop_header
    %s10 = sphi 0, %s14
    %p11 = scmp.ge.s32.totalorder %s10, 4
    %s20 = sphi 0, %s22
    %s23 = sphi 0, %s20
    %s24 = sphi 0, %s23
    %s40 = sphi 0, %s24
    %s46 = sphi 0, %s48
    %s49 = sphi 0, %s46
    %s50 = sphi 0, %s49
    %s66 = sphi 0, %s50
    %s70 = sphi 0, %s70
    %s72 = sphi 0, %s70
    %s73 = sphi 0, %s72
    %s87 = sphi 0, %s73
    %s91 = sphi 0, %s91
    %s93 = sphi 0, %s91
    %s94 = sphi 0, %s93
    %s108 = sphi 0, %s94
    %s114 = sphi 0, %s116
    %s117 = sphi 0, %s114
    %s118 = sphi 0, %s117
    %s134 = sphi 0, %s118
  $region4: #{forward.5} parent=0 // loop_header_branch
    %13 = sbr.rel (%p11) target = $region8
  $region5: #{forward.5} parent=0 // loop_body
    %s15 = ssub.s32 %s10, 1
    %s16 = ssub.s32 %s10, 2
    %s17 = sadd.s32 %s10, 1
    %s18 = ssub.s32 %s10, %s17
    %p19 = scmp.eq.s32.totalorder %s18, 0
    %s21 = sadd.s32 %s20, 1
    %s22 = scalar_select %p19, %s20, %s21
    %p25 = pneg %p19
    %p26 = scmp.eq.s32.totalorder %s10, 1
    %p27 = por %p25, %p26
    %p28 = scmp.ne.s32.totalorder %s20, %s23
    %p29 = scmp.eq.s32.totalorder %s10, 0
    %p30 = por %p28, %p29
    %p31 = scmp.ne.s32.totalorder %s20, %s23
    %p32 = scmp.eq.s32.totalorder %s15, 1
    %p33 = por %p31, %p32
    %p34 = scmp.ne.s32.totalorder %s23, %s24
    %p35 = scmp.eq.s32.totalorder %s15, 0
    %p36 = por %p34, %p35
    %p37 = scmp.ne.s32.totalorder %s23, %s24
    %p38 = scmp.eq.s32.totalorder %s16, 1
    %p39 = por %p37, %p38
    %p41 = scmp.ne.s32.totalorder %s24, %s40
    %p42 = scmp.eq.s32.totalorder %s16, 0
    %p43 = por %p41, %p42
    %s44 = ssub.s32 %s10, %s17
    %p45 = scmp.eq.s32.totalorder %s44, 0
    %s47 = sadd.s32 %s46, 1
    %s48 = scalar_select %p45, %s46, %s47
    %p51 = pneg %p45
    %p52 = scmp.eq.s32.totalorder %s10, 1
    %p53 = por %p51, %p52
    %p54 = scmp.ne.s32.totalorder %s46, %s49
    %p55 = scmp.eq.s32.totalorder %s10, 0
    %p56 = por %p54, %p55
    %p57 = scmp.ne.s32.totalorder %s46, %s49
    %p58 = scmp.eq.s32.totalorder %s15, 1
    %p59 = por %p57, %p58
    %p60 = scmp.ne.s32.totalorder %s49, %s50
    %p61 = scmp.eq.s32.totalorder %s15, 0
    %p62 = por %p60, %p61
    %p63 = scmp.ne.s32.totalorder %s49, %s50
    %p64 = scmp.eq.s32.totalorder %s16, 1
    %p65 = por %p63, %p64
    %p67 = scmp.ne.s32.totalorder %s50, %s66
    %p68 = scmp.eq.s32.totalorder %s16, 0
    %p69 = por %p67, %p68
    %s71 = sadd.s32 %s70, 1
    %p74 = scmp.eq.s32.totalorder %s10, 1
    %p75 = scmp.ne.s32.totalorder %s70, %s72
    %p76 = scmp.eq.s32.totalorder %s10, 0
    %p77 = por %p75, %p76
    %p78 = scmp.ne.s32.totalorder %s70, %s72
    %p79 = scmp.eq.s32.totalorder %s15, 1
    %p80 = por %p78, %p79
    %p81 = scmp.ne.s32.totalorder %s72, %s73
    %p82 = scmp.eq.s32.totalorder %s15, 0
    %p83 = por %p81, %p82
    %p84 = scmp.ne.s32.totalorder %s72, %s73
    %p85 = scmp.eq.s32.totalorder %s16, 1
    %p86 = por %p84, %p85
    %p88 = scmp.ne.s32.totalorder %s73, %s87
    %p89 = scmp.eq.s32.totalorder %s16, 0
    %p90 = por %p88, %p89
    %s92 = sadd.s32 %s91, 1
    %p95 = scmp.eq.s32.totalorder %s10, 1
    %p96 = scmp.ne.s32.totalorder %s91, %s93
    %p97 = scmp.eq.s32.totalorder %s10, 0
    %p98 = por %p96, %p97
    %p99 = scmp.ne.s32.totalorder %s91, %s93
    %p100 = scmp.eq.s32.totalorder %s15, 1
    %p101 = por %p99, %p100
    %p102 = scmp.ne.s32.totalorder %s93, %s94
    %p103 = scmp.eq.s32.totalorder %s15, 0
    %p104 = por %p102, %p103
    %p105 = scmp.ne.s32.totalorder %s93, %s94
    %p106 = scmp.eq.s32.totalorder %s16, 1
    %p107 = por %p105, %p106
    %p109 = scmp.ne.s32.totalorder %s94, %s108
    %p110 = scmp.eq.s32.totalorder %s16, 0
    %p111 = por %p109, %p110
    %s112 = ssub.s32 %s10, %s17
    %p113 = scmp.eq.s32.totalorder %s112, 0
    %s115 = sadd.s32 %s114, 1
    %s116 = scalar_select %p113, %s114, %s115
    %p119 = pneg %p113
    %p120 = scmp.eq.s32.totalorder %s10, 1
    %p121 = por %p119, %p120
    %p122 = scmp.ne.s32.totalorder %s114, %s117
    %p123 = scmp.eq.s32.totalorder %s10, 0
    %p124 = por %p122, %p123
    %p125 = scmp.ne.s32.totalorder %s114, %s117
    %p126 = scmp.eq.s32.totalorder %s15, 1
    %p127 = por %p125, %p126
    %p128 = scmp.ne.s32.totalorder %s117, %s118
    %p129 = scmp.eq.s32.totalorder %s15, 0
    %p130 = por %p128, %p129
    %p131 = scmp.ne.s32.totalorder %s117, %s118
    %p132 = scmp.eq.s32.totalorder %s16, 1
    %p133 = por %p131, %p132
    %p135 = scmp.ne.s32.totalorder %s118, %s134
    %p136 = scmp.eq.s32.totalorder %s16, 0
    %p137 = por %p135, %p136
    %p138 = scmp.le.s32.totalorder 1, %s10
    %p139 = scmp.lt.s32.totalorder %s10, 3
    %p140 = pnand %p138, %p139
    %p141 = pneg %p140
    // Predicated region
    $region9: #{forward.5} parent=5 // pred_check
      _
    $region10: #{forward.5} parent=5 // pred_check_branch
      %143 = sbr.rel (%p140) target = $region12
    $region11: #{forward.5} parent=5 // pred_region
      %s144 = ssub.s32 %s10, 1
      // Predicated region
      $region13: #{forward.5} parent=11 // pred_check
        %p145 = pneg %p83
      $region14: #{forward.5} parent=11 // pred_check_branch
        %147 = sbr.rel (%p145) target = $region16
      $region15: #{forward.5} parent=11 // pred_region
        _
      $region16: #{forward.5} parent=11 // pred_fallthru
        _
      // Predicated region
      $region17: #{forward.5} parent=11 // pred_check
        %p148 = pneg %p104
      $region18: #{forward.5} parent=11 // pred_check_branch
        %150 = sbr.rel (%p148) target = $region20
      $region19: #{forward.5} parent=11 // pred_region
        _
      $region20: #{forward.5} parent=11 // pred_fallthru
        _
    $region12: #{forward.5} parent=5 // pred_fallthru
      _
    %p151 = scmp.lt.s32.totalorder %s10, 2
    // Predicated region
    $region21: #{forward.5} parent=5 // pred_check
      %p152 = pneg %p151
    $region22: #{forward.5} parent=5 // pred_check_branch
      %154 = sbr.rel (%p152) target = $region24
    $region23: #{forward.5} parent=5 // pred_region
      // Predicated region
      $region25: #{forward.5} parent=23 // pred_check
        %p155 = pneg %p30
      $region26: #{forward.5} parent=23 // pred_check_branch
        %157 = sbr.rel (%p155) target = $region28
      $region27: #{forward.5} parent=23 // pred_region
        %p158 = scmp.lt.s32.totalorder %s10, 1
        %s159 = scalar_select %p158, %s10, 1
        %s160 = smul.addr %s159, 4
        %s161 = smul.addr %s160, 8
        %s162 = scalar_lea.vmem %s0, %s161
      $region28: #{forward.5} parent=23 // pred_fallthru
        _
      // Predicated region
      $region29: #{forward.5} parent=23 // pred_check
        %p163 = pneg %p56
      $region30: #{forward.5} parent=23 // pred_check_branch
        %165 = sbr.rel (%p163) target = $region32
      $region31: #{forward.5} parent=23 // pred_region
        %p166 = scmp.lt.s32.totalorder %s10, 1
        %s167 = scalar_select %p166, %s10, 1
        %s168 = smul.addr %s167, 4
        %s169 = smul.addr %s168, 8
        %s170 = scalar_lea.vmem %s1, %s169
      $region32: #{forward.5} parent=23 // pred_fallthru
        _
    $region24: #{forward.5} parent=5 // pred_fallthru
      _
    %p171 = scmp.le.s32.totalorder 1, %s10
    %p172 = scmp.lt.s32.totalorder %s10, 3
    %p173 = pnand %p171, %p172
    %p174 = pneg %p173
    // Predicated region
    $region33: #{forward.5} parent=5 // pred_check
      _
    $region34: #{forward.5} parent=5 // pred_check_branch
      %176 = sbr.rel (%p173) target = $region36
    $region35: #{forward.5} parent=5 // pred_region
      %s177 = ssub.s32 %s10, 1
      %p178 = scmp.lt.s32.totalorder %s15, 1
      %s179 = scalar_select %p178, %s15, 1
      %s180 = smul.addr %s179, 4
      %s181 = smul.addr %s180, 8
      %s182 = scalar_lea.vmem %s0, %s181
      %p183 = pneg %p36
      %p184 = pneg %p33
      %p185 = scmp.lt.s32.totalorder %s15, 1
      %s186 = scalar_select %p185, %s15, 1
      %s187 = smul.addr %s186, 4
      %s188 = smul.addr %s187, 8
      %s189 = scalar_lea.vmem %s1, %s188
      %p190 = pneg %p62
      %p191 = pneg %p59
      %p192 = pneg %p83
      %p193 = pneg %p80
      %p194 = pneg %p104
      %p195 = pneg %p101
      %p196 = pneg %p130
      %p197 = pneg %p127
      %p198 = scmp.lt.s32.totalorder %s15, 1
      %s199 = scalar_select %p198, %s15, 1
      %s200 = smul.addr %s199, 4
      %s201 = smul.addr %s200, 8
      %s202 = scalar_lea.vmem %s4, %s201
      %p203 = scmp.lt.s32.totalorder %s15, 1
      %s204 = scalar_select %p203, %s15, 1
      %s205 = smul.addr %s204, 4
      %s206 = smul.addr %s205, 8
      %s207 = scalar_lea.vmem %s0, %s206
      %p208 = scmp.lt.s32.totalorder %s15, 1
      %s209 = scalar_select %p208, %s15, 1
      %s210 = smul.addr %s209, 4
      %s211 = smul.addr %s210, 8
      %s212 = scalar_lea.vmem %s1, %s211
      %p213 = scmp.lt.s32.totalorder %s15, 1
      %s214 = scalar_select %p213, %s15, 1
      %s215 = smul.addr %s214, 4
      %s216 = smul.addr %s215, 8
      %s217 = scalar_lea.vmem %s4, %s216
      %v218 = vld [vmem:[%s207] sm:$0xff]
      %v219 = vld [vmem:[%s207 + $0x8] sm:$0xff]
      %v220 = vld [vmem:[%s207 + $0x10] sm:$0xff]
      %v221 = vld [vmem:[%s207 + $0x18] sm:$0xff]
      %v222 = vld [vmem:[%s2] sm:$0xff]
      %224 = vset.pattern.permute.xlu0 0
      %225 = vperm.xlu0 %224, %v222
      %v226 = vpop.permute.xlu0 %225
      %v228 = vmul.f32 %v218, %v226
      %v229 = vmul.f32 %v219, %v226
      %v230 = vmul.f32 %v220, %v226
      %v231 = vmul.f32 %v221, %v226
      %v232 = vld [vmem:[%s3] sm:$0xff]
      %234 = vset.pattern.permute.xlu0 0
      %235 = vperm.xlu0 %234, %v232
      %v236 = vpop.permute.xlu0 %235
      %v238 = vadd.f32 %v228, %v236
      %v239 = vadd.f32 %v229, %v236
      %v240 = vadd.f32 %v230, %v236
      %v241 = vadd.f32 %v231, %v236
      %v242 = vld [vmem:[%s212] sm:$0xff]
      %v243 = vld [vmem:[%s212 + $0x8] sm:$0xff]
      %v244 = vld [vmem:[%s212 + $0x10] sm:$0xff]
      %v245 = vld [vmem:[%s212 + $0x18] sm:$0xff]
      %v246 = vadd.f32 %v238, %v242
      %v247 = vadd.f32 %v239, %v243
      %v248 = vadd.f32 %v240, %v244
      %v249 = vadd.f32 %v241, %v245
      %v250 = vmax.f32 %v246, 0.0
      %v251 = vmax.f32 %v247, 0.0
      %v252 = vmax.f32 %v248, 0.0
      %v253 = vmax.f32 %v249, 0.0
      %254 = vst [vmem:[%s217] sm:$0xff] %v250
      %255 = vst [vmem:[%s217 + $0x8] sm:$0xff] %v251
      %256 = vst [vmem:[%s217 + $0x10] sm:$0xff] %v252
      %257 = vst [vmem:[%s217 + $0x18] sm:$0xff] %v253
      %p258 = scmp.lt.s32.totalorder %s15, 1
      %s259 = scalar_select %p258, %s15, 1
      %s260 = smul.addr %s259, 4
      %s261 = smul.addr %s260, 8
      %s262 = scalar_lea.vmem %s4, %s261
      // Predicated region
      $region37: #{forward.5} parent=35 // pred_check
        %p263 = pneg %p127
      $region38: #{forward.5} parent=35 // pred_check_branch
        %265 = sbr.rel (%p263) target = $region40
      $region39: #{forward.5} parent=35 // pred_region
        _
      $region40: #{forward.5} parent=35 // pred_fallthru
        _
    $region36: #{forward.5} parent=5 // pred_fallthru
      _
    %p266 = scmp.le.s32.totalorder 2, %s10
    // Predicated region
    $region41: #{forward.5} parent=5 // pred_check
      %p267 = pneg %p266
    $region42: #{forward.5} parent=5 // pred_check_branch
      %269 = sbr.rel (%p267) target = $region44
    $region43: #{forward.5} parent=5 // pred_region
      %s270 = ssub.s32 %s10, 2
      // Predicated region
      $region45: #{forward.5} parent=43 // pred_check
        %p271 = pneg %p133
      $region46: #{forward.5} parent=43 // pred_check_branch
        %273 = sbr.rel (%p271) target = $region48
      $region47: #{forward.5} parent=43 // pred_region
        %p274 = scmp.lt.s32.totalorder %s16, 1
        %s275 = scalar_select %p274, %s16, 1
        %s276 = smul.addr %s275, 4
        %s277 = smul.addr %s276, 8
        %s278 = scalar_lea.vmem %s4, %s277
      $region48: #{forward.5} parent=43 // pred_fallthru
        _
    $region44: #{forward.5} parent=5 // pred_fallthru
      _
  $region6: #{forward.5} parent=0 // loop_footer
    %s14 = sadd.s32 1, %s10
  $region7: #{forward.5} parent=0 // loop_footer_branch
    %9 = sbr.rel target = $region3
  $region8: #{forward.5} parent=0 // loop_exit
    _

// kernel: forward.3
$region0: #{forward.3}
  #allocation0 [shape = 'u32[]', space=smem, size = 0x4, offset = 0x4, fixed_abs, tag = 'smem constant byte address 0x4 - core index']
  #allocation1 [shape = 'u32[144,128]{1,0:T(1,128)}', space=vmem, size = 0x12000, scoped, tag = 'internal scratch']
  %s0 = inlined_call_operand.vmem [shape: f32[2,8,512], index: 0, kind: input, shape index: {}]
  %s1 = inlined_call_operand.vmem [shape: f32[4,8,16], index: 1, kind: input, shape index: {}]
  %s2 = inlined_call_operand.vmem [shape: f32[4,16,8], index: 2, kind: input, shape index: {}]
  %s3 = inlined_call_operand.hbm [shape: f32[4,8,16], index: 3, kind: input, shape index: {}]
  %s4 = inlined_call_operand.hbm [shape: f32[2,4,512,512], index: 4, kind: output, shape index: {0}]
  %s5 = inlined_call_operand.vmem [shape: f32[2,64,512], index: 5, kind: output, shape index: {1}]
  %6 = xla_tuple %s4, %s5
  %s7 = sld [smem:[#allocation0]]
  $region61: #{forward.3} parent=0
    _
  %s9 = ssub.s32 1, %s7
  %s10 = scalar_select 0, %s9, %s7
  $region1: #{forward.3} parent=0
    #allocation2 [shape = 'u8[8192]{0}', space=vmem, size = 0x2000, scoped, tag = 'input window, operand 3']
    #allocation3 [shape = 's32[2]{0}', space=sflag, size = 0x8, scoped, tag = 'scoped memory for forward.3']
    #allocation4 [shape = 's32[2]{0}', space=sflag, size = 0x8, scoped, tag = 'scoped memory for forward.3']
    #allocation5 [shape = 'u8[2097152]{0}', space=vmem, size = 0x200000, scoped, tag = 'output window, operand 0']
    %11 = vsyncpa [#allocation3], 0
    %s12 = scalar_lea.sflag [#allocation3], 1
    %13 = vsyncpa %s12, 0
    %14 = vsyncpa [#allocation4], 0
    %s15 = scalar_lea.sflag [#allocation4], 1
    %16 = vsyncpa %s15, 0
    loop: start=0, step=1, limit=10
    $region2: #{forward.3} parent=1 // loop_pre_header
      _
    $region3: #{forward.3} parent=1 // loop_header
      %s18 = sphi 0, %s22
      %p19 = scmp.ge.s32.totalorder %s18, 10
      %s25 = sphi 0, %s37
      %s26 = sphi 0, %s33
      %s27 = sphi 0, %s25
      %s28 = sphi 0, %s26
      %s29 = sphi 0, %s27
      %s30 = sphi 0, %s28
      %s40 = sphi 0, %s42
      %s43 = sphi 0, %s40
      %s44 = sphi 0, %s43
      %s60 = sphi 0, %s44
      %s66 = sphi 0, %s68
      %s69 = sphi 0, %s66
      %s70 = sphi 0, %s69
      %s86 = sphi 0, %s70
      %s92 = sphi 0, %s94
      %s95 = sphi 0, %s92
      %s96 = sphi 0, %s95
      %s112 = sphi 0, %s96
      %s118 = sphi 0, %s120
      %s121 = sphi 0, %s118
      %s122 = sphi 0, %s121
      %s138 = sphi 0, %s122
      %s146 = sphi 0, %s148
      %s149 = sphi 0, %s146
      %s150 = sphi 0, %s149
      %s166 = sphi 0, %s150
      %s174 = sphi 0, %s176
      %s177 = sphi 0, %s174
      %s178 = sphi 0, %s177
      %s194 = sphi 0, %s178
    $region4: #{forward.3} parent=1 // loop_header_branch
      %21 = sbr.rel (%p19) target = $region8
    $region5: #{forward.3} parent=1 // loop_body
      %s23 = ssub.s32 %s18, 1
      %s24 = ssub.s32 %s18, 2
      %s31 = sadd.s32 1, %s26
      %p32 = scmp.ge.s32.totalorder %s31, 4
      %s33 = scalar_select %p32, 0, %s31
      %s34 = sadd.s32 1, %s25
      %s35 = scalar_select %p32, %s34, %s25
      %p36 = scmp.ge.s32.totalorder %s35, 2
      %s37 = scalar_select %p36, 0, %s35
      %s38 = ssub.s32 %s25, %s37
      %p39 = scmp.eq.s32.totalorder %s38, 0
      %s41 = sadd.s32 %s40, 1
      %s42 = scalar_select %p39, %s40, %s41
      %p45 = pneg %p39
      %p46 = scmp.eq.s32.totalorder %s18, 7
      %p47 = por %p45, %p46
      %p48 = scmp.ne.s32.totalorder %s40, %s43
      %p49 = scmp.eq.s32.totalorder %s18, 0
      %p50 = por %p48, %p49
      %p51 = scmp.ne.s32.totalorder %s40, %s43
      %p52 = scmp.eq.s32.totalorder %s23, 7
      %p53 = por %p51, %p52
      %p54 = scmp.ne.s32.totalorder %s43, %s44
      %p55 = scmp.eq.s32.totalorder %s23, 0
      %p56 = por %p54, %p55
      %p57 = scmp.ne.s32.totalorder %s43, %s44
      %p58 = scmp.eq.s32.totalorder %s24, 7
      %p59 = por %p57, %p58
      %p61 = scmp.ne.s32.totalorder %s44, %s60
      %p62 = scmp.eq.s32.totalorder %s24, 0
      %p63 = por %p61, %p62
      %s64 = ssub.s32 %s26, %s33
      %p65 = scmp.eq.s32.totalorder %s64, 0
      %s67 = sadd.s32 %s66, 1
      %s68 = scalar_select %p65, %s66, %s67
      %p71 = pneg %p65
      %p72 = scmp.eq.s32.totalorder %s18, 7
      %p73 = por %p71, %p72
      %p74 = scmp.ne.s32.totalorder %s66, %s69
      %p75 = scmp.eq.s32.totalorder %s18, 0
      %p76 = por %p74, %p75
      %p77 = scmp.ne.s32.totalorder %s66, %s69
      %p78 = scmp.eq.s32.totalorder %s23, 7
      %p79 = por %p77, %p78
      %p80 = scmp.ne.s32.totalorder %s69, %s70
      %p81 = scmp.eq.s32.totalorder %s23, 0
      %p82 = por %p80, %p81
      %p83 = scmp.ne.s32.totalorder %s69, %s70
      %p84 = scmp.eq.s32.totalorder %s24, 7
      %p85 = por %p83, %p84
      %p87 = scmp.ne.s32.totalorder %s70, %s86
      %p88 = scmp.eq.s32.totalorder %s24, 0
      %p89 = por %p87, %p88
      %s90 = ssub.s32 %s26, %s33
      %p91 = scmp.eq.s32.totalorder %s90, 0
      %s93 = sadd.s32 %s92, 1
      %s94 = scalar_select %p91, %s92, %s93
      %p97 = pneg %p91
      %p98 = scmp.eq.s32.totalorder %s18, 7
      %p99 = por %p97, %p98
      %p100 = scmp.ne.s32.totalorder %s92, %s95
      %p101 = scmp.eq.s32.totalorder %s18, 0
      %p102 = por %p100, %p101
      %p103 = scmp.ne.s32.totalorder %s92, %s95
      %p104 = scmp.eq.s32.totalorder %s23, 7
      %p105 = por %p103, %p104
      %p106 = scmp.ne.s32.totalorder %s95, %s96
      %p107 = scmp.eq.s32.totalorder %s23, 0
      %p108 = por %p106, %p107
      %p109 = scmp.ne.s32.totalorder %s95, %s96
      %p110 = scmp.eq.s32.totalorder %s24, 7
      %p111 = por %p109, %p110
      %p113 = scmp.ne.s32.totalorder %s96, %s112
      %p114 = scmp.eq.s32.totalorder %s24, 0
      %p115 = por %p113, %p114
      %s116 = ssub.s32 %s26, %s33
      %p117 = scmp.eq.s32.totalorder %s116, 0
      %s119 = sadd.s32 %s118, 1
      %s120 = scalar_select %p117, %s118, %s119
      %p123 = pneg %p117
      %p124 = scmp.eq.s32.totalorder %s18, 7
      %p125 = por %p123, %p124
      %p126 = scmp.ne.s32.totalorder %s118, %s121
      %p127 = scmp.eq.s32.totalorder %s18, 0
      %p128 = por %p126, %p127
      %p129 = scmp.ne.s32.totalorder %s118, %s121
      %p130 = scmp.eq.s32.totalorder %s23, 7
      %p131 = por %p129, %p130
      %p132 = scmp.ne.s32.totalorder %s121, %s122
      %p133 = scmp.eq.s32.totalorder %s23, 0
      %p134 = por %p132, %p133
      %p135 = scmp.ne.s32.totalorder %s121, %s122
      %p136 = scmp.eq.s32.totalorder %s24, 7
      %p137 = por %p135, %p136
      %p139 = scmp.ne.s32.totalorder %s122, %s138
      %p140 = scmp.eq.s32.totalorder %s24, 0
      %p141 = por %p139, %p140
      %s142 = ssub.s32 %s25, %s37
      %s143 = ssub.s32 %s26, %s33
      %s144 = sor.u32 %s142, %s143
      %p145 = scmp.eq.s32.totalorder %s144, 0
      %s147 = sadd.s32 %s146, 1
      %s148 = scalar_select %p145, %s146, %s147
      %p151 = pneg %p145
      %p152 = scmp.eq.s32.totalorder %s18, 7
      %p153 = por %p151, %p152
      %p154 = scmp.ne.s32.totalorder %s146, %s149
      %p155 = scmp.eq.s32.totalorder %s18, 0
      %p156 = por %p154, %p155
      %p157 = scmp.ne.s32.totalorder %s146, %s149
      %p158 = scmp.eq.s32.totalorder %s23, 7
      %p159 = por %p157, %p158
      %p160 = scmp.ne.s32.totalorder %s149, %s150
      %p161 = scmp.eq.s32.totalorder %s23, 0
      %p162 = por %p160, %p161
      %p163 = scmp.ne.s32.totalorder %s149, %s150
      %p164 = scmp.eq.s32.totalorder %s24, 7
      %p165 = por %p163, %p164
      %p167 = scmp.ne.s32.totalorder %s150, %s166
      %p168 = scmp.eq.s32.totalorder %s24, 0
      %p169 = por %p167, %p168
      %s170 = ssub.s32 %s25, %s37
      %s171 = ssub.s32 %s26, %s33
      %s172 = sor.u32 %s170, %s171
      %p173 = scmp.eq.s32.totalorder %s172, 0
      %s175 = sadd.s32 %s174, 1
      %s176 = scalar_select %p173, %s174, %s175
      %p179 = pneg %p173
      %p180 = scmp.eq.s32.totalorder %s18, 7
      %p181 = por %p179, %p180
      %p182 = scmp.ne.s32.totalorder %s174, %s177
      %p183 = scmp.eq.s32.totalorder %s18, 0
      %p184 = por %p182, %p183
      %p185 = scmp.ne.s32.totalorder %s174, %s177
      %p186 = scmp.eq.s32.totalorder %s23, 7
      %p187 = por %p185, %p186
      %p188 = scmp.ne.s32.totalorder %s177, %s178
      %p189 = scmp.eq.s32.totalorder %s23, 0
      %p190 = por %p188, %p189
      %p191 = scmp.ne.s32.totalorder %s177, %s178
      %p192 = scmp.eq.s32.totalorder %s24, 7
      %p193 = por %p191, %p192
      %p195 = scmp.ne.s32.totalorder %s178, %s194
      %p196 = scmp.eq.s32.totalorder %s24, 0
      %p197 = por %p195, %p196
      %p198 = scmp.le.s32.totalorder 1, %s18
      %p199 = scmp.lt.s32.totalorder %s18, 9
      %p200 = pnand %p198, %p199
      %p201 = pneg %p200
      // Predicated region
      $region9: #{forward.3} parent=5 // pred_check
        _
      $region10: #{forward.3} parent=5 // pred_check_branch
        %203 = sbr.rel (%p200) target = $region12
      $region11: #{forward.3} parent=5 // pred_region
        %s204 = ssub.s32 %s18, 1
      $region12: #{forward.3} parent=5 // pred_fallthru
        _
      %p205 = scmp.lt.s32.totalorder %s18, 8
      // Predicated region
      $region13: #{forward.3} parent=5 // pred_check
        %p206 = pneg %p205
      $region14: #{forward.3} parent=5 // pred_check_branch
        %208 = sbr.rel (%p206) target = $region16
      $region15: #{forward.3} parent=5 // pred_region
        // Predicated region
        $region17: #{forward.3} parent=15 // pred_check
          %p209 = pneg %p50
        $region18: #{forward.3} parent=15 // pred_check_branch
          %211 = sbr.rel (%p209) target = $region20
        $region19: #{forward.3} parent=15 // pred_region
          %p212 = scmp.lt.s32.totalorder %s25, 1
          %s213 = scalar_select %p212, %s25, 1
          %s214 = smul.addr %s213, 4
          %s215 = smul.addr %s214, 8
          %s216 = scalar_lea.vmem %s0, %s215
        $region20: #{forward.3} parent=15 // pred_fallthru
          _
        // Predicated region
        $region21: #{forward.3} parent=15 // pred_check
          %p217 = pneg %p76
        $region22: #{forward.3} parent=15 // pred_check_branch
          %219 = sbr.rel (%p217) target = $region24
        $region23: #{forward.3} parent=15 // pred_region
          %p220 = scmp.lt.s32.totalorder %s26, 3
          %s221 = scalar_select %p220, %s26, 3
          %s222 = smul.addr %s221, 8
          %s223 = scalar_lea.vmem %s1, %s222
        $region24: #{forward.3} parent=15 // pred_fallthru
          _
        // Predicated region
        $region25: #{forward.3} parent=15 // pred_check
          %p224 = pneg %p102
        $region26: #{forward.3} parent=15 // pred_check_branch
          %226 = sbr.rel (%p224) target = $region28
        $region27: #{forward.3} parent=15 // pred_region
          %p227 = scmp.lt.s32.totalorder %s26, 3
          %s228 = scalar_select %p227, %s26, 3
          %s229 = smul.addr %s228, 2
          %s230 = smul.addr %s229, 8
          %s231 = scalar_lea.vmem %s2, %s230
        $region28: #{forward.3} parent=15 // pred_fallthru
          _
        // Predicated region
        $region29: #{forward.3} parent=15 // pred_check
          %p232 = pneg %p128
        $region30: #{forward.3} parent=15 // pred_check_branch
          %234 = sbr.rel (%p232) target = $region32
        $region31: #{forward.3} parent=15 // pred_region
          %s235 = sand.u32 %s118, 1
          %s236 = scalar_lea.sflag [#allocation3], %s235
          %s237 = sand.u32 %s118, 1
          %s238 = smul.addr %s237, 8
          %s239 = scalar_lea.vmem [#allocation2], %s238
          %s241 = ssub.s32 128, 128
          %242 = vsyncadd %s236, %s241
          %s243 = smul.addr %s26, 128
          %s244 = scalar_lea.hbm %s3, %s243
          %s246 = sshll.u32 %s239, 4
          %s247 = int_to_ptr.vmem [resolvable:$true] %s246
          %249 = dma.hbm_to_vmem [thread:$0]  %s244, 128, %s247, %s236
        $region32: #{forward.3} parent=15 // pred_fallthru
          _
      $region16: #{forward.3} parent=5 // pred_fallthru
        _
      %p250 = scmp.le.s32.totalorder 1, %s18
      %p251 = scmp.lt.s32.totalorder %s18, 9
      %p252 = pnand %p250, %p251
      %p253 = pneg %p252
      // Predicated region
      $region33: #{forward.3} parent=5 // pred_check
        _
      $region34: #{forward.3} parent=5 // pred_check_branch
        %255 = sbr.rel (%p252) target = $region36
      $region35: #{forward.3} parent=5 // pred_region
        %s256 = ssub.s32 %s18, 1
        %s257 = sand.u32 %s121, 1
        %s258 = scalar_lea.sflag [#allocation3], %s257
        %s259 = sand.u32 %s121, 1
        %s260 = smul.addr %s259, 8
        %s261 = scalar_lea.vmem [#allocation2], %s260
        // Predicated region
        $region37: #{forward.3} parent=35 // pred_check
          %p262 = pneg %p134
        $region38: #{forward.3} parent=35 // pred_check_branch
          %264 = sbr.rel (%p262) target = $region40
        $region39: #{forward.3} parent=35 // pred_region
          %265 = dma.done %s258, 128
        $region40: #{forward.3} parent=35 // pred_fallthru
          _
        %p266 = scmp.lt.s32.totalorder %s27, 1
        %s267 = scalar_select %p266, %s27, 1
        %s268 = smul.addr %s267, 4
        %s269 = smul.addr %s268, 8
        %s270 = scalar_lea.vmem %s0, %s269
        %p271 = pneg %p56
        %p272 = pneg %p53
        %p273 = scmp.lt.s32.totalorder %s28, 3
        %s274 = scalar_select %p273, %s28, 3
        %s275 = smul.addr %s274, 8
        %s276 = scalar_lea.vmem %s1, %s275
        %p277 = pneg %p82
        %p278 = pneg %p79
        %p279 = scmp.lt.s32.totalorder %s28, 3
        %s280 = scalar_select %p279, %s28, 3
        %s281 = smul.addr %s280, 2
        %s282 = smul.addr %s281, 8
        %s283 = scalar_lea.vmem %s2, %s282
        %p284 = pneg %p108
        %p285 = pneg %p105
        %s286 = sand.u32 %s121, 1
        %s287 = scalar_lea.sflag [#allocation3], %s286
        %s288 = sand.u32 %s121, 1
        %s289 = smul.addr %s288, 8
        %s290 = scalar_lea.vmem [#allocation2], %s289
        %p291 = pneg %p134
        %p292 = pneg %p131
        %p293 = pneg %p162
        %p294 = pneg %p159
        %s295 = sand.u32 %s149, 1
        %s296 = scalar_lea.sflag [#allocation4], %s295
        %s297 = sand.u32 %s149, 1
        %s298 = smul.addr %s297, 2048
        %s299 = scalar_lea.vmem [#allocation5], %s298
        %p300 = pneg %p190
        %p301 = pneg %p187
        %s302 = smul.u32 2, %s28
        %p303 = scmp.lt.s32.totalorder %s27, 1
        %s304 = scalar_select %p303, %s27, 1
        %p305 = scmp.lt.s32.totalorder %s302, 7
        %s306 = scalar_select %p305, %s302, 7
        %s307 = smul.addr %s306, 4
        %s308 = smul.addr %s304, 32
        %s309 = sadd.s32 %s307, %s308
        %s310 = smul.addr %s309, 8
        %s311 = scalar_lea.vmem %s5, %s310
        %p312 = scmp.lt.s32.totalorder %s27, 1
        %s313 = scalar_select %p312, %s27, 1
        %s314 = smul.addr %s313, 4
        %s315 = smul.addr %s314, 8
        %s316 = scalar_lea.vmem %s0, %s315
        %p317 = scmp.lt.s32.totalorder %s28, 3
        %s318 = scalar_select %p317, %s28, 3
        %s319 = smul.addr %s318, 8
        %s320 = scalar_lea.vmem %s1, %s319
        %p321 = scmp.lt.s32.totalorder %s28, 3
        %s322 = scalar_select %p321, %s28, 3
        %s323 = smul.addr %s322, 2
        %s324 = smul.addr %s323, 8
        %s325 = scalar_lea.vmem %s2, %s324
        %s326 = smul.u32 2, %s28
        %p327 = scmp.lt.s32.totalorder %s27, 1
        %s328 = scalar_select %p327, %s27, 1
        %p329 = scmp.lt.s32.totalorder %s326, 7
        %s330 = scalar_select %p329, %s326, 7
        %s331 = smul.addr %s330, 4
        %s332 = smul.addr %s328, 32
        %s333 = sadd.s32 %s331, %s332
        %s334 = smul.addr %s333, 8
        %s335 = scalar_lea.vmem %s5, %s334
        %s336 = smul.u32 2, %s28
        %v337 = vld [vmem:[%s316] sm:$0xff]
        %v338 = vld [vmem:[%s316 + $0x8] sm:$0xff]
        %v339 = vld [vmem:[%s316 + $0x10] sm:$0xff]
        %v340 = vld [vmem:[%s316 + $0x18] sm:$0xff]
        %341 = vxpose.xlu0.b32.start [1/16] %v337, 128
        %342 = vxpose.xlu0.b32.cont [2/16] 0.0, 128
        %343 = vxpose.xlu0.b32.cont [3/16] 0.0, 128
        %344 = vxpose.xlu0.b32.cont [4/16] 0.0, 128
        %345 = vxpose.xlu0.b32.cont [5/16] 0.0, 128
        %346 = vxpose.xlu0.b32.cont [6/16] 0.0, 128
        %347 = vxpose.xlu0.b32.cont [7/16] 0.0, 128
        %348 = vxpose.xlu0.b32.cont [8/16] 0.0, 128
        %349 = vxpose.xlu0.b32.cont [9/16] 0.0, 128
        %350 = vxpose.xlu0.b32.cont [10/16] 0.0, 128
        %351 = vxpose.xlu0.b32.cont [11/16] 0.0, 128
        %352 = vxpose.xlu0.b32.cont [12/16] 0.0, 128
        %353 = vxpose.xlu0.b32.cont [13/16] 0.0, 128
        %354 = vxpose.xlu0.b32.cont [14/16] 0.0, 128
        %355 = vxpose.xlu0.b32.cont [15/16] 0.0, 128
        %356 = vxpose.xlu0.b32.end [16/16] 0.0, 128
        %v357 = vpop.trf.xlu0
        %v358 = vpop.trf.xlu0
        %v359 = vpop.trf.xlu0
        %v360 = vpop.trf.xlu0
        %v361 = vpop.trf.xlu0
        %v362 = vpop.trf.xlu0
        %v363 = vpop.trf.xlu0
        %v364 = vpop.trf.xlu0
        %v365 = vpop.trf.xlu0
        %v366 = vpop.trf.xlu0
        %v367 = vpop.trf.xlu0
        %v368 = vpop.trf.xlu0
        %v369 = vpop.trf.xlu0
        %v370 = vpop.trf.xlu0
        %v371 = vpop.trf.xlu0
        %v372 = vpop.trf.xlu0
        %373 = vxpose.xlu0.b32.start [1/16] %v338, 128
        %374 = vxpose.xlu0.b32.cont [2/16] 0.0, 128
        %375 = vxpose.xlu0.b32.cont [3/16] 0.0, 128
        %376 = vxpose.xlu0.b32.cont [4/16] 0.0, 128
        %377 = vxpose.xlu0.b32.cont [5/16] 0.0, 128
        %378 = vxpose.xlu0.b32.cont [6/16] 0.0, 128
        %379 = vxpose.xlu0.b32.cont [7/16] 0.0, 128
        %380 = vxpose.xlu0.b32.cont [8/16] 0.0, 128
        %381 = vxpose.xlu0.b32.cont [9/16] 0.0, 128
        %382 = vxpose.xlu0.b32.cont [10/16] 0.0, 128
        %383 = vxpose.xlu0.b32.cont [11/16] 0.0, 128
        %384 = vxpose.xlu0.b32.cont [12/16] 0.0, 128
        %385 = vxpose.xlu0.b32.cont [13/16] 0.0, 128
        %386 = vxpose.xlu0.b32.cont [14/16] 0.0, 128
        %387 = vxpose.xlu0.b32.cont [15/16] 0.0, 128
        %388 = vxpose.xlu0.b32.end [16/16] 0.0, 128
        %v389 = vpop.trf.xlu0
        %v390 = vpop.trf.xlu0
        %v391 = vpop.trf.xlu0
        %v392 = vpop.trf.xlu0
        %v393 = vpop.trf.xlu0
        %v394 = vpop.trf.xlu0
        %v395 = vpop.trf.xlu0
        %v396 = vpop.trf.xlu0
        %v397 = vpop.trf.xlu0
        %v398 = vpop.trf.xlu0
        %v399 = vpop.trf.xlu0
        %v400 = vpop.trf.xlu0
        %v401 = vpop.trf.xlu0
        %v402 = vpop.trf.xlu0
        %v403 = vpop.trf.xlu0
        %v404 = vpop.trf.xlu0
        %405 = vxpose.xlu0.b32.start [1/16] %v339, 128
        %406 = vxpose.xlu0.b32.cont [2/16] 0.0, 128
        %407 = vxpose.xlu0.b32.cont [3/16] 0.0, 128
        %408 = vxpose.xlu0.b32.cont [4/16] 0.0, 128
        %409 = vxpose.xlu0.b32.cont [5/16] 0.0, 128
        %410 = vxpose.xlu0.b32.cont [6/16] 0.0, 128
        %411 = vxpose.xlu0.b32.cont [7/16] 0.0, 128
        %412 = vxpose.xlu0.b32.cont [8/16] 0.0, 128
        %413 = vxpose.xlu0.b32.cont [9/16] 0.0, 128
        %414 = vxpose.xlu0.b32.cont [10/16] 0.0, 128
        %415 = vxpose.xlu0.b32.cont [11/16] 0.0, 128
        %416 = vxpose.xlu0.b32.cont [12/16] 0.0, 128
        %417 = vxpose.xlu0.b32.cont [13/16] 0.0, 128
        %418 = vxpose.xlu0.b32.cont [14/16] 0.0, 128
        %419 = vxpose.xlu0.b32.cont [15/16] 0.0, 128
        %420 = vxpose.xlu0.b32.end [16/16] 0.0, 128
        %v421 = vpop.trf.xlu0
        %v422 = vpop.trf.xlu0
        %v423 = vpop.trf.xlu0
        %v424 = vpop.trf.xlu0
        %v425 = vpop.trf.xlu0
        %v426 = vpop.trf.xlu0
        %v427 = vpop.trf.xlu0
        %v428 = vpop.trf.xlu0
        %v429 = vpop.trf.xlu0
        %v430 = vpop.trf.xlu0
        %v431 = vpop.trf.xlu0
        %v432 = vpop.trf.xlu0
        %v433 = vpop.trf.xlu0
        %v434 = vpop.trf.xlu0
        %v435 = vpop.trf.xlu0
        %v436 = vpop.trf.xlu0
        %437 = vxpose.xlu0.b32.start [1/16] %v340, 128
        %438 = vxpose.xlu0.b32.cont [2/16] 0.0, 128
        %439 = vxpose.xlu0.b32.cont [3/16] 0.0, 128
        %440 = vxpose.xlu0.b32.cont [4/16] 0.0, 128
        %441 = vxpose.xlu0.b32.cont [5/16] 0.0, 128
        %442 = vxpose.xlu0.b32.cont [6/16] 0.0, 128
        %443 = vxpose.xlu0.b32.cont [7/16] 0.0, 128
        %444 = vxpose.xlu0.b32.cont [8/16] 0.0, 128
        %445 = vxpose.xlu0.b32.cont [9/16] 0.0, 128
        %446 = vxpose.xlu0.b32.cont [10/16] 0.0, 128
        %447 = vxpose.xlu0.b32.cont [11/16] 0.0, 128
        %448 = vxpose.xlu0.b32.cont [12/16] 0.0, 128
        %449 = vxpose.xlu0.b32.cont [13/16] 0.0, 128
        %450 = vxpose.xlu0.b32.cont [14/16] 0.0, 128
        %451 = vxpose.xlu0.b32.cont [15/16] 0.0, 128
        %452 = vxpose.xlu0.b32.end [16/16] 0.0, 128
        %v453 = vpop.trf.xlu0
        %v454 = vpop.trf.xlu0
        %v455 = vpop.trf.xlu0
        %v456 = vpop.trf.xlu0
        %v457 = vpop.trf.xlu0
        %v458 = vpop.trf.xlu0
        %v459 = vpop.trf.xlu0
        %v460 = vpop.trf.xlu0
        %v461 = vpop.trf.xlu0
        %v462 = vpop.trf.xlu0
        %v463 = vpop.trf.xlu0
        %v464 = vpop.trf.xlu0
        %v465 = vpop.trf.xlu0
        %v466 = vpop.trf.xlu0
        %v467 = vpop.trf.xlu0
        %v468 = vpop.trf.xlu0
        %v469 = vld [vmem:[%s320] sm:$0xff]
        %vm470 = vcmask 64512
        %v472 = vsel %vm470, %v357, 0
        %v475 = vsel %vm470, %v358, 0
        %v478 = vsel %vm470, %v359, 0
        %v481 = vsel %vm470, %v360, 0
        %v484 = vsel %vm470, %v361, 0
        %v487 = vsel %vm470, %v362, 0
        %v490 = vsel %vm470, %v363, 0
        %v493 = vsel %vm470, %v364, 0
        %v496 = vsel %vm470, %v365, 0
        %v499 = vsel %vm470, %v366, 0
        %v502 = vsel %vm470, %v367, 0
        %v505 = vsel %vm470, %v368, 0
        %v508 = vsel %vm470, %v369, 0
        %v511 = vsel %vm470, %v370, 0
        %v514 = vsel %vm470, %v371, 0
        %v517 = vsel %vm470, %v372, 0
        %v520 = vsel %vm470, %v389, 0
        %v523 = vsel %vm470, %v390, 0
        %v526 = vsel %vm470, %v391, 0
        %v529 = vsel %vm470, %v392, 0
        %v532 = vsel %vm470, %v393, 0
        %v535 = vsel %vm470, %v394, 0
        %v538 = vsel %vm470, %v395, 0
        %v541 = vsel %vm470, %v396, 0
        %v544 = vsel %vm470, %v397, 0
        %v547 = vsel %vm470, %v398, 0
        %v550 = vsel %vm470, %v399, 0
        %v553 = vsel %vm470, %v400, 0
        %v556 = vsel %vm470, %v401, 0
        %v559 = vsel %vm470, %v402, 0
        %v562 = vsel %vm470, %v403, 0
        %v565 = vsel %vm470, %v404, 0
        %v568 = vsel %vm470, %v421, 0
        %v571 = vsel %vm470, %v422, 0
        %v574 = vsel %vm470, %v423, 0
        %v577 = vsel %vm470, %v424, 0
        %v580 = vsel %vm470, %v425, 0
        %v583 = vsel %vm470, %v426, 0
        %v586 = vsel %vm470, %v427, 0
        %v589 = vsel %vm470, %v428, 0
        %v592 = vsel %vm470, %v429, 0
        %v595 = vsel %vm470, %v430, 0
        %v598 = vsel %vm470, %v431, 0
        %v601 = vsel %vm470, %v432, 0
        %v604 = vsel %vm470, %v433, 0
        %v607 = vsel %vm470, %v434, 0
        %v610 = vsel %vm470, %v435, 0
        %v613 = vsel %vm470, %v436, 0
        %v616 = vsel %vm470, %v453, 0
        %v619 = vsel %vm470, %v454, 0
        %v622 = vsel %vm470, %v455, 0
        %v625 = vsel %vm470, %v456, 0
        %v628 = vsel %vm470, %v457, 0
        %v631 = vsel %vm470, %v458, 0
        %v634 = vsel %vm470, %v459, 0
        %v637 = vsel %vm470, %v460, 0
        %v640 = vsel %vm470, %v461, 0
        %v643 = vsel %vm470, %v462, 0
        %v646 = vsel %vm470, %v463, 0
        %v649 = vsel %vm470, %v464, 0
        %v652 = vsel %vm470, %v465, 0
        %v655 = vsel %vm470, %v466, 0
        %v658 = vsel %vm470, %v467, 0
        %v661 = vsel %vm470, %v468, 0
        %663 = vmatprep.subr.mxu0 0.0
        %664 = vmatpush1.msra.mxu0 %v469
        %665 = vmatprep.subr.mxu0 0.0
        %666 = vmatpush1.msra.mxu0 0.0
        %667 = vmatprep.subr.mxu0 0.0
        %668 = vmatpush1.msra.mxu0 0.0
        %669 = vmatprep.subr.mxu0 0.0
        %670 = vmatpush1.msra.mxu0 0.0
        %671 = vmatprep.subr.mxu0 0.0
        %672 = vmatpush1.msra.mxu0 0.0
        %673 = vmatprep.subr.mxu0 0.0
        %674 = vmatpush1.msra.mxu0 0.0
        %675 = vmatprep.subr.mxu0 0.0
        %676 = vmatpush1.msra.mxu0 0.0
        %677 = vmatprep.subr.mxu0 0.0
        %678 = vmatpush1.msra.mxu0 0.0
        %679 = vmatprep.subr.mxu0 0.0
        %680 = vmatpush1.msra.mxu0 0.0
        %681 = vmatprep.subr.mxu0 0.0
        %682 = vmatpush1.msra.mxu0 0.0
        %683 = vmatprep.subr.mxu0 0.0
        %684 = vmatpush1.msra.mxu0 0.0
        %685 = vmatprep.subr.mxu0 0.0
        %686 = vmatpush1.msra.mxu0 0.0
        %687 = vmatprep.subr.mxu0 0.0
        %688 = vmatpush1.msra.mxu0 0.0
        %689 = vmatprep.subr.mxu0 0.0
        %690 = vmatpush1.msra.mxu0 0.0
        %691 = vmatprep.subr.mxu0 0.0
        %692 = vmatpush1.msra.mxu0 0.0
        %693 = vmatprep.subr.mxu0 0.0
        %694 = vmatpush1.msra.mxu0 0.0
        %695 = vmatprep.subr.mxu0 0.0
        %696 = vmatpush1.msra.mxu0 0.0
        %697 = vmatprep.subr.mxu0 0.0
        %698 = vmatpush1.msra.mxu0 0.0
        %699 = vmatprep.subr.mxu0 0.0
        %700 = vmatpush1.msra.mxu0 0.0
        %701 = vmatprep.subr.mxu0 0.0
        %702 = vmatpush1.msra.mxu0 0.0
        %703 = vmatprep.subr.mxu0 0.0
        %704 = vmatpush1.msra.mxu0 0.0
        %705 = vmatprep.subr.mxu0 0.0
        %706 = vmatpush1.msra.mxu0 0.0
        %707 = vmatprep.subr.mxu0 0.0
        %708 = vmatpush1.msra.mxu0 0.0
        %709 = vmatprep.subr.mxu0 0.0
        %710 = vmatpush1.msra.mxu0 0.0
        %711 = vmatprep.subr.mxu0 0.0
        %712 = vmatpush1.msra.mxu0 0.0
        %713 = vmatprep.subr.mxu0 0.0
        %714 = vmatpush1.msra.mxu0 0.0
        %715 = vmatprep.subr.mxu0 0.0
        %716 = vmatpush1.msra.mxu0 0.0
        %717 = vmatprep.subr.mxu0 0.0
        %718 = vmatpush1.msra.mxu0 0.0
        %719 = vmatprep.subr.mxu0 0.0
        %720 = vmatpush1.msra.mxu0 0.0
        %721 = vmatprep.subr.mxu0 0.0
        %722 = vmatpush1.msra.mxu0 0.0
        %723 = vmatprep.subr.mxu0 0.0
        %724 = vmatpush1.msra.mxu0 0.0
        %725 = vmatprep.subr.mxu0 0.0
        %726 = vmatpush1.msra.mxu0 0.0
        %727 = vmatprep.mubr.f32.mxu0 0.0
        %728 = vmatmul.mubr.f32.gmra.mrb[0].mxu0 %v472
        %v729 = vpop.f32.mrb[0].mxu0
        %v730 = vadd.f32 0.0, %v729
        %v731 = vpop.f32.mrb[0].mxu0
        %732 = vmatprep.mubr.f32.mxu0 0.0
        %733 = vmatmul.mubr.f32.gmra.mrb[0].mxu0 %v475
        %v734 = vpop.f32.mrb[0].mxu0
        %v735 = vadd.f32 0.0, %v734
        %v736 = vpop.f32.mrb[0].mxu0
        %737 = vmatprep.mubr.f32.mxu0 0.0
        %738 = vmatmul.mubr.f32.gmra.mrb[0].mxu0 %v478
        %v739 = vpop.f32.mrb[0].mxu0
        %v740 = vadd.f32 0.0, %v739
        %v741 = vpop.f32.mrb[0].mxu0
        %742 = vmatprep.mubr.f32.mxu0 0.0
        %743 = vmatmul.mubr.f32.gmra.mrb[0].mxu0 %v481
        %v744 = vpop.f32.mrb[0].mxu0
        %v745 = vadd.f32 0.0, %v744
        %v746 = vpop.f32.mrb[0].mxu0
        %747 = vmatprep.mubr.f32.mxu0 0.0
        %748 = vmatmul.mubr.f32.gmra.mrb[0].mxu0 %v484
        %v749 = vpop.f32.mrb[0].mxu0
        %v750 = vadd.f32 0.0, %v749
        %v751 = vpop.f32.mrb[0].mxu0
        %752 = vmatprep.mubr.f32.mxu0 0.0
        %753 = vmatmul.mubr.f32.gmra.mrb[0].mxu0 %v487
        %v754 = vpop.f32.mrb[0].mxu0
        %v755 = vadd.f32 0.0, %v754
        %v756 = vpop.f32.mrb[0].mxu0
        %757 = vmatprep.mubr.f32.mxu0 0.0
        %758 = vmatmul.mubr.f32.gmra.mrb[0].mxu0 %v490
        %v759 = vpop.f32.mrb[0].mxu0
        %v760 = vadd.f32 0.0, %v759
        %v761 = vpop.f32.mrb[0].mxu0
        %762 = vmatprep.mubr.f32.mxu0 0.0
        %763 = vmatmul.mubr.f32.gmra.mrb[0].mxu0 %v493
        %v764 = vpop.f32.mrb[0].mxu0
        %v765 = vadd.f32 0.0, %v764
        %v766 = vpop.f32.mrb[0].mxu0
        %767 = vmatprep.mubr.f32.mxu0 0.0
        %768 = vmatmul.mubr.f32.gmra.mrb[0].mxu0 %v496
        %v769 = vpop.f32.mrb[0].mxu0
        %v770 = vadd.f32 0.0, %v769
        %v771 = vpop.f32.mrb[0].mxu0
        %772 = vmatprep.mubr.f32.mxu0 0.0
        %773 = vmatmul.mubr.f32.gmra.mrb[0].mxu0 %v499
        %v774 = vpop.f32.mrb[0].mxu0
        %v775 = vadd.f32 0.0, %v774
        %v776 = vpop.f32.mrb[0].mxu0
        %777 = vmatprep.mubr.f32.mxu0 0.0
        %778 = vmatmul.mubr.f32.gmra.mrb[0].mxu0 %v502
        %v779 = vpop.f32.mrb[0].mxu0
        %v780 = vadd.f32 0.0, %v779
        %v781 = vpop.f32.mrb[0].mxu0
        %782 = vmatprep.mubr.f32.mxu0 0.0
        %783 = vmatmul.mubr.f32.gmra.mrb[0].mxu0 %v505
        %v784 = vpop.f32.mrb[0].mxu0
        %v785 = vadd.f32 0.0, %v784
        %v786 = vpop.f32.mrb[0].mxu0
        %787 = vmatprep.mubr.f32.mxu0 0.0
        %788 = vmatmul.mubr.f32.gmra.mrb[0].mxu0 %v508
        %v789 = vpop.f32.mrb[0].mxu0
        %v790 = vadd.f32 0.0, %v789
        %v791 = vpop.f32.mrb[0].mxu0
        %792 = vmatprep.mubr.f32.mxu0 0.0
        %793 = vmatmul.mubr.f32.gmra.mrb[0].mxu0 %v511
        %v794 = vpop.f32.mrb[0].mxu0
        %v795 = vadd.f32 0.0, %v794
        %v796 = vpop.f32.mrb[0].mxu0
        %797 = vmatprep.mubr.f32.mxu0 0.0
        %798 = vmatmul.mubr.f32.gmra.mrb[0].mxu0 %v514
        %v799 = vpop.f32.mrb[0].mxu0
        %v800 = vadd.f32 0.0, %v799
        %v801 = vpop.f32.mrb[0].mxu0
        %802 = vmatprep.mubr.f32.mxu0 0.0
        %803 = vmatmul.mubr.f32.gmra.mrb[0].mxu0 %v517
        %v804 = vpop.f32.mrb[0].mxu0
        %v805 = vadd.f32 0.0, %v804
        %v806 = vpop.f32.mrb[0].mxu0
        %807 = vmatprep.mubr.f32.mxu0 0.0
        %808 = vmatmul.mubr.f32.gmra.mrb[0].mxu0 %v520
        %v809 = vpop.f32.mrb[0].mxu0
        %v810 = vadd.f32 0.0, %v809
        %v811 = vpop.f32.mrb[0].mxu0
        %812 = vmatprep.mubr.f32.mxu0 0.0
        %813 = vmatmul.mubr.f32.gmra.mrb[0].mxu0 %v523
        %v814 = vpop.f32.mrb[0].mxu0
        %v815 = vadd.f32 0.0, %v814
        %v816 = vpop.f32.mrb[0].mxu0
        %817 = vmatprep.mubr.f32.mxu0 0.0
        %818 = vmatmul.mubr.f32.gmra.mrb[0].mxu0 %v526
        %v819 = vpop.f32.mrb[0].mxu0
        %v820 = vadd.f32 0.0, %v819
        %v821 = vpop.f32.mrb[0].mxu0
        %822 = vmatprep.mubr.f32.mxu0 0.0
        %823 = vmatmul.mubr.f32.gmra.mrb[0].mxu0 %v529
        %v824 = vpop.f32.mrb[0].mxu0
        %v825 = vadd.f32 0.0, %v824
        %v826 = vpop.f32.mrb[0].mxu0
        %827 = vmatprep.mubr.f32.mxu0 0.0
        %828 = vmatmul.mubr.f32.gmra.mrb[0].mxu0 %v532
        %v829 = vpop.f32.mrb[0].mxu0
        %v830 = vadd.f32 0.0, %v829
        %v831 = vpop.f32.mrb[0].mxu0
        %832 = vmatprep.mubr.f32.mxu0 0.0
        %833 = vmatmul.mubr.f32.gmra.mrb[0].mxu0 %v535
        %v834 = vpop.f32.mrb[0].mxu0
        %v835 = vadd.f32 0.0, %v834
        %v836 = vpop.f32.mrb[0].mxu0
        %837 = vmatprep.mubr.f32.mxu0 0.0
        %838 = vmatmul.mubr.f32.gmra.mrb[0].mxu0 %v538
        %v839 = vpop.f32.mrb[0].mxu0
        %v840 = vadd.f32 0.0, %v839
        %v841 = vpop.f32.mrb[0].mxu0
        %842 = vmatprep.mubr.f32.mxu0 0.0
        %843 = vmatmul.mubr.f32.gmra.mrb[0].mxu0 %v541
        %v844 = vpop.f32.mrb[0].mxu0
        %v845 = vadd.f32 0.0, %v844
        %v846 = vpop.f32.mrb[0].mxu0
        %847 = vmatprep.mubr.f32.mxu0 0.0
        %848 = vmatmul.mubr.f32.gmra.mrb[0].mxu0 %v544
        %v849 = vpop.f32.mrb[0].mxu0
        %v850 = vadd.f32 0.0, %v849
        %v851 = vpop.f32.mrb[0].mxu0
        %852 = vmatprep.mubr.f32.mxu0 0.0
        %853 = vmatmul.mubr.f32.gmra.mrb[0].mxu0 %v547
        %v854 = vpop.f32.mrb[0].mxu0
        %v855 = vadd.f32 0.0, %v854
        %v856 = vpop.f32.mrb[0].mxu0
        %857 = vmatprep.mubr.f32.mxu0 0.0
        %858 = vmatmul.mubr.f32.gmra.mrb[0].mxu0 %v550
        %v859 = vpop.f32.mrb[0].mxu0
        %v860 = vadd.f32 0.0, %v859
        %v861 = vpop.f32.mrb[0].mxu0
        %862 = vmatprep.mubr.f32.mxu0 0.0
        %863 = vmatmul.mubr.f32.gmra.mrb[0].mxu0 %v553
        %v864 = vpop.f32.mrb[0].mxu0
        %v865 = vadd.f32 0.0, %v864
        %v866 = vpop.f32.mrb[0].mxu0
        %867 = vmatprep.mubr.f32.mxu0 0.0
        %868 = vmatmul.mubr.f32.gmra.mrb[0].mxu0 %v556
        %v869 = vpop.f32.mrb[0].mxu0
        %v870 = vadd.f32 0.0, %v869
        %v871 = vpop.f32.mrb[0].mxu0
        %872 = vmatprep.mubr.f32.mxu0 0.0
        %873 = vmatmul.mubr.f32.gmra.mrb[0].mxu0 %v559
        %v874 = vpop.f32.mrb[0].mxu0
        %v875 = vadd.f32 0.0, %v874
        %v876 = vpop.f32.mrb[0].mxu0
        %877 = vmatprep.mubr.f32.mxu0 0.0
        %878 = vmatmul.mubr.f32.gmra.mrb[0].mxu0 %v562
        %v879 = vpop.f32.mrb[0].mxu0
        %v880 = vadd.f32 0.0, %v879
        %v881 = vpop.f32.mrb[0].mxu0
        %882 = vmatprep.mubr.f32.mxu0 0.0
        %883 = vmatmul.mubr.f32.gmra.mrb[0].mxu0 %v565
        %v884 = vpop.f32.mrb[0].mxu0
        %v885 = vadd.f32 0.0, %v884
        %v886 = vpop.f32.mrb[0].mxu0
        %887 = vmatprep.mubr.f32.mxu0 0.0
        %888 = vmatmul.mubr.f32.gmra.mrb[0].mxu0 %v568
        %v889 = vpop.f32.mrb[0].mxu0
        %v890 = vadd.f32 0.0, %v889
        %v891 = vpop.f32.mrb[0].mxu0
        %892 = vmatprep.mubr.f32.mxu0 0.0
        %893 = vmatmul.mubr.f32.gmra.mrb[0].mxu0 %v571
        %v894 = vpop.f32.mrb[0].mxu0
        %v895 = vadd.f32 0.0, %v894
        %v896 = vpop.f32.mrb[0].mxu0
        %897 = vmatprep.mubr.f32.mxu0 0.0
        %898 = vmatmul.mubr.f32.gmra.mrb[0].mxu0 %v574
        %v899 = vpop.f32.mrb[0].mxu0
        %v900 = vadd.f32 0.0, %v899
        %v901 = vpop.f32.mrb[0].mxu0
        %902 = vmatprep.mubr.f32.mxu0 0.0
        %903 = vmatmul.mubr.f32.gmra.mrb[0].mxu0 %v577
        %v904 = vpop.f32.mrb[0].mxu0
        %v905 = vadd.f32 0.0, %v904
        %v906 = vpop.f32.mrb[0].mxu0
        %907 = vmatprep.mubr.f32.mxu0 0.0
        %908 = vmatmul.mubr.f32.gmra.mrb[0].mxu0 %v580
        %v909 = vpop.f32.mrb[0].mxu0
        %v910 = vadd.f32 0.0, %v909
        %v911 = vpop.f32.mrb[0].mxu0
        %912 = vmatprep.mubr.f32.mxu0 0.0
        %913 = vmatmul.mubr.f32.gmra.mrb[0].mxu0 %v583
        %v914 = vpop.f32.mrb[0].mxu0
        %v915 = vadd.f32 0.0, %v914
        %v916 = vpop.f32.mrb[0].mxu0
        %917 = vmatprep.mubr.f32.mxu0 0.0
        %918 = vmatmul.mubr.f32.gmra.mrb[0].mxu0 %v586
        %v919 = vpop.f32.mrb[0].mxu0
        %v920 = vadd.f32 0.0, %v919
        %v921 = vpop.f32.mrb[0].mxu0
        %922 = vmatprep.mubr.f32.mxu0 0.0
        %923 = vmatmul.mubr.f32.gmra.mrb[0].mxu0 %v589
        %v924 = vpop.f32.mrb[0].mxu0
        %v925 = vadd.f32 0.0, %v924
        %v926 = vpop.f32.mrb[0].mxu0
        %927 = vmatprep.mubr.f32.mxu0 0.0
        %928 = vmatmul.mubr.f32.gmra.mrb[0].mxu0 %v592
        %v929 = vpop.f32.mrb[0].mxu0
        %v930 = vadd.f32 0.0, %v929
        %v931 = vpop.f32.mrb[0].mxu0
        %932 = vmatprep.mubr.f32.mxu0 0.0
        %933 = vmatmul.mubr.f32.gmra.mrb[0].mxu0 %v595
        %v934 = vpop.f32.mrb[0].mxu0
        %v935 = vadd.f32 0.0, %v934
        %v936 = vpop.f32.mrb[0].mxu0
        %937 = vmatprep.mubr.f32.mxu0 0.0
        %938 = vmatmul.mubr.f32.gmra.mrb[0].mxu0 %v598
        %v939 = vpop.f32.mrb[0].mxu0
        %v940 = vadd.f32 0.0, %v939
        %v941 = vpop.f32.mrb[0].mxu0
        %942 = vmatprep.mubr.f32.mxu0 0.0
        %943 = vmatmul.mubr.f32.gmra.mrb[0].mxu0 %v601
        %v944 = vpop.f32.mrb[0].mxu0
        %v945 = vadd.f32 0.0, %v944
        %v946 = vpop.f32.mrb[0].mxu0
        %947 = vmatprep.mubr.f32.mxu0 0.0
        %948 = vmatmul.mubr.f32.gmra.mrb[0].mxu0 %v604
        %v949 = vpop.f32.mrb[0].mxu0
        %v950 = vadd.f32 0.0, %v949
        %v951 = vpop.f32.mrb[0].mxu0
        %952 = vmatprep.mubr.f32.mxu0 0.0
        %953 = vmatmul.mubr.f32.gmra.mrb[0].mxu0 %v607
        %v954 = vpop.f32.mrb[0].mxu0
        %v955 = vadd.f32 0.0, %v954
        %v956 = vpop.f32.mrb[0].mxu0
        %957 = vmatprep.mubr.f32.mxu0 0.0
        %958 = vmatmul.mubr.f32.gmra.mrb[0].mxu0 %v610
        %v959 = vpop.f32.mrb[0].mxu0
        %v960 = vadd.f32 0.0, %v959
        %v961 = vpop.f32.mrb[0].mxu0
        %962 = vmatprep.mubr.f32.mxu0 0.0
        %963 = vmatmul.mubr.f32.gmra.mrb[0].mxu0 %v613
        %v964 = vpop.f32.mrb[0].mxu0
        %v965 = vadd.f32 0.0, %v964
        %v966 = vpop.f32.mrb[0].mxu0
        %967 = vmatprep.mubr.f32.mxu0 0.0
        %968 = vmatmul.mubr.f32.gmra.mrb[0].mxu0 %v616
        %v969 = vpop.f32.mrb[0].mxu0
        %v970 = vadd.f32 0.0, %v969
        %v971 = vpop.f32.mrb[0].mxu0
        %972 = vmatprep.mubr.f32.mxu0 0.0
        %973 = vmatmul.mubr.f32.gmra.mrb[0].mxu0 %v619
        %v974 = vpop.f32.mrb[0].mxu0
        %v975 = vadd.f32 0.0, %v974
        %v976 = vpop.f32.mrb[0].mxu0
        %977 = vmatprep.mubr.f32.mxu0 0.0
        %978 = vmatmul.mubr.f32.gmra.mrb[0].mxu0 %v622
        %v979 = vpop.f32.mrb[0].mxu0
        %v980 = vadd.f32 0.0, %v979
        %v981 = vpop.f32.mrb[0].mxu0
        %982 = vmatprep.mubr.f32.mxu0 0.0
        %983 = vmatmul.mubr.f32.gmra.mrb[0].mxu0 %v625
        %v984 = vpop.f32.mrb[0].mxu0
        %v985 = vadd.f32 0.0, %v984
        %v986 = vpop.f32.mrb[0].mxu0
        %987 = vmatprep.mubr.f32.mxu0 0.0
        %988 = vmatmul.mubr.f32.gmra.mrb[0].mxu0 %v628
        %v989 = vpop.f32.mrb[0].mxu0
        %v990 = vadd.f32 0.0, %v989
        %v991 = vpop.f32.mrb[0].mxu0
        %992 = vmatprep.mubr.f32.mxu0 0.0
        %993 = vmatmul.mubr.f32.gmra.mrb[0].mxu0 %v631
        %v994 = vpop.f32.mrb[0].mxu0
        %v995 = vadd.f32 0.0, %v994
        %v996 = vpop.f32.mrb[0].mxu0
        %997 = vmatprep.mubr.f32.mxu0 0.0
        %998 = vmatmul.mubr.f32.gmra.mrb[0].mxu0 %v634
        %v999 = vpop.f32.mrb[0].mxu0
        %v1000 = vadd.f32 0.0, %v999
        %v1001 = vpop.f32.mrb[0].mxu0
        %1002 = vmatprep.mubr.f32.mxu0 0.0
        %1003 = vmatmul.mubr.f32.gmra.mrb[0].mxu0 %v637
        %v1004 = vpop.f32.mrb[0].mxu0
        %v1005 = vadd.f32 0.0, %v1004
        %v1006 = vpop.f32.mrb[0].mxu0
        %1007 = vmatprep.mubr.f32.mxu0 0.0
        %1008 = vmatmul.mubr.f32.gmra.mrb[0].mxu0 %v640
        %v1009 = vpop.f32.mrb[0].mxu0
        %v1010 = vadd.f32 0.0, %v1009
        %v1011 = vpop.f32.mrb[0].mxu0
        %1012 = vmatprep.mubr.f32.mxu0 0.0
        %1013 = vmatmul.mubr.f32.gmra.mrb[0].mxu0 %v643
        %v1014 = vpop.f32.mrb[0].mxu0
        %v1015 = vadd.f32 0.0, %v1014
        %v1016 = vpop.f32.mrb[0].mxu0
        %1017 = vmatprep.mubr.f32.mxu0 0.0
        %1018 = vmatmul.mubr.f32.gmra.mrb[0].mxu0 %v646
        %v1019 = vpop.f32.mrb[0].mxu0
        %v1020 = vadd.f32 0.0, %v1019
        %v1021 = vpop.f32.mrb[0].mxu0
        %1022 = vmatprep.mubr.f32.mxu0 0.0
        %1023 = vmatmul.mubr.f32.gmra.mrb[0].mxu0 %v649
        %v1024 = vpop.f32.mrb[0].mxu0
        %v1025 = vadd.f32 0.0, %v1024
        %v1026 = vpop.f32.mrb[0].mxu0
        %1027 = vmatprep.mubr.f32.mxu0 0.0
        %1028 = vmatmul.mubr.f32.gmra.mrb[0].mxu0 %v652
        %v1029 = vpop.f32.mrb[0].mxu0
        %v1030 = vadd.f32 0.0, %v1029
        %v1031 = vpop.f32.mrb[0].mxu0
        %1032 = vmatprep.mubr.f32.mxu0 0.0
        %1033 = vmatmul.mubr.f32.gmra.mrb[0].mxu0 %v655
        %v1034 = vpop.f32.mrb[0].mxu0
        %v1035 = vadd.f32 0.0, %v1034
        %v1036 = vpop.f32.mrb[0].mxu0
        %1037 = vmatprep.mubr.f32.mxu0 0.0
        %1038 = vmatmul.mubr.f32.gmra.mrb[0].mxu0 %v658
        %v1039 = vpop.f32.mrb[0].mxu0
        %v1040 = vadd.f32 0.0, %v1039
        %v1041 = vpop.f32.mrb[0].mxu0
        %1042 = vmatprep.mubr.f32.mxu0 0.0
        %1043 = vmatmul.mubr.f32.gmra.mrb[0].mxu0 %v661
        %v1044 = vpop.f32.mrb[0].mxu0
        %v1045 = vadd.f32 0.0, %v1044
        %v1046 = vpop.f32.mrb[0].mxu0
        %1047 = vdwg.mxu0
        %v1048 = vld [vmem:[%s325] sm:$0xff]
        %v1049 = vld [vmem:[%s325 + $0x8] sm:$0xff]
        %v1051 = vsel %vm470, %v1048, 0
        %v1054 = vsel %vm470, %v1049, 0
        %1056 = vmatprep.subr.mxu0 %v338
        %1057 = vmatpush1.msra.mxu0 %v337
        %1058 = vmatprep.subr.mxu0 0.0
        %1059 = vmatpush1.msra.mxu0 0.0
        %1060 = vmatprep.subr.mxu0 0.0
        %1061 = vmatpush1.msra.mxu0 0.0
        %1062 = vmatprep.subr.mxu0 0.0
        %1063 = vmatpush1.msra.mxu0 0.0
        %1064 = vmatprep.subr.mxu0 0.0
        %1065 = vmatpush1.msra.mxu0 0.0
        %1066 = vmatprep.subr.mxu0 0.0
        %1067 = vmatpush1.msra.mxu0 0.0
        %1068 = vmatprep.subr.mxu0 0.0
        %1069 = vmatpush1.msra.mxu0 0.0
        %1070 = vmatprep.subr.mxu0 0.0
        %1071 = vmatpush1.msra.mxu0 0.0
        %1072 = vmatprep.subr.mxu0 0.0
        %1073 = vmatpush1.msra.mxu0 0.0
        %1074 = vmatprep.subr.mxu0 0.0
        %1075 = vmatpush1.msra.mxu0 0.0
        %1076 = vmatprep.subr.mxu0 0.0
        %1077 = vmatpush1.msra.mxu0 0.0
        %1078 = vmatprep.subr.mxu0 0.0
        %1079 = vmatpush1.msra.mxu0 0.0
        %1080 = vmatprep.subr.mxu0 0.0
        %1081 = vmatpush1.msra.mxu0 0.0
        %1082 = vmatprep.subr.mxu0 0.0
        %1083 = vmatpush1.msra.mxu0 0.0
        %1084 = vmatprep.subr.mxu0 0.0
        %1085 = vmatpush1.msra.mxu0 0.0
        %1086 = vmatprep.subr.mxu0 0.0
        %1087 = vmatpush1.msra.mxu0 0.0
        %1088 = vmatprep.subr.mxu0 0.0
        %1089 = vmatpush1.msra.mxu0 0.0
        %1090 = vmatprep.subr.mxu0 0.0
        %1091 = vmatpush1.msra.mxu0 0.0
        %1092 = vmatprep.subr.mxu0 0.0
        %1093 = vmatpush1.msra.mxu0 0.0
        %1094 = vmatprep.subr.mxu0 0.0
        %1095 = vmatpush1.msra.mxu0 0.0
        %1096 = vmatprep.subr.mxu0 0.0
        %1097 = vmatpush1.msra.mxu0 0.0
        %1098 = vmatprep.subr.mxu0 0.0
        %1099 = vmatpush1.msra.mxu0 0.0
        %1100 = vmatprep.subr.mxu0 0.0
        %1101 = vmatpush1.msra.mxu0 0.0
        %1102 = vmatprep.subr.mxu0 0.0
        %1103 = vmatpush1.msra.mxu0 0.0
        %1104 = vmatprep.subr.mxu0 0.0
        %1105 = vmatpush1.msra.mxu0 0.0
        %1106 = vmatprep.subr.mxu0 0.0
        %1107 = vmatpush1.msra.mxu0 0.0
        %1108 = vmatprep.subr.mxu0 0.0
        %1109 = vmatpush1.msra.mxu0 0.0
        %1110 = vmatprep.subr.mxu0 0.0
        %1111 = vmatpush1.msra.mxu0 0.0
        %1112 = vmatprep.subr.mxu0 0.0
        %1113 = vmatpush1.msra.mxu0 0.0
        %1114 = vmatprep.subr.mxu0 0.0
        %1115 = vmatpush1.msra.mxu0 0.0
        %1116 = vmatprep.subr.mxu0 0.0
        %1117 = vmatpush1.msra.mxu0 0.0
        %1118 = vmatprep.subr.mxu0 0.0
        %1119 = vmatpush1.msra.mxu0 0.0
        %1120 = vmatprep.mubr.f32.mxu0 0.0
        %1121 = vmatmul.mubr.f32.gmra.mrb[0].mxu0 %v1051
        %v1122 = vpop.f32.mrb[0].mxu0
        %v1123 = vadd.f32 0.0, %v1122
        %v1124 = vpop.f32.mrb[0].mxu0
        %v1125 = vadd.f32 0.0, %v1124
        %1126 = vmatprep.mubr.f32.mxu0 0.0
        %1127 = vmatmul.mubr.f32.gmra.mrb[0].mxu0 %v1054
        %v1128 = vpop.f32.mrb[0].mxu0
        %v1129 = vadd.f32 0.0, %v1128
        %v1130 = vpop.f32.mrb[0].mxu0
        %v1131 = vadd.f32 0.0, %v1130
        %1132 = vdwg.mxu0
        %1133 = vmatprep.subr.mxu0 %v340
        %1134 = vmatpush1.msra.mxu0 %v339
        %1135 = vmatprep.subr.mxu0 0.0
        %1136 = vmatpush1.msra.mxu0 0.0
        %1137 = vmatprep.subr.mxu0 0.0
        %1138 = vmatpush1.msra.mxu0 0.0
        %1139 = vmatprep.subr.mxu0 0.0
        %1140 = vmatpush1.msra.mxu0 0.0
        %1141 = vmatprep.subr.mxu0 0.0
        %1142 = vmatpush1.msra.mxu0 0.0
        %1143 = vmatprep.subr.mxu0 0.0
        %1144 = vmatpush1.msra.mxu0 0.0
        %1145 = vmatprep.subr.mxu0 0.0
        %1146 = vmatpush1.msra.mxu0 0.0
        %1147 = vmatprep.subr.mxu0 0.0
        %1148 = vmatpush1.msra.mxu0 0.0
        %1149 = vmatprep.subr.mxu0 0.0
        %1150 = vmatpush1.msra.mxu0 0.0
        %1151 = vmatprep.subr.mxu0 0.0
        %1152 = vmatpush1.msra.mxu0 0.0
        %1153 = vmatprep.subr.mxu0 0.0
        %1154 = vmatpush1.msra.mxu0 0.0
        %1155 = vmatprep.subr.mxu0 0.0
        %1156 = vmatpush1.msra.mxu0 0.0
        %1157 = vmatprep.subr.mxu0 0.0
        %1158 = vmatpush1.msra.mxu0 0.0
        %1159 = vmatprep.subr.mxu0 0.0
        %1160 = vmatpush1.msra.mxu0 0.0
        %1161 = vmatprep.subr.mxu0 0.0
        %1162 = vmatpush1.msra.mxu0 0.0
        %1163 = vmatprep.subr.mxu0 0.0
        %1164 = vmatpush1.msra.mxu0 0.0
        %1165 = vmatprep.subr.mxu0 0.0
        %1166 = vmatpush1.msra.mxu0 0.0
        %1167 = vmatprep.subr.mxu0 0.0
        %1168 = vmatpush1.msra.mxu0 0.0
        %1169 = vmatprep.subr.mxu0 0.0
        %1170 = vmatpush1.msra.mxu0 0.0
        %1171 = vmatprep.subr.mxu0 0.0
        %1172 = vmatpush1.msra.mxu0 0.0
        %1173 = vmatprep.subr.mxu0 0.0
        %1174 = vmatpush1.msra.mxu0 0.0
        %1175 = vmatprep.subr.mxu0 0.0
        %1176 = vmatpush1.msra.mxu0 0.0
        %1177 = vmatprep.subr.mxu0 0.0
        %1178 = vmatpush1.msra.mxu0 0.0
        %1179 = vmatprep.subr.mxu0 0.0
        %1180 = vmatpush1.msra.mxu0 0.0
        %1181 = vmatprep.subr.mxu0 0.0
        %1182 = vmatpush1.msra.mxu0 0.0
        %1183 = vmatprep.subr.mxu0 0.0
        %1184 = vmatpush1.msra.mxu0 0.0
        %1185 = vmatprep.subr.mxu0 0.0
        %1186 = vmatpush1.msra.mxu0 0.0
        %1187 = vmatprep.subr.mxu0 0.0
        %1188 = vmatpush1.msra.mxu0 0.0
        %1189 = vmatprep.subr.mxu0 0.0
        %1190 = vmatpush1.msra.mxu0 0.0
        %1191 = vmatprep.subr.mxu0 0.0
        %1192 = vmatpush1.msra.mxu0 0.0
        %1193 = vmatprep.subr.mxu0 0.0
        %1194 = vmatpush1.msra.mxu0 0.0
        %1195 = vmatprep.subr.mxu0 0.0
        %1196 = vmatpush1.msra.mxu0 0.0
        %1197 = vmatprep.mubr.f32.mxu0 0.0
        %1198 = vmatmul.mubr.f32.gmra.mrb[0].mxu0 %v1051
        %v1199 = vpop.f32.mrb[0].mxu0
        %v1200 = vadd.f32 0.0, %v1199
        %v1201 = vpop.f32.mrb[0].mxu0
        %v1202 = vadd.f32 0.0, %v1201
        %1203 = vmatprep.mubr.f32.mxu0 0.0
        %1204 = vmatmul.mubr.f32.gmra.mrb[0].mxu0 %v1054
        %v1205 = vpop.f32.mrb[0].mxu0
        %v1206 = vadd.f32 0.0, %v1205
        %v1207 = vpop.f32.mrb[0].mxu0
        %v1208 = vadd.f32 0.0, %v1207
        %1209 = vdwg.mxu0
        %v1210 = vld [vmem:[%s261] sm:$0xff]
        %1211 = vmatprep.subr.mxu0 0.0
        %1212 = vmatpush1.msra.mxu0 %v1210
        %1213 = vmatprep.subr.mxu0 0.0
        %1214 = vmatpush1.msra.mxu0 0.0
        %1215 = vmatprep.subr.mxu0 0.0
        %1216 = vmatpush1.msra.mxu0 0.0
        %1217 = vmatprep.subr.mxu0 0.0
        %1218 = vmatpush1.msra.mxu0 0.0
        %1219 = vmatprep.subr.mxu0 0.0
        %1220 = vmatpush1.msra.mxu0 0.0
        %1221 = vmatprep.subr.mxu0 0.0
        %1222 = vmatpush1.msra.mxu0 0.0
        %1223 = vmatprep.subr.mxu0 0.0
        %1224 = vmatpush1.msra.mxu0 0.0
        %1225 = vmatprep.subr.mxu0 0.0
        %1226 = vmatpush1.msra.mxu0 0.0
        %1227 = vmatprep.subr.mxu0 0.0
        %1228 = vmatpush1.msra.mxu0 0.0
        %1229 = vmatprep.subr.mxu0 0.0
        %1230 = vmatpush1.msra.mxu0 0.0
        %1231 = vmatprep.subr.mxu0 0.0
        %1232 = vmatpush1.msra.mxu0 0.0
        %1233 = vmatprep.subr.mxu0 0.0
        %1234 = vmatpush1.msra.mxu0 0.0
        %1235 = vmatprep.subr.mxu0 0.0
        %1236 = vmatpush1.msra.mxu0 0.0
        %1237 = vmatprep.subr.mxu0 0.0
        %1238 = vmatpush1.msra.mxu0 0.0
        %1239 = vmatprep.subr.mxu0 0.0
        %1240 = vmatpush1.msra.mxu0 0.0
        %1241 = vmatprep.subr.mxu0 0.0
        %1242 = vmatpush1.msra.mxu0 0.0
        %1243 = vmatprep.subr.mxu0 0.0
        %1244 = vmatpush1.msra.mxu0 0.0
        %1245 = vmatprep.subr.mxu0 0.0
        %1246 = vmatpush1.msra.mxu0 0.0
        %1247 = vmatprep.subr.mxu0 0.0
        %1248 = vmatpush1.msra.mxu0 0.0
        %1249 = vmatprep.subr.mxu0 0.0
        %1250 = vmatpush1.msra.mxu0 0.0
        %1251 = vmatprep.subr.mxu0 0.0
        %1252 = vmatpush1.msra.mxu0 0.0
        %1253 = vmatprep.subr.mxu0 0.0
        %1254 = vmatpush1.msra.mxu0 0.0
        %1255 = vmatprep.subr.mxu0 0.0
        %1256 = vmatpush1.msra.mxu0 0.0
        %1257 = vmatprep.subr.mxu0 0.0
        %1258 = vmatpush1.msra.mxu0 0.0
        %1259 = vmatprep.subr.mxu0 0.0
        %1260 = vmatpush1.msra.mxu0 0.0
        %1261 = vmatprep.subr.mxu0 0.0
        %1262 = vmatpush1.msra.mxu0 0.0
        %1263 = vmatprep.subr.mxu0 0.0
        %1264 = vmatpush1.msra.mxu0 0.0
        %1265 = vmatprep.subr.mxu0 0.0
        %1266 = vmatpush1.msra.mxu0 0.0
        %1267 = vmatprep.subr.mxu0 0.0
        %1268 = vmatpush1.msra.mxu0 0.0
        %1269 = vmatprep.subr.mxu0 0.0
        %1270 = vmatpush1.msra.mxu0 0.0
        %1271 = vmatprep.subr.mxu0 0.0
        %1272 = vmatpush1.msra.mxu0 0.0
        %1273 = vmatprep.subr.mxu0 0.0
        %1274 = vmatpush1.msra.mxu0 0.0
        %1275 = vmatprep.mubr.f32.mxu0 0.0
        %1276 = vmatmul.mubr.f32.gmra.mrb[0].mxu0 %v472
        %v1277 = vpop.f32.mrb[0].mxu0
        %v1278 = vadd.f32 0.0, %v1277
        %v1279 = vpop.f32.mrb[0].mxu0
        %1280 = vmatprep.mubr.f32.mxu0 0.0
        %1281 = vmatmul.mubr.f32.gmra.mrb[0].mxu0 %v475
        %v1282 = vpop.f32.mrb[0].mxu0
        %v1283 = vadd.f32 0.0, %v1282
        %v1284 = vpop.f32.mrb[0].mxu0
        %1285 = vmatprep.mubr.f32.mxu0 0.0
        %1286 = vmatmul.mubr.f32.gmra.mrb[0].mxu0 %v478
        %v1287 = vpop.f32.mrb[0].mxu0
        %v1288 = vadd.f32 0.0, %v1287
        %v1289 = vpop.f32.mrb[0].mxu0
        %1290 = vmatprep.mubr.f32.mxu0 0.0
        %1291 = vmatmul.mubr.f32.gmra.mrb[0].mxu0 %v481
        %v1292 = vpop.f32.mrb[0].mxu0
        %v1293 = vadd.f32 0.0, %v1292
        %v1294 = vpop.f32.mrb[0].mxu0
        %1295 = vmatprep.mubr.f32.mxu0 0.0
        %1296 = vmatmul.mubr.f32.gmra.mrb[0].mxu0 %v484
        %v1297 = vpop.f32.mrb[0].mxu0
        %v1298 = vadd.f32 0.0, %v1297
        %v1299 = vpop.f32.mrb[0].mxu0
        %1300 = vmatprep.mubr.f32.mxu0 0.0
        %1301 = vmatmul.mubr.f32.gmra.mrb[0].mxu0 %v487
        %v1302 = vpop.f32.mrb[0].mxu0
        %v1303 = vadd.f32 0.0, %v1302
        %v1304 = vpop.f32.mrb[0].mxu0
        %1305 = vmatprep.mubr.f32.mxu0 0.0
        %1306 = vmatmul.mubr.f32.gmra.mrb[0].mxu0 %v490
        %v1307 = vpop.f32.mrb[0].mxu0
        %v1308 = vadd.f32 0.0, %v1307
        %v1309 = vpop.f32.mrb[0].mxu0
        %1310 = vmatprep.mubr.f32.mxu0 0.0
        %1311 = vmatmul.mubr.f32.gmra.mrb[0].mxu0 %v493
        %v1312 = vpop.f32.mrb[0].mxu0
        %v1313 = vadd.f32 0.0, %v1312
        %v1314 = vpop.f32.mrb[0].mxu0
        %1315 = vmatprep.mubr.f32.mxu0 0.0
        %1316 = vmatmul.mubr.f32.gmra.mrb[0].mxu0 %v496
        %v1317 = vpop.f32.mrb[0].mxu0
        %v1318 = vadd.f32 0.0, %v1317
        %v1319 = vpop.f32.mrb[0].mxu0
        %1320 = vmatprep.mubr.f32.mxu0 0.0
        %1321 = vmatmul.mubr.f32.gmra.mrb[0].mxu0 %v499
        %v1322 = vpop.f32.mrb[0].mxu0
        %v1323 = vadd.f32 0.0, %v1322
        %v1324 = vpop.f32.mrb[0].mxu0
        %1325 = vmatprep.mubr.f32.mxu0 0.0
        %1326 = vmatmul.mubr.f32.gmra.mrb[0].mxu0 %v502
        %v1327 = vpop.f32.mrb[0].mxu0
        %v1328 = vadd.f32 0.0, %v1327
        %v1329 = vpop.f32.mrb[0].mxu0
        %1330 = vmatprep.mubr.f32.mxu0 0.0
        %1331 = vmatmul.mubr.f32.gmra.mrb[0].mxu0 %v505
        %v1332 = vpop.f32.mrb[0].mxu0
        %v1333 = vadd.f32 0.0, %v1332
        %v1334 = vpop.f32.mrb[0].mxu0
        %1335 = vmatprep.mubr.f32.mxu0 0.0
        %1336 = vmatmul.mubr.f32.gmra.mrb[0].mxu0 %v508
        %v1337 = vpop.f32.mrb[0].mxu0
        %v1338 = vadd.f32 0.0, %v1337
        %v1339 = vpop.f32.mrb[0].mxu0
        %1340 = vmatprep.mubr.f32.mxu0 0.0
        %1341 = vmatmul.mubr.f32.gmra.mrb[0].mxu0 %v511
        %v1342 = vpop.f32.mrb[0].mxu0
        %v1343 = vadd.f32 0.0, %v1342
        %v1344 = vpop.f32.mrb[0].mxu0
        %1345 = vmatprep.mubr.f32.mxu0 0.0
        %1346 = vmatmul.mubr.f32.gmra.mrb[0].mxu0 %v514
        %v1347 = vpop.f32.mrb[0].mxu0
        %v1348 = vadd.f32 0.0, %v1347
        %v1349 = vpop.f32.mrb[0].mxu0
        %1350 = vmatprep.mubr.f32.mxu0 0.0
        %1351 = vmatmul.mubr.f32.gmra.mrb[0].mxu0 %v517
        %v1352 = vpop.f32.mrb[0].mxu0
        %v1353 = vadd.f32 0.0, %v1352
        %v1354 = vpop.f32.mrb[0].mxu0
        %1355 = vmatprep.mubr.f32.mxu0 0.0
        %1356 = vmatmul.mubr.f32.gmra.mrb[0].mxu0 %v520
        %v1357 = vpop.f32.mrb[0].mxu0
        %v1358 = vadd.f32 0.0, %v1357
        %v1359 = vpop.f32.mrb[0].mxu0
        %1360 = vmatprep.mubr.f32.mxu0 0.0
        %1361 = vmatmul.mubr.f32.gmra.mrb[0].mxu0 %v523
        %v1362 = vpop.f32.mrb[0].mxu0
        %v1363 = vadd.f32 0.0, %v1362
        %v1364 = vpop.f32.mrb[0].mxu0
        %1365 = vmatprep.mubr.f32.mxu0 0.0
        %1366 = vmatmul.mubr.f32.gmra.mrb[0].mxu0 %v526
        %v1367 = vpop.f32.mrb[0].mxu0
        %v1368 = vadd.f32 0.0, %v1367
        %v1369 = vpop.f32.mrb[0].mxu0
        %1370 = vmatprep.mubr.f32.mxu0 0.0
        %1371 = vmatmul.mubr.f32.gmra.mrb[0].mxu0 %v529
        %v1372 = vpop.f32.mrb[0].mxu0
        %v1373 = vadd.f32 0.0, %v1372
        %v1374 = vpop.f32.mrb[0].mxu0
        %1375 = vmatprep.mubr.f32.mxu0 0.0
        %1376 = vmatmul.mubr.f32.gmra.mrb[0].mxu0 %v532
        %v1377 = vpop.f32.mrb[0].mxu0
        %v1378 = vadd.f32 0.0, %v1377
        %v1379 = vpop.f32.mrb[0].mxu0
        %1380 = vmatprep.mubr.f32.mxu0 0.0
        %1381 = vmatmul.mubr.f32.gmra.mrb[0].mxu0 %v535
        %v1382 = vpop.f32.mrb[0].mxu0
        %v1383 = vadd.f32 0.0, %v1382
        %v1384 = vpop.f32.mrb[0].mxu0
        %1385 = vmatprep.mubr.f32.mxu0 0.0
        %1386 = vmatmul.mubr.f32.gmra.mrb[0].mxu0 %v538
        %v1387 = vpop.f32.mrb[0].mxu0
        %v1388 = vadd.f32 0.0, %v1387
        %v1389 = vpop.f32.mrb[0].mxu0
        %1390 = vmatprep.mubr.f32.mxu0 0.0
        %1391 = vmatmul.mubr.f32.gmra.mrb[0].mxu0 %v541
        %v1392 = vpop.f32.mrb[0].mxu0
        %v1393 = vadd.f32 0.0, %v1392
        %v1394 = vpop.f32.mrb[0].mxu0
        %1395 = vmatprep.mubr.f32.mxu0 0.0
        %1396 = vmatmul.mubr.f32.gmra.mrb[0].mxu0 %v544
        %v1397 = vpop.f32.mrb[0].mxu0
        %v1398 = vadd.f32 0.0, %v1397
        %v1399 = vpop.f32.mrb[0].mxu0
        %1400 = vmatprep.mubr.f32.mxu0 0.0
        %1401 = vmatmul.mubr.f32.gmra.mrb[0].mxu0 %v547
        %v1402 = vpop.f32.mrb[0].mxu0
        %v1403 = vadd.f32 0.0, %v1402
        %v1404 = vpop.f32.mrb[0].mxu0
        %1405 = vmatprep.mubr.f32.mxu0 0.0
        %1406 = vmatmul.mubr.f32.gmra.mrb[0].mxu0 %v550
        %v1407 = vpop.f32.mrb[0].mxu0
        %v1408 = vadd.f32 0.0, %v1407
        %v1409 = vpop.f32.mrb[0].mxu0
        %1410 = vmatprep.mubr.f32.mxu0 0.0
        %1411 = vmatmul.mubr.f32.gmra.mrb[0].mxu0 %v553
        %v1412 = vpop.f32.mrb[0].mxu0
        %v1413 = vadd.f32 0.0, %v1412
        %v1414 = vpop.f32.mrb[0].mxu0
        %1415 = vmatprep.mubr.f32.mxu0 0.0
        %1416 = vmatmul.mubr.f32.gmra.mrb[0].mxu0 %v556
        %v1417 = vpop.f32.mrb[0].mxu0
        %v1418 = vadd.f32 0.0, %v1417
        %v1419 = vpop.f32.mrb[0].mxu0
        %1420 = vmatprep.mubr.f32.mxu0 0.0
        %1421 = vmatmul.mubr.f32.gmra.mrb[0].mxu0 %v559
        %v1422 = vpop.f32.mrb[0].mxu0
        %v1423 = vadd.f32 0.0, %v1422
        %v1424 = vpop.f32.mrb[0].mxu0
        %1425 = vmatprep.mubr.f32.mxu0 0.0
        %1426 = vmatmul.mubr.f32.gmra.mrb[0].mxu0 %v562
        %v1427 = vpop.f32.mrb[0].mxu0
        %v1428 = vadd.f32 0.0, %v1427
        %v1429 = vpop.f32.mrb[0].mxu0
        %1430 = vmatprep.mubr.f32.mxu0 0.0
        %1431 = vmatmul.mubr.f32.gmra.mrb[0].mxu0 %v565
        %v1432 = vpop.f32.mrb[0].mxu0
        %v1433 = vadd.f32 0.0, %v1432
        %v1434 = vpop.f32.mrb[0].mxu0
        %1435 = vmatprep.mubr.f32.mxu0 0.0
        %1436 = vmatmul.mubr.f32.gmra.mrb[0].mxu0 %v568
        %v1437 = vpop.f32.mrb[0].mxu0
        %v1438 = vadd.f32 0.0, %v1437
        %v1439 = vpop.f32.mrb[0].mxu0
        %1440 = vmatprep.mubr.f32.mxu0 0.0
        %1441 = vmatmul.mubr.f32.gmra.mrb[0].mxu0 %v571
        %v1442 = vpop.f32.mrb[0].mxu0
        %v1443 = vadd.f32 0.0, %v1442
        %v1444 = vpop.f32.mrb[0].mxu0
        %1445 = vmatprep.mubr.f32.mxu0 0.0
        %1446 = vmatmul.mubr.f32.gmra.mrb[0].mxu0 %v574
        %v1447 = vpop.f32.mrb[0].mxu0
        %v1448 = vadd.f32 0.0, %v1447
        %v1449 = vpop.f32.mrb[0].mxu0
        %1450 = vmatprep.mubr.f32.mxu0 0.0
        %1451 = vmatmul.mubr.f32.gmra.mrb[0].mxu0 %v577
        %v1452 = vpop.f32.mrb[0].mxu0
        %v1453 = vadd.f32 0.0, %v1452
        %v1454 = vpop.f32.mrb[0].mxu0
        %1455 = vmatprep.mubr.f32.mxu0 0.0
        %1456 = vmatmul.mubr.f32.gmra.mrb[0].mxu0 %v580
        %v1457 = vpop.f32.mrb[0].mxu0
        %v1458 = vadd.f32 0.0, %v1457
        %v1459 = vpop.f32.mrb[0].mxu0
        %1460 = vmatprep.mubr.f32.mxu0 0.0
        %1461 = vmatmul.mubr.f32.gmra.mrb[0].mxu0 %v583
        %v1462 = vpop.f32.mrb[0].mxu0
        %v1463 = vadd.f32 0.0, %v1462
        %v1464 = vpop.f32.mrb[0].mxu0
        %1465 = vmatprep.mubr.f32.mxu0 0.0
        %1466 = vmatmul.mubr.f32.gmra.mrb[0].mxu0 %v586
        %v1467 = vpop.f32.mrb[0].mxu0
        %v1468 = vadd.f32 0.0, %v1467
        %v1469 = vpop.f32.mrb[0].mxu0
        %1470 = vmatprep.mubr.f32.mxu0 0.0
        %1471 = vmatmul.mubr.f32.gmra.mrb[0].mxu0 %v589
        %v1472 = vpop.f32.mrb[0].mxu0
        %v1473 = vadd.f32 0.0, %v1472
        %v1474 = vpop.f32.mrb[0].mxu0
        %1475 = vmatprep.mubr.f32.mxu0 0.0
        %1476 = vmatmul.mubr.f32.gmra.mrb[0].mxu0 %v592
        %v1477 = vpop.f32.mrb[0].mxu0
        %v1478 = vadd.f32 0.0, %v1477
        %v1479 = vpop.f32.mrb[0].mxu0
        %1480 = vmatprep.mubr.f32.mxu0 0.0
        %1481 = vmatmul.mubr.f32.gmra.mrb[0].mxu0 %v595
        %v1482 = vpop.f32.mrb[0].mxu0
        %v1483 = vadd.f32 0.0, %v1482
        %v1484 = vpop.f32.mrb[0].mxu0
        %1485 = vmatprep.mubr.f32.mxu0 0.0
        %1486 = vmatmul.mubr.f32.gmra.mrb[0].mxu0 %v598
        %v1487 = vpop.f32.mrb[0].mxu0
        %v1488 = vadd.f32 0.0, %v1487
        %v1489 = vpop.f32.mrb[0].mxu0
        %1490 = vmatprep.mubr.f32.mxu0 0.0
        %1491 = vmatmul.mubr.f32.gmra.mrb[0].mxu0 %v601
        %v1492 = vpop.f32.mrb[0].mxu0
        %v1493 = vadd.f32 0.0, %v1492
        %v1494 = vpop.f32.mrb[0].mxu0
        %1495 = vmatprep.mubr.f32.mxu0 0.0
        %1496 = vmatmul.mubr.f32.gmra.mrb[0].mxu0 %v604
        %v1497 = vpop.f32.mrb[0].mxu0
        %v1498 = vadd.f32 0.0, %v1497
        %v1499 = vpop.f32.mrb[0].mxu0
        %1500 = vmatprep.mubr.f32.mxu0 0.0
        %1501 = vmatmul.mubr.f32.gmra.mrb[0].mxu0 %v607
        %v1502 = vpop.f32.mrb[0].mxu0
        %v1503 = vadd.f32 0.0, %v1502
        %v1504 = vpop.f32.mrb[0].mxu0
        %1505 = vmatprep.mubr.f32.mxu0 0.0
        %1506 = vmatmul.mubr.f32.gmra.mrb[0].mxu0 %v610
        %v1507 = vpop.f32.mrb[0].mxu0
        %v1508 = vadd.f32 0.0, %v1507
        %v1509 = vpop.f32.mrb[0].mxu0
        %1510 = vmatprep.mubr.f32.mxu0 0.0
        %1511 = vmatmul.mubr.f32.gmra.mrb[0].mxu0 %v613
        %v1512 = vpop.f32.mrb[0].mxu0
        %v1513 = vadd.f32 0.0, %v1512
        %v1514 = vpop.f32.mrb[0].mxu0
        %1515 = vmatprep.mubr.f32.mxu0 0.0
        %1516 = vmatmul.mubr.f32.gmra.mrb[0].mxu0 %v616
        %v1517 = vpop.f32.mrb[0].mxu0
        %v1518 = vadd.f32 0.0, %v1517
        %v1519 = vpop.f32.mrb[0].mxu0
        %1520 = vmatprep.mubr.f32.mxu0 0.0
        %1521 = vmatmul.mubr.f32.gmra.mrb[0].mxu0 %v619
        %v1522 = vpop.f32.mrb[0].mxu0
        %v1523 = vadd.f32 0.0, %v1522
        %v1524 = vpop.f32.mrb[0].mxu0
        %1525 = vmatprep.mubr.f32.mxu0 0.0
        %1526 = vmatmul.mubr.f32.gmra.mrb[0].mxu0 %v622
        %v1527 = vpop.f32.mrb[0].mxu0
        %v1528 = vadd.f32 0.0, %v1527
        %v1529 = vpop.f32.mrb[0].mxu0
        %1530 = vmatprep.mubr.f32.mxu0 0.0
        %1531 = vmatmul.mubr.f32.gmra.mrb[0].mxu0 %v625
        %v1532 = vpop.f32.mrb[0].mxu0
        %v1533 = vadd.f32 0.0, %v1532
        %v1534 = vpop.f32.mrb[0].mxu0
        %1535 = vmatprep.mubr.f32.mxu0 0.0
        %1536 = vmatmul.mubr.f32.gmra.mrb[0].mxu0 %v628
        %v1537 = vpop.f32.mrb[0].mxu0
        %v1538 = vadd.f32 0.0, %v1537
        %v1539 = vpop.f32.mrb[0].mxu0
        %1540 = vmatprep.mubr.f32.mxu0 0.0
        %1541 = vmatmul.mubr.f32.gmra.mrb[0].mxu0 %v631
        %v1542 = vpop.f32.mrb[0].mxu0
        %v1543 = vadd.f32 0.0, %v1542
        %v1544 = vpop.f32.mrb[0].mxu0
        %1545 = vmatprep.mubr.f32.mxu0 0.0
        %1546 = vmatmul.mubr.f32.gmra.mrb[0].mxu0 %v634
        %v1547 = vpop.f32.mrb[0].mxu0
        %v1548 = vadd.f32 0.0, %v1547
        %v1549 = vpop.f32.mrb[0].mxu0
        %1550 = vmatprep.mubr.f32.mxu0 0.0
        %1551 = vmatmul.mubr.f32.gmra.mrb[0].mxu0 %v637
        %v1552 = vpop.f32.mrb[0].mxu0
        %v1553 = vadd.f32 0.0, %v1552
        %v1554 = vpop.f32.mrb[0].mxu0
        %1555 = vmatprep.mubr.f32.mxu0 0.0
        %1556 = vmatmul.mubr.f32.gmra.mrb[0].mxu0 %v640
        %v1557 = vpop.f32.mrb[0].mxu0
        %v1558 = vadd.f32 0.0, %v1557
        %v1559 = vpop.f32.mrb[0].mxu0
        %1560 = vmatprep.mubr.f32.mxu0 0.0
        %1561 = vmatmul.mubr.f32.gmra.mrb[0].mxu0 %v643
        %v1562 = vpop.f32.mrb[0].mxu0
        %v1563 = vadd.f32 0.0, %v1562
        %v1564 = vpop.f32.mrb[0].mxu0
        %1565 = vmatprep.mubr.f32.mxu0 0.0
        %1566 = vmatmul.mubr.f32.gmra.mrb[0].mxu0 %v646
        %v1567 = vpop.f32.mrb[0].mxu0
        %v1568 = vadd.f32 0.0, %v1567
        %v1569 = vpop.f32.mrb[0].mxu0
        %1570 = vmatprep.mubr.f32.mxu0 0.0
        %1571 = vmatmul.mubr.f32.gmra.mrb[0].mxu0 %v649
        %v1572 = vpop.f32.mrb[0].mxu0
        %v1573 = vadd.f32 0.0, %v1572
        %v1574 = vpop.f32.mrb[0].mxu0
        %1575 = vmatprep.mubr.f32.mxu0 0.0
        %1576 = vmatmul.mubr.f32.gmra.mrb[0].mxu0 %v652
        %v1577 = vpop.f32.mrb[0].mxu0
        %v1578 = vadd.f32 0.0, %v1577
        %v1579 = vpop.f32.mrb[0].mxu0
        %1580 = vmatprep.mubr.f32.mxu0 0.0
        %1581 = vmatmul.mubr.f32.gmra.mrb[0].mxu0 %v655
        %v1582 = vpop.f32.mrb[0].mxu0
        %v1583 = vadd.f32 0.0, %v1582
        %v1584 = vpop.f32.mrb[0].mxu0
        %1585 = vmatprep.mubr.f32.mxu0 0.0
        %1586 = vmatmul.mubr.f32.gmra.mrb[0].mxu0 %v658
        %v1587 = vpop.f32.mrb[0].mxu0
        %v1588 = vadd.f32 0.0, %v1587
        %v1589 = vpop.f32.mrb[0].mxu0
        %1590 = vmatprep.mubr.f32.mxu0 0.0
        %1591 = vmatmul.mubr.f32.gmra.mrb[0].mxu0 %v661
        %v1592 = vpop.f32.mrb[0].mxu0
        %v1593 = vadd.f32 0.0, %v1592
        %v1594 = vpop.f32.mrb[0].mxu0
        %1595 = vdwg.mxu0
        %vm1596 = vcmask 130048
        %v1598 = vsel %vm1596, %v730, 0
        %v1601 = vsel %vm1596, %v735, 0
        %v1604 = vsel %vm1596, %v740, 0
        %v1607 = vsel %vm1596, %v745, 0
        %v1610 = vsel %vm1596, %v750, 0
        %v1613 = vsel %vm1596, %v755, 0
        %v1616 = vsel %vm1596, %v760, 0
        %v1619 = vsel %vm1596, %v765, 0
        %v1622 = vsel %vm1596, %v770, 0
        %v1625 = vsel %vm1596, %v775, 0
        %v1628 = vsel %vm1596, %v780, 0
        %v1631 = vsel %vm1596, %v785, 0
        %v1634 = vsel %vm1596, %v790, 0
        %v1637 = vsel %vm1596, %v795, 0
        %v1640 = vsel %vm1596, %v800, 0
        %v1643 = vsel %vm1596, %v805, 0
        %v1646 = vsel %vm1596, %v810, 0
        %v1649 = vsel %vm1596, %v815, 0
        %v1652 = vsel %vm1596, %v820, 0
        %v1655 = vsel %vm1596, %v825, 0
        %v1658 = vsel %vm1596, %v830, 0
        %v1661 = vsel %vm1596, %v835, 0
        %v1664 = vsel %vm1596, %v840, 0
        %v1667 = vsel %vm1596, %v845, 0
        %v1670 = vsel %vm1596, %v850, 0
        %v1673 = vsel %vm1596, %v855, 0
        %v1676 = vsel %vm1596, %v860, 0
        %v1679 = vsel %vm1596, %v865, 0
        %v1682 = vsel %vm1596, %v870, 0
        %v1685 = vsel %vm1596, %v875, 0
        %v1688 = vsel %vm1596, %v880, 0
        %v1691 = vsel %vm1596, %v885, 0
        %v1694 = vsel %vm1596, %v890, 0
        %v1697 = vsel %vm1596, %v895, 0
        %v1700 = vsel %vm1596, %v900, 0
        %v1703 = vsel %vm1596, %v905, 0
        %v1706 = vsel %vm1596, %v910, 0
        %v1709 = vsel %vm1596, %v915, 0
        %v1712 = vsel %vm1596, %v920, 0
        %v1715 = vsel %vm1596, %v925, 0
        %v1718 = vsel %vm1596, %v930, 0
        %v1721 = vsel %vm1596, %v935, 0
        %v1724 = vsel %vm1596, %v940, 0
        %v1727 = vsel %vm1596, %v945, 0
        %v1730 = vsel %vm1596, %v950, 0
        %v1733 = vsel %vm1596, %v955, 0
        %v1736 = vsel %vm1596, %v960, 0
        %v1739 = vsel %vm1596, %v965, 0
        %v1742 = vsel %vm1596, %v970, 0
        %v1745 = vsel %vm1596, %v975, 0
        %v1748 = vsel %vm1596, %v980, 0
        %v1751 = vsel %vm1596, %v985, 0
        %v1754 = vsel %vm1596, %v990, 0
        %v1757 = vsel %vm1596, %v995, 0
        %v1760 = vsel %vm1596, %v1000, 0
        %v1763 = vsel %vm1596, %v1005, 0
        %v1766 = vsel %vm1596, %v1010, 0
        %v1769 = vsel %vm1596, %v1015, 0
        %v1772 = vsel %vm1596, %v1020, 0
        %v1775 = vsel %vm1596, %v1025, 0
        %v1778 = vsel %vm1596, %v1030, 0
        %v1781 = vsel %vm1596, %v1035, 0
        %v1784 = vsel %vm1596, %v1040, 0
        %v1787 = vsel %vm1596, %v1045, 0
        %1789 = vmatprep.subr.mxu0 %v1125
        %1790 = vmatpush1.msra.mxu0 %v1123
        %1791 = vmatprep.subr.mxu0 %v1131
        %1792 = vmatpush1.msra.mxu0 %v1129
        %1793 = vmatprep.subr.mxu0 0.0
        %1794 = vmatpush1.msra.mxu0 0.0
        %1795 = vmatprep.subr.mxu0 0.0
        %1796 = vmatpush1.msra.mxu0 0.0
        %1797 = vmatprep.subr.mxu0 0.0
        %1798 = vmatpush1.msra.mxu0 0.0
        %1799 = vmatprep.subr.mxu0 0.0
        %1800 = vmatpush1.msra.mxu0 0.0
        %1801 = vmatprep.subr.mxu0 0.0
        %1802 = vmatpush1.msra.mxu0 0.0
        %1803 = vmatprep.subr.mxu0 0.0
        %1804 = vmatpush1.msra.mxu0 0.0
        %1805 = vmatprep.subr.mxu0 0.0
        %1806 = vmatpush1.msra.mxu0 0.0
        %1807 = vmatprep.subr.mxu0 0.0
        %1808 = vmatpush1.msra.mxu0 0.0
        %1809 = vmatprep.subr.mxu0 0.0
        %1810 = vmatpush1.msra.mxu0 0.0
        %1811 = vmatprep.subr.mxu0 0.0
        %1812 = vmatpush1.msra.mxu0 0.0
        %1813 = vmatprep.subr.mxu0 0.0
        %1814 = vmatpush1.msra.mxu0 0.0
        %1815 = vmatprep.subr.mxu0 0.0
        %1816 = vmatpush1.msra.mxu0 0.0
        %1817 = vmatprep.subr.mxu0 0.0
        %1818 = vmatpush1.msra.mxu0 0.0
        %1819 = vmatprep.subr.mxu0 0.0
        %1820 = vmatpush1.msra.mxu0 0.0
        %1821 = vmatprep.subr.mxu0 0.0
        %1822 = vmatpush1.msra.mxu0 0.0
        %1823 = vmatprep.subr.mxu0 0.0
        %1824 = vmatpush1.msra.mxu0 0.0
        %1825 = vmatprep.subr.mxu0 0.0
        %1826 = vmatpush1.msra.mxu0 0.0
        %1827 = vmatprep.subr.mxu0 0.0
        %1828 = vmatpush1.msra.mxu0 0.0
        %1829 = vmatprep.subr.mxu0 0.0
        %1830 = vmatpush1.msra.mxu0 0.0
        %1831 = vmatprep.subr.mxu0 0.0
        %1832 = vmatpush1.msra.mxu0 0.0
        %1833 = vmatprep.subr.mxu0 0.0
        %1834 = vmatpush1.msra.mxu0 0.0
        %1835 = vmatprep.subr.mxu0 0.0
        %1836 = vmatpush1.msra.mxu0 0.0
        %1837 = vmatprep.subr.mxu0 0.0
        %1838 = vmatpush1.msra.mxu0 0.0
        %1839 = vmatprep.subr.mxu0 0.0
        %1840 = vmatpush1.msra.mxu0 0.0
        %1841 = vmatprep.subr.mxu0 0.0
        %1842 = vmatpush1.msra.mxu0 0.0
        %1843 = vmatprep.subr.mxu0 0.0
        %1844 = vmatpush1.msra.mxu0 0.0
        %1845 = vmatprep.subr.mxu0 0.0
        %1846 = vmatpush1.msra.mxu0 0.0
        %1847 = vmatprep.subr.mxu0 0.0
        %1848 = vmatpush1.msra.mxu0 0.0
        %1849 = vmatprep.subr.mxu0 0.0
        %1850 = vmatpush1.msra.mxu0 0.0
        %1851 = vmatprep.subr.mxu0 0.0
        %1852 = vmatpush1.msra.mxu0 0.0
        %1853 = vmatprep.mubr.f32.mxu0 0.0
        %1854 = vmatmul.mubr.f32.gmra.mrb[0].mxu0 %v1598
        %v1855 = vpop.f32.mrb[0].mxu0
        %v1856 = vadd.f32 0.0, %v1855
        %v1857 = vpop.f32.mrb[0].mxu0
        %v1858 = vadd.f32 0.0, %v1857
        %1859 = vmatprep.mubr.f32.mxu0 0.0
        %1860 = vmatmul.mubr.f32.gmra.mrb[0].mxu0 %v1601
        %v1861 = vpop.f32.mrb[0].mxu0
        %v1862 = vadd.f32 0.0, %v1861
        %v1863 = vpop.f32.mrb[0].mxu0
        %v1864 = vadd.f32 0.0, %v1863
        %1865 = vmatprep.mubr.f32.mxu0 0.0
        %1866 = vmatmul.mubr.f32.gmra.mrb[0].mxu0 %v1604
        %v1867 = vpop.f32.mrb[0].mxu0
        %v1868 = vadd.f32 0.0, %v1867
        %v1869 = vpop.f32.mrb[0].mxu0
        %v1870 = vadd.f32 0.0, %v1869
        %1871 = vmatprep.mubr.f32.mxu0 0.0
        %1872 = vmatmul.mubr.f32.gmra.mrb[0].mxu0 %v1607
        %v1873 = vpop.f32.mrb[0].mxu0
        %v1874 = vadd.f32 0.0, %v1873
        %v1875 = vpop.f32.mrb[0].mxu0
        %v1876 = vadd.f32 0.0, %v1875
        %1877 = vmatprep.mubr.f32.mxu0 0.0
        %1878 = vmatmul.mubr.f32.gmra.mrb[0].mxu0 %v1610
        %v1879 = vpop.f32.mrb[0].mxu0
        %v1880 = vadd.f32 0.0, %v1879
        %v1881 = vpop.f32.mrb[0].mxu0
        %v1882 = vadd.f32 0.0, %v1881
        %1883 = vmatprep.mubr.f32.mxu0 0.0
        %1884 = vmatmul.mubr.f32.gmra.mrb[0].mxu0 %v1613
        %v1885 = vpop.f32.mrb[0].mxu0
        %v1886 = vadd.f32 0.0, %v1885
        %v1887 = vpop.f32.mrb[0].mxu0
        %v1888 = vadd.f32 0.0, %v1887
        %1889 = vmatprep.mubr.f32.mxu0 0.0
        %1890 = vmatmul.mubr.f32.gmra.mrb[0].mxu0 %v1616
        %v1891 = vpop.f32.mrb[0].mxu0
        %v1892 = vadd.f32 0.0, %v1891
        %v1893 = vpop.f32.mrb[0].mxu0
        %v1894 = vadd.f32 0.0, %v1893
        %1895 = vmatprep.mubr.f32.mxu0 0.0
        %1896 = vmatmul.mubr.f32.gmra.mrb[0].mxu0 %v1619
        %v1897 = vpop.f32.mrb[0].mxu0
        %v1898 = vadd.f32 0.0, %v1897
        %v1899 = vpop.f32.mrb[0].mxu0
        %v1900 = vadd.f32 0.0, %v1899
        %1901 = vmatprep.mubr.f32.mxu0 0.0
        %1902 = vmatmul.mubr.f32.gmra.mrb[0].mxu0 %v1622
        %v1903 = vpop.f32.mrb[0].mxu0
        %v1904 = vadd.f32 0.0, %v1903
        %v1905 = vpop.f32.mrb[0].mxu0
        %v1906 = vadd.f32 0.0, %v1905
        %1907 = vmatprep.mubr.f32.mxu0 0.0
        %1908 = vmatmul.mubr.f32.gmra.mrb[0].mxu0 %v1625
        %v1909 = vpop.f32.mrb[0].mxu0
        %v1910 = vadd.f32 0.0, %v1909
        %v1911 = vpop.f32.mrb[0].mxu0
        %v1912 = vadd.f32 0.0, %v1911
        %1913 = vmatprep.mubr.f32.mxu0 0.0
        %1914 = vmatmul.mubr.f32.gmra.mrb[0].mxu0 %v1628
        %v1915 = vpop.f32.mrb[0].mxu0
        %v1916 = vadd.f32 0.0, %v1915
        %v1917 = vpop.f32.mrb[0].mxu0
        %v1918 = vadd.f32 0.0, %v1917
        %1919 = vmatprep.mubr.f32.mxu0 0.0
        %1920 = vmatmul.mubr.f32.gmra.mrb[0].mxu0 %v1631
        %v1921 = vpop.f32.mrb[0].mxu0
        %v1922 = vadd.f32 0.0, %v1921
        %v1923 = vpop.f32.mrb[0].mxu0
        %v1924 = vadd.f32 0.0, %v1923
        %1925 = vmatprep.mubr.f32.mxu0 0.0
        %1926 = vmatmul.mubr.f32.gmra.mrb[0].mxu0 %v1634
        %v1927 = vpop.f32.mrb[0].mxu0
        %v1928 = vadd.f32 0.0, %v1927
        %v1929 = vpop.f32.mrb[0].mxu0
        %v1930 = vadd.f32 0.0, %v1929
        %1931 = vmatprep.mubr.f32.mxu0 0.0
        %1932 = vmatmul.mubr.f32.gmra.mrb[0].mxu0 %v1637
        %v1933 = vpop.f32.mrb[0].mxu0
        %v1934 = vadd.f32 0.0, %v1933
        %v1935 = vpop.f32.mrb[0].mxu0
        %v1936 = vadd.f32 0.0, %v1935
        %1937 = vmatprep.mubr.f32.mxu0 0.0
        %1938 = vmatmul.mubr.f32.gmra.mrb[0].mxu0 %v1640
        %v1939 = vpop.f32.mrb[0].mxu0
        %v1940 = vadd.f32 0.0, %v1939
        %v1941 = vpop.f32.mrb[0].mxu0
        %v1942 = vadd.f32 0.0, %v1941
        %1943 = vmatprep.mubr.f32.mxu0 0.0
        %1944 = vmatmul.mubr.f32.gmra.mrb[0].mxu0 %v1643
        %v1945 = vpop.f32.mrb[0].mxu0
        %v1946 = vadd.f32 0.0, %v1945
        %v1947 = vpop.f32.mrb[0].mxu0
        %v1948 = vadd.f32 0.0, %v1947
        %1949 = vmatprep.mubr.f32.mxu0 0.0
        %1950 = vmatmul.mubr.f32.gmra.mrb[0].mxu0 %v1646
        %v1951 = vpop.f32.mrb[0].mxu0
        %v1952 = vadd.f32 0.0, %v1951
        %v1953 = vpop.f32.mrb[0].mxu0
        %v1954 = vadd.f32 0.0, %v1953
        %1955 = vmatprep.mubr.f32.mxu0 0.0
        %1956 = vmatmul.mubr.f32.gmra.mrb[0].mxu0 %v1649
        %v1957 = vpop.f32.mrb[0].mxu0
        %v1958 = vadd.f32 0.0, %v1957
        %v1959 = vpop.f32.mrb[0].mxu0
        %v1960 = vadd.f32 0.0, %v1959
        %1961 = vmatprep.mubr.f32.mxu0 0.0
        %1962 = vmatmul.mubr.f32.gmra.mrb[0].mxu0 %v1652
        %v1963 = vpop.f32.mrb[0].mxu0
        %v1964 = vadd.f32 0.0, %v1963
        %v1965 = vpop.f32.mrb[0].mxu0
        %v1966 = vadd.f32 0.0, %v1965
        %1967 = vmatprep.mubr.f32.mxu0 0.0
        %1968 = vmatmul.mubr.f32.gmra.mrb[0].mxu0 %v1655
        %v1969 = vpop.f32.mrb[0].mxu0
        %v1970 = vadd.f32 0.0, %v1969
        %v1971 = vpop.f32.mrb[0].mxu0
        %v1972 = vadd.f32 0.0, %v1971
        %1973 = vmatprep.mubr.f32.mxu0 0.0
        %1974 = vmatmul.mubr.f32.gmra.mrb[0].mxu0 %v1658
        %v1975 = vpop.f32.mrb[0].mxu0
        %v1976 = vadd.f32 0.0, %v1975
        %v1977 = vpop.f32.mrb[0].mxu0
        %v1978 = vadd.f32 0.0, %v1977
        %1979 = vmatprep.mubr.f32.mxu0 0.0
        %1980 = vmatmul.mubr.f32.gmra.mrb[0].mxu0 %v1661
        %v1981 = vpop.f32.mrb[0].mxu0
        %v1982 = vadd.f32 0.0, %v1981
        %v1983 = vpop.f32.mrb[0].mxu0
        %v1984 = vadd.f32 0.0, %v1983
        %1985 = vmatprep.mubr.f32.mxu0 0.0
        %1986 = vmatmul.mubr.f32.gmra.mrb[0].mxu0 %v1664
        %v1987 = vpop.f32.mrb[0].mxu0
        %v1988 = vadd.f32 0.0, %v1987
        %v1989 = vpop.f32.mrb[0].mxu0
        %v1990 = vadd.f32 0.0, %v1989
        %1991 = vmatprep.mubr.f32.mxu0 0.0
        %1992 = vmatmul.mubr.f32.gmra.mrb[0].mxu0 %v1667
        %v1993 = vpop.f32.mrb[0].mxu0
        %v1994 = vadd.f32 0.0, %v1993
        %v1995 = vpop.f32.mrb[0].mxu0
        %v1996 = vadd.f32 0.0, %v1995
        %1997 = vmatprep.mubr.f32.mxu0 0.0
        %1998 = vmatmul.mubr.f32.gmra.mrb[0].mxu0 %v1670
        %v1999 = vpop.f32.mrb[0].mxu0
        %v2000 = vadd.f32 0.0, %v1999
        %v2001 = vpop.f32.mrb[0].mxu0
        %v2002 = vadd.f32 0.0, %v2001
        %2003 = vmatprep.mubr.f32.mxu0 0.0
        %2004 = vmatmul.mubr.f32.gmra.mrb[0].mxu0 %v1673
        %v2005 = vpop.f32.mrb[0].mxu0
        %v2006 = vadd.f32 0.0, %v2005
        %v2007 = vpop.f32.mrb[0].mxu0
        %v2008 = vadd.f32 0.0, %v2007
        %2009 = vmatprep.mubr.f32.mxu0 0.0
        %2010 = vmatmul.mubr.f32.gmra.mrb[0].mxu0 %v1676
        %v2011 = vpop.f32.mrb[0].mxu0
        %v2012 = vadd.f32 0.0, %v2011
        %v2013 = vpop.f32.mrb[0].mxu0
        %v2014 = vadd.f32 0.0, %v2013
        %2015 = vmatprep.mubr.f32.mxu0 0.0
        %2016 = vmatmul.mubr.f32.gmra.mrb[0].mxu0 %v1679
        %v2017 = vpop.f32.mrb[0].mxu0
        %v2018 = vadd.f32 0.0, %v2017
        %v2019 = vpop.f32.mrb[0].mxu0
        %v2020 = vadd.f32 0.0, %v2019
        %2021 = vmatprep.mubr.f32.mxu0 0.0
        %2022 = vmatmul.mubr.f32.gmra.mrb[0].mxu0 %v1682
        %v2023 = vpop.f32.mrb[0].mxu0
        %v2024 = vadd.f32 0.0, %v2023
        %v2025 = vpop.f32.mrb[0].mxu0
        %v2026 = vadd.f32 0.0, %v2025
        %2027 = vmatprep.mubr.f32.mxu0 0.0
        %2028 = vmatmul.mubr.f32.gmra.mrb[0].mxu0 %v1685
        %v2029 = vpop.f32.mrb[0].mxu0
        %v2030 = vadd.f32 0.0, %v2029
        %v2031 = vpop.f32.mrb[0].mxu0
        %v2032 = vadd.f32 0.0, %v2031
        %2033 = vmatprep.mubr.f32.mxu0 0.0
        %2034 = vmatmul.mubr.f32.gmra.mrb[0].mxu0 %v1688
        %v2035 = vpop.f32.mrb[0].mxu0
        %v2036 = vadd.f32 0.0, %v2035
        %v2037 = vpop.f32.mrb[0].mxu0
        %v2038 = vadd.f32 0.0, %v2037
        %2039 = vmatprep.mubr.f32.mxu0 0.0
        %2040 = vmatmul.mubr.f32.gmra.mrb[0].mxu0 %v1691
        %v2041 = vpop.f32.mrb[0].mxu0
        %v2042 = vadd.f32 0.0, %v2041
        %v2043 = vpop.f32.mrb[0].mxu0
        %v2044 = vadd.f32 0.0, %v2043
        %2045 = vmatprep.mubr.f32.mxu0 0.0
        %2046 = vmatmul.mubr.f32.gmra.mrb[0].mxu0 %v1694
        %v2047 = vpop.f32.mrb[0].mxu0
        %v2048 = vadd.f32 0.0, %v2047
        %v2049 = vpop.f32.mrb[0].mxu0
        %v2050 = vadd.f32 0.0, %v2049
        %2051 = vmatprep.mubr.f32.mxu0 0.0
        %2052 = vmatmul.mubr.f32.gmra.mrb[0].mxu0 %v1697
        %v2053 = vpop.f32.mrb[0].mxu0
        %v2054 = vadd.f32 0.0, %v2053
        %v2055 = vpop.f32.mrb[0].mxu0
        %v2056 = vadd.f32 0.0, %v2055
        %2057 = vmatprep.mubr.f32.mxu0 0.0
        %2058 = vmatmul.mubr.f32.gmra.mrb[0].mxu0 %v1700
        %v2059 = vpop.f32.mrb[0].mxu0
        %v2060 = vadd.f32 0.0, %v2059
        %v2061 = vpop.f32.mrb[0].mxu0
        %v2062 = vadd.f32 0.0, %v2061
        %2063 = vmatprep.mubr.f32.mxu0 0.0
        %2064 = vmatmul.mubr.f32.gmra.mrb[0].mxu0 %v1703
        %v2065 = vpop.f32.mrb[0].mxu0
        %v2066 = vadd.f32 0.0, %v2065
        %v2067 = vpop.f32.mrb[0].mxu0
        %v2068 = vadd.f32 0.0, %v2067
        %2069 = vmatprep.mubr.f32.mxu0 0.0
        %2070 = vmatmul.mubr.f32.gmra.mrb[0].mxu0 %v1706
        %v2071 = vpop.f32.mrb[0].mxu0
        %v2072 = vadd.f32 0.0, %v2071
        %v2073 = vpop.f32.mrb[0].mxu0
        %v2074 = vadd.f32 0.0, %v2073
        %2075 = vmatprep.mubr.f32.mxu0 0.0
        %2076 = vmatmul.mubr.f32.gmra.mrb[0].mxu0 %v1709
        %v2077 = vpop.f32.mrb[0].mxu0
        %v2078 = vadd.f32 0.0, %v2077
        %v2079 = vpop.f32.mrb[0].mxu0
        %v2080 = vadd.f32 0.0, %v2079
        %2081 = vmatprep.mubr.f32.mxu0 0.0
        %2082 = vmatmul.mubr.f32.gmra.mrb[0].mxu0 %v1712
        %v2083 = vpop.f32.mrb[0].mxu0
        %v2084 = vadd.f32 0.0, %v2083
        %v2085 = vpop.f32.mrb[0].mxu0
        %v2086 = vadd.f32 0.0, %v2085
        %2087 = vmatprep.mubr.f32.mxu0 0.0
        %2088 = vmatmul.mubr.f32.gmra.mrb[0].mxu0 %v1715
        %v2089 = vpop.f32.mrb[0].mxu0
        %v2090 = vadd.f32 0.0, %v2089
        %v2091 = vpop.f32.mrb[0].mxu0
        %v2092 = vadd.f32 0.0, %v2091
        %2093 = vmatprep.mubr.f32.mxu0 0.0
        %2094 = vmatmul.mubr.f32.gmra.mrb[0].mxu0 %v1718
        %v2095 = vpop.f32.mrb[0].mxu0
        %v2096 = vadd.f32 0.0, %v2095
        %v2097 = vpop.f32.mrb[0].mxu0
        %v2098 = vadd.f32 0.0, %v2097
        %2099 = vmatprep.mubr.f32.mxu0 0.0
        %2100 = vmatmul.mubr.f32.gmra.mrb[0].mxu0 %v1721
        %v2101 = vpop.f32.mrb[0].mxu0
        %v2102 = vadd.f32 0.0, %v2101
        %v2103 = vpop.f32.mrb[0].mxu0
        %v2104 = vadd.f32 0.0, %v2103
        %2105 = vmatprep.mubr.f32.mxu0 0.0
        %2106 = vmatmul.mubr.f32.gmra.mrb[0].mxu0 %v1724
        %v2107 = vpop.f32.mrb[0].mxu0
        %v2108 = vadd.f32 0.0, %v2107
        %v2109 = vpop.f32.mrb[0].mxu0
        %v2110 = vadd.f32 0.0, %v2109
        %2111 = vmatprep.mubr.f32.mxu0 0.0
        %2112 = vmatmul.mubr.f32.gmra.mrb[0].mxu0 %v1727
        %v2113 = vpop.f32.mrb[0].mxu0
        %v2114 = vadd.f32 0.0, %v2113
        %v2115 = vpop.f32.mrb[0].mxu0
        %v2116 = vadd.f32 0.0, %v2115
        %2117 = vmatprep.mubr.f32.mxu0 0.0
        %2118 = vmatmul.mubr.f32.gmra.mrb[0].mxu0 %v1730
        %v2119 = vpop.f32.mrb[0].mxu0
        %v2120 = vadd.f32 0.0, %v2119
        %v2121 = vpop.f32.mrb[0].mxu0
        %v2122 = vadd.f32 0.0, %v2121
        %2123 = vmatprep.mubr.f32.mxu0 0.0
        %2124 = vmatmul.mubr.f32.gmra.mrb[0].mxu0 %v1733
        %v2125 = vpop.f32.mrb[0].mxu0
        %v2126 = vadd.f32 0.0, %v2125
        %v2127 = vpop.f32.mrb[0].mxu0
        %v2128 = vadd.f32 0.0, %v2127
        %2129 = vmatprep.mubr.f32.mxu0 0.0
        %2130 = vmatmul.mubr.f32.gmra.mrb[0].mxu0 %v1736
        %v2131 = vpop.f32.mrb[0].mxu0
        %v2132 = vadd.f32 0.0, %v2131
        %v2133 = vpop.f32.mrb[0].mxu0
        %v2134 = vadd.f32 0.0, %v2133
        %2135 = vmatprep.mubr.f32.mxu0 0.0
        %2136 = vmatmul.mubr.f32.gmra.mrb[0].mxu0 %v1739
        %v2137 = vpop.f32.mrb[0].mxu0
        %v2138 = vadd.f32 0.0, %v2137
        %v2139 = vpop.f32.mrb[0].mxu0
        %v2140 = vadd.f32 0.0, %v2139
        %2141 = vmatprep.mubr.f32.mxu0 0.0
        %2142 = vmatmul.mubr.f32.gmra.mrb[0].mxu0 %v1742
        %v2143 = vpop.f32.mrb[0].mxu0
        %v2144 = vadd.f32 0.0, %v2143
        %v2145 = vpop.f32.mrb[0].mxu0
        %v2146 = vadd.f32 0.0, %v2145
        %2147 = vmatprep.mubr.f32.mxu0 0.0
        %2148 = vmatmul.mubr.f32.gmra.mrb[0].mxu0 %v1745
        %v2149 = vpop.f32.mrb[0].mxu0
        %v2150 = vadd.f32 0.0, %v2149
        %v2151 = vpop.f32.mrb[0].mxu0
        %v2152 = vadd.f32 0.0, %v2151
        %2153 = vmatprep.mubr.f32.mxu0 0.0
        %2154 = vmatmul.mubr.f32.gmra.mrb[0].mxu0 %v1748
        %v2155 = vpop.f32.mrb[0].mxu0
        %v2156 = vadd.f32 0.0, %v2155
        %v2157 = vpop.f32.mrb[0].mxu0
        %v2158 = vadd.f32 0.0, %v2157
        %2159 = vmatprep.mubr.f32.mxu0 0.0
        %2160 = vmatmul.mubr.f32.gmra.mrb[0].mxu0 %v1751
        %v2161 = vpop.f32.mrb[0].mxu0
        %v2162 = vadd.f32 0.0, %v2161
        %v2163 = vpop.f32.mrb[0].mxu0
        %v2164 = vadd.f32 0.0, %v2163
        %2165 = vmatprep.mubr.f32.mxu0 0.0
        %2166 = vmatmul.mubr.f32.gmra.mrb[0].mxu0 %v1754
        %v2167 = vpop.f32.mrb[0].mxu0
        %v2168 = vadd.f32 0.0, %v2167
        %v2169 = vpop.f32.mrb[0].mxu0
        %v2170 = vadd.f32 0.0, %v2169
        %2171 = vmatprep.mubr.f32.mxu0 0.0
        %2172 = vmatmul.mubr.f32.gmra.mrb[0].mxu0 %v1757
        %v2173 = vpop.f32.mrb[0].mxu0
        %v2174 = vadd.f32 0.0, %v2173
        %v2175 = vpop.f32.mrb[0].mxu0
        %v2176 = vadd.f32 0.0, %v2175
        %2177 = vmatprep.mubr.f32.mxu0 0.0
        %2178 = vmatmul.mubr.f32.gmra.mrb[0].mxu0 %v1760
        %v2179 = vpop.f32.mrb[0].mxu0
        %v2180 = vadd.f32 0.0, %v2179
        %v2181 = vpop.f32.mrb[0].mxu0
        %v2182 = vadd.f32 0.0, %v2181
        %2183 = vmatprep.mubr.f32.mxu0 0.0
        %2184 = vmatmul.mubr.f32.gmra.mrb[0].mxu0 %v1763
        %v2185 = vpop.f32.mrb[0].mxu0
        %v2186 = vadd.f32 0.0, %v2185
        %v2187 = vpop.f32.mrb[0].mxu0
        %v2188 = vadd.f32 0.0, %v2187
        %2189 = vmatprep.mubr.f32.mxu0 0.0
        %2190 = vmatmul.mubr.f32.gmra.mrb[0].mxu0 %v1766
        %v2191 = vpop.f32.mrb[0].mxu0
        %v2192 = vadd.f32 0.0, %v2191
        %v2193 = vpop.f32.mrb[0].mxu0
        %v2194 = vadd.f32 0.0, %v2193
        %2195 = vmatprep.mubr.f32.mxu0 0.0
        %2196 = vmatmul.mubr.f32.gmra.mrb[0].mxu0 %v1769
        %v2197 = vpop.f32.mrb[0].mxu0
        %v2198 = vadd.f32 0.0, %v2197
        %v2199 = vpop.f32.mrb[0].mxu0
        %v2200 = vadd.f32 0.0, %v2199
        %2201 = vmatprep.mubr.f32.mxu0 0.0
        %2202 = vmatmul.mubr.f32.gmra.mrb[0].mxu0 %v1772
        %v2203 = vpop.f32.mrb[0].mxu0
        %v2204 = vadd.f32 0.0, %v2203
        %v2205 = vpop.f32.mrb[0].mxu0
        %v2206 = vadd.f32 0.0, %v2205
        %2207 = vmatprep.mubr.f32.mxu0 0.0
        %2208 = vmatmul.mubr.f32.gmra.mrb[0].mxu0 %v1775
        %v2209 = vpop.f32.mrb[0].mxu0
        %v2210 = vadd.f32 0.0, %v2209
        %v2211 = vpop.f32.mrb[0].mxu0
        %v2212 = vadd.f32 0.0, %v2211
        %2213 = vmatprep.mubr.f32.mxu0 0.0
        %2214 = vmatmul.mubr.f32.gmra.mrb[0].mxu0 %v1778
        %v2215 = vpop.f32.mrb[0].mxu0
        %v2216 = vadd.f32 0.0, %v2215
        %v2217 = vpop.f32.mrb[0].mxu0
        %v2218 = vadd.f32 0.0, %v2217
        %2219 = vmatprep.mubr.f32.mxu0 0.0
        %2220 = vmatmul.mubr.f32.gmra.mrb[0].mxu0 %v1781
        %v2221 = vpop.f32.mrb[0].mxu0
        %v2222 = vadd.f32 0.0, %v2221
        %v2223 = vpop.f32.mrb[0].mxu0
        %v2224 = vadd.f32 0.0, %v2223
        %2225 = vmatprep.mubr.f32.mxu0 0.0
        %2226 = vmatmul.mubr.f32.gmra.mrb[0].mxu0 %v1784
        %v2227 = vpop.f32.mrb[0].mxu0
        %v2228 = vadd.f32 0.0, %v2227
        %v2229 = vpop.f32.mrb[0].mxu0
        %v2230 = vadd.f32 0.0, %v2229
        %2231 = vmatprep.mubr.f32.mxu0 0.0
        %2232 = vmatmul.mubr.f32.gmra.mrb[0].mxu0 %v1787
        %v2233 = vpop.f32.mrb[0].mxu0
        %v2234 = vadd.f32 0.0, %v2233
        %v2235 = vpop.f32.mrb[0].mxu0
        %v2236 = vadd.f32 0.0, %v2235
        %2237 = vdwg.mxu0
        %2238 = vmatprep.subr.mxu0 %v1202
        %2239 = vmatpush1.msra.mxu0 %v1200
        %2240 = vmatprep.subr.mxu0 %v1208
        %2241 = vmatpush1.msra.mxu0 %v1206
        %2242 = vmatprep.subr.mxu0 0.0
        %2243 = vmatpush1.msra.mxu0 0.0
        %2244 = vmatprep.subr.mxu0 0.0
        %2245 = vmatpush1.msra.mxu0 0.0
        %2246 = vmatprep.subr.mxu0 0.0
        %2247 = vmatpush1.msra.mxu0 0.0
        %2248 = vmatprep.subr.mxu0 0.0
        %2249 = vmatpush1.msra.mxu0 0.0
        %2250 = vmatprep.subr.mxu0 0.0
        %2251 = vmatpush1.msra.mxu0 0.0
        %2252 = vmatprep.subr.mxu0 0.0
        %2253 = vmatpush1.msra.mxu0 0.0
        %2254 = vmatprep.subr.mxu0 0.0
        %2255 = vmatpush1.msra.mxu0 0.0
        %2256 = vmatprep.subr.mxu0 0.0
        %2257 = vmatpush1.msra.mxu0 0.0
        %2258 = vmatprep.subr.mxu0 0.0
        %2259 = vmatpush1.msra.mxu0 0.0
        %2260 = vmatprep.subr.mxu0 0.0
        %2261 = vmatpush1.msra.mxu0 0.0
        %2262 = vmatprep.subr.mxu0 0.0
        %2263 = vmatpush1.msra.mxu0 0.0
        %2264 = vmatprep.subr.mxu0 0.0
        %2265 = vmatpush1.msra.mxu0 0.0
        %2266 = vmatprep.subr.mxu0 0.0
        %2267 = vmatpush1.msra.mxu0 0.0
        %2268 = vmatprep.subr.mxu0 0.0
        %2269 = vmatpush1.msra.mxu0 0.0
        %2270 = vmatprep.subr.mxu0 0.0
        %2271 = vmatpush1.msra.mxu0 0.0
        %2272 = vmatprep.subr.mxu0 0.0
        %2273 = vmatpush1.msra.mxu0 0.0
        %2274 = vmatprep.subr.mxu0 0.0
        %2275 = vmatpush1.msra.mxu0 0.0
        %2276 = vmatprep.subr.mxu0 0.0
        %2277 = vmatpush1.msra.mxu0 0.0
        %2278 = vmatprep.subr.mxu0 0.0
        %2279 = vmatpush1.msra.mxu0 0.0
        %2280 = vmatprep.subr.mxu0 0.0
        %2281 = vmatpush1.msra.mxu0 0.0
        %2282 = vmatprep.subr.mxu0 0.0
        %2283 = vmatpush1.msra.mxu0 0.0
        %2284 = vmatprep.subr.mxu0 0.0
        %2285 = vmatpush1.msra.mxu0 0.0
        %2286 = vmatprep.subr.mxu0 0.0
        %2287 = vmatpush1.msra.mxu0 0.0
        %2288 = vmatprep.subr.mxu0 0.0
        %2289 = vmatpush1.msra.mxu0 0.0
        %2290 = vmatprep.subr.mxu0 0.0
        %2291 = vmatpush1.msra.mxu0 0.0
        %2292 = vmatprep.subr.mxu0 0.0
        %2293 = vmatpush1.msra.mxu0 0.0
        %2294 = vmatprep.subr.mxu0 0.0
        %2295 = vmatpush1.msra.mxu0 0.0
        %2296 = vmatprep.subr.mxu0 0.0
        %2297 = vmatpush1.msra.mxu0 0.0
        %2298 = vmatprep.subr.mxu0 0.0
        %2299 = vmatpush1.msra.mxu0 0.0
        %2300 = vmatprep.subr.mxu0 0.0
        %2301 = vmatpush1.msra.mxu0 0.0
        %2302 = vmatprep.mubr.f32.mxu0 0.0
        %2303 = vmatmul.mubr.f32.gmra.mrb[0].mxu0 %v1598
        %v2304 = vpop.f32.mrb[0].mxu0
        %v2305 = vadd.f32 0.0, %v2304
        %v2306 = vpop.f32.mrb[0].mxu0
        %v2307 = vadd.f32 0.0, %v2306
        %2308 = vmatprep.mubr.f32.mxu0 0.0
        %2309 = vmatmul.mubr.f32.gmra.mrb[0].mxu0 %v1601
        %v2310 = vpop.f32.mrb[0].mxu0
        %v2311 = vadd.f32 0.0, %v2310
        %v2312 = vpop.f32.mrb[0].mxu0
        %v2313 = vadd.f32 0.0, %v2312
        %2314 = vmatprep.mubr.f32.mxu0 0.0
        %2315 = vmatmul.mubr.f32.gmra.mrb[0].mxu0 %v1604
        %v2316 = vpop.f32.mrb[0].mxu0
        %v2317 = vadd.f32 0.0, %v2316
        %v2318 = vpop.f32.mrb[0].mxu0
        %v2319 = vadd.f32 0.0, %v2318
        %2320 = vmatprep.mubr.f32.mxu0 0.0
        %2321 = vmatmul.mubr.f32.gmra.mrb[0].mxu0 %v1607
        %v2322 = vpop.f32.mrb[0].mxu0
        %v2323 = vadd.f32 0.0, %v2322
        %v2324 = vpop.f32.mrb[0].mxu0
        %v2325 = vadd.f32 0.0, %v2324
        %2326 = vmatprep.mubr.f32.mxu0 0.0
        %2327 = vmatmul.mubr.f32.gmra.mrb[0].mxu0 %v1610
        %v2328 = vpop.f32.mrb[0].mxu0
        %v2329 = vadd.f32 0.0, %v2328
        %v2330 = vpop.f32.mrb[0].mxu0
        %v2331 = vadd.f32 0.0, %v2330
        %2332 = vmatprep.mubr.f32.mxu0 0.0
        %2333 = vmatmul.mubr.f32.gmra.mrb[0].mxu0 %v1613
        %v2334 = vpop.f32.mrb[0].mxu0
        %v2335 = vadd.f32 0.0, %v2334
        %v2336 = vpop.f32.mrb[0].mxu0
        %v2337 = vadd.f32 0.0, %v2336
        %2338 = vmatprep.mubr.f32.mxu0 0.0
        %2339 = vmatmul.mubr.f32.gmra.mrb[0].mxu0 %v1616
        %v2340 = vpop.f32.mrb[0].mxu0
        %v2341 = vadd.f32 0.0, %v2340
        %v2342 = vpop.f32.mrb[0].mxu0
        %v2343 = vadd.f32 0.0, %v2342
        %2344 = vmatprep.mubr.f32.mxu0 0.0
        %2345 = vmatmul.mubr.f32.gmra.mrb[0].mxu0 %v1619
        %v2346 = vpop.f32.mrb[0].mxu0
        %v2347 = vadd.f32 0.0, %v2346
        %v2348 = vpop.f32.mrb[0].mxu0
        %v2349 = vadd.f32 0.0, %v2348
        %2350 = vmatprep.mubr.f32.mxu0 0.0
        %2351 = vmatmul.mubr.f32.gmra.mrb[0].mxu0 %v1622
        %v2352 = vpop.f32.mrb[0].mxu0
        %v2353 = vadd.f32 0.0, %v2352
        %v2354 = vpop.f32.mrb[0].mxu0
        %v2355 = vadd.f32 0.0, %v2354
        %2356 = vmatprep.mubr.f32.mxu0 0.0
        %2357 = vmatmul.mubr.f32.gmra.mrb[0].mxu0 %v1625
        %v2358 = vpop.f32.mrb[0].mxu0
        %v2359 = vadd.f32 0.0, %v2358
        %v2360 = vpop.f32.mrb[0].mxu0
        %v2361 = vadd.f32 0.0, %v2360
        %2362 = vmatprep.mubr.f32.mxu0 0.0
        %2363 = vmatmul.mubr.f32.gmra.mrb[0].mxu0 %v1628
        %v2364 = vpop.f32.mrb[0].mxu0
        %v2365 = vadd.f32 0.0, %v2364
        %v2366 = vpop.f32.mrb[0].mxu0
        %v2367 = vadd.f32 0.0, %v2366
        %2368 = vmatprep.mubr.f32.mxu0 0.0
        %2369 = vmatmul.mubr.f32.gmra.mrb[0].mxu0 %v1631
        %v2370 = vpop.f32.mrb[0].mxu0
        %v2371 = vadd.f32 0.0, %v2370
        %v2372 = vpop.f32.mrb[0].mxu0
        %v2373 = vadd.f32 0.0, %v2372
        %2374 = vmatprep.mubr.f32.mxu0 0.0
        %2375 = vmatmul.mubr.f32.gmra.mrb[0].mxu0 %v1634
        %v2376 = vpop.f32.mrb[0].mxu0
        %v2377 = vadd.f32 0.0, %v2376
        %v2378 = vpop.f32.mrb[0].mxu0
        %v2379 = vadd.f32 0.0, %v2378
        %2380 = vmatprep.mubr.f32.mxu0 0.0
        %2381 = vmatmul.mubr.f32.gmra.mrb[0].mxu0 %v1637
        %v2382 = vpop.f32.mrb[0].mxu0
        %v2383 = vadd.f32 0.0, %v2382
        %v2384 = vpop.f32.mrb[0].mxu0
        %v2385 = vadd.f32 0.0, %v2384
        %2386 = vmatprep.mubr.f32.mxu0 0.0
        %2387 = vmatmul.mubr.f32.gmra.mrb[0].mxu0 %v1640
        %v2388 = vpop.f32.mrb[0].mxu0
        %v2389 = vadd.f32 0.0, %v2388
        %v2390 = vpop.f32.mrb[0].mxu0
        %v2391 = vadd.f32 0.0, %v2390
        %2392 = vmatprep.mubr.f32.mxu0 0.0
        %2393 = vmatmul.mubr.f32.gmra.mrb[0].mxu0 %v1643
        %v2394 = vpop.f32.mrb[0].mxu0
        %v2395 = vadd.f32 0.0, %v2394
        %v2396 = vpop.f32.mrb[0].mxu0
        %v2397 = vadd.f32 0.0, %v2396
        %2398 = vmatprep.mubr.f32.mxu0 0.0
        %2399 = vmatmul.mubr.f32.gmra.mrb[0].mxu0 %v1646
        %v2400 = vpop.f32.mrb[0].mxu0
        %v2401 = vadd.f32 0.0, %v2400
        %v2402 = vpop.f32.mrb[0].mxu0
        %v2403 = vadd.f32 0.0, %v2402
        %2404 = vmatprep.mubr.f32.mxu0 0.0
        %2405 = vmatmul.mubr.f32.gmra.mrb[0].mxu0 %v1649
        %v2406 = vpop.f32.mrb[0].mxu0
        %v2407 = vadd.f32 0.0, %v2406
        %v2408 = vpop.f32.mrb[0].mxu0
        %v2409 = vadd.f32 0.0, %v2408
        %2410 = vmatprep.mubr.f32.mxu0 0.0
        %2411 = vmatmul.mubr.f32.gmra.mrb[0].mxu0 %v1652
        %v2412 = vpop.f32.mrb[0].mxu0
        %v2413 = vadd.f32 0.0, %v2412
        %v2414 = vpop.f32.mrb[0].mxu0
        %v2415 = vadd.f32 0.0, %v2414
        %2416 = vmatprep.mubr.f32.mxu0 0.0
        %2417 = vmatmul.mubr.f32.gmra.mrb[0].mxu0 %v1655
        %v2418 = vpop.f32.mrb[0].mxu0
        %v2419 = vadd.f32 0.0, %v2418
        %v2420 = vpop.f32.mrb[0].mxu0
        %v2421 = vadd.f32 0.0, %v2420
        %2422 = vmatprep.mubr.f32.mxu0 0.0
        %2423 = vmatmul.mubr.f32.gmra.mrb[0].mxu0 %v1658
        %v2424 = vpop.f32.mrb[0].mxu0
        %v2425 = vadd.f32 0.0, %v2424
        %v2426 = vpop.f32.mrb[0].mxu0
        %v2427 = vadd.f32 0.0, %v2426
        %2428 = vmatprep.mubr.f32.mxu0 0.0
        %2429 = vmatmul.mubr.f32.gmra.mrb[0].mxu0 %v1661
        %v2430 = vpop.f32.mrb[0].mxu0
        %v2431 = vadd.f32 0.0, %v2430
        %v2432 = vpop.f32.mrb[0].mxu0
        %v2433 = vadd.f32 0.0, %v2432
        %2434 = vmatprep.mubr.f32.mxu0 0.0
        %2435 = vmatmul.mubr.f32.gmra.mrb[0].mxu0 %v1664
        %v2436 = vpop.f32.mrb[0].mxu0
        %v2437 = vadd.f32 0.0, %v2436
        %v2438 = vpop.f32.mrb[0].mxu0
        %v2439 = vadd.f32 0.0, %v2438
        %2440 = vmatprep.mubr.f32.mxu0 0.0
        %2441 = vmatmul.mubr.f32.gmra.mrb[0].mxu0 %v1667
        %v2442 = vpop.f32.mrb[0].mxu0
        %v2443 = vadd.f32 0.0, %v2442
        %v2444 = vpop.f32.mrb[0].mxu0
        %v2445 = vadd.f32 0.0, %v2444
        %2446 = vmatprep.mubr.f32.mxu0 0.0
        %2447 = vmatmul.mubr.f32.gmra.mrb[0].mxu0 %v1670
        %v2448 = vpop.f32.mrb[0].mxu0
        %v2449 = vadd.f32 0.0, %v2448
        %v2450 = vpop.f32.mrb[0].mxu0
        %v2451 = vadd.f32 0.0, %v2450
        %2452 = vmatprep.mubr.f32.mxu0 0.0
        %2453 = vmatmul.mubr.f32.gmra.mrb[0].mxu0 %v1673
        %v2454 = vpop.f32.mrb[0].mxu0
        %v2455 = vadd.f32 0.0, %v2454
        %v2456 = vpop.f32.mrb[0].mxu0
        %v2457 = vadd.f32 0.0, %v2456
        %2458 = vmatprep.mubr.f32.mxu0 0.0
        %2459 = vmatmul.mubr.f32.gmra.mrb[0].mxu0 %v1676
        %v2460 = vpop.f32.mrb[0].mxu0
        %v2461 = vadd.f32 0.0, %v2460
        %v2462 = vpop.f32.mrb[0].mxu0
        %v2463 = vadd.f32 0.0, %v2462
        %2464 = vmatprep.mubr.f32.mxu0 0.0
        %2465 = vmatmul.mubr.f32.gmra.mrb[0].mxu0 %v1679
        %v2466 = vpop.f32.mrb[0].mxu0
        %v2467 = vadd.f32 0.0, %v2466
        %v2468 = vpop.f32.mrb[0].mxu0
        %v2469 = vadd.f32 0.0, %v2468
        %2470 = vmatprep.mubr.f32.mxu0 0.0
        %2471 = vmatmul.mubr.f32.gmra.mrb[0].mxu0 %v1682
        %v2472 = vpop.f32.mrb[0].mxu0
        %v2473 = vadd.f32 0.0, %v2472
        %v2474 = vpop.f32.mrb[0].mxu0
        %v2475 = vadd.f32 0.0, %v2474
        %2476 = vmatprep.mubr.f32.mxu0 0.0
        %2477 = vmatmul.mubr.f32.gmra.mrb[0].mxu0 %v1685
        %v2478 = vpop.f32.mrb[0].mxu0
        %v2479 = vadd.f32 0.0, %v2478
        %v2480 = vpop.f32.mrb[0].mxu0
        %v2481 = vadd.f32 0.0, %v2480
        %2482 = vmatprep.mubr.f32.mxu0 0.0
        %2483 = vmatmul.mubr.f32.gmra.mrb[0].mxu0 %v1688
        %v2484 = vpop.f32.mrb[0].mxu0
        %v2485 = vadd.f32 0.0, %v2484
        %v2486 = vpop.f32.mrb[0].mxu0
        %v2487 = vadd.f32 0.0, %v2486
        %2488 = vmatprep.mubr.f32.mxu0 0.0
        %2489 = vmatmul.mubr.f32.gmra.mrb[0].mxu0 %v1691
        %v2490 = vpop.f32.mrb[0].mxu0
        %v2491 = vadd.f32 0.0, %v2490
        %v2492 = vpop.f32.mrb[0].mxu0
        %v2493 = vadd.f32 0.0, %v2492
        %2494 = vmatprep.mubr.f32.mxu0 0.0
        %2495 = vmatmul.mubr.f32.gmra.mrb[0].mxu0 %v1694
        %v2496 = vpop.f32.mrb[0].mxu0
        %v2497 = vadd.f32 0.0, %v2496
        %v2498 = vpop.f32.mrb[0].mxu0
        %v2499 = vadd.f32 0.0, %v2498
        %2500 = vmatprep.mubr.f32.mxu0 0.0
        %2501 = vmatmul.mubr.f32.gmra.mrb[0].mxu0 %v1697
        %v2502 = vpop.f32.mrb[0].mxu0
        %v2503 = vadd.f32 0.0, %v2502
        %v2504 = vpop.f32.mrb[0].mxu0
        %v2505 = vadd.f32 0.0, %v2504
        %2506 = vmatprep.mubr.f32.mxu0 0.0
        %2507 = vmatmul.mubr.f32.gmra.mrb[0].mxu0 %v1700
        %v2508 = vpop.f32.mrb[0].mxu0
        %v2509 = vadd.f32 0.0, %v2508
        %v2510 = vpop.f32.mrb[0].mxu0
        %v2511 = vadd.f32 0.0, %v2510
        %2512 = vmatprep.mubr.f32.mxu0 0.0
        %2513 = vmatmul.mubr.f32.gmra.mrb[0].mxu0 %v1703
        %v2514 = vpop.f32.mrb[0].mxu0
        %v2515 = vadd.f32 0.0, %v2514
        %v2516 = vpop.f32.mrb[0].mxu0
        %v2517 = vadd.f32 0.0, %v2516
        %2518 = vmatprep.mubr.f32.mxu0 0.0
        %2519 = vmatmul.mubr.f32.gmra.mrb[0].mxu0 %v1706
        %v2520 = vpop.f32.mrb[0].mxu0
        %v2521 = vadd.f32 0.0, %v2520
        %v2522 = vpop.f32.mrb[0].mxu0
        %v2523 = vadd.f32 0.0, %v2522
        %2524 = vmatprep.mubr.f32.mxu0 0.0
        %2525 = vmatmul.mubr.f32.gmra.mrb[0].mxu0 %v1709
        %v2526 = vpop.f32.mrb[0].mxu0
        %v2527 = vadd.f32 0.0, %v2526
        %v2528 = vpop.f32.mrb[0].mxu0
        %v2529 = vadd.f32 0.0, %v2528
        %2530 = vmatprep.mubr.f32.mxu0 0.0
        %2531 = vmatmul.mubr.f32.gmra.mrb[0].mxu0 %v1712
        %v2532 = vpop.f32.mrb[0].mxu0
        %v2533 = vadd.f32 0.0, %v2532
        %v2534 = vpop.f32.mrb[0].mxu0
        %v2535 = vadd.f32 0.0, %v2534
        %2536 = vmatprep.mubr.f32.mxu0 0.0
        %2537 = vmatmul.mubr.f32.gmra.mrb[0].mxu0 %v1715
        %v2538 = vpop.f32.mrb[0].mxu0
        %v2539 = vadd.f32 0.0, %v2538
        %v2540 = vpop.f32.mrb[0].mxu0
        %v2541 = vadd.f32 0.0, %v2540
        %2542 = vmatprep.mubr.f32.mxu0 0.0
        %2543 = vmatmul.mubr.f32.gmra.mrb[0].mxu0 %v1718
        %v2544 = vpop.f32.mrb[0].mxu0
        %v2545 = vadd.f32 0.0, %v2544
        %v2546 = vpop.f32.mrb[0].mxu0
        %v2547 = vadd.f32 0.0, %v2546
        %2548 = vmatprep.mubr.f32.mxu0 0.0
        %2549 = vmatmul.mubr.f32.gmra.mrb[0].mxu0 %v1721
        %v2550 = vpop.f32.mrb[0].mxu0
        %v2551 = vadd.f32 0.0, %v2550
        %v2552 = vpop.f32.mrb[0].mxu0
        %v2553 = vadd.f32 0.0, %v2552
        %2554 = vmatprep.mubr.f32.mxu0 0.0
        %2555 = vmatmul.mubr.f32.gmra.mrb[0].mxu0 %v1724
        %v2556 = vpop.f32.mrb[0].mxu0
        %v2557 = vadd.f32 0.0, %v2556
        %v2558 = vpop.f32.mrb[0].mxu0
        %v2559 = vadd.f32 0.0, %v2558
        %2560 = vmatprep.mubr.f32.mxu0 0.0
        %2561 = vmatmul.mubr.f32.gmra.mrb[0].mxu0 %v1727
        %v2562 = vpop.f32.mrb[0].mxu0
        %v2563 = vadd.f32 0.0, %v2562
        %v2564 = vpop.f32.mrb[0].mxu0
        %v2565 = vadd.f32 0.0, %v2564
        %2566 = vmatprep.mubr.f32.mxu0 0.0
        %2567 = vmatmul.mubr.f32.gmra.mrb[0].mxu0 %v1730
        %v2568 = vpop.f32.mrb[0].mxu0
        %v2569 = vadd.f32 0.0, %v2568
        %v2570 = vpop.f32.mrb[0].mxu0
        %v2571 = vadd.f32 0.0, %v2570
        %2572 = vmatprep.mubr.f32.mxu0 0.0
        %2573 = vmatmul.mubr.f32.gmra.mrb[0].mxu0 %v1733
        %v2574 = vpop.f32.mrb[0].mxu0
        %v2575 = vadd.f32 0.0, %v2574
        %v2576 = vpop.f32.mrb[0].mxu0
        %v2577 = vadd.f32 0.0, %v2576
        %2578 = vmatprep.mubr.f32.mxu0 0.0
        %2579 = vmatmul.mubr.f32.gmra.mrb[0].mxu0 %v1736
        %v2580 = vpop.f32.mrb[0].mxu0
        %v2581 = vadd.f32 0.0, %v2580
        %v2582 = vpop.f32.mrb[0].mxu0
        %v2583 = vadd.f32 0.0, %v2582
        %2584 = vmatprep.mubr.f32.mxu0 0.0
        %2585 = vmatmul.mubr.f32.gmra.mrb[0].mxu0 %v1739
        %v2586 = vpop.f32.mrb[0].mxu0
        %v2587 = vadd.f32 0.0, %v2586
        %v2588 = vpop.f32.mrb[0].mxu0
        %v2589 = vadd.f32 0.0, %v2588
        %2590 = vmatprep.mubr.f32.mxu0 0.0
        %2591 = vmatmul.mubr.f32.gmra.mrb[0].mxu0 %v1742
        %v2592 = vpop.f32.mrb[0].mxu0
        %v2593 = vadd.f32 0.0, %v2592
        %v2594 = vpop.f32.mrb[0].mxu0
        %v2595 = vadd.f32 0.0, %v2594
        %2596 = vmatprep.mubr.f32.mxu0 0.0
        %2597 = vmatmul.mubr.f32.gmra.mrb[0].mxu0 %v1745
        %v2598 = vpop.f32.mrb[0].mxu0
        %v2599 = vadd.f32 0.0, %v2598
        %v2600 = vpop.f32.mrb[0].mxu0
        %v2601 = vadd.f32 0.0, %v2600
        %2602 = vmatprep.mubr.f32.mxu0 0.0
        %2603 = vmatmul.mubr.f32.gmra.mrb[0].mxu0 %v1748
        %v2604 = vpop.f32.mrb[0].mxu0
        %v2605 = vadd.f32 0.0, %v2604
        %v2606 = vpop.f32.mrb[0].mxu0
        %v2607 = vadd.f32 0.0, %v2606
        %2608 = vmatprep.mubr.f32.mxu0 0.0
        %2609 = vmatmul.mubr.f32.gmra.mrb[0].mxu0 %v1751
        %v2610 = vpop.f32.mrb[0].mxu0
        %v2611 = vadd.f32 0.0, %v2610
        %v2612 = vpop.f32.mrb[0].mxu0
        %v2613 = vadd.f32 0.0, %v2612
        %2614 = vmatprep.mubr.f32.mxu0 0.0
        %2615 = vmatmul.mubr.f32.gmra.mrb[0].mxu0 %v1754
        %v2616 = vpop.f32.mrb[0].mxu0
        %v2617 = vadd.f32 0.0, %v2616
        %v2618 = vpop.f32.mrb[0].mxu0
        %v2619 = vadd.f32 0.0, %v2618
        %2620 = vmatprep.mubr.f32.mxu0 0.0
        %2621 = vmatmul.mubr.f32.gmra.mrb[0].mxu0 %v1757
        %v2622 = vpop.f32.mrb[0].mxu0
        %v2623 = vadd.f32 0.0, %v2622
        %v2624 = vpop.f32.mrb[0].mxu0
        %v2625 = vadd.f32 0.0, %v2624
        %2626 = vmatprep.mubr.f32.mxu0 0.0
        %2627 = vmatmul.mubr.f32.gmra.mrb[0].mxu0 %v1760
        %v2628 = vpop.f32.mrb[0].mxu0
        %v2629 = vadd.f32 0.0, %v2628
        %v2630 = vpop.f32.mrb[0].mxu0
        %v2631 = vadd.f32 0.0, %v2630
        %2632 = vmatprep.mubr.f32.mxu0 0.0
        %2633 = vmatmul.mubr.f32.gmra.mrb[0].mxu0 %v1763
        %v2634 = vpop.f32.mrb[0].mxu0
        %v2635 = vadd.f32 0.0, %v2634
        %v2636 = vpop.f32.mrb[0].mxu0
        %v2637 = vadd.f32 0.0, %v2636
        %2638 = vmatprep.mubr.f32.mxu0 0.0
        %2639 = vmatmul.mubr.f32.gmra.mrb[0].mxu0 %v1766
        %v2640 = vpop.f32.mrb[0].mxu0
        %v2641 = vadd.f32 0.0, %v2640
        %v2642 = vpop.f32.mrb[0].mxu0
        %v2643 = vadd.f32 0.0, %v2642
        %2644 = vmatprep.mubr.f32.mxu0 0.0
        %2645 = vmatmul.mubr.f32.gmra.mrb[0].mxu0 %v1769
        %v2646 = vpop.f32.mrb[0].mxu0
        %v2647 = vadd.f32 0.0, %v2646
        %v2648 = vpop.f32.mrb[0].mxu0
        %v2649 = vadd.f32 0.0, %v2648
        %2650 = vmatprep.mubr.f32.mxu0 0.0
        %2651 = vmatmul.mubr.f32.gmra.mrb[0].mxu0 %v1772
        %v2652 = vpop.f32.mrb[0].mxu0
        %v2653 = vadd.f32 0.0, %v2652
        %v2654 = vpop.f32.mrb[0].mxu0
        %v2655 = vadd.f32 0.0, %v2654
        %2656 = vmatprep.mubr.f32.mxu0 0.0
        %2657 = vmatmul.mubr.f32.gmra.mrb[0].mxu0 %v1775
        %v2658 = vpop.f32.mrb[0].mxu0
        %v2659 = vadd.f32 0.0, %v2658
        %v2660 = vpop.f32.mrb[0].mxu0
        %v2661 = vadd.f32 0.0, %v2660
        %2662 = vmatprep.mubr.f32.mxu0 0.0
        %2663 = vmatmul.mubr.f32.gmra.mrb[0].mxu0 %v1778
        %v2664 = vpop.f32.mrb[0].mxu0
        %v2665 = vadd.f32 0.0, %v2664
        %v2666 = vpop.f32.mrb[0].mxu0
        %v2667 = vadd.f32 0.0, %v2666
        %2668 = vmatprep.mubr.f32.mxu0 0.0
        %2669 = vmatmul.mubr.f32.gmra.mrb[0].mxu0 %v1781
        %v2670 = vpop.f32.mrb[0].mxu0
        %v2671 = vadd.f32 0.0, %v2670
        %v2672 = vpop.f32.mrb[0].mxu0
        %v2673 = vadd.f32 0.0, %v2672
        %2674 = vmatprep.mubr.f32.mxu0 0.0
        %2675 = vmatmul.mubr.f32.gmra.mrb[0].mxu0 %v1784
        %v2676 = vpop.f32.mrb[0].mxu0
        %v2677 = vadd.f32 0.0, %v2676
        %v2678 = vpop.f32.mrb[0].mxu0
        %v2679 = vadd.f32 0.0, %v2678
        %2680 = vmatprep.mubr.f32.mxu0 0.0
        %2681 = vmatmul.mubr.f32.gmra.mrb[0].mxu0 %v1787
        %v2682 = vpop.f32.mrb[0].mxu0
        %v2683 = vadd.f32 0.0, %v2682
        %v2684 = vpop.f32.mrb[0].mxu0
        %v2685 = vadd.f32 0.0, %v2684
        %2686 = vdwg.mxu0
        %v2687 = vmax.f32 %v1856, %v1858
        %v2688 = vmax.f32 %v2687, %v2305
        %v2689 = vmax.f32 %v2688, %v2307
        %2690 = vmax.xlane.f32.xlu0 %v2689
        %v2691 = vpop.xlane.xlu0 %2690
        %v2692 = vmax.f32 %v1862, %v1864
        %v2693 = vmax.f32 %v2692, %v2311
        %v2694 = vmax.f32 %v2693, %v2313
        %2695 = vmax.xlane.f32.xlu0 %v2694
        %v2696 = vpop.xlane.xlu0 %2695
        %v2697 = vmax.f32 %v1868, %v1870
        %v2698 = vmax.f32 %v2697, %v2317
        %v2699 = vmax.f32 %v2698, %v2319
        %2700 = vmax.xlane.f32.xlu0 %v2699
        %v2701 = vpop.xlane.xlu0 %2700
        %v2702 = vmax.f32 %v1874, %v1876
        %v2703 = vmax.f32 %v2702, %v2323
        %v2704 = vmax.f32 %v2703, %v2325
        %2705 = vmax.xlane.f32.xlu0 %v2704
        %v2706 = vpop.xlane.xlu0 %2705
        %v2707 = vmax.f32 %v1880, %v1882
        %v2708 = vmax.f32 %v2707, %v2329
        %v2709 = vmax.f32 %v2708, %v2331
        %2710 = vmax.xlane.f32.xlu0 %v2709
        %v2711 = vpop.xlane.xlu0 %2710
        %v2712 = vmax.f32 %v1886, %v1888
        %v2713 = vmax.f32 %v2712, %v2335
        %v2714 = vmax.f32 %v2713, %v2337
        %2715 = vmax.xlane.f32.xlu0 %v2714
        %v2716 = vpop.xlane.xlu0 %2715
        %v2717 = vmax.f32 %v1892, %v1894
        %v2718 = vmax.f32 %v2717, %v2341
        %v2719 = vmax.f32 %v2718, %v2343
        %2720 = vmax.xlane.f32.xlu0 %v2719
        %v2721 = vpop.xlane.xlu0 %2720
        %v2722 = vmax.f32 %v1898, %v1900
        %v2723 = vmax.f32 %v2722, %v2347
        %v2724 = vmax.f32 %v2723, %v2349
        %2725 = vmax.xlane.f32.xlu0 %v2724
        %v2726 = vpop.xlane.xlu0 %2725
        %v2727 = vmax.f32 %v1904, %v1906
        %v2728 = vmax.f32 %v2727, %v2353
        %v2729 = vmax.f32 %v2728, %v2355
        %2730 = vmax.xlane.f32.xlu0 %v2729
        %v2731 = vpop.xlane.xlu0 %2730
        %v2732 = vmax.f32 %v1910, %v1912
        %v2733 = vmax.f32 %v2732, %v2359
        %v2734 = vmax.f32 %v2733, %v2361
        %2735 = vmax.xlane.f32.xlu0 %v2734
        %v2736 = vpop.xlane.xlu0 %2735
        %v2737 = vmax.f32 %v1916, %v1918
        %v2738 = vmax.f32 %v2737, %v2365
        %v2739 = vmax.f32 %v2738, %v2367
        %2740 = vmax.xlane.f32.xlu0 %v2739
        %v2741 = vpop.xlane.xlu0 %2740
        %v2742 = vmax.f32 %v1922, %v1924
        %v2743 = vmax.f32 %v2742, %v2371
        %v2744 = vmax.f32 %v2743, %v2373
        %2745 = vmax.xlane.f32.xlu0 %v2744
        %v2746 = vpop.xlane.xlu0 %2745
        %v2747 = vmax.f32 %v1928, %v1930
        %v2748 = vmax.f32 %v2747, %v2377
        %v2749 = vmax.f32 %v2748, %v2379
        %2750 = vmax.xlane.f32.xlu0 %v2749
        %v2751 = vpop.xlane.xlu0 %2750
        %v2752 = vmax.f32 %v1934, %v1936
        %v2753 = vmax.f32 %v2752, %v2383
        %v2754 = vmax.f32 %v2753, %v2385
        %2755 = vmax.xlane.f32.xlu0 %v2754
        %v2756 = vpop.xlane.xlu0 %2755
        %v2757 = vmax.f32 %v1940, %v1942
        %v2758 = vmax.f32 %v2757, %v2389
        %v2759 = vmax.f32 %v2758, %v2391
        %2760 = vmax.xlane.f32.xlu0 %v2759
        %v2761 = vpop.xlane.xlu0 %2760
        %v2762 = vmax.f32 %v1946, %v1948
        %v2763 = vmax.f32 %v2762, %v2395
        %v2764 = vmax.f32 %v2763, %v2397
        %2765 = vmax.xlane.f32.xlu0 %v2764
        %v2766 = vpop.xlane.xlu0 %2765
        %v2767 = vmax.f32 %v1952, %v1954
        %v2768 = vmax.f32 %v2767, %v2401
        %v2769 = vmax.f32 %v2768, %v2403
        %2770 = vmax.xlane.f32.xlu0 %v2769
        %v2771 = vpop.xlane.xlu0 %2770
        %v2772 = vmax.f32 %v1958, %v1960
        %v2773 = vmax.f32 %v2772, %v2407
        %v2774 = vmax.f32 %v2773, %v2409
        %2775 = vmax.xlane.f32.xlu0 %v2774
        %v2776 = vpop.xlane.xlu0 %2775
        %v2777 = vmax.f32 %v1964, %v1966
        %v2778 = vmax.f32 %v2777, %v2413
        %v2779 = vmax.f32 %v2778, %v2415
        %2780 = vmax.xlane.f32.xlu0 %v2779
        %v2781 = vpop.xlane.xlu0 %2780
        %v2782 = vmax.f32 %v1970, %v1972
        %v2783 = vmax.f32 %v2782, %v2419
        %v2784 = vmax.f32 %v2783, %v2421
        %2785 = vmax.xlane.f32.xlu0 %v2784
        %v2786 = vpop.xlane.xlu0 %2785
        %v2787 = vmax.f32 %v1976, %v1978
        %v2788 = vmax.f32 %v2787, %v2425
        %v2789 = vmax.f32 %v2788, %v2427
        %2790 = vmax.xlane.f32.xlu0 %v2789
        %v2791 = vpop.xlane.xlu0 %2790
        %v2792 = vmax.f32 %v1982, %v1984
        %v2793 = vmax.f32 %v2792, %v2431
        %v2794 = vmax.f32 %v2793, %v2433
        %2795 = vmax.xlane.f32.xlu0 %v2794
        %v2796 = vpop.xlane.xlu0 %2795
        %v2797 = vmax.f32 %v1988, %v1990
        %v2798 = vmax.f32 %v2797, %v2437
        %v2799 = vmax.f32 %v2798, %v2439
        %2800 = vmax.xlane.f32.xlu0 %v2799
        %v2801 = vpop.xlane.xlu0 %2800
        %v2802 = vmax.f32 %v1994, %v1996
        %v2803 = vmax.f32 %v2802, %v2443
        %v2804 = vmax.f32 %v2803, %v2445
        %2805 = vmax.xlane.f32.xlu0 %v2804
        %v2806 = vpop.xlane.xlu0 %2805
        %v2807 = vmax.f32 %v2000, %v2002
        %v2808 = vmax.f32 %v2807, %v2449
        %v2809 = vmax.f32 %v2808, %v2451
        %2810 = vmax.xlane.f32.xlu0 %v2809
        %v2811 = vpop.xlane.xlu0 %2810
        %v2812 = vmax.f32 %v2006, %v2008
        %v2813 = vmax.f32 %v2812, %v2455
        %v2814 = vmax.f32 %v2813, %v2457
        %2815 = vmax.xlane.f32.xlu0 %v2814
        %v2816 = vpop.xlane.xlu0 %2815
        %v2817 = vmax.f32 %v2012, %v2014
        %v2818 = vmax.f32 %v2817, %v2461
        %v2819 = vmax.f32 %v2818, %v2463
        %2820 = vmax.xlane.f32.xlu0 %v2819
        %v2821 = vpop.xlane.xlu0 %2820
        %v2822 = vmax.f32 %v2018, %v2020
        %v2823 = vmax.f32 %v2822, %v2467
        %v2824 = vmax.f32 %v2823, %v2469
        %2825 = vmax.xlane.f32.xlu0 %v2824
        %v2826 = vpop.xlane.xlu0 %2825
        %v2827 = vmax.f32 %v2024, %v2026
        %v2828 = vmax.f32 %v2827, %v2473
        %v2829 = vmax.f32 %v2828, %v2475
        %2830 = vmax.xlane.f32.xlu0 %v2829
        %v2831 = vpop.xlane.xlu0 %2830
        %v2832 = vmax.f32 %v2030, %v2032
        %v2833 = vmax.f32 %v2832, %v2479
        %v2834 = vmax.f32 %v2833, %v2481
        %2835 = vmax.xlane.f32.xlu0 %v2834
        %v2836 = vpop.xlane.xlu0 %2835
        %v2837 = vmax.f32 %v2036, %v2038
        %v2838 = vmax.f32 %v2837, %v2485
        %v2839 = vmax.f32 %v2838, %v2487
        %2840 = vmax.xlane.f32.xlu0 %v2839
        %v2841 = vpop.xlane.xlu0 %2840
        %v2842 = vmax.f32 %v2042, %v2044
        %v2843 = vmax.f32 %v2842, %v2491
        %v2844 = vmax.f32 %v2843, %v2493
        %2845 = vmax.xlane.f32.xlu0 %v2844
        %v2846 = vpop.xlane.xlu0 %2845
        %v2847 = vmax.f32 %v2048, %v2050
        %v2848 = vmax.f32 %v2847, %v2497
        %v2849 = vmax.f32 %v2848, %v2499
        %2850 = vmax.xlane.f32.xlu0 %v2849
        %v2851 = vpop.xlane.xlu0 %2850
        %v2852 = vmax.f32 %v2054, %v2056
        %v2853 = vmax.f32 %v2852, %v2503
        %v2854 = vmax.f32 %v2853, %v2505
        %2855 = vmax.xlane.f32.xlu0 %v2854
        %v2856 = vpop.xlane.xlu0 %2855
        %v2857 = vmax.f32 %v2060, %v2062
        %v2858 = vmax.f32 %v2857, %v2509
        %v2859 = vmax.f32 %v2858, %v2511
        %2860 = vmax.xlane.f32.xlu0 %v2859
        %v2861 = vpop.xlane.xlu0 %2860
        %v2862 = vmax.f32 %v2066, %v2068
        %v2863 = vmax.f32 %v2862, %v2515
        %v2864 = vmax.f32 %v2863, %v2517
        %2865 = vmax.xlane.f32.xlu0 %v2864
        %v2866 = vpop.xlane.xlu0 %2865
        %v2867 = vmax.f32 %v2072, %v2074
        %v2868 = vmax.f32 %v2867, %v2521
        %v2869 = vmax.f32 %v2868, %v2523
        %2870 = vmax.xlane.f32.xlu0 %v2869
        %v2871 = vpop.xlane.xlu0 %2870
        %v2872 = vmax.f32 %v2078, %v2080
        %v2873 = vmax.f32 %v2872, %v2527
        %v2874 = vmax.f32 %v2873, %v2529
        %2875 = vmax.xlane.f32.xlu0 %v2874
        %v2876 = vpop.xlane.xlu0 %2875
        %v2877 = vmax.f32 %v2084, %v2086
        %v2878 = vmax.f32 %v2877, %v2533
        %v2879 = vmax.f32 %v2878, %v2535
        %2880 = vmax.xlane.f32.xlu0 %v2879
        %v2881 = vpop.xlane.xlu0 %2880
        %v2882 = vmax.f32 %v2090, %v2092
        %v2883 = vmax.f32 %v2882, %v2539
        %v2884 = vmax.f32 %v2883, %v2541
        %2885 = vmax.xlane.f32.xlu0 %v2884
        %v2886 = vpop.xlane.xlu0 %2885
        %v2887 = vmax.f32 %v2096, %v2098
        %v2888 = vmax.f32 %v2887, %v2545
        %v2889 = vmax.f32 %v2888, %v2547
        %2890 = vmax.xlane.f32.xlu0 %v2889
        %v2891 = vpop.xlane.xlu0 %2890
        %v2892 = vmax.f32 %v2102, %v2104
        %v2893 = vmax.f32 %v2892, %v2551
        %v2894 = vmax.f32 %v2893, %v2553
        %2895 = vmax.xlane.f32.xlu0 %v2894
        %v2896 = vpop.xlane.xlu0 %2895
        %v2897 = vmax.f32 %v2108, %v2110
        %v2898 = vmax.f32 %v2897, %v2557
        %v2899 = vmax.f32 %v2898, %v2559
        %2900 = vmax.xlane.f32.xlu0 %v2899
        %v2901 = vpop.xlane.xlu0 %2900
        %v2902 = vmax.f32 %v2114, %v2116
        %v2903 = vmax.f32 %v2902, %v2563
        %v2904 = vmax.f32 %v2903, %v2565
        %2905 = vmax.xlane.f32.xlu0 %v2904
        %v2906 = vpop.xlane.xlu0 %2905
        %v2907 = vmax.f32 %v2120, %v2122
        %v2908 = vmax.f32 %v2907, %v2569
        %v2909 = vmax.f32 %v2908, %v2571
        %2910 = vmax.xlane.f32.xlu0 %v2909
        %v2911 = vpop.xlane.xlu0 %2910
        %v2912 = vmax.f32 %v2126, %v2128
        %v2913 = vmax.f32 %v2912, %v2575
        %v2914 = vmax.f32 %v2913, %v2577
        %2915 = vmax.xlane.f32.xlu0 %v2914
        %v2916 = vpop.xlane.xlu0 %2915
        %v2917 = vmax.f32 %v2132, %v2134
        %v2918 = vmax.f32 %v2917, %v2581
        %v2919 = vmax.f32 %v2918, %v2583
        %2920 = vmax.xlane.f32.xlu0 %v2919
        %v2921 = vpop.xlane.xlu0 %2920
        %v2922 = vmax.f32 %v2138, %v2140
        %v2923 = vmax.f32 %v2922, %v2587
        %v2924 = vmax.f32 %v2923, %v2589
        %2925 = vmax.xlane.f32.xlu0 %v2924
        %v2926 = vpop.xlane.xlu0 %2925
        %v2927 = vmax.f32 %v2144, %v2146
        %v2928 = vmax.f32 %v2927, %v2593
        %v2929 = vmax.f32 %v2928, %v2595
        %2930 = vmax.xlane.f32.xlu0 %v2929
        %v2931 = vpop.xlane.xlu0 %2930
        %v2932 = vmax.f32 %v2150, %v2152
        %v2933 = vmax.f32 %v2932, %v2599
        %v2934 = vmax.f32 %v2933, %v2601
        %2935 = vmax.xlane.f32.xlu0 %v2934
        %v2936 = vpop.xlane.xlu0 %2935
        %v2937 = vmax.f32 %v2156, %v2158
        %v2938 = vmax.f32 %v2937, %v2605
        %v2939 = vmax.f32 %v2938, %v2607
        %2940 = vmax.xlane.f32.xlu0 %v2939
        %v2941 = vpop.xlane.xlu0 %2940
        %v2942 = vmax.f32 %v2162, %v2164
        %v2943 = vmax.f32 %v2942, %v2611
        %v2944 = vmax.f32 %v2943, %v2613
        %2945 = vmax.xlane.f32.xlu0 %v2944
        %v2946 = vpop.xlane.xlu0 %2945
        %v2947 = vmax.f32 %v2168, %v2170
        %v2948 = vmax.f32 %v2947, %v2617
        %v2949 = vmax.f32 %v2948, %v2619
        %2950 = vmax.xlane.f32.xlu0 %v2949
        %v2951 = vpop.xlane.xlu0 %2950
        %v2952 = vmax.f32 %v2174, %v2176
        %v2953 = vmax.f32 %v2952, %v2623
        %v2954 = vmax.f32 %v2953, %v2625
        %2955 = vmax.xlane.f32.xlu0 %v2954
        %v2956 = vpop.xlane.xlu0 %2955
        %v2957 = vmax.f32 %v2180, %v2182
        %v2958 = vmax.f32 %v2957, %v2629
        %v2959 = vmax.f32 %v2958, %v2631
        %2960 = vmax.xlane.f32.xlu0 %v2959
        %v2961 = vpop.xlane.xlu0 %2960
        %v2962 = vmax.f32 %v2186, %v2188
        %v2963 = vmax.f32 %v2962, %v2635
        %v2964 = vmax.f32 %v2963, %v2637
        %2965 = vmax.xlane.f32.xlu0 %v2964
        %v2966 = vpop.xlane.xlu0 %2965
        %v2967 = vmax.f32 %v2192, %v2194
        %v2968 = vmax.f32 %v2967, %v2641
        %v2969 = vmax.f32 %v2968, %v2643
        %2970 = vmax.xlane.f32.xlu0 %v2969
        %v2971 = vpop.xlane.xlu0 %2970
        %v2972 = vmax.f32 %v2198, %v2200
        %v2973 = vmax.f32 %v2972, %v2647
        %v2974 = vmax.f32 %v2973, %v2649
        %2975 = vmax.xlane.f32.xlu0 %v2974
        %v2976 = vpop.xlane.xlu0 %2975
        %v2977 = vmax.f32 %v2204, %v2206
        %v2978 = vmax.f32 %v2977, %v2653
        %v2979 = vmax.f32 %v2978, %v2655
        %2980 = vmax.xlane.f32.xlu0 %v2979
        %v2981 = vpop.xlane.xlu0 %2980
        %v2982 = vmax.f32 %v2210, %v2212
        %v2983 = vmax.f32 %v2982, %v2659
        %v2984 = vmax.f32 %v2983, %v2661
        %2985 = vmax.xlane.f32.xlu0 %v2984
        %v2986 = vpop.xlane.xlu0 %2985
        %v2987 = vmax.f32 %v2216, %v2218
        %v2988 = vmax.f32 %v2987, %v2665
        %v2989 = vmax.f32 %v2988, %v2667
        %2990 = vmax.xlane.f32.xlu0 %v2989
        %v2991 = vpop.xlane.xlu0 %2990
        %v2992 = vmax.f32 %v2222, %v2224
        %v2993 = vmax.f32 %v2992, %v2671
        %v2994 = vmax.f32 %v2993, %v2673
        %2995 = vmax.xlane.f32.xlu0 %v2994
        %v2996 = vpop.xlane.xlu0 %2995
        %v2997 = vmax.f32 %v2228, %v2230
        %v2998 = vmax.f32 %v2997, %v2677
        %v2999 = vmax.f32 %v2998, %v2679
        %3000 = vmax.xlane.f32.xlu0 %v2999
        %v3001 = vpop.xlane.xlu0 %3000
        %v3002 = vmax.f32 %v2234, %v2236
        %v3003 = vmax.f32 %v3002, %v2683
        %v3004 = vmax.f32 %v3003, %v2685
        %3005 = vmax.xlane.f32.xlu0 %v3004
        %v3006 = vpop.xlane.xlu0 %3005
        %v3007 = vsub.f32 %v1856, %v2691
        %v3008 = vsub.f32 %v1858, %v2691
        %v3009 = vsub.f32 %v2305, %v2691
        %v3010 = vsub.f32 %v2307, %v2691
        %v3011 = vsub.f32 %v1862, %v2696
        %v3012 = vsub.f32 %v1864, %v2696
        %v3013 = vsub.f32 %v2311, %v2696
        %v3014 = vsub.f32 %v2313, %v2696
        %v3015 = vsub.f32 %v1868, %v2701
        %v3016 = vsub.f32 %v1870, %v2701
        %v3017 = vsub.f32 %v2317, %v2701
        %v3018 = vsub.f32 %v2319, %v2701
        %v3019 = vsub.f32 %v1874, %v2706
        %v3020 = vsub.f32 %v1876, %v2706
        %v3021 = vsub.f32 %v2323, %v2706
        %v3022 = vsub.f32 %v2325, %v2706
        %v3023 = vsub.f32 %v1880, %v2711
        %v3024 = vsub.f32 %v1882, %v2711
        %v3025 = vsub.f32 %v2329, %v2711
        %v3026 = vsub.f32 %v2331, %v2711
        %v3027 = vsub.f32 %v1886, %v2716
        %v3028 = vsub.f32 %v1888, %v2716
        %v3029 = vsub.f32 %v2335, %v2716
        %v3030 = vsub.f32 %v2337, %v2716
        %v3031 = vsub.f32 %v1892, %v2721
        %v3032 = vsub.f32 %v1894, %v2721
        %v3033 = vsub.f32 %v2341, %v2721
        %v3034 = vsub.f32 %v2343, %v2721
        %v3035 = vsub.f32 %v1898, %v2726
        %v3036 = vsub.f32 %v1900, %v2726
        %v3037 = vsub.f32 %v2347, %v2726
        %v3038 = vsub.f32 %v2349, %v2726
        %v3039 = vsub.f32 %v1904, %v2731
        %v3040 = vsub.f32 %v1906, %v2731
        %v3041 = vsub.f32 %v2353, %v2731
        %v3042 = vsub.f32 %v2355, %v2731
        %v3043 = vsub.f32 %v1910, %v2736
        %v3044 = vsub.f32 %v1912, %v2736
        %v3045 = vsub.f32 %v2359, %v2736
        %v3046 = vsub.f32 %v2361, %v2736
        %v3047 = vsub.f32 %v1916, %v2741
        %v3048 = vsub.f32 %v1918, %v2741
        %v3049 = vsub.f32 %v2365, %v2741
        %v3050 = vsub.f32 %v2367, %v2741
        %v3051 = vsub.f32 %v1922, %v2746
        %v3052 = vsub.f32 %v1924, %v2746
        %v3053 = vsub.f32 %v2371, %v2746
        %v3054 = vsub.f32 %v2373, %v2746
        %v3055 = vsub.f32 %v1928, %v2751
        %v3056 = vsub.f32 %v1930, %v2751
        %v3057 = vsub.f32 %v2377, %v2751
        %v3058 = vsub.f32 %v2379, %v2751
        %v3059 = vsub.f32 %v1934, %v2756
        %v3060 = vsub.f32 %v1936, %v2756
        %v3061 = vsub.f32 %v2383, %v2756
        %v3062 = vsub.f32 %v2385, %v2756
        %v3063 = vsub.f32 %v1940, %v2761
        %v3064 = vsub.f32 %v1942, %v2761
        %v3065 = vsub.f32 %v2389, %v2761
        %v3066 = vsub.f32 %v2391, %v2761
        %v3067 = vsub.f32 %v1946, %v2766
        %v3068 = vsub.f32 %v1948, %v2766
        %v3069 = vsub.f32 %v2395, %v2766
        %v3070 = vsub.f32 %v2397, %v2766
        %v3071 = vsub.f32 %v1952, %v2771
        %v3072 = vsub.f32 %v1954, %v2771
        %v3073 = vsub.f32 %v2401, %v2771
        %v3074 = vsub.f32 %v2403, %v2771
        %v3075 = vsub.f32 %v1958, %v2776
        %v3076 = vsub.f32 %v1960, %v2776
        %v3077 = vsub.f32 %v2407, %v2776
        %v3078 = vsub.f32 %v2409, %v2776
        %v3079 = vsub.f32 %v1964, %v2781
        %v3080 = vsub.f32 %v1966, %v2781
        %v3081 = vsub.f32 %v2413, %v2781
        %v3082 = vsub.f32 %v2415, %v2781
        %v3083 = vsub.f32 %v1970, %v2786
        %v3084 = vsub.f32 %v1972, %v2786
        %v3085 = vsub.f32 %v2419, %v2786
        %v3086 = vsub.f32 %v2421, %v2786
        %v3087 = vsub.f32 %v1976, %v2791
        %v3088 = vsub.f32 %v1978, %v2791
        %v3089 = vsub.f32 %v2425, %v2791
        %v3090 = vsub.f32 %v2427, %v2791
        %v3091 = vsub.f32 %v1982, %v2796
        %v3092 = vsub.f32 %v1984, %v2796
        %v3093 = vsub.f32 %v2431, %v2796
        %v3094 = vsub.f32 %v2433, %v2796
        %v3095 = vsub.f32 %v1988, %v2801
        %v3096 = vsub.f32 %v1990, %v2801
        %v3097 = vsub.f32 %v2437, %v2801
        %v3098 = vsub.f32 %v2439, %v2801
        %v3099 = vsub.f32 %v1994, %v2806
        %v3100 = vsub.f32 %v1996, %v2806
        %v3101 = vsub.f32 %v2443, %v2806
        %v3102 = vsub.f32 %v2445, %v2806
        %v3103 = vsub.f32 %v2000, %v2811
        %v3104 = vsub.f32 %v2002, %v2811
        %v3105 = vsub.f32 %v2449, %v2811
        %v3106 = vsub.f32 %v2451, %v2811
        %v3107 = vsub.f32 %v2006, %v2816
        %v3108 = vsub.f32 %v2008, %v2816
        %v3109 = vsub.f32 %v2455, %v2816
        %v3110 = vsub.f32 %v2457, %v2816
        %v3111 = vsub.f32 %v2012, %v2821
        %v3112 = vsub.f32 %v2014, %v2821
        %v3113 = vsub.f32 %v2461, %v2821
        %v3114 = vsub.f32 %v2463, %v2821
        %v3115 = vsub.f32 %v2018, %v2826
        %v3116 = vsub.f32 %v2020, %v2826
        %v3117 = vsub.f32 %v2467, %v2826
        %v3118 = vsub.f32 %v2469, %v2826
        %v3119 = vsub.f32 %v2024, %v2831
        %v3120 = vsub.f32 %v2026, %v2831
        %v3121 = vsub.f32 %v2473, %v2831
        %v3122 = vsub.f32 %v2475, %v2831
        %v3123 = vsub.f32 %v2030, %v2836
        %v3124 = vsub.f32 %v2032, %v2836
        %v3125 = vsub.f32 %v2479, %v2836
        %v3126 = vsub.f32 %v2481, %v2836
        %v3127 = vsub.f32 %v2036, %v2841
        %v3128 = vsub.f32 %v2038, %v2841
        %v3129 = vsub.f32 %v2485, %v2841
        %v3130 = vsub.f32 %v2487, %v2841
        %v3131 = vsub.f32 %v2042, %v2846
        %v3132 = vsub.f32 %v2044, %v2846
        %v3133 = vsub.f32 %v2491, %v2846
        %v3134 = vsub.f32 %v2493, %v2846
        %v3135 = vsub.f32 %v2048, %v2851
        %v3136 = vsub.f32 %v2050, %v2851
        %v3137 = vsub.f32 %v2497, %v2851
        %v3138 = vsub.f32 %v2499, %v2851
        %v3139 = vsub.f32 %v2054, %v2856
        %v3140 = vsub.f32 %v2056, %v2856
        %v3141 = vsub.f32 %v2503, %v2856
        %v3142 = vsub.f32 %v2505, %v2856
        %v3143 = vsub.f32 %v2060, %v2861
        %v3144 = vsub.f32 %v2062, %v2861
        %v3145 = vsub.f32 %v2509, %v2861
        %v3146 = vsub.f32 %v2511, %v2861
        %v3147 = vsub.f32 %v2066, %v2866
        %v3148 = vsub.f32 %v2068, %v2866
        %v3149 = vsub.f32 %v2515, %v2866
        %v3150 = vsub.f32 %v2517, %v2866
        %v3151 = vsub.f32 %v2072, %v2871
        %v3152 = vsub.f32 %v2074, %v2871
        %v3153 = vsub.f32 %v2521, %v2871
        %v3154 = vsub.f32 %v2523, %v2871
        %v3155 = vsub.f32 %v2078, %v2876
        %v3156 = vsub.f32 %v2080, %v2876
        %v3157 = vsub.f32 %v2527, %v2876
        %v3158 = vsub.f32 %v2529, %v2876
        %v3159 = vsub.f32 %v2084, %v2881
        %v3160 = vsub.f32 %v2086, %v2881
        %v3161 = vsub.f32 %v2533, %v2881
        %v3162 = vsub.f32 %v2535, %v2881
        %v3163 = vsub.f32 %v2090, %v2886
        %v3164 = vsub.f32 %v2092, %v2886
        %v3165 = vsub.f32 %v2539, %v2886
        %v3166 = vsub.f32 %v2541, %v2886
        %v3167 = vsub.f32 %v2096, %v2891
        %v3168 = vsub.f32 %v2098, %v2891
        %v3169 = vsub.f32 %v2545, %v2891
        %v3170 = vsub.f32 %v2547, %v2891
        %v3171 = vsub.f32 %v2102, %v2896
        %v3172 = vsub.f32 %v2104, %v2896
        %v3173 = vsub.f32 %v2551, %v2896
        %v3174 = vsub.f32 %v2553, %v2896
        %v3175 = vsub.f32 %v2108, %v2901
        %v3176 = vsub.f32 %v2110, %v2901
        %v3177 = vsub.f32 %v2557, %v2901
        %v3178 = vsub.f32 %v2559, %v2901
        %v3179 = vsub.f32 %v2114, %v2906
        %v3180 = vsub.f32 %v2116, %v2906
        %v3181 = vsub.f32 %v2563, %v2906
        %v3182 = vsub.f32 %v2565, %v2906
        %v3183 = vsub.f32 %v2120, %v2911
        %v3184 = vsub.f32 %v2122, %v2911
        %v3185 = vsub.f32 %v2569, %v2911
        %v3186 = vsub.f32 %v2571, %v2911
        %v3187 = vsub.f32 %v2126, %v2916
        %v3188 = vsub.f32 %v2128, %v2916
        %v3189 = vsub.f32 %v2575, %v2916
        %v3190 = vsub.f32 %v2577, %v2916
        %v3191 = vsub.f32 %v2132, %v2921
        %v3192 = vsub.f32 %v2134, %v2921
        %v3193 = vsub.f32 %v2581, %v2921
        %v3194 = vsub.f32 %v2583, %v2921
        %v3195 = vsub.f32 %v2138, %v2926
        %v3196 = vsub.f32 %v2140, %v2926
        %v3197 = vsub.f32 %v2587, %v2926
        %v3198 = vsub.f32 %v2589, %v2926
        %v3199 = vsub.f32 %v2144, %v2931
        %v3200 = vsub.f32 %v2146, %v2931
        %v3201 = vsub.f32 %v2593, %v2931
        %v3202 = vsub.f32 %v2595, %v2931
        %v3203 = vsub.f32 %v2150, %v2936
        %v3204 = vsub.f32 %v2152, %v2936
        %v3205 = vsub.f32 %v2599, %v2936
        %v3206 = vsub.f32 %v2601, %v2936
        %v3207 = vsub.f32 %v2156, %v2941
        %v3208 = vsub.f32 %v2158, %v2941
        %v3209 = vsub.f32 %v2605, %v2941
        %v3210 = vsub.f32 %v2607, %v2941
        %v3211 = vsub.f32 %v2162, %v2946
        %v3212 = vsub.f32 %v2164, %v2946
        %v3213 = vsub.f32 %v2611, %v2946
        %v3214 = vsub.f32 %v2613, %v2946
        %v3215 = vsub.f32 %v2168, %v2951
        %v3216 = vsub.f32 %v2170, %v2951
        %v3217 = vsub.f32 %v2617, %v2951
        %v3218 = vsub.f32 %v2619, %v2951
        %v3219 = vsub.f32 %v2174, %v2956
        %v3220 = vsub.f32 %v2176, %v2956
        %v3221 = vsub.f32 %v2623, %v2956
        %v3222 = vsub.f32 %v2625, %v2956
        %v3223 = vsub.f32 %v2180, %v2961
        %v3224 = vsub.f32 %v2182, %v2961
        %v3225 = vsub.f32 %v2629, %v2961
        %v3226 = vsub.f32 %v2631, %v2961
        %v3227 = vsub.f32 %v2186, %v2966
        %v3228 = vsub.f32 %v2188, %v2966
        %v3229 = vsub.f32 %v2635, %v2966
        %v3230 = vsub.f32 %v2637, %v2966
        %v3231 = vsub.f32 %v2192, %v2971
        %v3232 = vsub.f32 %v2194, %v2971
        %v3233 = vsub.f32 %v2641, %v2971
        %v3234 = vsub.f32 %v2643, %v2971
        %v3235 = vsub.f32 %v2198, %v2976
        %v3236 = vsub.f32 %v2200, %v2976
        %v3237 = vsub.f32 %v2647, %v2976
        %v3238 = vsub.f32 %v2649, %v2976
        %v3239 = vsub.f32 %v2204, %v2981
        %v3240 = vsub.f32 %v2206, %v2981
        %v3241 = vsub.f32 %v2653, %v2981
        %v3242 = vsub.f32 %v2655, %v2981
        %v3243 = vsub.f32 %v2210, %v2986
        %v3244 = vsub.f32 %v2212, %v2986
        %v3245 = vsub.f32 %v2659, %v2986
        %v3246 = vsub.f32 %v2661, %v2986
        %v3247 = vsub.f32 %v2216, %v2991
        %v3248 = vsub.f32 %v2218, %v2991
        %v3249 = vsub.f32 %v2665, %v2991
        %v3250 = vsub.f32 %v2667, %v2991
        %v3251 = vsub.f32 %v2222, %v2996
        %v3252 = vsub.f32 %v2224, %v2996
        %v3253 = vsub.f32 %v2671, %v2996
        %v3254 = vsub.f32 %v2673, %v2996
        %v3255 = vsub.f32 %v2228, %v3001
        %v3256 = vsub.f32 %v2230, %v3001
        %v3257 = vsub.f32 %v2677, %v3001
        %v3258 = vsub.f32 %v2679, %v3001
        %v3259 = vsub.f32 %v2234, %v3006
        %v3260 = vsub.f32 %v2236, %v3006
        %v3261 = vsub.f32 %v2683, %v3006
        %v3262 = vsub.f32 %v2685, %v3006
        %v3263 = vmul.f32 %v3007, 1.442695
        %v3264 = vpow.pop %v3263
        %v3265 = vmul.f32 %v3008, 1.442695
        %v3266 = vpow.pop %v3265
        %v3267 = vmul.f32 %v3009, 1.442695
        %v3268 = vpow.pop %v3267
        %v3269 = vmul.f32 %v3010, 1.442695
        %v3270 = vpow.pop %v3269
        %v3271 = vmul.f32 %v3011, 1.442695
        %v3272 = vpow.pop %v3271
        %v3273 = vmul.f32 %v3012, 1.442695
        %v3274 = vpow.pop %v3273
        %v3275 = vmul.f32 %v3013, 1.442695
        %v3276 = vpow.pop %v3275
        %v3277 = vmul.f32 %v3014, 1.442695
        %v3278 = vpow.pop %v3277
        %v3279 = vmul.f32 %v3015, 1.442695
        %v3280 = vpow.pop %v3279
        %v3281 = vmul.f32 %v3016, 1.442695
        %v3282 = vpow.pop %v3281
        %v3283 = vmul.f32 %v3017, 1.442695
        %v3284 = vpow.pop %v3283
        %v3285 = vmul.f32 %v3018, 1.442695
        %v3286 = vpow.pop %v3285
        %v3287 = vmul.f32 %v3019, 1.442695
        %v3288 = vpow.pop %v3287
        %v3289 = vmul.f32 %v3020, 1.442695
        %v3290 = vpow.pop %v3289
        %v3291 = vmul.f32 %v3021, 1.442695
        %v3292 = vpow.pop %v3291
        %v3293 = vmul.f32 %v3022, 1.442695
        %v3294 = vpow.pop %v3293
        %v3295 = vmul.f32 %v3023, 1.442695
        %v3296 = vpow.pop %v3295
        %v3297 = vmul.f32 %v3024, 1.442695
        %v3298 = vpow.pop %v3297
        %v3299 = vmul.f32 %v3025, 1.442695
        %v3300 = vpow.pop %v3299
        %v3301 = vmul.f32 %v3026, 1.442695
        %v3302 = vpow.pop %v3301
        %v3303 = vmul.f32 %v3027, 1.442695
        %v3304 = vpow.pop %v3303
        %v3305 = vmul.f32 %v3028, 1.442695
        %v3306 = vpow.pop %v3305
        %v3307 = vmul.f32 %v3029, 1.442695
        %v3308 = vpow.pop %v3307
        %v3309 = vmul.f32 %v3030, 1.442695
        %v3310 = vpow.pop %v3309
        %v3311 = vmul.f32 %v3031, 1.442695
        %v3312 = vpow.pop %v3311
        %v3313 = vmul.f32 %v3032, 1.442695
        %v3314 = vpow.pop %v3313
        %v3315 = vmul.f32 %v3033, 1.442695
        %v3316 = vpow.pop %v3315
        %v3317 = vmul.f32 %v3034, 1.442695
        %v3318 = vpow.pop %v3317
        %v3319 = vmul.f32 %v3035, 1.442695
        %v3320 = vpow.pop %v3319
        %v3321 = vmul.f32 %v3036, 1.442695
        %v3322 = vpow.pop %v3321
        %v3323 = vmul.f32 %v3037, 1.442695
        %v3324 = vpow.pop %v3323
        %v3325 = vmul.f32 %v3038, 1.442695
        %v3326 = vpow.pop %v3325
        %v3327 = vmul.f32 %v3039, 1.442695
        %v3328 = vpow.pop %v3327
        %v3329 = vmul.f32 %v3040, 1.442695
        %v3330 = vpow.pop %v3329
        %v3331 = vmul.f32 %v3041, 1.442695
        %v3332 = vpow.pop %v3331
        %v3333 = vmul.f32 %v3042, 1.442695
        %v3334 = vpow.pop %v3333
        %v3335 = vmul.f32 %v3043, 1.442695
        %v3336 = vpow.pop %v3335
        %v3337 = vmul.f32 %v3044, 1.442695
        %v3338 = vpow.pop %v3337
        %v3339 = vmul.f32 %v3045, 1.442695
        %v3340 = vpow.pop %v3339
        %v3341 = vmul.f32 %v3046, 1.442695
        %v3342 = vpow.pop %v3341
        %v3343 = vmul.f32 %v3047, 1.442695
        %v3344 = vpow.pop %v3343
        %v3345 = vmul.f32 %v3048, 1.442695
        %v3346 = vpow.pop %v3345
        %v3347 = vmul.f32 %v3049, 1.442695
        %v3348 = vpow.pop %v3347
        %v3349 = vmul.f32 %v3050, 1.442695
        %v3350 = vpow.pop %v3349
        %v3351 = vmul.f32 %v3051, 1.442695
        %v3352 = vpow.pop %v3351
        %v3353 = vmul.f32 %v3052, 1.442695
        %v3354 = vpow.pop %v3353
        %v3355 = vmul.f32 %v3053, 1.442695
        %v3356 = vpow.pop %v3355
        %v3357 = vmul.f32 %v3054, 1.442695
        %v3358 = vpow.pop %v3357
        %v3359 = vmul.f32 %v3055, 1.442695
        %v3360 = vpow.pop %v3359
        %v3361 = vmul.f32 %v3056, 1.442695
        %v3362 = vpow.pop %v3361
        %v3363 = vmul.f32 %v3057, 1.442695
        %v3364 = vpow.pop %v3363
        %v3365 = vmul.f32 %v3058, 1.442695
        %v3366 = vpow.pop %v3365
        %v3367 = vmul.f32 %v3059, 1.442695
        %v3368 = vpow.pop %v3367
        %v3369 = vmul.f32 %v3060, 1.442695
        %v3370 = vpow.pop %v3369
        %v3371 = vmul.f32 %v3061, 1.442695
        %v3372 = vpow.pop %v3371
        %v3373 = vmul.f32 %v3062, 1.442695
        %v3374 = vpow.pop %v3373
        %v3375 = vmul.f32 %v3063, 1.442695
        %v3376 = vpow.pop %v3375
        %v3377 = vmul.f32 %v3064, 1.442695
        %v3378 = vpow.pop %v3377
        %v3379 = vmul.f32 %v3065, 1.442695
        %v3380 = vpow.pop %v3379
        %v3381 = vmul.f32 %v3066, 1.442695
        %v3382 = vpow.pop %v3381
        %v3383 = vmul.f32 %v3067, 1.442695
        %v3384 = vpow.pop %v3383
        %v3385 = vmul.f32 %v3068, 1.442695
        %v3386 = vpow.pop %v3385
        %v3387 = vmul.f32 %v3069, 1.442695
        %v3388 = vpow.pop %v3387
        %v3389 = vmul.f32 %v3070, 1.442695
        %v3390 = vpow.pop %v3389
        %v3391 = vmul.f32 %v3071, 1.442695
        %v3392 = vpow.pop %v3391
        %v3393 = vmul.f32 %v3072, 1.442695
        %v3394 = vpow.pop %v3393
        %v3395 = vmul.f32 %v3073, 1.442695
        %v3396 = vpow.pop %v3395
        %v3397 = vmul.f32 %v3074, 1.442695
        %v3398 = vpow.pop %v3397
        %v3399 = vmul.f32 %v3075, 1.442695
        %v3400 = vpow.pop %v3399
        %v3401 = vmul.f32 %v3076, 1.442695
        %v3402 = vpow.pop %v3401
        %v3403 = vmul.f32 %v3077, 1.442695
        %v3404 = vpow.pop %v3403
        %v3405 = vmul.f32 %v3078, 1.442695
        %v3406 = vpow.pop %v3405
        %v3407 = vmul.f32 %v3079, 1.442695
        %v3408 = vpow.pop %v3407
        %v3409 = vmul.f32 %v3080, 1.442695
        %v3410 = vpow.pop %v3409
        %v3411 = vmul.f32 %v3081, 1.442695
        %v3412 = vpow.pop %v3411
        %v3413 = vmul.f32 %v3082, 1.442695
        %v3414 = vpow.pop %v3413
        %v3415 = vmul.f32 %v3083, 1.442695
        %v3416 = vpow.pop %v3415
        %v3417 = vmul.f32 %v3084, 1.442695
        %v3418 = vpow.pop %v3417
        %v3419 = vmul.f32 %v3085, 1.442695
        %v3420 = vpow.pop %v3419
        %v3421 = vmul.f32 %v3086, 1.442695
        %v3422 = vpow.pop %v3421
        %v3423 = vmul.f32 %v3087, 1.442695
        %v3424 = vpow.pop %v3423
        %v3425 = vmul.f32 %v3088, 1.442695
        %v3426 = vpow.pop %v3425
        %v3427 = vmul.f32 %v3089, 1.442695
        %v3428 = vpow.pop %v3427
        %v3429 = vmul.f32 %v3090, 1.442695
        %v3430 = vpow.pop %v3429
        %v3431 = vmul.f32 %v3091, 1.442695
        %v3432 = vpow.pop %v3431
        %v3433 = vmul.f32 %v3092, 1.442695
        %v3434 = vpow.pop %v3433
        %v3435 = vmul.f32 %v3093, 1.442695
        %v3436 = vpow.pop %v3435
        %v3437 = vmul.f32 %v3094, 1.442695
        %v3438 = vpow.pop %v3437
        %v3439 = vmul.f32 %v3095, 1.442695
        %v3440 = vpow.pop %v3439
        %v3441 = vmul.f32 %v3096, 1.442695
        %v3442 = vpow.pop %v3441
        %v3443 = vmul.f32 %v3097, 1.442695
        %v3444 = vpow.pop %v3443
        %v3445 = vmul.f32 %v3098, 1.442695
        %v3446 = vpow.pop %v3445
        %v3447 = vmul.f32 %v3099, 1.442695
        %v3448 = vpow.pop %v3447
        %v3449 = vmul.f32 %v3100, 1.442695
        %v3450 = vpow.pop %v3449
        %v3451 = vmul.f32 %v3101, 1.442695
        %v3452 = vpow.pop %v3451
        %v3453 = vmul.f32 %v3102, 1.442695
        %v3454 = vpow.pop %v3453
        %v3455 = vmul.f32 %v3103, 1.442695
        %v3456 = vpow.pop %v3455
        %v3457 = vmul.f32 %v3104, 1.442695
        %v3458 = vpow.pop %v3457
        %v3459 = vmul.f32 %v3105, 1.442695
        %v3460 = vpow.pop %v3459
        %v3461 = vmul.f32 %v3106, 1.442695
        %v3462 = vpow.pop %v3461
        %v3463 = vmul.f32 %v3107, 1.442695
        %v3464 = vpow.pop %v3463
        %v3465 = vmul.f32 %v3108, 1.442695
        %v3466 = vpow.pop %v3465
        %v3467 = vmul.f32 %v3109, 1.442695
        %v3468 = vpow.pop %v3467
        %v3469 = vmul.f32 %v3110, 1.442695
        %v3470 = vpow.pop %v3469
        %v3471 = vmul.f32 %v3111, 1.442695
        %v3472 = vpow.pop %v3471
        %v3473 = vmul.f32 %v3112, 1.442695
        %v3474 = vpow.pop %v3473
        %v3475 = vmul.f32 %v3113, 1.442695
        %v3476 = vpow.pop %v3475
        %v3477 = vmul.f32 %v3114, 1.442695
        %v3478 = vpow.pop %v3477
        %v3479 = vmul.f32 %v3115, 1.442695
        %v3480 = vpow.pop %v3479
        %v3481 = vmul.f32 %v3116, 1.442695
        %v3482 = vpow.pop %v3481
        %v3483 = vmul.f32 %v3117, 1.442695
        %v3484 = vpow.pop %v3483
        %v3485 = vmul.f32 %v3118, 1.442695
        %v3486 = vpow.pop %v3485
        %v3487 = vmul.f32 %v3119, 1.442695
        %v3488 = vpow.pop %v3487
        %v3489 = vmul.f32 %v3120, 1.442695
        %v3490 = vpow.pop %v3489
        %v3491 = vmul.f32 %v3121, 1.442695
        %v3492 = vpow.pop %v3491
        %v3493 = vmul.f32 %v3122, 1.442695
        %v3494 = vpow.pop %v3493
        %v3495 = vmul.f32 %v3123, 1.442695
        %v3496 = vpow.pop %v3495
        %v3497 = vmul.f32 %v3124, 1.442695
        %v3498 = vpow.pop %v3497
        %v3499 = vmul.f32 %v3125, 1.442695
        %v3500 = vpow.pop %v3499
        %v3501 = vmul.f32 %v3126, 1.442695
        %v3502 = vpow.pop %v3501
        %v3503 = vmul.f32 %v3127, 1.442695
        %v3504 = vpow.pop %v3503
        %v3505 = vmul.f32 %v3128, 1.442695
        %v3506 = vpow.pop %v3505
        %v3507 = vmul.f32 %v3129, 1.442695
        %v3508 = vpow.pop %v3507
        %v3509 = vmul.f32 %v3130, 1.442695
        %v3510 = vpow.pop %v3509
        %v3511 = vmul.f32 %v3131, 1.442695
        %v3512 = vpow.pop %v3511
        %v3513 = vmul.f32 %v3132, 1.442695
        %v3514 = vpow.pop %v3513
        %v3515 = vmul.f32 %v3133, 1.442695
        %v3516 = vpow.pop %v3515
        %v3517 = vmul.f32 %v3134, 1.442695
        %v3518 = vpow.pop %v3517
        %v3519 = vmul.f32 %v3135, 1.442695
        %v3520 = vpow.pop %v3519
        %v3521 = vmul.f32 %v3136, 1.442695
        %v3522 = vpow.pop %v3521
        %v3523 = vmul.f32 %v3137, 1.442695
        %v3524 = vpow.pop %v3523
        %v3525 = vmul.f32 %v3138, 1.442695
        %v3526 = vpow.pop %v3525
        %v3527 = vmul.f32 %v3139, 1.442695
        %v3528 = vpow.pop %v3527
        %v3529 = vmul.f32 %v3140, 1.442695
        %v3530 = vpow.pop %v3529
        %v3531 = vmul.f32 %v3141, 1.442695
        %v3532 = vpow.pop %v3531
        %v3533 = vmul.f32 %v3142, 1.442695
        %v3534 = vpow.pop %v3533
        %v3535 = vmul.f32 %v3143, 1.442695
        %v3536 = vpow.pop %v3535
        %v3537 = vmul.f32 %v3144, 1.442695
        %v3538 = vpow.pop %v3537
        %v3539 = vmul.f32 %v3145, 1.442695
        %v3540 = vpow.pop %v3539
        %v3541 = vmul.f32 %v3146, 1.442695
        %v3542 = vpow.pop %v3541
        %v3543 = vmul.f32 %v3147, 1.442695
        %v3544 = vpow.pop %v3543
        %v3545 = vmul.f32 %v3148, 1.442695
        %v3546 = vpow.pop %v3545
        %v3547 = vmul.f32 %v3149, 1.442695
        %v3548 = vpow.pop %v3547
        %v3549 = vmul.f32 %v3150, 1.442695
        %v3550 = vpow.pop %v3549
        %v3551 = vmul.f32 %v3151, 1.442695
        %v3552 = vpow.pop %v3551
        %v3553 = vmul.f32 %v3152, 1.442695
        %v3554 = vpow.pop %v3553
        %v3555 = vmul.f32 %v3153, 1.442695
        %v3556 = vpow.pop %v3555
        %v3557 = vmul.f32 %v3154, 1.442695
        %v3558 = vpow.pop %v3557
        %v3559 = vmul.f32 %v3155, 1.442695
        %v3560 = vpow.pop %v3559
        %v3561 = vmul.f32 %v3156, 1.442695
        %v3562 = vpow.pop %v3561
        %v3563 = vmul.f32 %v3157, 1.442695
        %v3564 = vpow.pop %v3563
        %v3565 = vmul.f32 %v3158, 1.442695
        %v3566 = vpow.pop %v3565
        %v3567 = vmul.f32 %v3159, 1.442695
        %v3568 = vpow.pop %v3567
        %v3569 = vmul.f32 %v3160, 1.442695
        %v3570 = vpow.pop %v3569
        %v3571 = vmul.f32 %v3161, 1.442695
        %v3572 = vpow.pop %v3571
        %v3573 = vmul.f32 %v3162, 1.442695
        %v3574 = vpow.pop %v3573
        %v3575 = vmul.f32 %v3163, 1.442695
        %v3576 = vpow.pop %v3575
        %v3577 = vmul.f32 %v3164, 1.442695
        %v3578 = vpow.pop %v3577
        %v3579 = vmul.f32 %v3165, 1.442695
        %v3580 = vpow.pop %v3579
        %v3581 = vmul.f32 %v3166, 1.442695
        %v3582 = vpow.pop %v3581
        %v3583 = vmul.f32 %v3167, 1.442695
        %v3584 = vpow.pop %v3583
        %v3585 = vmul.f32 %v3168, 1.442695
        %v3586 = vpow.pop %v3585
        %v3587 = vmul.f32 %v3169, 1.442695
        %v3588 = vpow.pop %v3587
        %v3589 = vmul.f32 %v3170, 1.442695
        %v3590 = vpow.pop %v3589
        %v3591 = vmul.f32 %v3171, 1.442695
        %v3592 = vpow.pop %v3591
        %v3593 = vmul.f32 %v3172, 1.442695
        %v3594 = vpow.pop %v3593
        %v3595 = vmul.f32 %v3173, 1.442695
        %v3596 = vpow.pop %v3595
        %v3597 = vmul.f32 %v3174, 1.442695
        %v3598 = vpow.pop %v3597
        %v3599 = vmul.f32 %v3175, 1.442695
        %v3600 = vpow.pop %v3599
        %v3601 = vmul.f32 %v3176, 1.442695
        %v3602 = vpow.pop %v3601
        %v3603 = vmul.f32 %v3177, 1.442695
        %v3604 = vpow.pop %v3603
        %v3605 = vmul.f32 %v3178, 1.442695
        %v3606 = vpow.pop %v3605
        %v3607 = vmul.f32 %v3179, 1.442695
        %v3608 = vpow.pop %v3607
        %v3609 = vmul.f32 %v3180, 1.442695
        %v3610 = vpow.pop %v3609
        %v3611 = vmul.f32 %v3181, 1.442695
        %v3612 = vpow.pop %v3611
        %v3613 = vmul.f32 %v3182, 1.442695
        %v3614 = vpow.pop %v3613
        %v3615 = vmul.f32 %v3183, 1.442695
        %v3616 = vpow.pop %v3615
        %v3617 = vmul.f32 %v3184, 1.442695
        %v3618 = vpow.pop %v3617
        %v3619 = vmul.f32 %v3185, 1.442695
        %v3620 = vpow.pop %v3619
        %v3621 = vmul.f32 %v3186, 1.442695
        %v3622 = vpow.pop %v3621
        %v3623 = vmul.f32 %v3187, 1.442695
        %v3624 = vpow.pop %v3623
        %v3625 = vmul.f32 %v3188, 1.442695
        %v3626 = vpow.pop %v3625
        %v3627 = vmul.f32 %v3189, 1.442695
        %v3628 = vpow.pop %v3627
        %v3629 = vmul.f32 %v3190, 1.442695
        %v3630 = vpow.pop %v3629
        %v3631 = vmul.f32 %v3191, 1.442695
        %v3632 = vpow.pop %v3631
        %v3633 = vmul.f32 %v3192, 1.442695
        %v3634 = vpow.pop %v3633
        %v3635 = vmul.f32 %v3193, 1.442695
        %v3636 = vpow.pop %v3635
        %v3637 = vmul.f32 %v3194, 1.442695
        %v3638 = vpow.pop %v3637
        %v3639 = vmul.f32 %v3195, 1.442695
        %v3640 = vpow.pop %v3639
        %v3641 = vmul.f32 %v3196, 1.442695
        %v3642 = vpow.pop %v3641
        %v3643 = vmul.f32 %v3197, 1.442695
        %v3644 = vpow.pop %v3643
        %v3645 = vmul.f32 %v3198, 1.442695
        %v3646 = vpow.pop %v3645
        %v3647 = vmul.f32 %v3199, 1.442695
        %v3648 = vpow.pop %v3647
        %v3649 = vmul.f32 %v3200, 1.442695
        %v3650 = vpow.pop %v3649
        %v3651 = vmul.f32 %v3201, 1.442695
        %v3652 = vpow.pop %v3651
        %v3653 = vmul.f32 %v3202, 1.442695
        %v3654 = vpow.pop %v3653
        %v3655 = vmul.f32 %v3203, 1.442695
        %v3656 = vpow.pop %v3655
        %v3657 = vmul.f32 %v3204, 1.442695
        %v3658 = vpow.pop %v3657
        %v3659 = vmul.f32 %v3205, 1.442695
        %v3660 = vpow.pop %v3659
        %v3661 = vmul.f32 %v3206, 1.442695
        %v3662 = vpow.pop %v3661
        %v3663 = vmul.f32 %v3207, 1.442695
        %v3664 = vpow.pop %v3663
        %v3665 = vmul.f32 %v3208, 1.442695
        %v3666 = vpow.pop %v3665
        %v3667 = vmul.f32 %v3209, 1.442695
        %v3668 = vpow.pop %v3667
        %v3669 = vmul.f32 %v3210, 1.442695
        %v3670 = vpow.pop %v3669
        %v3671 = vmul.f32 %v3211, 1.442695
        %v3672 = vpow.pop %v3671
        %v3673 = vmul.f32 %v3212, 1.442695
        %v3674 = vpow.pop %v3673
        %v3675 = vmul.f32 %v3213, 1.442695
        %v3676 = vpow.pop %v3675
        %v3677 = vmul.f32 %v3214, 1.442695
        %v3678 = vpow.pop %v3677
        %v3679 = vmul.f32 %v3215, 1.442695
        %v3680 = vpow.pop %v3679
        %v3681 = vmul.f32 %v3216, 1.442695
        %v3682 = vpow.pop %v3681
        %v3683 = vmul.f32 %v3217, 1.442695
        %v3684 = vpow.pop %v3683
        %v3685 = vmul.f32 %v3218, 1.442695
        %v3686 = vpow.pop %v3685
        %v3687 = vmul.f32 %v3219, 1.442695
        %v3688 = vpow.pop %v3687
        %v3689 = vmul.f32 %v3220, 1.442695
        %v3690 = vpow.pop %v3689
        %v3691 = vmul.f32 %v3221, 1.442695
        %v3692 = vpow.pop %v3691
        %v3693 = vmul.f32 %v3222, 1.442695
        %v3694 = vpow.pop %v3693
        %v3695 = vmul.f32 %v3223, 1.442695
        %v3696 = vpow.pop %v3695
        %v3697 = vmul.f32 %v3224, 1.442695
        %v3698 = vpow.pop %v3697
        %v3699 = vmul.f32 %v3225, 1.442695
        %v3700 = vpow.pop %v3699
        %v3701 = vmul.f32 %v3226, 1.442695
        %v3702 = vpow.pop %v3701
        %v3703 = vmul.f32 %v3227, 1.442695
        %v3704 = vpow.pop %v3703
        %v3705 = vmul.f32 %v3228, 1.442695
        %v3706 = vpow.pop %v3705
        %v3707 = vmul.f32 %v3229, 1.442695
        %v3708 = vpow.pop %v3707
        %v3709 = vmul.f32 %v3230, 1.442695
        %v3710 = vpow.pop %v3709
        %v3711 = vmul.f32 %v3231, 1.442695
        %v3712 = vpow.pop %v3711
        %v3713 = vmul.f32 %v3232, 1.442695
        %v3714 = vpow.pop %v3713
        %v3715 = vmul.f32 %v3233, 1.442695
        %v3716 = vpow.pop %v3715
        %v3717 = vmul.f32 %v3234, 1.442695
        %v3718 = vpow.pop %v3717
        %v3719 = vmul.f32 %v3235, 1.442695
        %v3720 = vpow.pop %v3719
        %v3721 = vmul.f32 %v3236, 1.442695
        %v3722 = vpow.pop %v3721
        %v3723 = vmul.f32 %v3237, 1.442695
        %v3724 = vpow.pop %v3723
        %v3725 = vmul.f32 %v3238, 1.442695
        %v3726 = vpow.pop %v3725
        %v3727 = vmul.f32 %v3239, 1.442695
        %v3728 = vpow.pop %v3727
        %v3729 = vmul.f32 %v3240, 1.442695
        %v3730 = vpow.pop %v3729
        %v3731 = vmul.f32 %v3241, 1.442695
        %v3732 = vpow.pop %v3731
        %v3733 = vmul.f32 %v3242, 1.442695
        %v3734 = vpow.pop %v3733
        %v3735 = vmul.f32 %v3243, 1.442695
        %v3736 = vpow.pop %v3735
        %v3737 = vmul.f32 %v3244, 1.442695
        %v3738 = vpow.pop %v3737
        %v3739 = vmul.f32 %v3245, 1.442695
        %v3740 = vpow.pop %v3739
        %v3741 = vmul.f32 %v3246, 1.442695
        %v3742 = vpow.pop %v3741
        %v3743 = vmul.f32 %v3247, 1.442695
        %v3744 = vpow.pop %v3743
        %v3745 = vmul.f32 %v3248, 1.442695
        %v3746 = vpow.pop %v3745
        %v3747 = vmul.f32 %v3249, 1.442695
        %v3748 = vpow.pop %v3747
        %v3749 = vmul.f32 %v3250, 1.442695
        %v3750 = vpow.pop %v3749
        %v3751 = vmul.f32 %v3251, 1.442695
        %v3752 = vpow.pop %v3751
        %v3753 = vmul.f32 %v3252, 1.442695
        %v3754 = vpow.pop %v3753
        %v3755 = vmul.f32 %v3253, 1.442695
        %v3756 = vpow.pop %v3755
        %v3757 = vmul.f32 %v3254, 1.442695
        %v3758 = vpow.pop %v3757
        %v3759 = vmul.f32 %v3255, 1.442695
        %v3760 = vpow.pop %v3759
        %v3761 = vmul.f32 %v3256, 1.442695
        %v3762 = vpow.pop %v3761
        %v3763 = vmul.f32 %v3257, 1.442695
        %v3764 = vpow.pop %v3763
        %v3765 = vmul.f32 %v3258, 1.442695
        %v3766 = vpow.pop %v3765
        %v3767 = vmul.f32 %v3259, 1.442695
        %v3768 = vpow.pop %v3767
        %v3769 = vmul.f32 %v3260, 1.442695
        %v3770 = vpow.pop %v3769
        %v3771 = vmul.f32 %v3261, 1.442695
        %v3772 = vpow.pop %v3771
        %v3773 = vmul.f32 %v3262, 1.442695
        %v3774 = vpow.pop %v3773
        %v3775 = vadd.f32 %v3264, %v3266
        %v3776 = vadd.f32 %v3775, %v3268
        %v3777 = vadd.f32 %v3776, %v3270
        %3778 = vadd.xlane.f32.xlu0 %v3777
        %v3779 = vpop.xlane.xlu0 %3778
        %v3780 = vadd.f32 %v3272, %v3274
        %v3781 = vadd.f32 %v3780, %v3276
        %v3782 = vadd.f32 %v3781, %v3278
        %3783 = vadd.xlane.f32.xlu0 %v3782
        %v3784 = vpop.xlane.xlu0 %3783
        %v3785 = vadd.f32 %v3280, %v3282
        %v3786 = vadd.f32 %v3785, %v3284
        %v3787 = vadd.f32 %v3786, %v3286
        %3788 = vadd.xlane.f32.xlu0 %v3787
        %v3789 = vpop.xlane.xlu0 %3788
        %v3790 = vadd.f32 %v3288, %v3290
        %v3791 = vadd.f32 %v3790, %v3292
        %v3792 = vadd.f32 %v3791, %v3294
        %3793 = vadd.xlane.f32.xlu0 %v3792
        %v3794 = vpop.xlane.xlu0 %3793
        %v3795 = vadd.f32 %v3296, %v3298
        %v3796 = vadd.f32 %v3795, %v3300
        %v3797 = vadd.f32 %v3796, %v3302
        %3798 = vadd.xlane.f32.xlu0 %v3797
        %v3799 = vpop.xlane.xlu0 %3798
        %v3800 = vadd.f32 %v3304, %v3306
        %v3801 = vadd.f32 %v3800, %v3308
        %v3802 = vadd.f32 %v3801, %v3310
        %3803 = vadd.xlane.f32.xlu0 %v3802
        %v3804 = vpop.xlane.xlu0 %3803
        %v3805 = vadd.f32 %v3312, %v3314
        %v3806 = vadd.f32 %v3805, %v3316
        %v3807 = vadd.f32 %v3806, %v3318
        %3808 = vadd.xlane.f32.xlu0 %v3807
        %v3809 = vpop.xlane.xlu0 %3808
        %v3810 = vadd.f32 %v3320, %v3322
        %v3811 = vadd.f32 %v3810, %v3324
        %v3812 = vadd.f32 %v3811, %v3326
        %3813 = vadd.xlane.f32.xlu0 %v3812
        %v3814 = vpop.xlane.xlu0 %3813
        %v3815 = vadd.f32 %v3328, %v3330
        %v3816 = vadd.f32 %v3815, %v3332
        %v3817 = vadd.f32 %v3816, %v3334
        %3818 = vadd.xlane.f32.xlu0 %v3817
        %v3819 = vpop.xlane.xlu0 %3818
        %v3820 = vadd.f32 %v3336, %v3338
        %v3821 = vadd.f32 %v3820, %v3340
        %v3822 = vadd.f32 %v3821, %v3342
        %3823 = vadd.xlane.f32.xlu0 %v3822
        %v3824 = vpop.xlane.xlu0 %3823
        %v3825 = vadd.f32 %v3344, %v3346
        %v3826 = vadd.f32 %v3825, %v3348
        %v3827 = vadd.f32 %v3826, %v3350
        %3828 = vadd.xlane.f32.xlu0 %v3827
        %v3829 = vpop.xlane.xlu0 %3828
        %v3830 = vadd.f32 %v3352, %v3354
        %v3831 = vadd.f32 %v3830, %v3356
        %v3832 = vadd.f32 %v3831, %v3358
        %3833 = vadd.xlane.f32.xlu0 %v3832
        %v3834 = vpop.xlane.xlu0 %3833
        %v3835 = vadd.f32 %v3360, %v3362
        %v3836 = vadd.f32 %v3835, %v3364
        %v3837 = vadd.f32 %v3836, %v3366
        %3838 = vadd.xlane.f32.xlu0 %v3837
        %v3839 = vpop.xlane.xlu0 %3838
        %v3840 = vadd.f32 %v3368, %v3370
        %v3841 = vadd.f32 %v3840, %v3372
        %v3842 = vadd.f32 %v3841, %v3374
        %3843 = vadd.xlane.f32.xlu0 %v3842
        %v3844 = vpop.xlane.xlu0 %3843
        %v3845 = vadd.f32 %v3376, %v3378
        %v3846 = vadd.f32 %v3845, %v3380
        %v3847 = vadd.f32 %v3846, %v3382
        %3848 = vadd.xlane.f32.xlu0 %v3847
        %v3849 = vpop.xlane.xlu0 %3848
        %v3850 = vadd.f32 %v3384, %v3386
        %v3851 = vadd.f32 %v3850, %v3388
        %v3852 = vadd.f32 %v3851, %v3390
        %3853 = vadd.xlane.f32.xlu0 %v3852
        %v3854 = vpop.xlane.xlu0 %3853
        %v3855 = vadd.f32 %v3392, %v3394
        %v3856 = vadd.f32 %v3855, %v3396
        %v3857 = vadd.f32 %v3856, %v3398
        %3858 = vadd.xlane.f32.xlu0 %v3857
        %v3859 = vpop.xlane.xlu0 %3858
        %v3860 = vadd.f32 %v3400, %v3402
        %v3861 = vadd.f32 %v3860, %v3404
        %v3862 = vadd.f32 %v3861, %v3406
        %3863 = vadd.xlane.f32.xlu0 %v3862
        %v3864 = vpop.xlane.xlu0 %3863
        %v3865 = vadd.f32 %v3408, %v3410
        %v3866 = vadd.f32 %v3865, %v3412
        %v3867 = vadd.f32 %v3866, %v3414
        %3868 = vadd.xlane.f32.xlu0 %v3867
        %v3869 = vpop.xlane.xlu0 %3868
        %v3870 = vadd.f32 %v3416, %v3418
        %v3871 = vadd.f32 %v3870, %v3420
        %v3872 = vadd.f32 %v3871, %v3422
        %3873 = vadd.xlane.f32.xlu0 %v3872
        %v3874 = vpop.xlane.xlu0 %3873
        %v3875 = vadd.f32 %v3424, %v3426
        %v3876 = vadd.f32 %v3875, %v3428
        %v3877 = vadd.f32 %v3876, %v3430
        %3878 = vadd.xlane.f32.xlu0 %v3877
        %v3879 = vpop.xlane.xlu0 %3878
        %v3880 = vadd.f32 %v3432, %v3434
        %v3881 = vadd.f32 %v3880, %v3436
        %v3882 = vadd.f32 %v3881, %v3438
        %3883 = vadd.xlane.f32.xlu0 %v3882
        %v3884 = vpop.xlane.xlu0 %3883
        %v3885 = vadd.f32 %v3440, %v3442
        %v3886 = vadd.f32 %v3885, %v3444
        %v3887 = vadd.f32 %v3886, %v3446
        %3888 = vadd.xlane.f32.xlu0 %v3887
        %v3889 = vpop.xlane.xlu0 %3888
        %v3890 = vadd.f32 %v3448, %v3450
        %v3891 = vadd.f32 %v3890, %v3452
        %v3892 = vadd.f32 %v3891, %v3454
        %3893 = vadd.xlane.f32.xlu0 %v3892
        %v3894 = vpop.xlane.xlu0 %3893
        %v3895 = vadd.f32 %v3456, %v3458
        %v3896 = vadd.f32 %v3895, %v3460
        %v3897 = vadd.f32 %v3896, %v3462
        %3898 = vadd.xlane.f32.xlu0 %v3897
        %v3899 = vpop.xlane.xlu0 %3898
        %v3900 = vadd.f32 %v3464, %v3466
        %v3901 = vadd.f32 %v3900, %v3468
        %v3902 = vadd.f32 %v3901, %v3470
        %3903 = vadd.xlane.f32.xlu0 %v3902
        %v3904 = vpop.xlane.xlu0 %3903
        %v3905 = vadd.f32 %v3472, %v3474
        %v3906 = vadd.f32 %v3905, %v3476
        %v3907 = vadd.f32 %v3906, %v3478
        %3908 = vadd.xlane.f32.xlu0 %v3907
        %v3909 = vpop.xlane.xlu0 %3908
        %v3910 = vadd.f32 %v3480, %v3482
        %v3911 = vadd.f32 %v3910, %v3484
        %v3912 = vadd.f32 %v3911, %v3486
        %3913 = vadd.xlane.f32.xlu0 %v3912
        %v3914 = vpop.xlane.xlu0 %3913
        %v3915 = vadd.f32 %v3488, %v3490
        %v3916 = vadd.f32 %v3915, %v3492
        %v3917 = vadd.f32 %v3916, %v3494
        %3918 = vadd.xlane.f32.xlu0 %v3917
        %v3919 = vpop.xlane.xlu0 %3918
        %v3920 = vadd.f32 %v3496, %v3498
        %v3921 = vadd.f32 %v3920, %v3500
        %v3922 = vadd.f32 %v3921, %v3502
        %3923 = vadd.xlane.f32.xlu0 %v3922
        %v3924 = vpop.xlane.xlu0 %3923
        %v3925 = vadd.f32 %v3504, %v3506
        %v3926 = vadd.f32 %v3925, %v3508
        %v3927 = vadd.f32 %v3926, %v3510
        %3928 = vadd.xlane.f32.xlu0 %v3927
        %v3929 = vpop.xlane.xlu0 %3928
        %v3930 = vadd.f32 %v3512, %v3514
        %v3931 = vadd.f32 %v3930, %v3516
        %v3932 = vadd.f32 %v3931, %v3518
        %3933 = vadd.xlane.f32.xlu0 %v3932
        %v3934 = vpop.xlane.xlu0 %3933
        %v3935 = vadd.f32 %v3520, %v3522
        %v3936 = vadd.f32 %v3935, %v3524
        %v3937 = vadd.f32 %v3936, %v3526
        %3938 = vadd.xlane.f32.xlu0 %v3937
        %v3939 = vpop.xlane.xlu0 %3938
        %v3940 = vadd.f32 %v3528, %v3530
        %v3941 = vadd.f32 %v3940, %v3532
        %v3942 = vadd.f32 %v3941, %v3534
        %3943 = vadd.xlane.f32.xlu0 %v3942
        %v3944 = vpop.xlane.xlu0 %3943
        %v3945 = vadd.f32 %v3536, %v3538
        %v3946 = vadd.f32 %v3945, %v3540
        %v3947 = vadd.f32 %v3946, %v3542
        %3948 = vadd.xlane.f32.xlu0 %v3947
        %v3949 = vpop.xlane.xlu0 %3948
        %v3950 = vadd.f32 %v3544, %v3546
        %v3951 = vadd.f32 %v3950, %v3548
        %v3952 = vadd.f32 %v3951, %v3550
        %3953 = vadd.xlane.f32.xlu0 %v3952
        %v3954 = vpop.xlane.xlu0 %3953
        %v3955 = vadd.f32 %v3552, %v3554
        %v3956 = vadd.f32 %v3955, %v3556
        %v3957 = vadd.f32 %v3956, %v3558
        %3958 = vadd.xlane.f32.xlu0 %v3957
        %v3959 = vpop.xlane.xlu0 %3958
        %v3960 = vadd.f32 %v3560, %v3562
        %v3961 = vadd.f32 %v3960, %v3564
        %v3962 = vadd.f32 %v3961, %v3566
        %3963 = vadd.xlane.f32.xlu0 %v3962
        %v3964 = vpop.xlane.xlu0 %3963
        %v3965 = vadd.f32 %v3568, %v3570
        %v3966 = vadd.f32 %v3965, %v3572
        %v3967 = vadd.f32 %v3966, %v3574
        %3968 = vadd.xlane.f32.xlu0 %v3967
        %v3969 = vpop.xlane.xlu0 %3968
        %v3970 = vadd.f32 %v3576, %v3578
        %v3971 = vadd.f32 %v3970, %v3580
        %v3972 = vadd.f32 %v3971, %v3582
        %3973 = vadd.xlane.f32.xlu0 %v3972
        %v3974 = vpop.xlane.xlu0 %3973
        %v3975 = vadd.f32 %v3584, %v3586
        %v3976 = vadd.f32 %v3975, %v3588
        %v3977 = vadd.f32 %v3976, %v3590
        %3978 = vadd.xlane.f32.xlu0 %v3977
        %v3979 = vpop.xlane.xlu0 %3978
        %v3980 = vadd.f32 %v3592, %v3594
        %v3981 = vadd.f32 %v3980, %v3596
        %v3982 = vadd.f32 %v3981, %v3598
        %3983 = vadd.xlane.f32.xlu0 %v3982
        %v3984 = vpop.xlane.xlu0 %3983
        %v3985 = vadd.f32 %v3600, %v3602
        %v3986 = vadd.f32 %v3985, %v3604
        %v3987 = vadd.f32 %v3986, %v3606
        %3988 = vadd.xlane.f32.xlu0 %v3987
        %v3989 = vpop.xlane.xlu0 %3988
        %v3990 = vadd.f32 %v3608, %v3610
        %v3991 = vadd.f32 %v3990, %v3612
        %v3992 = vadd.f32 %v3991, %v3614
        %3993 = vadd.xlane.f32.xlu0 %v3992
        %v3994 = vpop.xlane.xlu0 %3993
        %v3995 = vadd.f32 %v3616, %v3618
        %v3996 = vadd.f32 %v3995, %v3620
        %v3997 = vadd.f32 %v3996, %v3622
        %3998 = vadd.xlane.f32.xlu0 %v3997
        %v3999 = vpop.xlane.xlu0 %3998
        %v4000 = vadd.f32 %v3624, %v3626
        %v4001 = vadd.f32 %v4000, %v3628
        %v4002 = vadd.f32 %v4001, %v3630
        %4003 = vadd.xlane.f32.xlu0 %v4002
        %v4004 = vpop.xlane.xlu0 %4003
        %v4005 = vadd.f32 %v3632, %v3634
        %v4006 = vadd.f32 %v4005, %v3636
        %v4007 = vadd.f32 %v4006, %v3638
        %4008 = vadd.xlane.f32.xlu0 %v4007
        %v4009 = vpop.xlane.xlu0 %4008
        %v4010 = vadd.f32 %v3640, %v3642
        %v4011 = vadd.f32 %v4010, %v3644
        %v4012 = vadd.f32 %v4011, %v3646
        %4013 = vadd.xlane.f32.xlu0 %v4012
        %v4014 = vpop.xlane.xlu0 %4013
        %v4015 = vadd.f32 %v3648, %v3650
        %v4016 = vadd.f32 %v4015, %v3652
        %v4017 = vadd.f32 %v4016, %v3654
        %4018 = vadd.xlane.f32.xlu0 %v4017
        %v4019 = vpop.xlane.xlu0 %4018
        %v4020 = vadd.f32 %v3656, %v3658
        %v4021 = vadd.f32 %v4020, %v3660
        %v4022 = vadd.f32 %v4021, %v3662
        %4023 = vadd.xlane.f32.xlu0 %v4022
        %v4024 = vpop.xlane.xlu0 %4023
        %v4025 = vadd.f32 %v3664, %v3666
        %v4026 = vadd.f32 %v4025, %v3668
        %v4027 = vadd.f32 %v4026, %v3670
        %4028 = vadd.xlane.f32.xlu0 %v4027
        %v4029 = vpop.xlane.xlu0 %4028
        %v4030 = vadd.f32 %v3672, %v3674
        %v4031 = vadd.f32 %v4030, %v3676
        %v4032 = vadd.f32 %v4031, %v3678
        %4033 = vadd.xlane.f32.xlu0 %v4032
        %v4034 = vpop.xlane.xlu0 %4033
        %v4035 = vadd.f32 %v3680, %v3682
        %v4036 = vadd.f32 %v4035, %v3684
        %v4037 = vadd.f32 %v4036, %v3686
        %4038 = vadd.xlane.f32.xlu0 %v4037
        %v4039 = vpop.xlane.xlu0 %4038
        %v4040 = vadd.f32 %v3688, %v3690
        %v4041 = vadd.f32 %v4040, %v3692
        %v4042 = vadd.f32 %v4041, %v3694
        %4043 = vadd.xlane.f32.xlu0 %v4042
        %v4044 = vpop.xlane.xlu0 %4043
        %v4045 = vadd.f32 %v3696, %v3698
        %v4046 = vadd.f32 %v4045, %v3700
        %v4047 = vadd.f32 %v4046, %v3702
        %4048 = vadd.xlane.f32.xlu0 %v4047
        %v4049 = vpop.xlane.xlu0 %4048
        %v4050 = vadd.f32 %v3704, %v3706
        %v4051 = vadd.f32 %v4050, %v3708
        %v4052 = vadd.f32 %v4051, %v3710
        %4053 = vadd.xlane.f32.xlu0 %v4052
        %v4054 = vpop.xlane.xlu0 %4053
        %v4055 = vadd.f32 %v3712, %v3714
        %v4056 = vadd.f32 %v4055, %v3716
        %v4057 = vadd.f32 %v4056, %v3718
        %4058 = vadd.xlane.f32.xlu0 %v4057
        %v4059 = vpop.xlane.xlu0 %4058
        %v4060 = vadd.f32 %v3720, %v3722
        %v4061 = vadd.f32 %v4060, %v3724
        %v4062 = vadd.f32 %v4061, %v3726
        %4063 = vadd.xlane.f32.xlu0 %v4062
        %v4064 = vpop.xlane.xlu0 %4063
        %v4065 = vadd.f32 %v3728, %v3730
        %v4066 = vadd.f32 %v4065, %v3732
        %v4067 = vadd.f32 %v4066, %v3734
        %4068 = vadd.xlane.f32.xlu0 %v4067
        %v4069 = vpop.xlane.xlu0 %4068
        %v4070 = vadd.f32 %v3736, %v3738
        %v4071 = vadd.f32 %v4070, %v3740
        %v4072 = vadd.f32 %v4071, %v3742
        %4073 = vadd.xlane.f32.xlu0 %v4072
        %v4074 = vpop.xlane.xlu0 %4073
        %v4075 = vadd.f32 %v3744, %v3746
        %v4076 = vadd.f32 %v4075, %v3748
        %v4077 = vadd.f32 %v4076, %v3750
        %4078 = vadd.xlane.f32.xlu0 %v4077
        %v4079 = vpop.xlane.xlu0 %4078
        %v4080 = vadd.f32 %v3752, %v3754
        %v4081 = vadd.f32 %v4080, %v3756
        %v4082 = vadd.f32 %v4081, %v3758
        %4083 = vadd.xlane.f32.xlu0 %v4082
        %v4084 = vpop.xlane.xlu0 %4083
        %v4085 = vadd.f32 %v3760, %v3762
        %v4086 = vadd.f32 %v4085, %v3764
        %v4087 = vadd.f32 %v4086, %v3766
        %4088 = vadd.xlane.f32.xlu0 %v4087
        %v4089 = vpop.xlane.xlu0 %4088
        %v4090 = vadd.f32 %v3768, %v3770
        %v4091 = vadd.f32 %v4090, %v3772
        %v4092 = vadd.f32 %v4091, %v3774
        %4093 = vadd.xlane.f32.xlu0 %v4092
        %v4094 = vpop.xlane.xlu0 %4093
        %v4095 = vrcp.pop %v3779
        %v4096 = vmul.f32 1.0, %v4095
        %v4097 = vrcp.pop %v3784
        %v4098 = vmul.f32 1.0, %v4097
        %v4099 = vrcp.pop %v3789
        %v4100 = vmul.f32 1.0, %v4099
        %v4101 = vrcp.pop %v3794
        %v4102 = vmul.f32 1.0, %v4101
        %v4103 = vrcp.pop %v3799
        %v4104 = vmul.f32 1.0, %v4103
        %v4105 = vrcp.pop %v3804
        %v4106 = vmul.f32 1.0, %v4105
        %v4107 = vrcp.pop %v3809
        %v4108 = vmul.f32 1.0, %v4107
        %v4109 = vrcp.pop %v3814
        %v4110 = vmul.f32 1.0, %v4109
        %v4111 = vrcp.pop %v3819
        %v4112 = vmul.f32 1.0, %v4111
        %v4113 = vrcp.pop %v3824
        %v4114 = vmul.f32 1.0, %v4113
        %v4115 = vrcp.pop %v3829
        %v4116 = vmul.f32 1.0, %v4115
        %v4117 = vrcp.pop %v3834
        %v4118 = vmul.f32 1.0, %v4117
        %v4119 = vrcp.pop %v3839
        %v4120 = vmul.f32 1.0, %v4119
        %v4121 = vrcp.pop %v3844
        %v4122 = vmul.f32 1.0, %v4121
        %v4123 = vrcp.pop %v3849
        %v4124 = vmul.f32 1.0, %v4123
        %v4125 = vrcp.pop %v3854
        %v4126 = vmul.f32 1.0, %v4125
        %v4127 = vrcp.pop %v3859
        %v4128 = vmul.f32 1.0, %v4127
        %v4129 = vrcp.pop %v3864
        %v4130 = vmul.f32 1.0, %v4129
        %v4131 = vrcp.pop %v3869
        %v4132 = vmul.f32 1.0, %v4131
        %v4133 = vrcp.pop %v3874
        %v4134 = vmul.f32 1.0, %v4133
        %v4135 = vrcp.pop %v3879
        %v4136 = vmul.f32 1.0, %v4135
        %v4137 = vrcp.pop %v3884
        %v4138 = vmul.f32 1.0, %v4137
        %v4139 = vrcp.pop %v3889
        %v4140 = vmul.f32 1.0, %v4139
        %v4141 = vrcp.pop %v3894
        %v4142 = vmul.f32 1.0, %v4141
        %v4143 = vrcp.pop %v3899
        %v4144 = vmul.f32 1.0, %v4143
        %v4145 = vrcp.pop %v3904
        %v4146 = vmul.f32 1.0, %v4145
        %v4147 = vrcp.pop %v3909
        %v4148 = vmul.f32 1.0, %v4147
        %v4149 = vrcp.pop %v3914
        %v4150 = vmul.f32 1.0, %v4149
        %v4151 = vrcp.pop %v3919
        %v4152 = vmul.f32 1.0, %v4151
        %v4153 = vrcp.pop %v3924
        %v4154 = vmul.f32 1.0, %v4153
        %v4155 = vrcp.pop %v3929
        %v4156 = vmul.f32 1.0, %v4155
        %v4157 = vrcp.pop %v3934
        %v4158 = vmul.f32 1.0, %v4157
        %v4159 = vrcp.pop %v3939
        %v4160 = vmul.f32 1.0, %v4159
        %v4161 = vrcp.pop %v3944
        %v4162 = vmul.f32 1.0, %v4161
        %v4163 = vrcp.pop %v3949
        %v4164 = vmul.f32 1.0, %v4163
        %v4165 = vrcp.pop %v3954
        %v4166 = vmul.f32 1.0, %v4165
        %v4167 = vrcp.pop %v3959
        %v4168 = vmul.f32 1.0, %v4167
        %v4169 = vrcp.pop %v3964
        %v4170 = vmul.f32 1.0, %v4169
        %v4171 = vrcp.pop %v3969
        %v4172 = vmul.f32 1.0, %v4171
        %v4173 = vrcp.pop %v3974
        %v4174 = vmul.f32 1.0, %v4173
        %v4175 = vrcp.pop %v3979
        %v4176 = vmul.f32 1.0, %v4175
        %v4177 = vrcp.pop %v3984
        %v4178 = vmul.f32 1.0, %v4177
        %v4179 = vrcp.pop %v3989
        %v4180 = vmul.f32 1.0, %v4179
        %v4181 = vrcp.pop %v3994
        %v4182 = vmul.f32 1.0, %v4181
        %v4183 = vrcp.pop %v3999
        %v4184 = vmul.f32 1.0, %v4183
        %v4185 = vrcp.pop %v4004
        %v4186 = vmul.f32 1.0, %v4185
        %v4187 = vrcp.pop %v4009
        %v4188 = vmul.f32 1.0, %v4187
        %v4189 = vrcp.pop %v4014
        %v4190 = vmul.f32 1.0, %v4189
        %v4191 = vrcp.pop %v4019
        %v4192 = vmul.f32 1.0, %v4191
        %v4193 = vrcp.pop %v4024
        %v4194 = vmul.f32 1.0, %v4193
        %v4195 = vrcp.pop %v4029
        %v4196 = vmul.f32 1.0, %v4195
        %v4197 = vrcp.pop %v4034
        %v4198 = vmul.f32 1.0, %v4197
        %v4199 = vrcp.pop %v4039
        %v4200 = vmul.f32 1.0, %v4199
        %v4201 = vrcp.pop %v4044
        %v4202 = vmul.f32 1.0, %v4201
        %v4203 = vrcp.pop %v4049
        %v4204 = vmul.f32 1.0, %v4203
        %v4205 = vrcp.pop %v4054
        %v4206 = vmul.f32 1.0, %v4205
        %v4207 = vrcp.pop %v4059
        %v4208 = vmul.f32 1.0, %v4207
        %v4209 = vrcp.pop %v4064
        %v4210 = vmul.f32 1.0, %v4209
        %v4211 = vrcp.pop %v4069
        %v4212 = vmul.f32 1.0, %v4211
        %v4213 = vrcp.pop %v4074
        %v4214 = vmul.f32 1.0, %v4213
        %v4215 = vrcp.pop %v4079
        %v4216 = vmul.f32 1.0, %v4215
        %v4217 = vrcp.pop %v4084
        %v4218 = vmul.f32 1.0, %v4217
        %v4219 = vrcp.pop %v4089
        %v4220 = vmul.f32 1.0, %v4219
        %v4221 = vrcp.pop %v4094
        %v4222 = vmul.f32 1.0, %v4221
        %v4223 = vmul.f32 %v3264, %v4096
        %v4224 = vmul.f32 %v3266, %v4096
        %v4225 = vmul.f32 %v3268, %v4096
        %v4226 = vmul.f32 %v3270, %v4096
        %v4227 = vmul.f32 %v3272, %v4098
        %v4228 = vmul.f32 %v3274, %v4098
        %v4229 = vmul.f32 %v3276, %v4098
        %v4230 = vmul.f32 %v3278, %v4098
        %v4231 = vmul.f32 %v3280, %v4100
        %v4232 = vmul.f32 %v3282, %v4100
        %v4233 = vmul.f32 %v3284, %v4100
        %v4234 = vmul.f32 %v3286, %v4100
        %v4235 = vmul.f32 %v3288, %v4102
        %v4236 = vmul.f32 %v3290, %v4102
        %v4237 = vmul.f32 %v3292, %v4102
        %v4238 = vmul.f32 %v3294, %v4102
        %v4239 = vmul.f32 %v3296, %v4104
        %v4240 = vmul.f32 %v3298, %v4104
        %v4241 = vmul.f32 %v3300, %v4104
        %v4242 = vmul.f32 %v3302, %v4104
        %v4243 = vmul.f32 %v3304, %v4106
        %v4244 = vmul.f32 %v3306, %v4106
        %v4245 = vmul.f32 %v3308, %v4106
        %v4246 = vmul.f32 %v3310, %v4106
        %v4247 = vmul.f32 %v3312, %v4108
        %v4248 = vmul.f32 %v3314, %v4108
        %v4249 = vmul.f32 %v3316, %v4108
        %v4250 = vmul.f32 %v3318, %v4108
        %v4251 = vmul.f32 %v3320, %v4110
        %v4252 = vmul.f32 %v3322, %v4110
        %v4253 = vmul.f32 %v3324, %v4110
        %v4254 = vmul.f32 %v3326, %v4110
        %v4255 = vmul.f32 %v3328, %v4112
        %v4256 = vmul.f32 %v3330, %v4112
        %v4257 = vmul.f32 %v3332, %v4112
        %v4258 = vmul.f32 %v3334, %v4112
        %v4259 = vmul.f32 %v3336, %v4114
        %v4260 = vmul.f32 %v3338, %v4114
        %v4261 = vmul.f32 %v3340, %v4114
        %v4262 = vmul.f32 %v3342, %v4114
        %v4263 = vmul.f32 %v3344, %v4116
        %v4264 = vmul.f32 %v3346, %v4116
        %v4265 = vmul.f32 %v3348, %v4116
        %v4266 = vmul.f32 %v3350, %v4116
        %v4267 = vmul.f32 %v3352, %v4118
        %v4268 = vmul.f32 %v3354, %v4118
        %v4269 = vmul.f32 %v3356, %v4118
        %v4270 = vmul.f32 %v3358, %v4118
        %v4271 = vmul.f32 %v3360, %v4120
        %v4272 = vmul.f32 %v3362, %v4120
        %v4273 = vmul.f32 %v3364, %v4120
        %v4274 = vmul.f32 %v3366, %v4120
        %v4275 = vmul.f32 %v3368, %v4122
        %v4276 = vmul.f32 %v3370, %v4122
        %v4277 = vmul.f32 %v3372, %v4122
        %v4278 = vmul.f32 %v3374, %v4122
        %v4279 = vmul.f32 %v3376, %v4124
        %v4280 = vmul.f32 %v3378, %v4124
        %v4281 = vmul.f32 %v3380, %v4124
        %v4282 = vmul.f32 %v3382, %v4124
        %v4283 = vmul.f32 %v3384, %v4126
        %v4284 = vmul.f32 %v3386, %v4126
        %v4285 = vmul.f32 %v3388, %v4126
        %v4286 = vmul.f32 %v3390, %v4126
        %v4287 = vmul.f32 %v3392, %v4128
        %v4288 = vmul.f32 %v3394, %v4128
        %v4289 = vmul.f32 %v3396, %v4128
        %v4290 = vmul.f32 %v3398, %v4128
        %v4291 = vmul.f32 %v3400, %v4130
        %v4292 = vmul.f32 %v3402, %v4130
        %v4293 = vmul.f32 %v3404, %v4130
        %v4294 = vmul.f32 %v3406, %v4130
        %v4295 = vmul.f32 %v3408, %v4132
        %v4296 = vmul.f32 %v3410, %v4132
        %v4297 = vmul.f32 %v3412, %v4132
        %v4298 = vmul.f32 %v3414, %v4132
        %v4299 = vmul.f32 %v3416, %v4134
        %v4300 = vmul.f32 %v3418, %v4134
        %v4301 = vmul.f32 %v3420, %v4134
        %v4302 = vmul.f32 %v3422, %v4134
        %v4303 = vmul.f32 %v3424, %v4136
        %v4304 = vmul.f32 %v3426, %v4136
        %v4305 = vmul.f32 %v3428, %v4136
        %v4306 = vmul.f32 %v3430, %v4136
        %v4307 = vmul.f32 %v3432, %v4138
        %v4308 = vmul.f32 %v3434, %v4138
        %v4309 = vmul.f32 %v3436, %v4138
        %v4310 = vmul.f32 %v3438, %v4138
        %v4311 = vmul.f32 %v3440, %v4140
        %v4312 = vmul.f32 %v3442, %v4140
        %v4313 = vmul.f32 %v3444, %v4140
        %v4314 = vmul.f32 %v3446, %v4140
        %v4315 = vmul.f32 %v3448, %v4142
        %v4316 = vmul.f32 %v3450, %v4142
        %v4317 = vmul.f32 %v3452, %v4142
        %v4318 = vmul.f32 %v3454, %v4142
        %v4319 = vmul.f32 %v3456, %v4144
        %v4320 = vmul.f32 %v3458, %v4144
        %v4321 = vmul.f32 %v3460, %v4144
        %v4322 = vmul.f32 %v3462, %v4144
        %v4323 = vmul.f32 %v3464, %v4146
        %v4324 = vmul.f32 %v3466, %v4146
        %v4325 = vmul.f32 %v3468, %v4146
        %v4326 = vmul.f32 %v3470, %v4146
        %v4327 = vmul.f32 %v3472, %v4148
        %v4328 = vmul.f32 %v3474, %v4148
        %v4329 = vmul.f32 %v3476, %v4148
        %v4330 = vmul.f32 %v3478, %v4148
        %v4331 = vmul.f32 %v3480, %v4150
        %v4332 = vmul.f32 %v3482, %v4150
        %v4333 = vmul.f32 %v3484, %v4150
        %v4334 = vmul.f32 %v3486, %v4150
        %v4335 = vmul.f32 %v3488, %v4152
        %v4336 = vmul.f32 %v3490, %v4152
        %v4337 = vmul.f32 %v3492, %v4152
        %v4338 = vmul.f32 %v3494, %v4152
        %v4339 = vmul.f32 %v3496, %v4154
        %v4340 = vmul.f32 %v3498, %v4154
        %v4341 = vmul.f32 %v3500, %v4154
        %v4342 = vmul.f32 %v3502, %v4154
        %v4343 = vmul.f32 %v3504, %v4156
        %v4344 = vmul.f32 %v3506, %v4156
        %v4345 = vmul.f32 %v3508, %v4156
        %v4346 = vmul.f32 %v3510, %v4156
        %v4347 = vmul.f32 %v3512, %v4158
        %v4348 = vmul.f32 %v3514, %v4158
        %v4349 = vmul.f32 %v3516, %v4158
        %v4350 = vmul.f32 %v3518, %v4158
        %v4351 = vmul.f32 %v3520, %v4160
        %v4352 = vmul.f32 %v3522, %v4160
        %v4353 = vmul.f32 %v3524, %v4160
        %v4354 = vmul.f32 %v3526, %v4160
        %v4355 = vmul.f32 %v3528, %v4162
        %v4356 = vmul.f32 %v3530, %v4162
        %v4357 = vmul.f32 %v3532, %v4162
        %v4358 = vmul.f32 %v3534, %v4162
        %v4359 = vmul.f32 %v3536, %v4164
        %v4360 = vmul.f32 %v3538, %v4164
        %v4361 = vmul.f32 %v3540, %v4164
        %v4362 = vmul.f32 %v3542, %v4164
        %v4363 = vmul.f32 %v3544, %v4166
        %v4364 = vmul.f32 %v3546, %v4166
        %v4365 = vmul.f32 %v3548, %v4166
        %v4366 = vmul.f32 %v3550, %v4166
        %v4367 = vmul.f32 %v3552, %v4168
        %v4368 = vmul.f32 %v3554, %v4168
        %v4369 = vmul.f32 %v3556, %v4168
        %v4370 = vmul.f32 %v3558, %v4168
        %v4371 = vmul.f32 %v3560, %v4170
        %v4372 = vmul.f32 %v3562, %v4170
        %v4373 = vmul.f32 %v3564, %v4170
        %v4374 = vmul.f32 %v3566, %v4170
        %v4375 = vmul.f32 %v3568, %v4172
        %v4376 = vmul.f32 %v3570, %v4172
        %v4377 = vmul.f32 %v3572, %v4172
        %v4378 = vmul.f32 %v3574, %v4172
        %v4379 = vmul.f32 %v3576, %v4174
        %v4380 = vmul.f32 %v3578, %v4174
        %v4381 = vmul.f32 %v3580, %v4174
        %v4382 = vmul.f32 %v3582, %v4174
        %v4383 = vmul.f32 %v3584, %v4176
        %v4384 = vmul.f32 %v3586, %v4176
        %v4385 = vmul.f32 %v3588, %v4176
        %v4386 = vmul.f32 %v3590, %v4176
        %v4387 = vmul.f32 %v3592, %v4178
        %v4388 = vmul.f32 %v3594, %v4178
        %v4389 = vmul.f32 %v3596, %v4178
        %v4390 = vmul.f32 %v3598, %v4178
        %v4391 = vmul.f32 %v3600, %v4180
        %v4392 = vmul.f32 %v3602, %v4180
        %v4393 = vmul.f32 %v3604, %v4180
        %v4394 = vmul.f32 %v3606, %v4180
        %v4395 = vmul.f32 %v3608, %v4182
        %v4396 = vmul.f32 %v3610, %v4182
        %v4397 = vmul.f32 %v3612, %v4182
        %v4398 = vmul.f32 %v3614, %v4182
        %v4399 = vmul.f32 %v3616, %v4184
        %v4400 = vmul.f32 %v3618, %v4184
        %v4401 = vmul.f32 %v3620, %v4184
        %v4402 = vmul.f32 %v3622, %v4184
        %v4403 = vmul.f32 %v3624, %v4186
        %v4404 = vmul.f32 %v3626, %v4186
        %v4405 = vmul.f32 %v3628, %v4186
        %v4406 = vmul.f32 %v3630, %v4186
        %v4407 = vmul.f32 %v3632, %v4188
        %v4408 = vmul.f32 %v3634, %v4188
        %v4409 = vmul.f32 %v3636, %v4188
        %v4410 = vmul.f32 %v3638, %v4188
        %v4411 = vmul.f32 %v3640, %v4190
        %v4412 = vmul.f32 %v3642, %v4190
        %v4413 = vmul.f32 %v3644, %v4190
        %v4414 = vmul.f32 %v3646, %v4190
        %v4415 = vmul.f32 %v3648, %v4192
        %v4416 = vmul.f32 %v3650, %v4192
        %v4417 = vmul.f32 %v3652, %v4192
        %v4418 = vmul.f32 %v3654, %v4192
        %v4419 = vmul.f32 %v3656, %v4194
        %v4420 = vmul.f32 %v3658, %v4194
        %v4421 = vmul.f32 %v3660, %v4194
        %v4422 = vmul.f32 %v3662, %v4194
        %v4423 = vmul.f32 %v3664, %v4196
        %v4424 = vmul.f32 %v3666, %v4196
        %v4425 = vmul.f32 %v3668, %v4196
        %v4426 = vmul.f32 %v3670, %v4196
        %v4427 = vmul.f32 %v3672, %v4198
        %v4428 = vmul.f32 %v3674, %v4198
        %v4429 = vmul.f32 %v3676, %v4198
        %v4430 = vmul.f32 %v3678, %v4198
        %v4431 = vmul.f32 %v3680, %v4200
        %v4432 = vmul.f32 %v3682, %v4200
        %v4433 = vmul.f32 %v3684, %v4200
        %v4434 = vmul.f32 %v3686, %v4200
        %v4435 = vmul.f32 %v3688, %v4202
        %v4436 = vmul.f32 %v3690, %v4202
        %v4437 = vmul.f32 %v3692, %v4202
        %v4438 = vmul.f32 %v3694, %v4202
        %v4439 = vmul.f32 %v3696, %v4204
        %v4440 = vmul.f32 %v3698, %v4204
        %v4441 = vmul.f32 %v3700, %v4204
        %v4442 = vmul.f32 %v3702, %v4204
        %v4443 = vmul.f32 %v3704, %v4206
        %v4444 = vmul.f32 %v3706, %v4206
        %v4445 = vmul.f32 %v3708, %v4206
        %v4446 = vmul.f32 %v3710, %v4206
        %v4447 = vmul.f32 %v3712, %v4208
        %v4448 = vmul.f32 %v3714, %v4208
        %v4449 = vmul.f32 %v3716, %v4208
        %v4450 = vmul.f32 %v3718, %v4208
        %v4451 = vmul.f32 %v3720, %v4210
        %v4452 = vmul.f32 %v3722, %v4210
        %v4453 = vmul.f32 %v3724, %v4210
        %v4454 = vmul.f32 %v3726, %v4210
        %v4455 = vmul.f32 %v3728, %v4212
        %v4456 = vmul.f32 %v3730, %v4212
        %v4457 = vmul.f32 %v3732, %v4212
        %v4458 = vmul.f32 %v3734, %v4212
        %v4459 = vmul.f32 %v3736, %v4214
        %v4460 = vmul.f32 %v3738, %v4214
        %v4461 = vmul.f32 %v3740, %v4214
        %v4462 = vmul.f32 %v3742, %v4214
        %v4463 = vmul.f32 %v3744, %v4216
        %v4464 = vmul.f32 %v3746, %v4216
        %v4465 = vmul.f32 %v3748, %v4216
        %v4466 = vmul.f32 %v3750, %v4216
        %v4467 = vmul.f32 %v3752, %v4218
        %v4468 = vmul.f32 %v3754, %v4218
        %v4469 = vmul.f32 %v3756, %v4218
        %v4470 = vmul.f32 %v3758, %v4218
        %v4471 = vmul.f32 %v3760, %v4220
        %v4472 = vmul.f32 %v3762, %v4220
        %v4473 = vmul.f32 %v3764, %v4220
        %v4474 = vmul.f32 %v3766, %v4220
        %v4475 = vmul.f32 %v3768, %v4222
        %v4476 = vmul.f32 %v3770, %v4222
        %v4477 = vmul.f32 %v3772, %v4222
        %v4478 = vmul.f32 %v3774, %v4222
        %4479 = vst [vmem:[%s299] sm:$0xff] %v4223
        %4480 = vst [vmem:[%s299 + $0x8] sm:$0xff] %v4224
        %4481 = vst [vmem:[%s299 + $0x10] sm:$0xff] %v4225
        %4482 = vst [vmem:[%s299 + $0x18] sm:$0xff] %v4226
        %4483 = vst [vmem:[%s299 + $0x20] sm:$0xff] %v4227
        %4484 = vst [vmem:[%s299 + $0x28] sm:$0xff] %v4228
        %4485 = vst [vmem:[%s299 + $0x30] sm:$0xff] %v4229
        %4486 = vst [vmem:[%s299 + $0x38] sm:$0xff] %v4230
        %4487 = vst [vmem:[%s299 + $0x40] sm:$0xff] %v4231
        %4488 = vst [vmem:[%s299 + $0x48] sm:$0xff] %v4232
        %4489 = vst [vmem:[%s299 + $0x50] sm:$0xff] %v4233
        %4490 = vst [vmem:[%s299 + $0x58] sm:$0xff] %v4234
        %4491 = vst [vmem:[%s299 + $0x60] sm:$0xff] %v4235
        %4492 = vst [vmem:[%s299 + $0x68] sm:$0xff] %v4236
        %4493 = vst [vmem:[%s299 + $0x70] sm:$0xff] %v4237
        %4494 = vst [vmem:[%s299 + $0x78] sm:$0xff] %v4238
        %4495 = vst [vmem:[%s299 + $0x80] sm:$0xff] %v4239
        %4496 = vst [vmem:[%s299 + $0x88] sm:$0xff] %v4240
        %4497 = vst [vmem:[%s299 + $0x90] sm:$0xff] %v4241
        %4498 = vst [vmem:[%s299 + $0x98] sm:$0xff] %v4242
        %4499 = vst [vmem:[%s299 + $0xa0] sm:$0xff] %v4243
        %4500 = vst [vmem:[%s299 + $0xa8] sm:$0xff] %v4244
        %4501 = vst [vmem:[%s299 + $0xb0] sm:$0xff] %v4245
        %4502 = vst [vmem:[%s299 + $0xb8] sm:$0xff] %v4246
        %4503 = vst [vmem:[%s299 + $0xc0] sm:$0xff] %v4247
        %4504 = vst [vmem:[%s299 + $0xc8] sm:$0xff] %v4248
        %4505 = vst [vmem:[%s299 + $0xd0] sm:$0xff] %v4249
        %4506 = vst [vmem:[%s299 + $0xd8] sm:$0xff] %v4250
        %4507 = vst [vmem:[%s299 + $0xe0] sm:$0xff] %v4251
        %4508 = vst [vmem:[%s299 + $0xe8] sm:$0xff] %v4252
        %4509 = vst [vmem:[%s299 + $0xf0] sm:$0xff] %v4253
        %4510 = vst [vmem:[%s299 + $0xf8] sm:$0xff] %v4254
        %4511 = vst [vmem:[%s299 + $0x100] sm:$0xff] %v4255
        %4512 = vst [vmem:[%s299 + $0x108] sm:$0xff] %v4256
        %4513 = vst [vmem:[%s299 + $0x110] sm:$0xff] %v4257
        %4514 = vst [vmem:[%s299 + $0x118] sm:$0xff] %v4258
        %4515 = vst [vmem:[%s299 + $0x120] sm:$0xff] %v4259
        %4516 = vst [vmem:[%s299 + $0x128] sm:$0xff] %v4260
        %4517 = vst [vmem:[%s299 + $0x130] sm:$0xff] %v4261
        %4518 = vst [vmem:[%s299 + $0x138] sm:$0xff] %v4262
        %4519 = vst [vmem:[%s299 + $0x140] sm:$0xff] %v4263
        %4520 = vst [vmem:[%s299 + $0x148] sm:$0xff] %v4264
        %4521 = vst [vmem:[%s299 + $0x150] sm:$0xff] %v4265
        %4522 = vst [vmem:[%s299 + $0x158] sm:$0xff] %v4266
        %4523 = vst [vmem:[%s299 + $0x160] sm:$0xff] %v4267
        %4524 = vst [vmem:[%s299 + $0x168] sm:$0xff] %v4268
        %4525 = vst [vmem:[%s299 + $0x170] sm:$0xff] %v4269
        %4526 = vst [vmem:[%s299 + $0x178] sm:$0xff] %v4270
        %4527 = vst [vmem:[%s299 + $0x180] sm:$0xff] %v4271
        %4528 = vst [vmem:[%s299 + $0x188] sm:$0xff] %v4272
        %4529 = vst [vmem:[%s299 + $0x190] sm:$0xff] %v4273
        %4530 = vst [vmem:[%s299 + $0x198] sm:$0xff] %v4274
        %4531 = vst [vmem:[%s299 + $0x1a0] sm:$0xff] %v4275
        %4532 = vst [vmem:[%s299 + $0x1a8] sm:$0xff] %v4276
        %4533 = vst [vmem:[%s299 + $0x1b0] sm:$0xff] %v4277
        %4534 = vst [vmem:[%s299 + $0x1b8] sm:$0xff] %v4278
        %4535 = vst [vmem:[%s299 + $0x1c0] sm:$0xff] %v4279
        %4536 = vst [vmem:[%s299 + $0x1c8] sm:$0xff] %v4280
        %4537 = vst [vmem:[%s299 + $0x1d0] sm:$0xff] %v4281
        %4538 = vst [vmem:[%s299 + $0x1d8] sm:$0xff] %v4282
        %4539 = vst [vmem:[%s299 + $0x1e0] sm:$0xff] %v4283
        %4540 = vst [vmem:[%s299 + $0x1e8] sm:$0xff] %v4284
        %4541 = vst [vmem:[%s299 + $0x1f0] sm:$0xff] %v4285
        %4542 = vst [vmem:[%s299 + $0x1f8] sm:$0xff] %v4286
        %4543 = vst [vmem:[%s299 + $0x200] sm:$0xff] %v4287
        %4544 = vst [vmem:[%s299 + $0x208] sm:$0xff] %v4288
        %4545 = vst [vmem:[%s299 + $0x210] sm:$0xff] %v4289
        %4546 = vst [vmem:[%s299 + $0x218] sm:$0xff] %v4290
        %4547 = vst [vmem:[%s299 + $0x220] sm:$0xff] %v4291
        %4548 = vst [vmem:[%s299 + $0x228] sm:$0xff] %v4292
        %4549 = vst [vmem:[%s299 + $0x230] sm:$0xff] %v4293
        %4550 = vst [vmem:[%s299 + $0x238] sm:$0xff] %v4294
        %4551 = vst [vmem:[%s299 + $0x240] sm:$0xff] %v4295
        %4552 = vst [vmem:[%s299 + $0x248] sm:$0xff] %v4296
        %4553 = vst [vmem:[%s299 + $0x250] sm:$0xff] %v4297
        %4554 = vst [vmem:[%s299 + $0x258] sm:$0xff] %v4298
        %4555 = vst [vmem:[%s299 + $0x260] sm:$0xff] %v4299
        %4556 = vst [vmem:[%s299 + $0x268] sm:$0xff] %v4300
        %4557 = vst [vmem:[%s299 + $0x270] sm:$0xff] %v4301
        %4558 = vst [vmem:[%s299 + $0x278] sm:$0xff] %v4302
        %4559 = vst [vmem:[%s299 + $0x280] sm:$0xff] %v4303
        %4560 = vst [vmem:[%s299 + $0x288] sm:$0xff] %v4304
        %4561 = vst [vmem:[%s299 + $0x290] sm:$0xff] %v4305
        %4562 = vst [vmem:[%s299 + $0x298] sm:$0xff] %v4306
        %4563 = vst [vmem:[%s299 + $0x2a0] sm:$0xff] %v4307
        %4564 = vst [vmem:[%s299 + $0x2a8] sm:$0xff] %v4308
        %4565 = vst [vmem:[%s299 + $0x2b0] sm:$0xff] %v4309
        %4566 = vst [vmem:[%s299 + $0x2b8] sm:$0xff] %v4310
        %4567 = vst [vmem:[%s299 + $0x2c0] sm:$0xff] %v4311
        %4568 = vst [vmem:[%s299 + $0x2c8] sm:$0xff] %v4312
        %4569 = vst [vmem:[%s299 + $0x2d0] sm:$0xff] %v4313
        %4570 = vst [vmem:[%s299 + $0x2d8] sm:$0xff] %v4314
        %4571 = vst [vmem:[%s299 + $0x2e0] sm:$0xff] %v4315
        %4572 = vst [vmem:[%s299 + $0x2e8] sm:$0xff] %v4316
        %4573 = vst [vmem:[%s299 + $0x2f0] sm:$0xff] %v4317
        %4574 = vst [vmem:[%s299 + $0x2f8] sm:$0xff] %v4318
        %4575 = vst [vmem:[%s299 + $0x300] sm:$0xff] %v4319
        %4576 = vst [vmem:[%s299 + $0x308] sm:$0xff] %v4320
        %4577 = vst [vmem:[%s299 + $0x310] sm:$0xff] %v4321
        %4578 = vst [vmem:[%s299 + $0x318] sm:$0xff] %v4322
        %4579 = vst [vmem:[%s299 + $0x320] sm:$0xff] %v4323
        %4580 = vst [vmem:[%s299 + $0x328] sm:$0xff] %v4324
        %4581 = vst [vmem:[%s299 + $0x330] sm:$0xff] %v4325
        %4582 = vst [vmem:[%s299 + $0x338] sm:$0xff] %v4326
        %4583 = vst [vmem:[%s299 + $0x340] sm:$0xff] %v4327
        %4584 = vst [vmem:[%s299 + $0x348] sm:$0xff] %v4328
        %4585 = vst [vmem:[%s299 + $0x350] sm:$0xff] %v4329
        %4586 = vst [vmem:[%s299 + $0x358] sm:$0xff] %v4330
        %4587 = vst [vmem:[%s299 + $0x360] sm:$0xff] %v4331
        %4588 = vst [vmem:[%s299 + $0x368] sm:$0xff] %v4332
        %4589 = vst [vmem:[%s299 + $0x370] sm:$0xff] %v4333
        %4590 = vst [vmem:[%s299 + $0x378] sm:$0xff] %v4334
        %4591 = vst [vmem:[%s299 + $0x380] sm:$0xff] %v4335
        %4592 = vst [vmem:[%s299 + $0x388] sm:$0xff] %v4336
        %4593 = vst [vmem:[%s299 + $0x390] sm:$0xff] %v4337
        %4594 = vst [vmem:[%s299 + $0x398] sm:$0xff] %v4338
        %4595 = vst [vmem:[%s299 + $0x3a0] sm:$0xff] %v4339
        %4596 = vst [vmem:[%s299 + $0x3a8] sm:$0xff] %v4340
        %4597 = vst [vmem:[%s299 + $0x3b0] sm:$0xff] %v4341
        %4598 = vst [vmem:[%s299 + $0x3b8] sm:$0xff] %v4342
        %4599 = vst [vmem:[%s299 + $0x3c0] sm:$0xff] %v4343
        %4600 = vst [vmem:[%s299 + $0x3c8] sm:$0xff] %v4344
        %4601 = vst [vmem:[%s299 + $0x3d0] sm:$0xff] %v4345
        %4602 = vst [vmem:[%s299 + $0x3d8] sm:$0xff] %v4346
        %4603 = vst [vmem:[%s299 + $0x3e0] sm:$0xff] %v4347
        %4604 = vst [vmem:[%s299 + $0x3e8] sm:$0xff] %v4348
        %4605 = vst [vmem:[%s299 + $0x3f0] sm:$0xff] %v4349
        %4606 = vst [vmem:[%s299 + $0x3f8] sm:$0xff] %v4350
        %4607 = vst [vmem:[%s299 + $0x400] sm:$0xff] %v4351
        %4608 = vst [vmem:[%s299 + $0x408] sm:$0xff] %v4352
        %4609 = vst [vmem:[%s299 + $0x410] sm:$0xff] %v4353
        %4610 = vst [vmem:[%s299 + $0x418] sm:$0xff] %v4354
        %4611 = vst [vmem:[%s299 + $0x420] sm:$0xff] %v4355
        %4612 = vst [vmem:[%s299 + $0x428] sm:$0xff] %v4356
        %4613 = vst [vmem:[%s299 + $0x430] sm:$0xff] %v4357
        %4614 = vst [vmem:[%s299 + $0x438] sm:$0xff] %v4358
        %4615 = vst [vmem:[%s299 + $0x440] sm:$0xff] %v4359
        %4616 = vst [vmem:[%s299 + $0x448] sm:$0xff] %v4360
        %4617 = vst [vmem:[%s299 + $0x450] sm:$0xff] %v4361
        %4618 = vst [vmem:[%s299 + $0x458] sm:$0xff] %v4362
        %4619 = vst [vmem:[%s299 + $0x460] sm:$0xff] %v4363
        %4620 = vst [vmem:[%s299 + $0x468] sm:$0xff] %v4364
        %4621 = vst [vmem:[%s299 + $0x470] sm:$0xff] %v4365
        %4622 = vst [vmem:[%s299 + $0x478] sm:$0xff] %v4366
        %4623 = vst [vmem:[%s299 + $0x480] sm:$0xff] %v4367
        %4624 = vst [vmem:[%s299 + $0x488] sm:$0xff] %v4368
        %4625 = vst [vmem:[%s299 + $0x490] sm:$0xff] %v4369
        %4626 = vst [vmem:[%s299 + $0x498] sm:$0xff] %v4370
        %4627 = vst [vmem:[%s299 + $0x4a0] sm:$0xff] %v4371
        %4628 = vst [vmem:[%s299 + $0x4a8] sm:$0xff] %v4372
        %4629 = vst [vmem:[%s299 + $0x4b0] sm:$0xff] %v4373
        %4630 = vst [vmem:[%s299 + $0x4b8] sm:$0xff] %v4374
        %4631 = vst [vmem:[%s299 + $0x4c0] sm:$0xff] %v4375
        %4632 = vst [vmem:[%s299 + $0x4c8] sm:$0xff] %v4376
        %4633 = vst [vmem:[%s299 + $0x4d0] sm:$0xff] %v4377
        %4634 = vst [vmem:[%s299 + $0x4d8] sm:$0xff] %v4378
        %4635 = vst [vmem:[%s299 + $0x4e0] sm:$0xff] %v4379
        %4636 = vst [vmem:[%s299 + $0x4e8] sm:$0xff] %v4380
        %4637 = vst [vmem:[%s299 + $0x4f0] sm:$0xff] %v4381
        %4638 = vst [vmem:[%s299 + $0x4f8] sm:$0xff] %v4382
        %4639 = vst [vmem:[%s299 + $0x500] sm:$0xff] %v4383
        %4640 = vst [vmem:[%s299 + $0x508] sm:$0xff] %v4384
        %4641 = vst [vmem:[%s299 + $0x510] sm:$0xff] %v4385
        %4642 = vst [vmem:[%s299 + $0x518] sm:$0xff] %v4386
        %4643 = vst [vmem:[%s299 + $0x520] sm:$0xff] %v4387
        %4644 = vst [vmem:[%s299 + $0x528] sm:$0xff] %v4388
        %4645 = vst [vmem:[%s299 + $0x530] sm:$0xff] %v4389
        %4646 = vst [vmem:[%s299 + $0x538] sm:$0xff] %v4390
        %4647 = vst [vmem:[%s299 + $0x540] sm:$0xff] %v4391
        %4648 = vst [vmem:[%s299 + $0x548] sm:$0xff] %v4392
        %4649 = vst [vmem:[%s299 + $0x550] sm:$0xff] %v4393
        %4650 = vst [vmem:[%s299 + $0x558] sm:$0xff] %v4394
        %4651 = vst [vmem:[%s299 + $0x560] sm:$0xff] %v4395
        %4652 = vst [vmem:[%s299 + $0x568] sm:$0xff] %v4396
        %4653 = vst [vmem:[%s299 + $0x570] sm:$0xff] %v4397
        %4654 = vst [vmem:[%s299 + $0x578] sm:$0xff] %v4398
        %4655 = vst [vmem:[%s299 + $0x580] sm:$0xff] %v4399
        %4656 = vst [vmem:[%s299 + $0x588] sm:$0xff] %v4400
        %4657 = vst [vmem:[%s299 + $0x590] sm:$0xff] %v4401
        %4658 = vst [vmem:[%s299 + $0x598] sm:$0xff] %v4402
        %4659 = vst [vmem:[%s299 + $0x5a0] sm:$0xff] %v4403
        %4660 = vst [vmem:[%s299 + $0x5a8] sm:$0xff] %v4404
        %4661 = vst [vmem:[%s299 + $0x5b0] sm:$0xff] %v4405
        %4662 = vst [vmem:[%s299 + $0x5b8] sm:$0xff] %v4406
        %4663 = vst [vmem:[%s299 + $0x5c0] sm:$0xff] %v4407
        %4664 = vst [vmem:[%s299 + $0x5c8] sm:$0xff] %v4408
        %4665 = vst [vmem:[%s299 + $0x5d0] sm:$0xff] %v4409
        %4666 = vst [vmem:[%s299 + $0x5d8] sm:$0xff] %v4410
        %4667 = vst [vmem:[%s299 + $0x5e0] sm:$0xff] %v4411
        %4668 = vst [vmem:[%s299 + $0x5e8] sm:$0xff] %v4412
        %4669 = vst [vmem:[%s299 + $0x5f0] sm:$0xff] %v4413
        %4670 = vst [vmem:[%s299 + $0x5f8] sm:$0xff] %v4414
        %4671 = vst [vmem:[%s299 + $0x600] sm:$0xff] %v4415
        %4672 = vst [vmem:[%s299 + $0x608] sm:$0xff] %v4416
        %4673 = vst [vmem:[%s299 + $0x610] sm:$0xff] %v4417
        %4674 = vst [vmem:[%s299 + $0x618] sm:$0xff] %v4418
        %4675 = vst [vmem:[%s299 + $0x620] sm:$0xff] %v4419
        %4676 = vst [vmem:[%s299 + $0x628] sm:$0xff] %v4420
        %4677 = vst [vmem:[%s299 + $0x630] sm:$0xff] %v4421
        %4678 = vst [vmem:[%s299 + $0x638] sm:$0xff] %v4422
        %4679 = vst [vmem:[%s299 + $0x640] sm:$0xff] %v4423
        %4680 = vst [vmem:[%s299 + $0x648] sm:$0xff] %v4424
        %4681 = vst [vmem:[%s299 + $0x650] sm:$0xff] %v4425
        %4682 = vst [vmem:[%s299 + $0x658] sm:$0xff] %v4426
        %4683 = vst [vmem:[%s299 + $0x660] sm:$0xff] %v4427
        %4684 = vst [vmem:[%s299 + $0x668] sm:$0xff] %v4428
        %4685 = vst [vmem:[%s299 + $0x670] sm:$0xff] %v4429
        %4686 = vst [vmem:[%s299 + $0x678] sm:$0xff] %v4430
        %4687 = vst [vmem:[%s299 + $0x680] sm:$0xff] %v4431
        %4688 = vst [vmem:[%s299 + $0x688] sm:$0xff] %v4432
        %4689 = vst [vmem:[%s299 + $0x690] sm:$0xff] %v4433
        %4690 = vst [vmem:[%s299 + $0x698] sm:$0xff] %v4434
        %4691 = vst [vmem:[%s299 + $0x6a0] sm:$0xff] %v4435
        %4692 = vst [vmem:[%s299 + $0x6a8] sm:$0xff] %v4436
        %4693 = vst [vmem:[%s299 + $0x6b0] sm:$0xff] %v4437
        %4694 = vst [vmem:[%s299 + $0x6b8] sm:$0xff] %v4438
        %4695 = vst [vmem:[%s299 + $0x6c0] sm:$0xff] %v4439
        %4696 = vst [vmem:[%s299 + $0x6c8] sm:$0xff] %v4440
        %4697 = vst [vmem:[%s299 + $0x6d0] sm:$0xff] %v4441
        %4698 = vst [vmem:[%s299 + $0x6d8] sm:$0xff] %v4442
        %4699 = vst [vmem:[%s299 + $0x6e0] sm:$0xff] %v4443
        %4700 = vst [vmem:[%s299 + $0x6e8] sm:$0xff] %v4444
        %4701 = vst [vmem:[%s299 + $0x6f0] sm:$0xff] %v4445
        %4702 = vst [vmem:[%s299 + $0x6f8] sm:$0xff] %v4446
        %4703 = vst [vmem:[%s299 + $0x700] sm:$0xff] %v4447
        %4704 = vst [vmem:[%s299 + $0x708] sm:$0xff] %v4448
        %4705 = vst [vmem:[%s299 + $0x710] sm:$0xff] %v4449
        %4706 = vst [vmem:[%s299 + $0x718] sm:$0xff] %v4450
        %4707 = vst [vmem:[%s299 + $0x720] sm:$0xff] %v4451
        %4708 = vst [vmem:[%s299 + $0x728] sm:$0xff] %v4452
        %4709 = vst [vmem:[%s299 + $0x730] sm:$0xff] %v4453
        %4710 = vst [vmem:[%s299 + $0x738] sm:$0xff] %v4454
        %4711 = vst [vmem:[%s299 + $0x740] sm:$0xff] %v4455
        %4712 = vst [vmem:[%s299 + $0x748] sm:$0xff] %v4456
        %4713 = vst [vmem:[%s299 + $0x750] sm:$0xff] %v4457
        %4714 = vst [vmem:[%s299 + $0x758] sm:$0xff] %v4458
        %4715 = vst [vmem:[%s299 + $0x760] sm:$0xff] %v4459
        %4716 = vst [vmem:[%s299 + $0x768] sm:$0xff] %v4460
        %4717 = vst [vmem:[%s299 + $0x770] sm:$0xff] %v4461
        %4718 = vst [vmem:[%s299 + $0x778] sm:$0xff] %v4462
        %4719 = vst [vmem:[%s299 + $0x780] sm:$0xff] %v4463
        %4720 = vst [vmem:[%s299 + $0x788] sm:$0xff] %v4464
        %4721 = vst [vmem:[%s299 + $0x790] sm:$0xff] %v4465
        %4722 = vst [vmem:[%s299 + $0x798] sm:$0xff] %v4466
        %4723 = vst [vmem:[%s299 + $0x7a0] sm:$0xff] %v4467
        %4724 = vst [vmem:[%s299 + $0x7a8] sm:$0xff] %v4468
        %4725 = vst [vmem:[%s299 + $0x7b0] sm:$0xff] %v4469
        %4726 = vst [vmem:[%s299 + $0x7b8] sm:$0xff] %v4470
        %4727 = vst [vmem:[%s299 + $0x7c0] sm:$0xff] %v4471
        %4728 = vst [vmem:[%s299 + $0x7c8] sm:$0xff] %v4472
        %4729 = vst [vmem:[%s299 + $0x7d0] sm:$0xff] %v4473
        %4730 = vst [vmem:[%s299 + $0x7d8] sm:$0xff] %v4474
        %4731 = vst [vmem:[%s299 + $0x7e0] sm:$0xff] %v4475
        %4732 = vst [vmem:[%s299 + $0x7e8] sm:$0xff] %v4476
        %4733 = vst [vmem:[%s299 + $0x7f0] sm:$0xff] %v4477
        %4734 = vst [vmem:[%s299 + $0x7f8] sm:$0xff] %v4478
        %4735 = vmatprep.subr.mxu0 0.0
        %4736 = vmatpush1.msra.mxu0 %v1278
        %4737 = vmatprep.subr.mxu0 0.0
        %4738 = vmatpush1.msra.mxu0 %v1283
        %4739 = vmatprep.subr.mxu0 0.0
        %4740 = vmatpush1.msra.mxu0 %v1288
        %4741 = vmatprep.subr.mxu0 0.0
        %4742 = vmatpush1.msra.mxu0 %v1293
        %4743 = vmatprep.subr.mxu0 0.0
        %4744 = vmatpush1.msra.mxu0 %v1298
        %4745 = vmatprep.subr.mxu0 0.0
        %4746 = vmatpush1.msra.mxu0 %v1303
        %4747 = vmatprep.subr.mxu0 0.0
        %4748 = vmatpush1.msra.mxu0 %v1308
        %4749 = vmatprep.subr.mxu0 0.0
        %4750 = vmatpush1.msra.mxu0 %v1313
        %4751 = vmatprep.subr.mxu0 0.0
        %4752 = vmatpush1.msra.mxu0 %v1318
        %4753 = vmatprep.subr.mxu0 0.0
        %4754 = vmatpush1.msra.mxu0 %v1323
        %4755 = vmatprep.subr.mxu0 0.0
        %4756 = vmatpush1.msra.mxu0 %v1328
        %4757 = vmatprep.subr.mxu0 0.0
        %4758 = vmatpush1.msra.mxu0 %v1333
        %4759 = vmatprep.subr.mxu0 0.0
        %4760 = vmatpush1.msra.mxu0 %v1338
        %4761 = vmatprep.subr.mxu0 0.0
        %4762 = vmatpush1.msra.mxu0 %v1343
        %4763 = vmatprep.subr.mxu0 0.0
        %4764 = vmatpush1.msra.mxu0 %v1348
        %4765 = vmatprep.subr.mxu0 0.0
        %4766 = vmatpush1.msra.mxu0 %v1353
        %4767 = vmatprep.subr.mxu0 0.0
        %4768 = vmatpush1.msra.mxu0 %v1358
        %4769 = vmatprep.subr.mxu0 0.0
        %4770 = vmatpush1.msra.mxu0 %v1363
        %4771 = vmatprep.subr.mxu0 0.0
        %4772 = vmatpush1.msra.mxu0 %v1368
        %4773 = vmatprep.subr.mxu0 0.0
        %4774 = vmatpush1.msra.mxu0 %v1373
        %4775 = vmatprep.subr.mxu0 0.0
        %4776 = vmatpush1.msra.mxu0 %v1378
        %4777 = vmatprep.subr.mxu0 0.0
        %4778 = vmatpush1.msra.mxu0 %v1383
        %4779 = vmatprep.subr.mxu0 0.0
        %4780 = vmatpush1.msra.mxu0 %v1388
        %4781 = vmatprep.subr.mxu0 0.0
        %4782 = vmatpush1.msra.mxu0 %v1393
        %4783 = vmatprep.subr.mxu0 0.0
        %4784 = vmatpush1.msra.mxu0 %v1398
        %4785 = vmatprep.subr.mxu0 0.0
        %4786 = vmatpush1.msra.mxu0 %v1403
        %4787 = vmatprep.subr.mxu0 0.0
        %4788 = vmatpush1.msra.mxu0 %v1408
        %4789 = vmatprep.subr.mxu0 0.0
        %4790 = vmatpush1.msra.mxu0 %v1413
        %4791 = vmatprep.subr.mxu0 0.0
        %4792 = vmatpush1.msra.mxu0 %v1418
        %4793 = vmatprep.subr.mxu0 0.0
        %4794 = vmatpush1.msra.mxu0 %v1423
        %4795 = vmatprep.subr.mxu0 0.0
        %4796 = vmatpush1.msra.mxu0 %v1428
        %4797 = vmatprep.subr.mxu0 0.0
        %4798 = vmatpush1.msra.mxu0 %v1433
        %4799 = vmatprep.mubr.f32.mxu0 %v4224
        %4800 = vmatmul.mubr.f32.gmra.mrb[0].mxu0 %v4223
        %v4801 = vpop.f32.mrb[0].mxu0
        %v4802 = vadd.f32 0.0, %v4801
        %v4803 = vpop.f32.mrb[0].mxu0
        %4804 = vmatprep.mubr.f32.mxu0 %v4228
        %4805 = vmatmul.mubr.f32.gmra.mrb[0].mxu0 %v4227
        %v4806 = vpop.f32.mrb[0].mxu0
        %v4807 = vadd.f32 0.0, %v4806
        %v4808 = vpop.f32.mrb[0].mxu0
        %4809 = vmatprep.mubr.f32.mxu0 %v4232
        %4810 = vmatmul.mubr.f32.gmra.mrb[0].mxu0 %v4231
        %v4811 = vpop.f32.mrb[0].mxu0
        %v4812 = vadd.f32 0.0, %v4811
        %v4813 = vpop.f32.mrb[0].mxu0
        %4814 = vmatprep.mubr.f32.mxu0 %v4236
        %4815 = vmatmul.mubr.f32.gmra.mrb[0].mxu0 %v4235
        %v4816 = vpop.f32.mrb[0].mxu0
        %v4817 = vadd.f32 0.0, %v4816
        %v4818 = vpop.f32.mrb[0].mxu0
        %4819 = vmatprep.mubr.f32.mxu0 %v4240
        %4820 = vmatmul.mubr.f32.gmra.mrb[0].mxu0 %v4239
        %v4821 = vpop.f32.mrb[0].mxu0
        %v4822 = vadd.f32 0.0, %v4821
        %v4823 = vpop.f32.mrb[0].mxu0
        %4824 = vmatprep.mubr.f32.mxu0 %v4244
        %4825 = vmatmul.mubr.f32.gmra.mrb[0].mxu0 %v4243
        %v4826 = vpop.f32.mrb[0].mxu0
        %v4827 = vadd.f32 0.0, %v4826
        %v4828 = vpop.f32.mrb[0].mxu0
        %4829 = vmatprep.mubr.f32.mxu0 %v4248
        %4830 = vmatmul.mubr.f32.gmra.mrb[0].mxu0 %v4247
        %v4831 = vpop.f32.mrb[0].mxu0
        %v4832 = vadd.f32 0.0, %v4831
        %v4833 = vpop.f32.mrb[0].mxu0
        %4834 = vmatprep.mubr.f32.mxu0 %v4252
        %4835 = vmatmul.mubr.f32.gmra.mrb[0].mxu0 %v4251
        %v4836 = vpop.f32.mrb[0].mxu0
        %v4837 = vadd.f32 0.0, %v4836
        %v4838 = vpop.f32.mrb[0].mxu0
        %4839 = vmatprep.mubr.f32.mxu0 %v4256
        %4840 = vmatmul.mubr.f32.gmra.mrb[0].mxu0 %v4255
        %v4841 = vpop.f32.mrb[0].mxu0
        %v4842 = vadd.f32 0.0, %v4841
        %v4843 = vpop.f32.mrb[0].mxu0
        %4844 = vmatprep.mubr.f32.mxu0 %v4260
        %4845 = vmatmul.mubr.f32.gmra.mrb[0].mxu0 %v4259
        %v4846 = vpop.f32.mrb[0].mxu0
        %v4847 = vadd.f32 0.0, %v4846
        %v4848 = vpop.f32.mrb[0].mxu0
        %4849 = vmatprep.mubr.f32.mxu0 %v4264
        %4850 = vmatmul.mubr.f32.gmra.mrb[0].mxu0 %v4263
        %v4851 = vpop.f32.mrb[0].mxu0
        %v4852 = vadd.f32 0.0, %v4851
        %v4853 = vpop.f32.mrb[0].mxu0
        %4854 = vmatprep.mubr.f32.mxu0 %v4268
        %4855 = vmatmul.mubr.f32.gmra.mrb[0].mxu0 %v4267
        %v4856 = vpop.f32.mrb[0].mxu0
        %v4857 = vadd.f32 0.0, %v4856
        %v4858 = vpop.f32.mrb[0].mxu0
        %4859 = vmatprep.mubr.f32.mxu0 %v4272
        %4860 = vmatmul.mubr.f32.gmra.mrb[0].mxu0 %v4271
        %v4861 = vpop.f32.mrb[0].mxu0
        %v4862 = vadd.f32 0.0, %v4861
        %v4863 = vpop.f32.mrb[0].mxu0
        %4864 = vmatprep.mubr.f32.mxu0 %v4276
        %4865 = vmatmul.mubr.f32.gmra.mrb[0].mxu0 %v4275
        %v4866 = vpop.f32.mrb[0].mxu0
        %v4867 = vadd.f32 0.0, %v4866
        %v4868 = vpop.f32.mrb[0].mxu0
        %4869 = vmatprep.mubr.f32.mxu0 %v4280
        %4870 = vmatmul.mubr.f32.gmra.mrb[0].mxu0 %v4279
        %v4871 = vpop.f32.mrb[0].mxu0
        %v4872 = vadd.f32 0.0, %v4871
        %v4873 = vpop.f32.mrb[0].mxu0
        %4874 = vmatprep.mubr.f32.mxu0 %v4284
        %4875 = vmatmul.mubr.f32.gmra.mrb[0].mxu0 %v4283
        %v4876 = vpop.f32.mrb[0].mxu0
        %v4877 = vadd.f32 0.0, %v4876
        %v4878 = vpop.f32.mrb[0].mxu0
        %4879 = vmatprep.mubr.f32.mxu0 %v4288
        %4880 = vmatmul.mubr.f32.gmra.mrb[0].mxu0 %v4287
        %v4881 = vpop.f32.mrb[0].mxu0
        %v4882 = vadd.f32 0.0, %v4881
        %v4883 = vpop.f32.mrb[0].mxu0
        %4884 = vmatprep.mubr.f32.mxu0 %v4292
        %4885 = vmatmul.mubr.f32.gmra.mrb[0].mxu0 %v4291
        %v4886 = vpop.f32.mrb[0].mxu0
        %v4887 = vadd.f32 0.0, %v4886
        %v4888 = vpop.f32.mrb[0].mxu0
        %4889 = vmatprep.mubr.f32.mxu0 %v4296
        %4890 = vmatmul.mubr.f32.gmra.mrb[0].mxu0 %v4295
        %v4891 = vpop.f32.mrb[0].mxu0
        %v4892 = vadd.f32 0.0, %v4891
        %v4893 = vpop.f32.mrb[0].mxu0
        %4894 = vmatprep.mubr.f32.mxu0 %v4300
        %4895 = vmatmul.mubr.f32.gmra.mrb[0].mxu0 %v4299
        %v4896 = vpop.f32.mrb[0].mxu0
        %v4897 = vadd.f32 0.0, %v4896
        %v4898 = vpop.f32.mrb[0].mxu0
        %4899 = vmatprep.mubr.f32.mxu0 %v4304
        %4900 = vmatmul.mubr.f32.gmra.mrb[0].mxu0 %v4303
        %v4901 = vpop.f32.mrb[0].mxu0
        %v4902 = vadd.f32 0.0, %v4901
        %v4903 = vpop.f32.mrb[0].mxu0
        %4904 = vmatprep.mubr.f32.mxu0 %v4308
        %4905 = vmatmul.mubr.f32.gmra.mrb[0].mxu0 %v4307
        %v4906 = vpop.f32.mrb[0].mxu0
        %v4907 = vadd.f32 0.0, %v4906
        %v4908 = vpop.f32.mrb[0].mxu0
        %4909 = vmatprep.mubr.f32.mxu0 %v4312
        %4910 = vmatmul.mubr.f32.gmra.mrb[0].mxu0 %v4311
        %v4911 = vpop.f32.mrb[0].mxu0
        %v4912 = vadd.f32 0.0, %v4911
        %v4913 = vpop.f32.mrb[0].mxu0
        %4914 = vmatprep.mubr.f32.mxu0 %v4316
        %4915 = vmatmul.mubr.f32.gmra.mrb[0].mxu0 %v4315
        %v4916 = vpop.f32.mrb[0].mxu0
        %v4917 = vadd.f32 0.0, %v4916
        %v4918 = vpop.f32.mrb[0].mxu0
        %4919 = vmatprep.mubr.f32.mxu0 %v4320
        %4920 = vmatmul.mubr.f32.gmra.mrb[0].mxu0 %v4319
        %v4921 = vpop.f32.mrb[0].mxu0
        %v4922 = vadd.f32 0.0, %v4921
        %v4923 = vpop.f32.mrb[0].mxu0
        %4924 = vmatprep.mubr.f32.mxu0 %v4324
        %4925 = vmatmul.mubr.f32.gmra.mrb[0].mxu0 %v4323
        %v4926 = vpop.f32.mrb[0].mxu0
        %v4927 = vadd.f32 0.0, %v4926
        %v4928 = vpop.f32.mrb[0].mxu0
        %4929 = vmatprep.mubr.f32.mxu0 %v4328
        %4930 = vmatmul.mubr.f32.gmra.mrb[0].mxu0 %v4327
        %v4931 = vpop.f32.mrb[0].mxu0
        %v4932 = vadd.f32 0.0, %v4931
        %v4933 = vpop.f32.mrb[0].mxu0
        %4934 = vmatprep.mubr.f32.mxu0 %v4332
        %4935 = vmatmul.mubr.f32.gmra.mrb[0].mxu0 %v4331
        %v4936 = vpop.f32.mrb[0].mxu0
        %v4937 = vadd.f32 0.0, %v4936
        %v4938 = vpop.f32.mrb[0].mxu0
        %4939 = vmatprep.mubr.f32.mxu0 %v4336
        %4940 = vmatmul.mubr.f32.gmra.mrb[0].mxu0 %v4335
        %v4941 = vpop.f32.mrb[0].mxu0
        %v4942 = vadd.f32 0.0, %v4941
        %v4943 = vpop.f32.mrb[0].mxu0
        %4944 = vmatprep.mubr.f32.mxu0 %v4340
        %4945 = vmatmul.mubr.f32.gmra.mrb[0].mxu0 %v4339
        %v4946 = vpop.f32.mrb[0].mxu0
        %v4947 = vadd.f32 0.0, %v4946
        %v4948 = vpop.f32.mrb[0].mxu0
        %4949 = vmatprep.mubr.f32.mxu0 %v4344
        %4950 = vmatmul.mubr.f32.gmra.mrb[0].mxu0 %v4343
        %v4951 = vpop.f32.mrb[0].mxu0
        %v4952 = vadd.f32 0.0, %v4951
        %v4953 = vpop.f32.mrb[0].mxu0
        %4954 = vmatprep.mubr.f32.mxu0 %v4348
        %4955 = vmatmul.mubr.f32.gmra.mrb[0].mxu0 %v4347
        %v4956 = vpop.f32.mrb[0].mxu0
        %v4957 = vadd.f32 0.0, %v4956
        %v4958 = vpop.f32.mrb[0].mxu0
        %4959 = vmatprep.mubr.f32.mxu0 %v4352
        %4960 = vmatmul.mubr.f32.gmra.mrb[0].mxu0 %v4351
        %v4961 = vpop.f32.mrb[0].mxu0
        %v4962 = vadd.f32 0.0, %v4961
        %v4963 = vpop.f32.mrb[0].mxu0
        %4964 = vmatprep.mubr.f32.mxu0 %v4356
        %4965 = vmatmul.mubr.f32.gmra.mrb[0].mxu0 %v4355
        %v4966 = vpop.f32.mrb[0].mxu0
        %v4967 = vadd.f32 0.0, %v4966
        %v4968 = vpop.f32.mrb[0].mxu0
        %4969 = vmatprep.mubr.f32.mxu0 %v4360
        %4970 = vmatmul.mubr.f32.gmra.mrb[0].mxu0 %v4359
        %v4971 = vpop.f32.mrb[0].mxu0
        %v4972 = vadd.f32 0.0, %v4971
        %v4973 = vpop.f32.mrb[0].mxu0
        %4974 = vmatprep.mubr.f32.mxu0 %v4364
        %4975 = vmatmul.mubr.f32.gmra.mrb[0].mxu0 %v4363
        %v4976 = vpop.f32.mrb[0].mxu0
        %v4977 = vadd.f32 0.0, %v4976
        %v4978 = vpop.f32.mrb[0].mxu0
        %4979 = vmatprep.mubr.f32.mxu0 %v4368
        %4980 = vmatmul.mubr.f32.gmra.mrb[0].mxu0 %v4367
        %v4981 = vpop.f32.mrb[0].mxu0
        %v4982 = vadd.f32 0.0, %v4981
        %v4983 = vpop.f32.mrb[0].mxu0
        %4984 = vmatprep.mubr.f32.mxu0 %v4372
        %4985 = vmatmul.mubr.f32.gmra.mrb[0].mxu0 %v4371
        %v4986 = vpop.f32.mrb[0].mxu0
        %v4987 = vadd.f32 0.0, %v4986
        %v4988 = vpop.f32.mrb[0].mxu0
        %4989 = vmatprep.mubr.f32.mxu0 %v4376
        %4990 = vmatmul.mubr.f32.gmra.mrb[0].mxu0 %v4375
        %v4991 = vpop.f32.mrb[0].mxu0
        %v4992 = vadd.f32 0.0, %v4991
        %v4993 = vpop.f32.mrb[0].mxu0
        %4994 = vmatprep.mubr.f32.mxu0 %v4380
        %4995 = vmatmul.mubr.f32.gmra.mrb[0].mxu0 %v4379
        %v4996 = vpop.f32.mrb[0].mxu0
        %v4997 = vadd.f32 0.0, %v4996
        %v4998 = vpop.f32.mrb[0].mxu0
        %4999 = vmatprep.mubr.f32.mxu0 %v4384
        %5000 = vmatmul.mubr.f32.gmra.mrb[0].mxu0 %v4383
        %v5001 = vpop.f32.mrb[0].mxu0
        %v5002 = vadd.f32 0.0, %v5001
        %v5003 = vpop.f32.mrb[0].mxu0
        %5004 = vmatprep.mubr.f32.mxu0 %v4388
        %5005 = vmatmul.mubr.f32.gmra.mrb[0].mxu0 %v4387
        %v5006 = vpop.f32.mrb[0].mxu0
        %v5007 = vadd.f32 0.0, %v5006
        %v5008 = vpop.f32.mrb[0].mxu0
        %5009 = vmatprep.mubr.f32.mxu0 %v4392
        %5010 = vmatmul.mubr.f32.gmra.mrb[0].mxu0 %v4391
        %v5011 = vpop.f32.mrb[0].mxu0
        %v5012 = vadd.f32 0.0, %v5011
        %v5013 = vpop.f32.mrb[0].mxu0
        %5014 = vmatprep.mubr.f32.mxu0 %v4396
        %5015 = vmatmul.mubr.f32.gmra.mrb[0].mxu0 %v4395
        %v5016 = vpop.f32.mrb[0].mxu0
        %v5017 = vadd.f32 0.0, %v5016
        %v5018 = vpop.f32.mrb[0].mxu0
        %5019 = vmatprep.mubr.f32.mxu0 %v4400
        %5020 = vmatmul.mubr.f32.gmra.mrb[0].mxu0 %v4399
        %v5021 = vpop.f32.mrb[0].mxu0
        %v5022 = vadd.f32 0.0, %v5021
        %v5023 = vpop.f32.mrb[0].mxu0
        %5024 = vmatprep.mubr.f32.mxu0 %v4404
        %5025 = vmatmul.mubr.f32.gmra.mrb[0].mxu0 %v4403
        %v5026 = vpop.f32.mrb[0].mxu0
        %v5027 = vadd.f32 0.0, %v5026
        %v5028 = vpop.f32.mrb[0].mxu0
        %5029 = vmatprep.mubr.f32.mxu0 %v4408
        %5030 = vmatmul.mubr.f32.gmra.mrb[0].mxu0 %v4407
        %v5031 = vpop.f32.mrb[0].mxu0
        %v5032 = vadd.f32 0.0, %v5031
        %v5033 = vpop.f32.mrb[0].mxu0
        %5034 = vmatprep.mubr.f32.mxu0 %v4412
        %5035 = vmatmul.mubr.f32.gmra.mrb[0].mxu0 %v4411
        %v5036 = vpop.f32.mrb[0].mxu0
        %v5037 = vadd.f32 0.0, %v5036
        %v5038 = vpop.f32.mrb[0].mxu0
        %5039 = vmatprep.mubr.f32.mxu0 %v4416
        %5040 = vmatmul.mubr.f32.gmra.mrb[0].mxu0 %v4415
        %v5041 = vpop.f32.mrb[0].mxu0
        %v5042 = vadd.f32 0.0, %v5041
        %v5043 = vpop.f32.mrb[0].mxu0
        %5044 = vmatprep.mubr.f32.mxu0 %v4420
        %5045 = vmatmul.mubr.f32.gmra.mrb[0].mxu0 %v4419
        %v5046 = vpop.f32.mrb[0].mxu0
        %v5047 = vadd.f32 0.0, %v5046
        %v5048 = vpop.f32.mrb[0].mxu0
        %5049 = vmatprep.mubr.f32.mxu0 %v4424
        %5050 = vmatmul.mubr.f32.gmra.mrb[0].mxu0 %v4423
        %v5051 = vpop.f32.mrb[0].mxu0
        %v5052 = vadd.f32 0.0, %v5051
        %v5053 = vpop.f32.mrb[0].mxu0
        %5054 = vmatprep.mubr.f32.mxu0 %v4428
        %5055 = vmatmul.mubr.f32.gmra.mrb[0].mxu0 %v4427
        %v5056 = vpop.f32.mrb[0].mxu0
        %v5057 = vadd.f32 0.0, %v5056
        %v5058 = vpop.f32.mrb[0].mxu0
        %5059 = vmatprep.mubr.f32.mxu0 %v4432
        %5060 = vmatmul.mubr.f32.gmra.mrb[0].mxu0 %v4431
        %v5061 = vpop.f32.mrb[0].mxu0
        %v5062 = vadd.f32 0.0, %v5061
        %v5063 = vpop.f32.mrb[0].mxu0
        %5064 = vmatprep.mubr.f32.mxu0 %v4436
        %5065 = vmatmul.mubr.f32.gmra.mrb[0].mxu0 %v4435
        %v5066 = vpop.f32.mrb[0].mxu0
        %v5067 = vadd.f32 0.0, %v5066
        %v5068 = vpop.f32.mrb[0].mxu0
        %5069 = vmatprep.mubr.f32.mxu0 %v4440
        %5070 = vmatmul.mubr.f32.gmra.mrb[0].mxu0 %v4439
        %v5071 = vpop.f32.mrb[0].mxu0
        %v5072 = vadd.f32 0.0, %v5071
        %v5073 = vpop.f32.mrb[0].mxu0
        %5074 = vmatprep.mubr.f32.mxu0 %v4444
        %5075 = vmatmul.mubr.f32.gmra.mrb[0].mxu0 %v4443
        %v5076 = vpop.f32.mrb[0].mxu0
        %v5077 = vadd.f32 0.0, %v5076
        %v5078 = vpop.f32.mrb[0].mxu0
        %5079 = vmatprep.mubr.f32.mxu0 %v4448
        %5080 = vmatmul.mubr.f32.gmra.mrb[0].mxu0 %v4447
        %v5081 = vpop.f32.mrb[0].mxu0
        %v5082 = vadd.f32 0.0, %v5081
        %v5083 = vpop.f32.mrb[0].mxu0
        %5084 = vmatprep.mubr.f32.mxu0 %v4452
        %5085 = vmatmul.mubr.f32.gmra.mrb[0].mxu0 %v4451
        %v5086 = vpop.f32.mrb[0].mxu0
        %v5087 = vadd.f32 0.0, %v5086
        %v5088 = vpop.f32.mrb[0].mxu0
        %5089 = vmatprep.mubr.f32.mxu0 %v4456
        %5090 = vmatmul.mubr.f32.gmra.mrb[0].mxu0 %v4455
        %v5091 = vpop.f32.mrb[0].mxu0
        %v5092 = vadd.f32 0.0, %v5091
        %v5093 = vpop.f32.mrb[0].mxu0
        %5094 = vmatprep.mubr.f32.mxu0 %v4460
        %5095 = vmatmul.mubr.f32.gmra.mrb[0].mxu0 %v4459
        %v5096 = vpop.f32.mrb[0].mxu0
        %v5097 = vadd.f32 0.0, %v5096
        %v5098 = vpop.f32.mrb[0].mxu0
        %5099 = vmatprep.mubr.f32.mxu0 %v4464
        %5100 = vmatmul.mubr.f32.gmra.mrb[0].mxu0 %v4463
        %v5101 = vpop.f32.mrb[0].mxu0
        %v5102 = vadd.f32 0.0, %v5101
        %v5103 = vpop.f32.mrb[0].mxu0
        %5104 = vmatprep.mubr.f32.mxu0 %v4468
        %5105 = vmatmul.mubr.f32.gmra.mrb[0].mxu0 %v4467
        %v5106 = vpop.f32.mrb[0].mxu0
        %v5107 = vadd.f32 0.0, %v5106
        %v5108 = vpop.f32.mrb[0].mxu0
        %5109 = vmatprep.mubr.f32.mxu0 %v4472
        %5110 = vmatmul.mubr.f32.gmra.mrb[0].mxu0 %v4471
        %v5111 = vpop.f32.mrb[0].mxu0
        %v5112 = vadd.f32 0.0, %v5111
        %v5113 = vpop.f32.mrb[0].mxu0
        %5114 = vmatprep.mubr.f32.mxu0 %v4476
        %5115 = vmatmul.mubr.f32.gmra.mrb[0].mxu0 %v4475
        %v5116 = vpop.f32.mrb[0].mxu0
        %v5117 = vadd.f32 0.0, %v5116
        %v5118 = vpop.f32.mrb[0].mxu0
        %5119 = vdwg.mxu0
        %5120 = vmatprep.subr.mxu0 0.0
        %5121 = vmatpush1.msra.mxu0 %v1438
        %5122 = vmatprep.subr.mxu0 0.0
        %5123 = vmatpush1.msra.mxu0 %v1443
        %5124 = vmatprep.subr.mxu0 0.0
        %5125 = vmatpush1.msra.mxu0 %v1448
        %5126 = vmatprep.subr.mxu0 0.0
        %5127 = vmatpush1.msra.mxu0 %v1453
        %5128 = vmatprep.subr.mxu0 0.0
        %5129 = vmatpush1.msra.mxu0 %v1458
        %5130 = vmatprep.subr.mxu0 0.0
        %5131 = vmatpush1.msra.mxu0 %v1463
        %5132 = vmatprep.subr.mxu0 0.0
        %5133 = vmatpush1.msra.mxu0 %v1468
        %5134 = vmatprep.subr.mxu0 0.0
        %5135 = vmatpush1.msra.mxu0 %v1473
        %5136 = vmatprep.subr.mxu0 0.0
        %5137 = vmatpush1.msra.mxu0 %v1478
        %5138 = vmatprep.subr.mxu0 0.0
        %5139 = vmatpush1.msra.mxu0 %v1483
        %5140 = vmatprep.subr.mxu0 0.0
        %5141 = vmatpush1.msra.mxu0 %v1488
        %5142 = vmatprep.subr.mxu0 0.0
        %5143 = vmatpush1.msra.mxu0 %v1493
        %5144 = vmatprep.subr.mxu0 0.0
        %5145 = vmatpush1.msra.mxu0 %v1498
        %5146 = vmatprep.subr.mxu0 0.0
        %5147 = vmatpush1.msra.mxu0 %v1503
        %5148 = vmatprep.subr.mxu0 0.0
        %5149 = vmatpush1.msra.mxu0 %v1508
        %5150 = vmatprep.subr.mxu0 0.0
        %5151 = vmatpush1.msra.mxu0 %v1513
        %5152 = vmatprep.subr.mxu0 0.0
        %5153 = vmatpush1.msra.mxu0 %v1518
        %5154 = vmatprep.subr.mxu0 0.0
        %5155 = vmatpush1.msra.mxu0 %v1523
        %5156 = vmatprep.subr.mxu0 0.0
        %5157 = vmatpush1.msra.mxu0 %v1528
        %5158 = vmatprep.subr.mxu0 0.0
        %5159 = vmatpush1.msra.mxu0 %v1533
        %5160 = vmatprep.subr.mxu0 0.0
        %5161 = vmatpush1.msra.mxu0 %v1538
        %5162 = vmatprep.subr.mxu0 0.0
        %5163 = vmatpush1.msra.mxu0 %v1543
        %5164 = vmatprep.subr.mxu0 0.0
        %5165 = vmatpush1.msra.mxu0 %v1548
        %5166 = vmatprep.subr.mxu0 0.0
        %5167 = vmatpush1.msra.mxu0 %v1553
        %5168 = vmatprep.subr.mxu0 0.0
        %5169 = vmatpush1.msra.mxu0 %v1558
        %5170 = vmatprep.subr.mxu0 0.0
        %5171 = vmatpush1.msra.mxu0 %v1563
        %5172 = vmatprep.subr.mxu0 0.0
        %5173 = vmatpush1.msra.mxu0 %v1568
        %5174 = vmatprep.subr.mxu0 0.0
        %5175 = vmatpush1.msra.mxu0 %v1573
        %5176 = vmatprep.subr.mxu0 0.0
        %5177 = vmatpush1.msra.mxu0 %v1578
        %5178 = vmatprep.subr.mxu0 0.0
        %5179 = vmatpush1.msra.mxu0 %v1583
        %5180 = vmatprep.subr.mxu0 0.0
        %5181 = vmatpush1.msra.mxu0 %v1588
        %5182 = vmatprep.subr.mxu0 0.0
        %5183 = vmatpush1.msra.mxu0 %v1593
        %5184 = vmatprep.mubr.f32.mxu0 %v4226
        %5185 = vmatmul.mubr.f32.gmra.mrb[0].mxu0 %v4225
        %v5186 = vpop.f32.mrb[0].mxu0
        %v5187 = vadd.f32 %v4802, %v5186
        %v5188 = vpop.f32.mrb[0].mxu0
        %5189 = vmatprep.mubr.f32.mxu0 %v4230
        %5190 = vmatmul.mubr.f32.gmra.mrb[0].mxu0 %v4229
        %v5191 = vpop.f32.mrb[0].mxu0
        %v5192 = vadd.f32 %v4807, %v5191
        %v5193 = vpop.f32.mrb[0].mxu0
        %5194 = vmatprep.mubr.f32.mxu0 %v4234
        %5195 = vmatmul.mubr.f32.gmra.mrb[0].mxu0 %v4233
        %v5196 = vpop.f32.mrb[0].mxu0
        %v5197 = vadd.f32 %v4812, %v5196
        %v5198 = vpop.f32.mrb[0].mxu0
        %5199 = vmatprep.mubr.f32.mxu0 %v4238
        %5200 = vmatmul.mubr.f32.gmra.mrb[0].mxu0 %v4237
        %v5201 = vpop.f32.mrb[0].mxu0
        %v5202 = vadd.f32 %v4817, %v5201
        %v5203 = vpop.f32.mrb[0].mxu0
        %5204 = vmatprep.mubr.f32.mxu0 %v4242
        %5205 = vmatmul.mubr.f32.gmra.mrb[0].mxu0 %v4241
        %v5206 = vpop.f32.mrb[0].mxu0
        %v5207 = vadd.f32 %v4822, %v5206
        %v5208 = vpop.f32.mrb[0].mxu0
        %5209 = vmatprep.mubr.f32.mxu0 %v4246
        %5210 = vmatmul.mubr.f32.gmra.mrb[0].mxu0 %v4245
        %v5211 = vpop.f32.mrb[0].mxu0
        %v5212 = vadd.f32 %v4827, %v5211
        %v5213 = vpop.f32.mrb[0].mxu0
        %5214 = vmatprep.mubr.f32.mxu0 %v4250
        %5215 = vmatmul.mubr.f32.gmra.mrb[0].mxu0 %v4249
        %v5216 = vpop.f32.mrb[0].mxu0
        %v5217 = vadd.f32 %v4832, %v5216
        %v5218 = vpop.f32.mrb[0].mxu0
        %5219 = vmatprep.mubr.f32.mxu0 %v4254
        %5220 = vmatmul.mubr.f32.gmra.mrb[0].mxu0 %v4253
        %v5221 = vpop.f32.mrb[0].mxu0
        %v5222 = vadd.f32 %v4837, %v5221
        %v5223 = vpop.f32.mrb[0].mxu0
        %5224 = vmatprep.mubr.f32.mxu0 %v4258
        %5225 = vmatmul.mubr.f32.gmra.mrb[0].mxu0 %v4257
        %v5226 = vpop.f32.mrb[0].mxu0
        %v5227 = vadd.f32 %v4842, %v5226
        %v5228 = vpop.f32.mrb[0].mxu0
        %5229 = vmatprep.mubr.f32.mxu0 %v4262
        %5230 = vmatmul.mubr.f32.gmra.mrb[0].mxu0 %v4261
        %v5231 = vpop.f32.mrb[0].mxu0
        %v5232 = vadd.f32 %v4847, %v5231
        %v5233 = vpop.f32.mrb[0].mxu0
        %5234 = vmatprep.mubr.f32.mxu0 %v4266
        %5235 = vmatmul.mubr.f32.gmra.mrb[0].mxu0 %v4265
        %v5236 = vpop.f32.mrb[0].mxu0
        %v5237 = vadd.f32 %v4852, %v5236
        %v5238 = vpop.f32.mrb[0].mxu0
        %5239 = vmatprep.mubr.f32.mxu0 %v4270
        %5240 = vmatmul.mubr.f32.gmra.mrb[0].mxu0 %v4269
        %v5241 = vpop.f32.mrb[0].mxu0
        %v5242 = vadd.f32 %v4857, %v5241
        %v5243 = vpop.f32.mrb[0].mxu0
        %5244 = vmatprep.mubr.f32.mxu0 %v4274
        %5245 = vmatmul.mubr.f32.gmra.mrb[0].mxu0 %v4273
        %v5246 = vpop.f32.mrb[0].mxu0
        %v5247 = vadd.f32 %v4862, %v5246
        %v5248 = vpop.f32.mrb[0].mxu0
        %5249 = vmatprep.mubr.f32.mxu0 %v4278
        %5250 = vmatmul.mubr.f32.gmra.mrb[0].mxu0 %v4277
        %v5251 = vpop.f32.mrb[0].mxu0
        %v5252 = vadd.f32 %v4867, %v5251
        %v5253 = vpop.f32.mrb[0].mxu0
        %5254 = vmatprep.mubr.f32.mxu0 %v4282
        %5255 = vmatmul.mubr.f32.gmra.mrb[0].mxu0 %v4281
        %v5256 = vpop.f32.mrb[0].mxu0
        %v5257 = vadd.f32 %v4872, %v5256
        %v5258 = vpop.f32.mrb[0].mxu0
        %5259 = vmatprep.mubr.f32.mxu0 %v4286
        %5260 = vmatmul.mubr.f32.gmra.mrb[0].mxu0 %v4285
        %v5261 = vpop.f32.mrb[0].mxu0
        %v5262 = vadd.f32 %v4877, %v5261
        %v5263 = vpop.f32.mrb[0].mxu0
        %5264 = vmatprep.mubr.f32.mxu0 %v4290
        %5265 = vmatmul.mubr.f32.gmra.mrb[0].mxu0 %v4289
        %v5266 = vpop.f32.mrb[0].mxu0
        %v5267 = vadd.f32 %v4882, %v5266
        %v5268 = vpop.f32.mrb[0].mxu0
        %5269 = vmatprep.mubr.f32.mxu0 %v4294
        %5270 = vmatmul.mubr.f32.gmra.mrb[0].mxu0 %v4293
        %v5271 = vpop.f32.mrb[0].mxu0
        %v5272 = vadd.f32 %v4887, %v5271
        %v5273 = vpop.f32.mrb[0].mxu0
        %5274 = vmatprep.mubr.f32.mxu0 %v4298
        %5275 = vmatmul.mubr.f32.gmra.mrb[0].mxu0 %v4297
        %v5276 = vpop.f32.mrb[0].mxu0
        %v5277 = vadd.f32 %v4892, %v5276
        %v5278 = vpop.f32.mrb[0].mxu0
        %5279 = vmatprep.mubr.f32.mxu0 %v4302
        %5280 = vmatmul.mubr.f32.gmra.mrb[0].mxu0 %v4301
        %v5281 = vpop.f32.mrb[0].mxu0
        %v5282 = vadd.f32 %v4897, %v5281
        %v5283 = vpop.f32.mrb[0].mxu0
        %5284 = vmatprep.mubr.f32.mxu0 %v4306
        %5285 = vmatmul.mubr.f32.gmra.mrb[0].mxu0 %v4305
        %v5286 = vpop.f32.mrb[0].mxu0
        %v5287 = vadd.f32 %v4902, %v5286
        %v5288 = vpop.f32.mrb[0].mxu0
        %5289 = vmatprep.mubr.f32.mxu0 %v4310
        %5290 = vmatmul.mubr.f32.gmra.mrb[0].mxu0 %v4309
        %v5291 = vpop.f32.mrb[0].mxu0
        %v5292 = vadd.f32 %v4907, %v5291
        %v5293 = vpop.f32.mrb[0].mxu0
        %5294 = vmatprep.mubr.f32.mxu0 %v4314
        %5295 = vmatmul.mubr.f32.gmra.mrb[0].mxu0 %v4313
        %v5296 = vpop.f32.mrb[0].mxu0
        %v5297 = vadd.f32 %v4912, %v5296
        %v5298 = vpop.f32.mrb[0].mxu0
        %5299 = vmatprep.mubr.f32.mxu0 %v4318
        %5300 = vmatmul.mubr.f32.gmra.mrb[0].mxu0 %v4317
        %v5301 = vpop.f32.mrb[0].mxu0
        %v5302 = vadd.f32 %v4917, %v5301
        %v5303 = vpop.f32.mrb[0].mxu0
        %5304 = vmatprep.mubr.f32.mxu0 %v4322
        %5305 = vmatmul.mubr.f32.gmra.mrb[0].mxu0 %v4321
        %v5306 = vpop.f32.mrb[0].mxu0
        %v5307 = vadd.f32 %v4922, %v5306
        %v5308 = vpop.f32.mrb[0].mxu0
        %5309 = vmatprep.mubr.f32.mxu0 %v4326
        %5310 = vmatmul.mubr.f32.gmra.mrb[0].mxu0 %v4325
        %v5311 = vpop.f32.mrb[0].mxu0
        %v5312 = vadd.f32 %v4927, %v5311
        %v5313 = vpop.f32.mrb[0].mxu0
        %5314 = vmatprep.mubr.f32.mxu0 %v4330
        %5315 = vmatmul.mubr.f32.gmra.mrb[0].mxu0 %v4329
        %v5316 = vpop.f32.mrb[0].mxu0
        %v5317 = vadd.f32 %v4932, %v5316
        %v5318 = vpop.f32.mrb[0].mxu0
        %5319 = vmatprep.mubr.f32.mxu0 %v4334
        %5320 = vmatmul.mubr.f32.gmra.mrb[0].mxu0 %v4333
        %v5321 = vpop.f32.mrb[0].mxu0
        %v5322 = vadd.f32 %v4937, %v5321
        %v5323 = vpop.f32.mrb[0].mxu0
        %5324 = vmatprep.mubr.f32.mxu0 %v4338
        %5325 = vmatmul.mubr.f32.gmra.mrb[0].mxu0 %v4337
        %v5326 = vpop.f32.mrb[0].mxu0
        %v5327 = vadd.f32 %v4942, %v5326
        %v5328 = vpop.f32.mrb[0].mxu0
        %5329 = vmatprep.mubr.f32.mxu0 %v4342
        %5330 = vmatmul.mubr.f32.gmra.mrb[0].mxu0 %v4341
        %v5331 = vpop.f32.mrb[0].mxu0
        %v5332 = vadd.f32 %v4947, %v5331
        %v5333 = vpop.f32.mrb[0].mxu0
        %5334 = vmatprep.mubr.f32.mxu0 %v4346
        %5335 = vmatmul.mubr.f32.gmra.mrb[0].mxu0 %v4345
        %v5336 = vpop.f32.mrb[0].mxu0
        %v5337 = vadd.f32 %v4952, %v5336
        %v5338 = vpop.f32.mrb[0].mxu0
        %5339 = vmatprep.mubr.f32.mxu0 %v4350
        %5340 = vmatmul.mubr.f32.gmra.mrb[0].mxu0 %v4349
        %v5341 = vpop.f32.mrb[0].mxu0
        %v5342 = vadd.f32 %v4957, %v5341
        %v5343 = vpop.f32.mrb[0].mxu0
        %5344 = vmatprep.mubr.f32.mxu0 %v4354
        %5345 = vmatmul.mubr.f32.gmra.mrb[0].mxu0 %v4353
        %v5346 = vpop.f32.mrb[0].mxu0
        %v5347 = vadd.f32 %v4962, %v5346
        %v5348 = vpop.f32.mrb[0].mxu0
        %5349 = vmatprep.mubr.f32.mxu0 %v4358
        %5350 = vmatmul.mubr.f32.gmra.mrb[0].mxu0 %v4357
        %v5351 = vpop.f32.mrb[0].mxu0
        %v5352 = vadd.f32 %v4967, %v5351
        %v5353 = vpop.f32.mrb[0].mxu0
        %5354 = vmatprep.mubr.f32.mxu0 %v4362
        %5355 = vmatmul.mubr.f32.gmra.mrb[0].mxu0 %v4361
        %v5356 = vpop.f32.mrb[0].mxu0
        %v5357 = vadd.f32 %v4972, %v5356
        %v5358 = vpop.f32.mrb[0].mxu0
        %5359 = vmatprep.mubr.f32.mxu0 %v4366
        %5360 = vmatmul.mubr.f32.gmra.mrb[0].mxu0 %v4365
        %v5361 = vpop.f32.mrb[0].mxu0
        %v5362 = vadd.f32 %v4977, %v5361
        %v5363 = vpop.f32.mrb[0].mxu0
        %5364 = vmatprep.mubr.f32.mxu0 %v4370
        %5365 = vmatmul.mubr.f32.gmra.mrb[0].mxu0 %v4369
        %v5366 = vpop.f32.mrb[0].mxu0
        %v5367 = vadd.f32 %v4982, %v5366
        %v5368 = vpop.f32.mrb[0].mxu0
        %5369 = vmatprep.mubr.f32.mxu0 %v4374
        %5370 = vmatmul.mubr.f32.gmra.mrb[0].mxu0 %v4373
        %v5371 = vpop.f32.mrb[0].mxu0
        %v5372 = vadd.f32 %v4987, %v5371
        %v5373 = vpop.f32.mrb[0].mxu0
        %5374 = vmatprep.mubr.f32.mxu0 %v4378
        %5375 = vmatmul.mubr.f32.gmra.mrb[0].mxu0 %v4377
        %v5376 = vpop.f32.mrb[0].mxu0
        %v5377 = vadd.f32 %v4992, %v5376
        %v5378 = vpop.f32.mrb[0].mxu0
        %5379 = vmatprep.mubr.f32.mxu0 %v4382
        %5380 = vmatmul.mubr.f32.gmra.mrb[0].mxu0 %v4381
        %v5381 = vpop.f32.mrb[0].mxu0
        %v5382 = vadd.f32 %v4997, %v5381
        %v5383 = vpop.f32.mrb[0].mxu0
        %5384 = vmatprep.mubr.f32.mxu0 %v4386
        %5385 = vmatmul.mubr.f32.gmra.mrb[0].mxu0 %v4385
        %v5386 = vpop.f32.mrb[0].mxu0
        %v5387 = vadd.f32 %v5002, %v5386
        %v5388 = vpop.f32.mrb[0].mxu0
        %5389 = vmatprep.mubr.f32.mxu0 %v4390
        %5390 = vmatmul.mubr.f32.gmra.mrb[0].mxu0 %v4389
        %v5391 = vpop.f32.mrb[0].mxu0
        %v5392 = vadd.f32 %v5007, %v5391
        %v5393 = vpop.f32.mrb[0].mxu0
        %5394 = vmatprep.mubr.f32.mxu0 %v4394
        %5395 = vmatmul.mubr.f32.gmra.mrb[0].mxu0 %v4393
        %v5396 = vpop.f32.mrb[0].mxu0
        %v5397 = vadd.f32 %v5012, %v5396
        %v5398 = vpop.f32.mrb[0].mxu0
        %5399 = vmatprep.mubr.f32.mxu0 %v4398
        %5400 = vmatmul.mubr.f32.gmra.mrb[0].mxu0 %v4397
        %v5401 = vpop.f32.mrb[0].mxu0
        %v5402 = vadd.f32 %v5017, %v5401
        %v5403 = vpop.f32.mrb[0].mxu0
        %5404 = vmatprep.mubr.f32.mxu0 %v4402
        %5405 = vmatmul.mubr.f32.gmra.mrb[0].mxu0 %v4401
        %v5406 = vpop.f32.mrb[0].mxu0
        %v5407 = vadd.f32 %v5022, %v5406
        %v5408 = vpop.f32.mrb[0].mxu0
        %5409 = vmatprep.mubr.f32.mxu0 %v4406
        %5410 = vmatmul.mubr.f32.gmra.mrb[0].mxu0 %v4405
        %v5411 = vpop.f32.mrb[0].mxu0
        %v5412 = vadd.f32 %v5027, %v5411
        %v5413 = vpop.f32.mrb[0].mxu0
        %5414 = vmatprep.mubr.f32.mxu0 %v4410
        %5415 = vmatmul.mubr.f32.gmra.mrb[0].mxu0 %v4409
        %v5416 = vpop.f32.mrb[0].mxu0
        %v5417 = vadd.f32 %v5032, %v5416
        %v5418 = vpop.f32.mrb[0].mxu0
        %5419 = vmatprep.mubr.f32.mxu0 %v4414
        %5420 = vmatmul.mubr.f32.gmra.mrb[0].mxu0 %v4413
        %v5421 = vpop.f32.mrb[0].mxu0
        %v5422 = vadd.f32 %v5037, %v5421
        %v5423 = vpop.f32.mrb[0].mxu0
        %5424 = vmatprep.mubr.f32.mxu0 %v4418
        %5425 = vmatmul.mubr.f32.gmra.mrb[0].mxu0 %v4417
        %v5426 = vpop.f32.mrb[0].mxu0
        %v5427 = vadd.f32 %v5042, %v5426
        %v5428 = vpop.f32.mrb[0].mxu0
        %5429 = vmatprep.mubr.f32.mxu0 %v4422
        %5430 = vmatmul.mubr.f32.gmra.mrb[0].mxu0 %v4421
        %v5431 = vpop.f32.mrb[0].mxu0
        %v5432 = vadd.f32 %v5047, %v5431
        %v5433 = vpop.f32.mrb[0].mxu0
        %5434 = vmatprep.mubr.f32.mxu0 %v4426
        %5435 = vmatmul.mubr.f32.gmra.mrb[0].mxu0 %v4425
        %v5436 = vpop.f32.mrb[0].mxu0
        %v5437 = vadd.f32 %v5052, %v5436
        %v5438 = vpop.f32.mrb[0].mxu0
        %5439 = vmatprep.mubr.f32.mxu0 %v4430
        %5440 = vmatmul.mubr.f32.gmra.mrb[0].mxu0 %v4429
        %v5441 = vpop.f32.mrb[0].mxu0
        %v5442 = vadd.f32 %v5057, %v5441
        %v5443 = vpop.f32.mrb[0].mxu0
        %5444 = vmatprep.mubr.f32.mxu0 %v4434
        %5445 = vmatmul.mubr.f32.gmra.mrb[0].mxu0 %v4433
        %v5446 = vpop.f32.mrb[0].mxu0
        %v5447 = vadd.f32 %v5062, %v5446
        %v5448 = vpop.f32.mrb[0].mxu0
        %5449 = vmatprep.mubr.f32.mxu0 %v4438
        %5450 = vmatmul.mubr.f32.gmra.mrb[0].mxu0 %v4437
        %v5451 = vpop.f32.mrb[0].mxu0
        %v5452 = vadd.f32 %v5067, %v5451
        %v5453 = vpop.f32.mrb[0].mxu0
        %5454 = vmatprep.mubr.f32.mxu0 %v4442
        %5455 = vmatmul.mubr.f32.gmra.mrb[0].mxu0 %v4441
        %v5456 = vpop.f32.mrb[0].mxu0
        %v5457 = vadd.f32 %v5072, %v5456
        %v5458 = vpop.f32.mrb[0].mxu0
        %5459 = vmatprep.mubr.f32.mxu0 %v4446
        %5460 = vmatmul.mubr.f32.gmra.mrb[0].mxu0 %v4445
        %v5461 = vpop.f32.mrb[0].mxu0
        %v5462 = vadd.f32 %v5077, %v5461
        %v5463 = vpop.f32.mrb[0].mxu0
        %5464 = vmatprep.mubr.f32.mxu0 %v4450
        %5465 = vmatmul.mubr.f32.gmra.mrb[0].mxu0 %v4449
        %v5466 = vpop.f32.mrb[0].mxu0
        %v5467 = vadd.f32 %v5082, %v5466
        %v5468 = vpop.f32.mrb[0].mxu0
        %5469 = vmatprep.mubr.f32.mxu0 %v4454
        %5470 = vmatmul.mubr.f32.gmra.mrb[0].mxu0 %v4453
        %v5471 = vpop.f32.mrb[0].mxu0
        %v5472 = vadd.f32 %v5087, %v5471
        %v5473 = vpop.f32.mrb[0].mxu0
        %5474 = vmatprep.mubr.f32.mxu0 %v4458
        %5475 = vmatmul.mubr.f32.gmra.mrb[0].mxu0 %v4457
        %v5476 = vpop.f32.mrb[0].mxu0
        %v5477 = vadd.f32 %v5092, %v5476
        %v5478 = vpop.f32.mrb[0].mxu0
        %5479 = vmatprep.mubr.f32.mxu0 %v4462
        %5480 = vmatmul.mubr.f32.gmra.mrb[0].mxu0 %v4461
        %v5481 = vpop.f32.mrb[0].mxu0
        %v5482 = vadd.f32 %v5097, %v5481
        %v5483 = vpop.f32.mrb[0].mxu0
        %5484 = vmatprep.mubr.f32.mxu0 %v4466
        %5485 = vmatmul.mubr.f32.gmra.mrb[0].mxu0 %v4465
        %v5486 = vpop.f32.mrb[0].mxu0
        %v5487 = vadd.f32 %v5102, %v5486
        %v5488 = vpop.f32.mrb[0].mxu0
        %5489 = vmatprep.mubr.f32.mxu0 %v4470
        %5490 = vmatmul.mubr.f32.gmra.mrb[0].mxu0 %v4469
        %v5491 = vpop.f32.mrb[0].mxu0
        %v5492 = vadd.f32 %v5107, %v5491
        %v5493 = vpop.f32.mrb[0].mxu0
        %5494 = vmatprep.mubr.f32.mxu0 %v4474
        %5495 = vmatmul.mubr.f32.gmra.mrb[0].mxu0 %v4473
        %v5496 = vpop.f32.mrb[0].mxu0
        %v5497 = vadd.f32 %v5112, %v5496
        %v5498 = vpop.f32.mrb[0].mxu0
        %5499 = vmatprep.mubr.f32.mxu0 %v4478
        %5500 = vmatmul.mubr.f32.gmra.mrb[0].mxu0 %v4477
        %v5501 = vpop.f32.mrb[0].mxu0
        %v5502 = vadd.f32 %v5117, %v5501
        %v5503 = vpop.f32.mrb[0].mxu0
        %5504 = vdwg.mxu0
        %5505 = vxpose.xlu0.b32.start [1/16] %v5187, 128
        %5506 = vxpose.xlu0.b32.cont [2/16] %v5192, 128
        %5507 = vxpose.xlu0.b32.cont [3/16] %v5197, 128
        %5508 = vxpose.xlu0.b32.cont [4/16] %v5202, 128
        %5509 = vxpose.xlu0.b32.cont [5/16] %v5207, 128
        %5510 = vxpose.xlu0.b32.cont [6/16] %v5212, 128
        %5511 = vxpose.xlu0.b32.cont [7/16] %v5217, 128
        %5512 = vxpose.xlu0.b32.cont [8/16] %v5222, 128
        %5513 = vxpose.xlu0.b32.cont [9/16] %v5227, 128
        %5514 = vxpose.xlu0.b32.cont [10/16] %v5232, 128
        %5515 = vxpose.xlu0.b32.cont [11/16] %v5237, 128
        %5516 = vxpose.xlu0.b32.cont [12/16] %v5242, 128
        %5517 = vxpose.xlu0.b32.cont [13/16] %v5247, 128
        %5518 = vxpose.xlu0.b32.cont [14/16] %v5252, 128
        %5519 = vxpose.xlu0.b32.cont [15/16] %v5257, 128
        %5520 = vxpose.xlu0.b32.end [16/16] %v5262, 128
        %v5521 = vpop.trf.xlu0
        %v5522 = vpop.trf.xlu0
        %v5523 = vpop.trf.xlu0
        %v5524 = vpop.trf.xlu0
        %v5525 = vpop.trf.xlu0
        %v5526 = vpop.trf.xlu0
        %v5527 = vpop.trf.xlu0
        %v5528 = vpop.trf.xlu0
        %v5529 = vpop.trf.xlu0
        %v5530 = vpop.trf.xlu0
        %v5531 = vpop.trf.xlu0
        %v5532 = vpop.trf.xlu0
        %v5533 = vpop.trf.xlu0
        %v5534 = vpop.trf.xlu0
        %v5535 = vpop.trf.xlu0
        %v5536 = vpop.trf.xlu0
        %5537 = vxpose.xlu0.b32.start [1/16] %v5267, 128
        %5538 = vxpose.xlu0.b32.cont [2/16] %v5272, 128
        %5539 = vxpose.xlu0.b32.cont [3/16] %v5277, 128
        %5540 = vxpose.xlu0.b32.cont [4/16] %v5282, 128
        %5541 = vxpose.xlu0.b32.cont [5/16] %v5287, 128
        %5542 = vxpose.xlu0.b32.cont [6/16] %v5292, 128
        %5543 = vxpose.xlu0.b32.cont [7/16] %v5297, 128
        %5544 = vxpose.xlu0.b32.cont [8/16] %v5302, 128
        %5545 = vxpose.xlu0.b32.cont [9/16] %v5307, 128
        %5546 = vxpose.xlu0.b32.cont [10/16] %v5312, 128
        %5547 = vxpose.xlu0.b32.cont [11/16] %v5317, 128
        %5548 = vxpose.xlu0.b32.cont [12/16] %v5322, 128
        %5549 = vxpose.xlu0.b32.cont [13/16] %v5327, 128
        %5550 = vxpose.xlu0.b32.cont [14/16] %v5332, 128
        %5551 = vxpose.xlu0.b32.cont [15/16] %v5337, 128
        %5552 = vxpose.xlu0.b32.end [16/16] %v5342, 128
        %v5553 = vpop.trf.xlu0
        %v5554 = vpop.trf.xlu0
        %v5555 = vpop.trf.xlu0
        %v5556 = vpop.trf.xlu0
        %v5557 = vpop.trf.xlu0
        %v5558 = vpop.trf.xlu0
        %v5559 = vpop.trf.xlu0
        %v5560 = vpop.trf.xlu0
        %v5561 = vpop.trf.xlu0
        %v5562 = vpop.trf.xlu0
        %v5563 = vpop.trf.xlu0
        %v5564 = vpop.trf.xlu0
        %v5565 = vpop.trf.xlu0
        %v5566 = vpop.trf.xlu0
        %v5567 = vpop.trf.xlu0
        %v5568 = vpop.trf.xlu0
        %5569 = vxpose.xlu0.b32.start [1/16] %v5347, 128
        %5570 = vxpose.xlu0.b32.cont [2/16] %v5352, 128
        %5571 = vxpose.xlu0.b32.cont [3/16] %v5357, 128
        %5572 = vxpose.xlu0.b32.cont [4/16] %v5362, 128
        %5573 = vxpose.xlu0.b32.cont [5/16] %v5367, 128
        %5574 = vxpose.xlu0.b32.cont [6/16] %v5372, 128
        %5575 = vxpose.xlu0.b32.cont [7/16] %v5377, 128
        %5576 = vxpose.xlu0.b32.cont [8/16] %v5382, 128
        %5577 = vxpose.xlu0.b32.cont [9/16] %v5387, 128
        %5578 = vxpose.xlu0.b32.cont [10/16] %v5392, 128
        %5579 = vxpose.xlu0.b32.cont [11/16] %v5397, 128
        %5580 = vxpose.xlu0.b32.cont [12/16] %v5402, 128
        %5581 = vxpose.xlu0.b32.cont [13/16] %v5407, 128
        %5582 = vxpose.xlu0.b32.cont [14/16] %v5412, 128
        %5583 = vxpose.xlu0.b32.cont [15/16] %v5417, 128
        %5584 = vxpose.xlu0.b32.end [16/16] %v5422, 128
        %v5585 = vpop.trf.xlu0
        %v5586 = vpop.trf.xlu0
        %v5587 = vpop.trf.xlu0
        %v5588 = vpop.trf.xlu0
        %v5589 = vpop.trf.xlu0
        %v5590 = vpop.trf.xlu0
        %v5591 = vpop.trf.xlu0
        %v5592 = vpop.trf.xlu0
        %v5593 = vpop.trf.xlu0
        %v5594 = vpop.trf.xlu0
        %v5595 = vpop.trf.xlu0
        %v5596 = vpop.trf.xlu0
        %v5597 = vpop.trf.xlu0
        %v5598 = vpop.trf.xlu0
        %v5599 = vpop.trf.xlu0
        %v5600 = vpop.trf.xlu0
        %5601 = vxpose.xlu0.b32.start [1/16] %v5427, 128
        %5602 = vxpose.xlu0.b32.cont [2/16] %v5432, 128
        %5603 = vxpose.xlu0.b32.cont [3/16] %v5437, 128
        %5604 = vxpose.xlu0.b32.cont [4/16] %v5442, 128
        %5605 = vxpose.xlu0.b32.cont [5/16] %v5447, 128
        %5606 = vxpose.xlu0.b32.cont [6/16] %v5452, 128
        %5607 = vxpose.xlu0.b32.cont [7/16] %v5457, 128
        %5608 = vxpose.xlu0.b32.cont [8/16] %v5462, 128
        %5609 = vxpose.xlu0.b32.cont [9/16] %v5467, 128
        %5610 = vxpose.xlu0.b32.cont [10/16] %v5472, 128
        %5611 = vxpose.xlu0.b32.cont [11/16] %v5477, 128
        %5612 = vxpose.xlu0.b32.cont [12/16] %v5482, 128
        %5613 = vxpose.xlu0.b32.cont [13/16] %v5487, 128
        %5614 = vxpose.xlu0.b32.cont [14/16] %v5492, 128
        %5615 = vxpose.xlu0.b32.cont [15/16] %v5497, 128
        %5616 = vxpose.xlu0.b32.end [16/16] %v5502, 128
        %v5617 = vpop.trf.xlu0
        %v5618 = vpop.trf.xlu0
        %v5619 = vpop.trf.xlu0
        %v5620 = vpop.trf.xlu0
        %v5621 = vpop.trf.xlu0
        %v5622 = vpop.trf.xlu0
        %v5623 = vpop.trf.xlu0
        %v5624 = vpop.trf.xlu0
        %v5625 = vpop.trf.xlu0
        %v5626 = vpop.trf.xlu0
        %v5627 = vpop.trf.xlu0
        %v5628 = vpop.trf.xlu0
        %v5629 = vpop.trf.xlu0
        %v5630 = vpop.trf.xlu0
        %v5631 = vpop.trf.xlu0
        %v5632 = vpop.trf.xlu0
        %5633 = vst [vmem:[%s335] sm:$0xff] %v5521
        %5634 = vst [vmem:[%s335 + $0x8] sm:$0xff] %v5553
        %5635 = vst [vmem:[%s335 + $0x10] sm:$0xff] %v5585
        %5636 = vst [vmem:[%s335 + $0x18] sm:$0xff] %v5617
        %5637 = vst [vmem:[%s335 + $0x20] sm:$0xff] %v5522
        %5638 = vst [vmem:[%s335 + $0x28] sm:$0xff] %v5554
        %5639 = vst [vmem:[%s335 + $0x30] sm:$0xff] %v5586
        %5640 = vst [vmem:[%s335 + $0x38] sm:$0xff] %v5618
        %s5641 = sand.u32 %s149, 1
        %s5642 = scalar_lea.sflag [#allocation4], %s5641
        %s5643 = sand.u32 %s149, 1
        %s5644 = smul.addr %s5643, 2048
        %s5645 = scalar_lea.vmem [#allocation5], %s5644
        %s5646 = smul.u32 2, %s28
        %p5647 = scmp.lt.s32.totalorder %s27, 1
        %s5648 = scalar_select %p5647, %s27, 1
        %p5649 = scmp.lt.s32.totalorder %s5646, 7
        %s5650 = scalar_select %p5649, %s5646, 7
        %s5651 = smul.addr %s5650, 4
        %s5652 = smul.addr %s5648, 32
        %s5653 = sadd.s32 %s5651, %s5652
        %s5654 = smul.addr %s5653, 8
        %s5655 = scalar_lea.vmem %s5, %s5654
        // Predicated region
        $region41: #{forward.3} parent=35 // pred_check
          %p5656 = pneg %p159
        $region42: #{forward.3} parent=35 // pred_check_branch
          %5658 = sbr.rel (%p5656) target = $region44
        $region43: #{forward.3} parent=35 // pred_region
          %s5660 = ssub.s32 32768, 32768
          %5661 = vsyncadd %s5642, %s5660
          %s5662 = smul.addr %s28, 256
          %s5663 = smul.addr %s27, 1024
          %s5664 = sadd.s32 %s5662, %s5663
          %s5665 = smul.addr %s5664, 128
          %s5666 = scalar_lea.hbm %s4, %s5665
          %s5667 = sshll.u32 %s5645, 4
          %s5668 = int_to_ptr.vmem [resolvable:$true] %s5667
          %5673 = dma.vmem_to_hbm [thread:$0]  %s5668, 32768, %s5666, %s5642, 512, 512, 32
        $region44: #{forward.3} parent=35 // pred_fallthru
          _
        // Predicated region
        $region45: #{forward.3} parent=35 // pred_check
          %p5674 = pneg %p187
        $region46: #{forward.3} parent=35 // pred_check_branch
          %5676 = sbr.rel (%p5674) target = $region48
        $region47: #{forward.3} parent=35 // pred_region
          %s5677 = smul.u32 2, %s28
        $region48: #{forward.3} parent=35 // pred_fallthru
          _
      $region36: #{forward.3} parent=5 // pred_fallthru
        _
      %p5678 = scmp.le.s32.totalorder 2, %s18
      // Predicated region
      $region49: #{forward.3} parent=5 // pred_check
        %p5679 = pneg %p5678
      $region50: #{forward.3} parent=5 // pred_check_branch
        %5681 = sbr.rel (%p5679) target = $region52
      $region51: #{forward.3} parent=5 // pred_region
        %s5682 = ssub.s32 %s18, 2
        // Predicated region
        $region53: #{forward.3} parent=51 // pred_check
          %p5683 = pneg %p165
        $region54: #{forward.3} parent=51 // pred_check_branch
          %5685 = sbr.rel (%p5683) target = $region56
        $region55: #{forward.3} parent=51 // pred_region
          %s5686 = sand.u32 %s150, 1
          %s5687 = scalar_lea.sflag [#allocation4], %s5686
          %s5688 = sand.u32 %s150, 1
          %s5689 = smul.addr %s5688, 2048
          %s5690 = scalar_lea.vmem [#allocation5], %s5689
          %5691 = dma.done %s5687, 32768
        $region56: #{forward.3} parent=51 // pred_fallthru
          _
        // Predicated region
        $region57: #{forward.3} parent=51 // pred_check
          %p5692 = pneg %p193
        $region58: #{forward.3} parent=51 // pred_check_branch
          %5694 = sbr.rel (%p5692) target = $region60
        $region59: #{forward.3} parent=51 // pred_region
          %s5695 = smul.u32 2, %s30
          %p5696 = scmp.lt.s32.totalorder %s29, 1
          %s5697 = scalar_select %p5696, %s29, 1
          %p5698 = scmp.lt.s32.totalorder %s5695, 7
          %s5699 = scalar_select %p5698, %s5695, 7
          %s5700 = smul.addr %s5699, 4
          %s5701 = smul.addr %s5697, 32
          %s5702 = sadd.s32 %s5700, %s5701
          %s5703 = smul.addr %s5702, 8
          %s5704 = scalar_lea.vmem %s5, %s5703
        $region60: #{forward.3} parent=51 // pred_fallthru
          _
      $region52: #{forward.3} parent=5 // pred_fallthru
        _
    $region6: #{forward.3} parent=1 // loop_footer
      %s22 = sadd.s32 1, %s18
    $region7: #{forward.3} parent=1 // loop_footer_branch
      %17 = sbr.rel target = $region3
    $region8: #{forward.3} parent=1 // loop_exit
      _
    %5705 = vsyncpa [#allocation3], 1
    %s5706 = scalar_lea.sflag [#allocation3], 1
    %5707 = vsyncpa %s5706, 1
    %5708 = vsyncpa [#allocation4], 1
    %s5709 = scalar_lea.sflag [#allocation4], 1
    %5710 = vsyncpa %s5709, 1

</llo_original>
